<compile_context>
chip_gen: v6e
topology: v6e:2x2x1
jax: 0.10.0
libtpu: 0.0.40
codegen_flags: <defaults>
</compile_context>

<pallas_src>
import jax
import jax.numpy as jnp
from jax import lax
from jax.experimental import pallas as pl
from jax.experimental.pallas import tpu as pltpu


def _round_up(x, m):
    return ((x + m - 1) // m) * m


# ----------------------------- Pallas kernel ---------------------------------

def _make_outblock_kernel(C, Wp, L, G):
    """Kernel body for fixed (channels, padded width, padded+rounded length, guard lanes)."""
    # Flattened-index offset of conv tap (dh, dw) relative to the output pixel,
    # tap-major (dh, dw) to match the wrapper's (25*Cin) weight flattening.
    shifts = [(dh - 2) * Wp + (dw - 2) for dh in range(5) for dw in range(5)]

    def kernel(x_ref, mask_ref, w_ref, b_ref, o_ref, ext_ref, cols_ref):
        # x_ref   : (1, C, L)        f32   one zero-padded image, spatial flattened on lanes
        # mask_ref: (1, L)           f32   1.0 on the valid HxW interior, 0.0 elsewhere
        # w_ref   : (7, C, 25*C)     bf16  im2col conv weights (6 resblock convs + final)
        # b_ref   : (7, C, 1)        f32   conv biases (final conv padded to C rows)
        # o_ref   : (1, 1, L)        f32   final conv output (padded slab, lane-dense)
        # ext_ref : (C, L + 2*G)     bf16  guard-banded scratch realizing the tap shifts
        # cols_ref: (25*C, L)        bf16  persistent im2col column buffer

        # Zero ONLY the guard bands, every grid step (interior is overwritten by every
        # conv; doing this unconditionally keeps it correct under parallel TC sharding).
        zeros_g = jnp.zeros((C, G), jnp.bfloat16)
        ext_ref[:, :G] = zeros_g
        ext_ref[:, G + L:G + L + G] = zeros_g

        # Hoist the (1,L) -> (C,L) mask broadcast: JAX does not CSE broadcast_in_dim.
        maskC = jnp.broadcast_to(mask_ref[...], (C, L))        # (C, L) f32

        def conv5x5(v, k, apply_mask):
            """5x5 'same' conv of v:(C,L) f32 with conv #k -> (C,L) f32."""
            # Store the bf16 activation interior into the guard-banded scratch
            # (lane offset G and length L are 128-multiples: unmasked stores).
            ext_ref[:, G:G + L] = v.astype(jnp.bfloat16)
            # im2col: write the 25 shifted bf16 slices straight into the cols scratch.
            for t, s in enumerate(shifts):
                cols_ref[t * C:(t + 1) * C, :] = ext_ref[:, G + s:G + s + L]
            # One MXU matmul per conv: (C, 25*C) @ (25*C, L), bf16 in, f32 accumulate.
            out = jnp.dot(w_ref[k], cols_ref[...],
                          preferred_element_type=jnp.float32)
            out = out + b_ref[k]                               # bias, f32
            if apply_mask:
                # Re-zero the padding ring so the next conv reads genuine zeros there.
                out = out * maskC
            return out

        x = x_ref[0]                                           # (C, L) f32
        for i in range(3):                                     # 3 residual blocks
            h = conv5x5(x, 2 * i, True)
            h = jnp.maximum(h, 0.0)                            # ReLU (f32, VPU)
            h = conv5x5(h, 2 * i + 1, True)
            x = x + h                                          # residual add (f32)

        y = conv5x5(x, 6, False)                               # final conv; row 0 = Cout=1
        o_ref[0] = y[0:1, :]

    return kernel


# ------------------------------ JAX wrapper ----------------------------------

@jax.jit
def outblock_pallas(x_nchw, w_stack_hwio, b_stack, w_final_hwio, b_final):
    """OutBlock forward. x_nchw: (N, C, H, W) f32 -> (N, 1, H, W) f32."""
    N, C, H, W = x_nchw.shape
    Hp, Wp = H + 4, W + 4
    Lraw = Hp * Wp
    L = _round_up(Lraw, 128)             # lane-dense: full-vreg, unmasked stores
    G = _round_up(2 * Wp + 2, 128)       # guard lanes >= max |tap shift| (2*Wp + 2)

    # --- layout plumbing in the wrapper (cheap XLA ops) ---
    # Pad once, flatten padded spatial onto the lane axis, pad lanes up to L with zeros.
    xp = jnp.pad(x_nchw.astype(jnp.float32),
                 ((0, 0), (0, 0), (2, 2), (2, 2))).reshape(N, C, Lraw)
    xp = jnp.pad(xp, ((0, 0), (0, 0), (0, L - Lraw)))
    # Interior-validity mask shared by all images (zero on ring AND on the extra lanes).
    mask = jnp.pad(jnp.ones((H, W), jnp.float32), ((2, 2), (2, 2))).reshape(1, Lraw)
    mask = jnp.pad(mask, ((0, 0), (0, L - Lraw)))
    # im2col weights: HWIO (5,5,Cin,Cout) -> (Cout, 25*Cin), tap-major (dh, dw, ci).
    w_res = w_stack_hwio.reshape(6, 25 * C, C).transpose(0, 2, 1)        # (6, C, 25C)
    w_fin = w_final_hwio.reshape(25 * C, 1).T                            # (1, 25C)
    w_fin = jnp.concatenate(
        [w_fin, jnp.zeros((C - 1, 25 * C), w_fin.dtype)], axis=0)        # (C, 25C)
    w_all = jnp.concatenate([w_res, w_fin[None]], axis=0).astype(jnp.bfloat16)
    b_fin = jnp.concatenate([b_final.reshape(1),
                             jnp.zeros((C - 1,), b_final.dtype)])        # (C,)
    b_all = jnp.concatenate([b_stack, b_fin[None]], axis=0)              # (7, C)
    b_all = b_all.reshape(7, C, 1).astype(jnp.float32)

    kernel = _make_outblock_kernel(C, Wp, L, G)

    y = pl.pallas_call(
        kernel,
        grid=(N,),
        in_specs=[
            pl.BlockSpec((1, C, L), lambda n: (n, 0, 0)),        # one image per grid step
            pl.BlockSpec((1, L), lambda n: (0, 0)),              # interior mask (shared)
            pl.BlockSpec((7, C, 25 * C), lambda n: (0, 0, 0)),   # im2col weights (shared)
            pl.BlockSpec((7, C, 1), lambda n: (0, 0, 0)),        # biases (shared)
        ],
        out_specs=pl.BlockSpec((1, 1, L), lambda n: (n, 0, 0)),  # lane-dense output row
        out_shape=jax.ShapeDtypeStruct((N, 1, L), jnp.float32),
        scratch_shapes=[
            pltpu.VMEM((C, L + 2 * G), jnp.bfloat16),            # guard-banded ext (bf16)
            pltpu.VMEM((25 * C, L), jnp.bfloat16),               # persistent im2col cols
        ],
        compiler_params=pltpu.CompilerParams(
            dimension_semantics=("parallel",)),                  # batches across TCs (v7x)
    )(xp, mask, w_all, b_all)

    # Drop the extra lanes, un-flatten and crop the padding ring: (N, 1, H, W).
    return y[:, :, :Lraw].reshape(N, 1, Hp, Wp)[:, :, 2:2 + H, 2:2 + W]


# --------------------------- Pure-JAX reference ------------------------------

def outblock_reference(x_nchw, w_stack_hwio, b_stack, w_final_hwio, b_final,
                       matmul_dtype=jnp.float32):
    """lax.conv reference. matmul_dtype=bf16 mirrors the kernel's MXU numerics."""
    x = jnp.transpose(x_nchw, (0, 2, 3, 1)).astype(jnp.float32)

    def conv(v, w, b):
        y = lax.conv_general_dilated(
            v.astype(matmul_dtype), w.astype(matmul_dtype),
            window_strides=(1, 1), padding=((2, 2), (2, 2)),
            dimension_numbers=("NHWC", "HWIO", "NHWC"),
            preferred_element_type=jnp.float32,
            precision=lax.Precision.HIGHEST)
        return y + b[None, None, None, :]

    for i in range(3):
        h = conv(x, w_stack_hwio[2 * i], b_stack[2 * i])
        h = jnp.maximum(h, 0.0)
        h = conv(h, w_stack_hwio[2 * i + 1], b_stack[2 * i + 1])
        x = x + h
    y = conv(x, w_final_hwio, b_final)
    return jnp.transpose(y, (0, 3, 1, 2))


# ---------------------------------- main --------------------------------------

if __name__ == "__main__":
    N, C, H, W = 2, 8, 16, 16            # small shapes; in_channels = 8
    key = jax.random.PRNGKey(0)
    k_x, k_w, k_b, k_wf, k_bf = jax.random.split(key, 5)

    # Deterministic synthetic parameters (PyTorch-Conv2d-like uniform scale).
    bound = 1.0 / jnp.sqrt(jnp.float32(C * 5 * 5))
    x = jax.random.normal(k_x, (N, C, H, W), jnp.float32)
    # Resblock convs: 2 per block * 3 blocks, stored HWIO: (6, 5, 5, Cin, Cout).
    w_stack = jax.random.uniform(k_w, (6, 5, 5, C, C), jnp.float32, -bound, bound)
    b_stack = jax.random.uniform(k_b, (6, C), jnp.float32, -bound, bound)
    # Final conv: (5, 5, C, 1) HWIO.
    w_final = jax.random.uniform(k_wf, (5, 5, C, 1), jnp.float32, -bound, bound)
    b_final = jax.random.uniform(k_bf, (1,), jnp.float32, -bound, bound)

    out = jax.block_until_ready(outblock_pallas(x, w_stack, b_stack, w_final, b_final))
    assert out.shape == (N, 1, H, W), out.shape

    # Tight check vs. a reference using the kernel's matmul numerics (bf16 in, f32 acc):
    # verifies the layout / tap mapping / im2col math exactly.
    ref_bf16 = jax.block_until_ready(
        outblock_reference(x, w_stack, b_stack, w_final, b_final,
                           matmul_dtype=jnp.bfloat16))
    err_bf16 = float(jnp.max(jnp.abs(out - ref_bf16)))
    assert jnp.allclose(out, ref_bf16, rtol=1e-2, atol=1e-2), err_bf16

    # Looser check vs. the full-f32 reference: bf16 MXU inputs across 7 chained 5x5
    # convs accumulate ~1e-2-level deviation, hence the wider tolerance.
    ref_f32 = jax.block_until_ready(
        outblock_reference(x, w_stack, b_stack, w_final, b_final))
    err_f32 = float(jnp.max(jnp.abs(out - ref_f32)))
    assert jnp.allclose(out, ref_f32, rtol=1e-1, atol=1e-1), err_f32

    print("KERNEL_OK")
</pallas_src>

<mosaic_0001>
module attributes {stable_mosaic.version = 11 : i64} {
  func.func @kernel(%arg0: i32, %arg1: memref<1x8x512xf32, #tpu.memory_space<vmem>>, %arg2: memref<1x512xf32, #tpu.memory_space<vmem>>, %arg3: memref<7x8x200xbf16, #tpu.memory_space<vmem>>, %arg4: memref<7x8x1xf32, #tpu.memory_space<vmem>>, %arg5: memref<1x1x512xf32, #tpu.memory_space<vmem>>, %arg6: memref<8x768xbf16, #tpu.memory_space<vmem>>, %arg7: memref<200x512xbf16, #tpu.memory_space<vmem>>) attributes {dimension_semantics = [#tpu.dimension_semantics<parallel>], iteration_bounds = array<i64: 2>, scalar_prefetch = 0 : i64, scratch_operands = 2 : i64, tpu.core_type = #tpu.core_type<tc>, window_params = [{transform_indices = @transform_0, window_bounds = array<i64: 1, 8, 512>}, {pipeline_mode = #tpu.pipeline_mode<synchronous>, transform_indices = @transform_1, window_bounds = array<i64: 1, 512>}, {pipeline_mode = #tpu.pipeline_mode<synchronous>, transform_indices = @transform_2, window_bounds = array<i64: 7, 8, 200>}, {pipeline_mode = #tpu.pipeline_mode<synchronous>, transform_indices = @transform_3, window_bounds = array<i64: 7, 8, 1>}, {transform_indices = @transform_4, window_bounds = array<i64: 1, 1, 512>}]} {
    %cst = arith.constant 0.000000e+00 : bf16
    %0 = vector.broadcast %cst : bf16 to vector<8x128xbf16>
    %c0 = arith.constant 0 : index
    %c0_0 = arith.constant 0 : index
    %1 = vector.load %arg6[%c0, %c0_0] : memref<8x768xbf16, #tpu.memory_space<vmem>>, vector<8x128xbf16>
    tpu.vector_store %arg6[%c0, %c0_0], %0 {strides = array<i32>} : memref<8x768xbf16, #tpu.memory_space<vmem>>, vector<8x128xbf16>,
    %c0_1 = arith.constant 0 : index
    %c640 = arith.constant 640 : index
    %2 = vector.load %arg6[%c0_1, %c640] : memref<8x768xbf16, #tpu.memory_space<vmem>>, vector<8x128xbf16>
    tpu.vector_store %arg6[%c0_1, %c640], %0 {strides = array<i32>} : memref<8x768xbf16, #tpu.memory_space<vmem>>, vector<8x128xbf16>,
    %c0_2 = arith.constant 0 : index
    %c0_3 = arith.constant 0 : index
    %3 = vector.load %arg2[%c0_2, %c0_3] : memref<1x512xf32, #tpu.memory_space<vmem>>, vector<1x512xf32>
    %4 = vector.shape_cast %3 : vector<1x512xf32> to vector<1x512xf32>
    %5 = vector.broadcast %4 : vector<1x512xf32> to vector<8x512xf32>
    %c0_4 = arith.constant 0 : index
    %c0_5 = arith.constant 0 : index
    %c0_6 = arith.constant 0 : index
    %6 = vector.load %arg1[%c0_4, %c0_5, %c0_6] : memref<1x8x512xf32, #tpu.memory_space<vmem>>, vector<1x8x512xf32>
    %7 = vector.shape_cast %6 : vector<1x8x512xf32> to vector<8x512xf32>
    %8 = arith.truncf %7 : vector<8x512xf32> to vector<8x512xbf16>
    %c0_7 = arith.constant 0 : index
    %c128 = arith.constant 128 : index
    %9 = vector.load %arg6[%c0_7, %c128] : memref<8x768xbf16, #tpu.memory_space<vmem>>, vector<8x512xbf16>
    tpu.vector_store %arg6[%c0_7, %c128], %8 {strides = array<i32>} : memref<8x768xbf16, #tpu.memory_space<vmem>>, vector<8x512xbf16>,
    %c0_8 = arith.constant 0 : index
    %c86 = arith.constant 86 : index
    %10 = vector.load %arg6[%c0_8, %c86] : memref<8x768xbf16, #tpu.memory_space<vmem>>, vector<8x512xbf16>
    %c0_9 = arith.constant 0 : index
    %c0_10 = arith.constant 0 : index
    %11 = vector.load %arg7[%c0_9, %c0_10] : memref<200x512xbf16, #tpu.memory_space<vmem>>, vector<8x512xbf16>
    tpu.vector_store %arg7[%c0_9, %c0_10], %10 {strides = array<i32>} : memref<200x512xbf16, #tpu.memory_space<vmem>>, vector<8x512xbf16>,
    %c0_11 = arith.constant 0 : index
    %c87 = arith.constant 87 : index
    %12 = vector.load %arg6[%c0_11, %c87] : memref<8x768xbf16, #tpu.memory_space<vmem>>, vector<8x512xbf16>
    %c8 = arith.constant 8 : index
    %c0_12 = arith.constant 0 : index
    %13 = vector.load %arg7[%c8, %c0_12] : memref<200x512xbf16, #tpu.memory_space<vmem>>, vector<8x512xbf16>
    tpu.vector_store %arg7[%c8, %c0_12], %12 {strides = array<i32>} : memref<200x512xbf16, #tpu.memory_space<vmem>>, vector<8x512xbf16>,
    %c0_13 = arith.constant 0 : index
    %c88 = arith.constant 88 : index
    %14 = vector.load %arg6[%c0_13, %c88] : memref<8x768xbf16, #tpu.memory_space<vmem>>, vector<8x512xbf16>
    %c16 = arith.constant 16 : index
    %c0_14 = arith.constant 0 : index
    %15 = vector.load %arg7[%c16, %c0_14] : memref<200x512xbf16, #tpu.memory_space<vmem>>, vector<8x512xbf16>
    tpu.vector_store %arg7[%c16, %c0_14], %14 {strides = array<i32>} : memref<200x512xbf16, #tpu.memory_space<vmem>>, vector<8x512xbf16>,
    %c0_15 = arith.constant 0 : index
    %c89 = arith.constant 89 : index
    %16 = vector.load %arg6[%c0_15, %c89] : memref<8x768xbf16, #tpu.memory_space<vmem>>, vector<8x512xbf16>
    %c24 = arith.constant 24 : index
    %c0_16 = arith.constant 0 : index
    %17 = vector.load %arg7[%c24, %c0_16] : memref<200x512xbf16, #tpu.memory_space<vmem>>, vector<8x512xbf16>
    tpu.vector_store %arg7[%c24, %c0_16], %16 {strides = array<i32>} : memref<200x512xbf16, #tpu.memory_space<vmem>>, vector<8x512xbf16>,
    %c0_17 = arith.constant 0 : index
    %c90 = arith.constant 90 : index
    %18 = vector.load %arg6[%c0_17, %c90] : memref<8x768xbf16, #tpu.memory_space<vmem>>, vector<8x512xbf16>
    %c32 = arith.constant 32 : index
    %c0_18 = arith.constant 0 : index
    %19 = vector.load %arg7[%c32, %c0_18] : memref<200x512xbf16, #tpu.memory_space<vmem>>, vector<8x512xbf16>
    tpu.vector_store %arg7[%c32, %c0_18], %18 {strides = array<i32>} : memref<200x512xbf16, #tpu.memory_space<vmem>>, vector<8x512xbf16>,
    %c0_19 = arith.constant 0 : index
    %c106 = arith.constant 106 : index
    %20 = vector.load %arg6[%c0_19, %c106] : memref<8x768xbf16, #tpu.memory_space<vmem>>, vector<8x512xbf16>
    %c40 = arith.constant 40 : index
    %c0_20 = arith.constant 0 : index
    %21 = vector.load %arg7[%c40, %c0_20] : memref<200x512xbf16, #tpu.memory_space<vmem>>, vector<8x512xbf16>
    tpu.vector_store %arg7[%c40, %c0_20], %20 {strides = array<i32>} : memref<200x512xbf16, #tpu.memory_space<vmem>>, vector<8x512xbf16>,
    %c0_21 = arith.constant 0 : index
    %c107 = arith.constant 107 : index
    %22 = vector.load %arg6[%c0_21, %c107] : memref<8x768xbf16, #tpu.memory_space<vmem>>, vector<8x512xbf16>
    %c48 = arith.constant 48 : index
    %c0_22 = arith.constant 0 : index
    %23 = vector.load %arg7[%c48, %c0_22] : memref<200x512xbf16, #tpu.memory_space<vmem>>, vector<8x512xbf16>
    tpu.vector_store %arg7[%c48, %c0_22], %22 {strides = array<i32>} : memref<200x512xbf16, #tpu.memory_space<vmem>>, vector<8x512xbf16>,
    %c0_23 = arith.constant 0 : index
    %c108 = arith.constant 108 : index
    %24 = vector.load %arg6[%c0_23, %c108] : memref<8x768xbf16, #tpu.memory_space<vmem>>, vector<8x512xbf16>
    %c56 = arith.constant 56 : index
    %c0_24 = arith.constant 0 : index
    %25 = vector.load %arg7[%c56, %c0_24] : memref<200x512xbf16, #tpu.memory_space<vmem>>, vector<8x512xbf16>
    tpu.vector_store %arg7[%c56, %c0_24], %24 {strides = array<i32>} : memref<200x512xbf16, #tpu.memory_space<vmem>>, vector<8x512xbf16>,
    %c0_25 = arith.constant 0 : index
    %c109 = arith.constant 109 : index
    %26 = vector.load %arg6[%c0_25, %c109] : memref<8x768xbf16, #tpu.memory_space<vmem>>, vector<8x512xbf16>
    %c64 = arith.constant 64 : index
    %c0_26 = arith.constant 0 : index
    %27 = vector.load %arg7[%c64, %c0_26] : memref<200x512xbf16, #tpu.memory_space<vmem>>, vector<8x512xbf16>
    tpu.vector_store %arg7[%c64, %c0_26], %26 {strides = array<i32>} : memref<200x512xbf16, #tpu.memory_space<vmem>>, vector<8x512xbf16>,
    %c0_27 = arith.constant 0 : index
    %c110 = arith.constant 110 : index
    %28 = vector.load %arg6[%c0_27, %c110] : memref<8x768xbf16, #tpu.memory_space<vmem>>, vector<8x512xbf16>
    %c72 = arith.constant 72 : index
    %c0_28 = arith.constant 0 : index
    %29 = vector.load %arg7[%c72, %c0_28] : memref<200x512xbf16, #tpu.memory_space<vmem>>, vector<8x512xbf16>
    tpu.vector_store %arg7[%c72, %c0_28], %28 {strides = array<i32>} : memref<200x512xbf16, #tpu.memory_space<vmem>>, vector<8x512xbf16>,
    %c0_29 = arith.constant 0 : index
    %c126 = arith.constant 126 : index
    %30 = vector.load %arg6[%c0_29, %c126] : memref<8x768xbf16, #tpu.memory_space<vmem>>, vector<8x512xbf16>
    %c80 = arith.constant 80 : index
    %c0_30 = arith.constant 0 : index
    %31 = vector.load %arg7[%c80, %c0_30] : memref<200x512xbf16, #tpu.memory_space<vmem>>, vector<8x512xbf16>
    tpu.vector_store %arg7[%c80, %c0_30], %30 {strides = array<i32>} : memref<200x512xbf16, #tpu.memory_space<vmem>>, vector<8x512xbf16>,
    %c0_31 = arith.constant 0 : index
    %c127 = arith.constant 127 : index
    %32 = vector.load %arg6[%c0_31, %c127] : memref<8x768xbf16, #tpu.memory_space<vmem>>, vector<8x512xbf16>
    %c88_32 = arith.constant 88 : index
    %c0_33 = arith.constant 0 : index
    %33 = vector.load %arg7[%c88_32, %c0_33] : memref<200x512xbf16, #tpu.memory_space<vmem>>, vector<8x512xbf16>
    tpu.vector_store %arg7[%c88_32, %c0_33], %32 {strides = array<i32>} : memref<200x512xbf16, #tpu.memory_space<vmem>>, vector<8x512xbf16>,
    %c0_34 = arith.constant 0 : index
    %c128_35 = arith.constant 128 : index
    %34 = vector.load %arg6[%c0_34, %c128_35] : memref<8x768xbf16, #tpu.memory_space<vmem>>, vector<8x512xbf16>
    %c96 = arith.constant 96 : index
    %c0_36 = arith.constant 0 : index
    %35 = vector.load %arg7[%c96, %c0_36] : memref<200x512xbf16, #tpu.memory_space<vmem>>, vector<8x512xbf16>
    tpu.vector_store %arg7[%c96, %c0_36], %34 {strides = array<i32>} : memref<200x512xbf16, #tpu.memory_space<vmem>>, vector<8x512xbf16>,
    %c0_37 = arith.constant 0 : index
    %c129 = arith.constant 129 : index
    %36 = vector.load %arg6[%c0_37, %c129] : memref<8x768xbf16, #tpu.memory_space<vmem>>, vector<8x512xbf16>
    %c104 = arith.constant 104 : index
    %c0_38 = arith.constant 0 : index
    %37 = vector.load %arg7[%c104, %c0_38] : memref<200x512xbf16, #tpu.memory_space<vmem>>, vector<8x512xbf16>
    tpu.vector_store %arg7[%c104, %c0_38], %36 {strides = array<i32>} : memref<200x512xbf16, #tpu.memory_space<vmem>>, vector<8x512xbf16>,
    %c0_39 = arith.constant 0 : index
    %c130 = arith.constant 130 : index
    %38 = vector.load %arg6[%c0_39, %c130] : memref<8x768xbf16, #tpu.memory_space<vmem>>, vector<8x512xbf16>
    %c112 = arith.constant 112 : index
    %c0_40 = arith.constant 0 : index
    %39 = vector.load %arg7[%c112, %c0_40] : memref<200x512xbf16, #tpu.memory_space<vmem>>, vector<8x512xbf16>
    tpu.vector_store %arg7[%c112, %c0_40], %38 {strides = array<i32>} : memref<200x512xbf16, #tpu.memory_space<vmem>>, vector<8x512xbf16>,
    %c0_41 = arith.constant 0 : index
    %c146 = arith.constant 146 : index
    %40 = vector.load %arg6[%c0_41, %c146] : memref<8x768xbf16, #tpu.memory_space<vmem>>, vector<8x512xbf16>
    %c120 = arith.constant 120 : index
    %c0_42 = arith.constant 0 : index
    %41 = vector.load %arg7[%c120, %c0_42] : memref<200x512xbf16, #tpu.memory_space<vmem>>, vector<8x512xbf16>
    tpu.vector_store %arg7[%c120, %c0_42], %40 {strides = array<i32>} : memref<200x512xbf16, #tpu.memory_space<vmem>>, vector<8x512xbf16>,
    %c0_43 = arith.constant 0 : index
    %c147 = arith.constant 147 : index
    %42 = vector.load %arg6[%c0_43, %c147] : memref<8x768xbf16, #tpu.memory_space<vmem>>, vector<8x512xbf16>
    %c128_44 = arith.constant 128 : index
    %c0_45 = arith.constant 0 : index
    %43 = vector.load %arg7[%c128_44, %c0_45] : memref<200x512xbf16, #tpu.memory_space<vmem>>, vector<8x512xbf16>
    tpu.vector_store %arg7[%c128_44, %c0_45], %42 {strides = array<i32>} : memref<200x512xbf16, #tpu.memory_space<vmem>>, vector<8x512xbf16>,
    %c0_46 = arith.constant 0 : index
    %c148 = arith.constant 148 : index
    %44 = vector.load %arg6[%c0_46, %c148] : memref<8x768xbf16, #tpu.memory_space<vmem>>, vector<8x512xbf16>
    %c136 = arith.constant 136 : index
    %c0_47 = arith.constant 0 : index
    %45 = vector.load %arg7[%c136, %c0_47] : memref<200x512xbf16, #tpu.memory_space<vmem>>, vector<8x512xbf16>
    tpu.vector_store %arg7[%c136, %c0_47], %44 {strides = array<i32>} : memref<200x512xbf16, #tpu.memory_space<vmem>>, vector<8x512xbf16>,
    %c0_48 = arith.constant 0 : index
    %c149 = arith.constant 149 : index
    %46 = vector.load %arg6[%c0_48, %c149] : memref<8x768xbf16, #tpu.memory_space<vmem>>, vector<8x512xbf16>
    %c144 = arith.constant 144 : index
    %c0_49 = arith.constant 0 : index
    %47 = vector.load %arg7[%c144, %c0_49] : memref<200x512xbf16, #tpu.memory_space<vmem>>, vector<8x512xbf16>
    tpu.vector_store %arg7[%c144, %c0_49], %46 {strides = array<i32>} : memref<200x512xbf16, #tpu.memory_space<vmem>>, vector<8x512xbf16>,
    %c0_50 = arith.constant 0 : index
    %c150 = arith.constant 150 : index
    %48 = vector.load %arg6[%c0_50, %c150] : memref<8x768xbf16, #tpu.memory_space<vmem>>, vector<8x512xbf16>
    %c152 = arith.constant 152 : index
    %c0_51 = arith.constant 0 : index
    %49 = vector.load %arg7[%c152, %c0_51] : memref<200x512xbf16, #tpu.memory_space<vmem>>, vector<8x512xbf16>
    tpu.vector_store %arg7[%c152, %c0_51], %48 {strides = array<i32>} : memref<200x512xbf16, #tpu.memory_space<vmem>>, vector<8x512xbf16>,
    %c0_52 = arith.constant 0 : index
    %c166 = arith.constant 166 : index
    %50 = vector.load %arg6[%c0_52, %c166] : memref<8x768xbf16, #tpu.memory_space<vmem>>, vector<8x512xbf16>
    %c160 = arith.constant 160 : index
    %c0_53 = arith.constant 0 : index
    %51 = vector.load %arg7[%c160, %c0_53] : memref<200x512xbf16, #tpu.memory_space<vmem>>, vector<8x512xbf16>
    tpu.vector_store %arg7[%c160, %c0_53], %50 {strides = array<i32>} : memref<200x512xbf16, #tpu.memory_space<vmem>>, vector<8x512xbf16>,
    %c0_54 = arith.constant 0 : index
    %c167 = arith.constant 167 : index
    %52 = vector.load %arg6[%c0_54, %c167] : memref<8x768xbf16, #tpu.memory_space<vmem>>, vector<8x512xbf16>
    %c168 = arith.constant 168 : index
    %c0_55 = arith.constant 0 : index
    %53 = vector.load %arg7[%c168, %c0_55] : memref<200x512xbf16, #tpu.memory_space<vmem>>, vector<8x512xbf16>
    tpu.vector_store %arg7[%c168, %c0_55], %52 {strides = array<i32>} : memref<200x512xbf16, #tpu.memory_space<vmem>>, vector<8x512xbf16>,
    %c0_56 = arith.constant 0 : index
    %c168_57 = arith.constant 168 : index
    %54 = vector.load %arg6[%c0_56, %c168_57] : memref<8x768xbf16, #tpu.memory_space<vmem>>, vector<8x512xbf16>
    %c176 = arith.constant 176 : index
    %c0_58 = arith.constant 0 : index
    %55 = vector.load %arg7[%c176, %c0_58] : memref<200x512xbf16, #tpu.memory_space<vmem>>, vector<8x512xbf16>
    tpu.vector_store %arg7[%c176, %c0_58], %54 {strides = array<i32>} : memref<200x512xbf16, #tpu.memory_space<vmem>>, vector<8x512xbf16>,
    %c0_59 = arith.constant 0 : index
    %c169 = arith.constant 169 : index
    %56 = vector.load %arg6[%c0_59, %c169] : memref<8x768xbf16, #tpu.memory_space<vmem>>, vector<8x512xbf16>
    %c184 = arith.constant 184 : index
    %c0_60 = arith.constant 0 : index
    %57 = vector.load %arg7[%c184, %c0_60] : memref<200x512xbf16, #tpu.memory_space<vmem>>, vector<8x512xbf16>
    tpu.vector_store %arg7[%c184, %c0_60], %56 {strides = array<i32>} : memref<200x512xbf16, #tpu.memory_space<vmem>>, vector<8x512xbf16>,
    %c0_61 = arith.constant 0 : index
    %c170 = arith.constant 170 : index
    %58 = vector.load %arg6[%c0_61, %c170] : memref<8x768xbf16, #tpu.memory_space<vmem>>, vector<8x512xbf16>
    %c192 = arith.constant 192 : index
    %c0_62 = arith.constant 0 : index
    %59 = vector.load %arg7[%c192, %c0_62] : memref<200x512xbf16, #tpu.memory_space<vmem>>, vector<8x512xbf16>
    tpu.vector_store %arg7[%c192, %c0_62], %58 {strides = array<i32>} : memref<200x512xbf16, #tpu.memory_space<vmem>>, vector<8x512xbf16>,
    %c0_63 = arith.constant 0 : index
    %c0_64 = arith.constant 0 : index
    %c0_65 = arith.constant 0 : index
    %60 = vector.load %arg3[%c0_63, %c0_64, %c0_65] : memref<7x8x200xbf16, #tpu.memory_space<vmem>>, vector<1x8x200xbf16>
    %61 = vector.shape_cast %60 : vector<1x8x200xbf16> to vector<8x200xbf16>
    %c0_66 = arith.constant 0 : index
    %c0_67 = arith.constant 0 : index
    %62 = vector.load %arg7[%c0_66, %c0_67] : memref<200x512xbf16, #tpu.memory_space<vmem>>, vector<200x512xbf16>
    %cst_68 = arith.constant dense<0.000000e+00> : vector<8x512xf32>
    %63 = tpu.matmul %61, %62, %cst_68 {dimension_numbers = #tpu.dot_dimension_numbers<[1], [0], [0], [1], [0, 0, 1, 1], [], []>} : vector<8x200xbf16>, vector<200x512xbf16>, vector<8x512xf32> -> vector<8x512xf32>
    %c0_69 = arith.constant 0 : index
    %c0_70 = arith.constant 0 : index
    %c0_71 = arith.constant 0 : index
    %64 = vector.load %arg4[%c0_69, %c0_70, %c0_71] : memref<7x8x1xf32, #tpu.memory_space<vmem>>, vector<1x8x1xf32>
    %65 = vector.shape_cast %64 : vector<1x8x1xf32> to vector<8x1xf32>
    %66 = vector.broadcast %65 : vector<8x1xf32> to vector<8x512xf32>
    %67 = arith.addf %63, %66 : vector<8x512xf32>
    %68 = arith.mulf %67, %5 : vector<8x512xf32>
    %cst_72 = arith.constant 0.000000e+00 : f32
    %69 = vector.broadcast %cst_72 : f32 to vector<8x512xf32>
    %70 = arith.maximumf %68, %69 : vector<8x512xf32>
    %71 = arith.truncf %70 : vector<8x512xf32> to vector<8x512xbf16>
    %c0_73 = arith.constant 0 : index
    %c128_74 = arith.constant 128 : index
    %72 = vector.load %arg6[%c0_73, %c128_74] : memref<8x768xbf16, #tpu.memory_space<vmem>>, vector<8x512xbf16>
    tpu.vector_store %arg6[%c0_73, %c128_74], %71 {strides = array<i32>} : memref<8x768xbf16, #tpu.memory_space<vmem>>, vector<8x512xbf16>,
    %c0_75 = arith.constant 0 : index
    %c86_76 = arith.constant 86 : index
    %73 = vector.load %arg6[%c0_75, %c86_76] : memref<8x768xbf16, #tpu.memory_space<vmem>>, vector<8x512xbf16>
    %c0_77 = arith.constant 0 : index
    %c0_78 = arith.constant 0 : index
    %74 = vector.load %arg7[%c0_77, %c0_78] : memref<200x512xbf16, #tpu.memory_space<vmem>>, vector<8x512xbf16>
    tpu.vector_store %arg7[%c0_77, %c0_78], %73 {strides = array<i32>} : memref<200x512xbf16, #tpu.memory_space<vmem>>, vector<8x512xbf16>,
    %c0_79 = arith.constant 0 : index
    %c87_80 = arith.constant 87 : index
    %75 = vector.load %arg6[%c0_79, %c87_80] : memref<8x768xbf16, #tpu.memory_space<vmem>>, vector<8x512xbf16>
    %c8_81 = arith.constant 8 : index
    %c0_82 = arith.constant 0 : index
    %76 = vector.load %arg7[%c8_81, %c0_82] : memref<200x512xbf16, #tpu.memory_space<vmem>>, vector<8x512xbf16>
    tpu.vector_store %arg7[%c8_81, %c0_82], %75 {strides = array<i32>} : memref<200x512xbf16, #tpu.memory_space<vmem>>, vector<8x512xbf16>,
    %c0_83 = arith.constant 0 : index
    %c88_84 = arith.constant 88 : index
    %77 = vector.load %arg6[%c0_83, %c88_84] : memref<8x768xbf16, #tpu.memory_space<vmem>>, vector<8x512xbf16>
    %c16_85 = arith.constant 16 : index
    %c0_86 = arith.constant 0 : index
    %78 = vector.load %arg7[%c16_85, %c0_86] : memref<200x512xbf16, #tpu.memory_space<vmem>>, vector<8x512xbf16>
    tpu.vector_store %arg7[%c16_85, %c0_86], %77 {strides = array<i32>} : memref<200x512xbf16, #tpu.memory_space<vmem>>, vector<8x512xbf16>,
    %c0_87 = arith.constant 0 : index
    %c89_88 = arith.constant 89 : index
    %79 = vector.load %arg6[%c0_87, %c89_88] : memref<8x768xbf16, #tpu.memory_space<vmem>>, vector<8x512xbf16>
    %c24_89 = arith.constant 24 : index
    %c0_90 = arith.constant 0 : index
    %80 = vector.load %arg7[%c24_89, %c0_90] : memref<200x512xbf16, #tpu.memory_space<vmem>>, vector<8x512xbf16>
    tpu.vector_store %arg7[%c24_89, %c0_90], %79 {strides = array<i32>} : memref<200x512xbf16, #tpu.memory_space<vmem>>, vector<8x512xbf16>,
    %c0_91 = arith.constant 0 : index
    %c90_92 = arith.constant 90 : index
    %81 = vector.load %arg6[%c0_91, %c90_92] : memref<8x768xbf16, #tpu.memory_space<vmem>>, vector<8x512xbf16>
    %c32_93 = arith.constant 32 : index
    %c0_94 = arith.constant 0 : index
    %82 = vector.load %arg7[%c32_93, %c0_94] : memref<200x512xbf16, #tpu.memory_space<vmem>>, vector<8x512xbf16>
    tpu.vector_store %arg7[%c32_93, %c0_94], %81 {strides = array<i32>} : memref<200x512xbf16, #tpu.memory_space<vmem>>, vector<8x512xbf16>,
    %c0_95 = arith.constant 0 : index
    %c106_96 = arith.constant 106 : index
    %83 = vector.load %arg6[%c0_95, %c106_96] : memref<8x768xbf16, #tpu.memory_space<vmem>>, vector<8x512xbf16>
    %c40_97 = arith.constant 40 : index
    %c0_98 = arith.constant 0 : index
    %84 = vector.load %arg7[%c40_97, %c0_98] : memref<200x512xbf16, #tpu.memory_space<vmem>>, vector<8x512xbf16>
    tpu.vector_store %arg7[%c40_97, %c0_98], %83 {strides = array<i32>} : memref<200x512xbf16, #tpu.memory_space<vmem>>, vector<8x512xbf16>,
    %c0_99 = arith.constant 0 : index
    %c107_100 = arith.constant 107 : index
    %85 = vector.load %arg6[%c0_99, %c107_100] : memref<8x768xbf16, #tpu.memory_space<vmem>>, vector<8x512xbf16>
    %c48_101 = arith.constant 48 : index
    %c0_102 = arith.constant 0 : index
    %86 = vector.load %arg7[%c48_101, %c0_102] : memref<200x512xbf16, #tpu.memory_space<vmem>>, vector<8x512xbf16>
    tpu.vector_store %arg7[%c48_101, %c0_102], %85 {strides = array<i32>} : memref<200x512xbf16, #tpu.memory_space<vmem>>, vector<8x512xbf16>,
    %c0_103 = arith.constant 0 : index
    %c108_104 = arith.constant 108 : index
    %87 = vector.load %arg6[%c0_103, %c108_104] : memref<8x768xbf16, #tpu.memory_space<vmem>>, vector<8x512xbf16>
    %c56_105 = arith.constant 56 : index
    %c0_106 = arith.constant 0 : index
    %88 = vector.load %arg7[%c56_105, %c0_106] : memref<200x512xbf16, #tpu.memory_space<vmem>>, vector<8x512xbf16>
    tpu.vector_store %arg7[%c56_105, %c0_106], %87 {strides = array<i32>} : memref<200x512xbf16, #tpu.memory_space<vmem>>, vector<8x512xbf16>,
    %c0_107 = arith.constant 0 : index
    %c109_108 = arith.constant 109 : index
    %89 = vector.load %arg6[%c0_107, %c109_108] : memref<8x768xbf16, #tpu.memory_space<vmem>>, vector<8x512xbf16>
    %c64_109 = arith.constant 64 : index
    %c0_110 = arith.constant 0 : index
    %90 = vector.load %arg7[%c64_109, %c0_110] : memref<200x512xbf16, #tpu.memory_space<vmem>>, vector<8x512xbf16>
    tpu.vector_store %arg7[%c64_109, %c0_110], %89 {strides = array<i32>} : memref<200x512xbf16, #tpu.memory_space<vmem>>, vector<8x512xbf16>,
    %c0_111 = arith.constant 0 : index
    %c110_112 = arith.constant 110 : index
    %91 = vector.load %arg6[%c0_111, %c110_112] : memref<8x768xbf16, #tpu.memory_space<vmem>>, vector<8x512xbf16>
    %c72_113 = arith.constant 72 : index
    %c0_114 = arith.constant 0 : index
    %92 = vector.load %arg7[%c72_113, %c0_114] : memref<200x512xbf16, #tpu.memory_space<vmem>>, vector<8x512xbf16>
    tpu.vector_store %arg7[%c72_113, %c0_114], %91 {strides = array<i32>} : memref<200x512xbf16, #tpu.memory_space<vmem>>, vector<8x512xbf16>,
    %c0_115 = arith.constant 0 : index
    %c126_116 = arith.constant 126 : index
    %93 = vector.load %arg6[%c0_115, %c126_116] : memref<8x768xbf16, #tpu.memory_space<vmem>>, vector<8x512xbf16>
    %c80_117 = arith.constant 80 : index
    %c0_118 = arith.constant 0 : index
    %94 = vector.load %arg7[%c80_117, %c0_118] : memref<200x512xbf16, #tpu.memory_space<vmem>>, vector<8x512xbf16>
    tpu.vector_store %arg7[%c80_117, %c0_118], %93 {strides = array<i32>} : memref<200x512xbf16, #tpu.memory_space<vmem>>, vector<8x512xbf16>,
    %c0_119 = arith.constant 0 : index
    %c127_120 = arith.constant 127 : index
    %95 = vector.load %arg6[%c0_119, %c127_120] : memref<8x768xbf16, #tpu.memory_space<vmem>>, vector<8x512xbf16>
    %c88_121 = arith.constant 88 : index
    %c0_122 = arith.constant 0 : index
    %96 = vector.load %arg7[%c88_121, %c0_122] : memref<200x512xbf16, #tpu.memory_space<vmem>>, vector<8x512xbf16>
    tpu.vector_store %arg7[%c88_121, %c0_122], %95 {strides = array<i32>} : memref<200x512xbf16, #tpu.memory_space<vmem>>, vector<8x512xbf16>,
    %c0_123 = arith.constant 0 : index
    %c128_124 = arith.constant 128 : index
    %97 = vector.load %arg6[%c0_123, %c128_124] : memref<8x768xbf16, #tpu.memory_space<vmem>>, vector<8x512xbf16>
    %c96_125 = arith.constant 96 : index
    %c0_126 = arith.constant 0 : index
    %98 = vector.load %arg7[%c96_125, %c0_126] : memref<200x512xbf16, #tpu.memory_space<vmem>>, vector<8x512xbf16>
    tpu.vector_store %arg7[%c96_125, %c0_126], %97 {strides = array<i32>} : memref<200x512xbf16, #tpu.memory_space<vmem>>, vector<8x512xbf16>,
    %c0_127 = arith.constant 0 : index
    %c129_128 = arith.constant 129 : index
    %99 = vector.load %arg6[%c0_127, %c129_128] : memref<8x768xbf16, #tpu.memory_space<vmem>>, vector<8x512xbf16>
    %c104_129 = arith.constant 104 : index
    %c0_130 = arith.constant 0 : index
    %100 = vector.load %arg7[%c104_129, %c0_130] : memref<200x512xbf16, #tpu.memory_space<vmem>>, vector<8x512xbf16>
    tpu.vector_store %arg7[%c104_129, %c0_130], %99 {strides = array<i32>} : memref<200x512xbf16, #tpu.memory_space<vmem>>, vector<8x512xbf16>,
    %c0_131 = arith.constant 0 : index
    %c130_132 = arith.constant 130 : index
    %101 = vector.load %arg6[%c0_131, %c130_132] : memref<8x768xbf16, #tpu.memory_space<vmem>>, vector<8x512xbf16>
    %c112_133 = arith.constant 112 : index
    %c0_134 = arith.constant 0 : index
    %102 = vector.load %arg7[%c112_133, %c0_134] : memref<200x512xbf16, #tpu.memory_space<vmem>>, vector<8x512xbf16>
    tpu.vector_store %arg7[%c112_133, %c0_134], %101 {strides = array<i32>} : memref<200x512xbf16, #tpu.memory_space<vmem>>, vector<8x512xbf16>,
    %c0_135 = arith.constant 0 : index
    %c146_136 = arith.constant 146 : index
    %103 = vector.load %arg6[%c0_135, %c146_136] : memref<8x768xbf16, #tpu.memory_space<vmem>>, vector<8x512xbf16>
    %c120_137 = arith.constant 120 : index
    %c0_138 = arith.constant 0 : index
    %104 = vector.load %arg7[%c120_137, %c0_138] : memref<200x512xbf16, #tpu.memory_space<vmem>>, vector<8x512xbf16>
    tpu.vector_store %arg7[%c120_137, %c0_138], %103 {strides = array<i32>} : memref<200x512xbf16, #tpu.memory_space<vmem>>, vector<8x512xbf16>,
    %c0_139 = arith.constant 0 : index
    %c147_140 = arith.constant 147 : index
    %105 = vector.load %arg6[%c0_139, %c147_140] : memref<8x768xbf16, #tpu.memory_space<vmem>>, vector<8x512xbf16>
    %c128_141 = arith.constant 128 : index
    %c0_142 = arith.constant 0 : index
    %106 = vector.load %arg7[%c128_141, %c0_142] : memref<200x512xbf16, #tpu.memory_space<vmem>>, vector<8x512xbf16>
    tpu.vector_store %arg7[%c128_141, %c0_142], %105 {strides = array<i32>} : memref<200x512xbf16, #tpu.memory_space<vmem>>, vector<8x512xbf16>,
    %c0_143 = arith.constant 0 : index
    %c148_144 = arith.constant 148 : index
    %107 = vector.load %arg6[%c0_143, %c148_144] : memref<8x768xbf16, #tpu.memory_space<vmem>>, vector<8x512xbf16>
    %c136_145 = arith.constant 136 : index
    %c0_146 = arith.constant 0 : index
    %108 = vector.load %arg7[%c136_145, %c0_146] : memref<200x512xbf16, #tpu.memory_space<vmem>>, vector<8x512xbf16>
    tpu.vector_store %arg7[%c136_145, %c0_146], %107 {strides = array<i32>} : memref<200x512xbf16, #tpu.memory_space<vmem>>, vector<8x512xbf16>,
    %c0_147 = arith.constant 0 : index
    %c149_148 = arith.constant 149 : index
    %109 = vector.load %arg6[%c0_147, %c149_148] : memref<8x768xbf16, #tpu.memory_space<vmem>>, vector<8x512xbf16>
    %c144_149 = arith.constant 144 : index
    %c0_150 = arith.constant 0 : index
    %110 = vector.load %arg7[%c144_149, %c0_150] : memref<200x512xbf16, #tpu.memory_space<vmem>>, vector<8x512xbf16>
    tpu.vector_store %arg7[%c144_149, %c0_150], %109 {strides = array<i32>} : memref<200x512xbf16, #tpu.memory_space<vmem>>, vector<8x512xbf16>,
    %c0_151 = arith.constant 0 : index
    %c150_152 = arith.constant 150 : index
    %111 = vector.load %arg6[%c0_151, %c150_152] : memref<8x768xbf16, #tpu.memory_space<vmem>>, vector<8x512xbf16>
    %c152_153 = arith.constant 152 : index
    %c0_154 = arith.constant 0 : index
    %112 = vector.load %arg7[%c152_153, %c0_154] : memref<200x512xbf16, #tpu.memory_space<vmem>>, vector<8x512xbf16>
    tpu.vector_store %arg7[%c152_153, %c0_154], %111 {strides = array<i32>} : memref<200x512xbf16, #tpu.memory_space<vmem>>, vector<8x512xbf16>,
    %c0_155 = arith.constant 0 : index
    %c166_156 = arith.constant 166 : index
    %113 = vector.load %arg6[%c0_155, %c166_156] : memref<8x768xbf16, #tpu.memory_space<vmem>>, vector<8x512xbf16>
    %c160_157 = arith.constant 160 : index
    %c0_158 = arith.constant 0 : index
    %114 = vector.load %arg7[%c160_157, %c0_158] : memref<200x512xbf16, #tpu.memory_space<vmem>>, vector<8x512xbf16>
    tpu.vector_store %arg7[%c160_157, %c0_158], %113 {strides = array<i32>} : memref<200x512xbf16, #tpu.memory_space<vmem>>, vector<8x512xbf16>,
    %c0_159 = arith.constant 0 : index
    %c167_160 = arith.constant 167 : index
    %115 = vector.load %arg6[%c0_159, %c167_160] : memref<8x768xbf16, #tpu.memory_space<vmem>>, vector<8x512xbf16>
    %c168_161 = arith.constant 168 : index
    %c0_162 = arith.constant 0 : index
    %116 = vector.load %arg7[%c168_161, %c0_162] : memref<200x512xbf16, #tpu.memory_space<vmem>>, vector<8x512xbf16>
    tpu.vector_store %arg7[%c168_161, %c0_162], %115 {strides = array<i32>} : memref<200x512xbf16, #tpu.memory_space<vmem>>, vector<8x512xbf16>,
    %c0_163 = arith.constant 0 : index
    %c168_164 = arith.constant 168 : index
    %117 = vector.load %arg6[%c0_163, %c168_164] : memref<8x768xbf16, #tpu.memory_space<vmem>>, vector<8x512xbf16>
    %c176_165 = arith.constant 176 : index
    %c0_166 = arith.constant 0 : index
    %118 = vector.load %arg7[%c176_165, %c0_166] : memref<200x512xbf16, #tpu.memory_space<vmem>>, vector<8x512xbf16>
    tpu.vector_store %arg7[%c176_165, %c0_166], %117 {strides = array<i32>} : memref<200x512xbf16, #tpu.memory_space<vmem>>, vector<8x512xbf16>,
    %c0_167 = arith.constant 0 : index
    %c169_168 = arith.constant 169 : index
    %119 = vector.load %arg6[%c0_167, %c169_168] : memref<8x768xbf16, #tpu.memory_space<vmem>>, vector<8x512xbf16>
    %c184_169 = arith.constant 184 : index
    %c0_170 = arith.constant 0 : index
    %120 = vector.load %arg7[%c184_169, %c0_170] : memref<200x512xbf16, #tpu.memory_space<vmem>>, vector<8x512xbf16>
    tpu.vector_store %arg7[%c184_169, %c0_170], %119 {strides = array<i32>} : memref<200x512xbf16, #tpu.memory_space<vmem>>, vector<8x512xbf16>,
    %c0_171 = arith.constant 0 : index
    %c170_172 = arith.constant 170 : index
    %121 = vector.load %arg6[%c0_171, %c170_172] : memref<8x768xbf16, #tpu.memory_space<vmem>>, vector<8x512xbf16>
    %c192_173 = arith.constant 192 : index
    %c0_174 = arith.constant 0 : index
    %122 = vector.load %arg7[%c192_173, %c0_174] : memref<200x512xbf16, #tpu.memory_space<vmem>>, vector<8x512xbf16>
    tpu.vector_store %arg7[%c192_173, %c0_174], %121 {strides = array<i32>} : memref<200x512xbf16, #tpu.memory_space<vmem>>, vector<8x512xbf16>,
    %c1 = arith.constant 1 : index
    %c0_175 = arith.constant 0 : index
    %c0_176 = arith.constant 0 : index
    %123 = vector.load %arg3[%c1, %c0_175, %c0_176] : memref<7x8x200xbf16, #tpu.memory_space<vmem>>, vector<1x8x200xbf16>
    %124 = vector.shape_cast %123 : vector<1x8x200xbf16> to vector<8x200xbf16>
    %c0_177 = arith.constant 0 : index
    %c0_178 = arith.constant 0 : index
    %125 = vector.load %arg7[%c0_177, %c0_178] : memref<200x512xbf16, #tpu.memory_space<vmem>>, vector<200x512xbf16>
    %cst_179 = arith.constant dense<0.000000e+00> : vector<8x512xf32>
    %126 = tpu.matmul %124, %125, %cst_179 {dimension_numbers = #tpu.dot_dimension_numbers<[1], [0], [0], [1], [0, 0, 1, 1], [], []>} : vector<8x200xbf16>, vector<200x512xbf16>, vector<8x512xf32> -> vector<8x512xf32>
    %c1_180 = arith.constant 1 : index
    %c0_181 = arith.constant 0 : index
    %c0_182 = arith.constant 0 : index
    %127 = vector.load %arg4[%c1_180, %c0_181, %c0_182] : memref<7x8x1xf32, #tpu.memory_space<vmem>>, vector<1x8x1xf32>
    %128 = vector.shape_cast %127 : vector<1x8x1xf32> to vector<8x1xf32>
    %129 = vector.broadcast %128 : vector<8x1xf32> to vector<8x512xf32>
    %130 = arith.addf %126, %129 : vector<8x512xf32>
    %131 = arith.mulf %130, %5 : vector<8x512xf32>
    %132 = arith.addf %7, %131 : vector<8x512xf32>
    %133 = arith.truncf %132 : vector<8x512xf32> to vector<8x512xbf16>
    %c0_183 = arith.constant 0 : index
    %c128_184 = arith.constant 128 : index
    %134 = vector.load %arg6[%c0_183, %c128_184] : memref<8x768xbf16, #tpu.memory_space<vmem>>, vector<8x512xbf16>
    tpu.vector_store %arg6[%c0_183, %c128_184], %133 {strides = array<i32>} : memref<8x768xbf16, #tpu.memory_space<vmem>>, vector<8x512xbf16>,
    %c0_185 = arith.constant 0 : index
    %c86_186 = arith.constant 86 : index
    %135 = vector.load %arg6[%c0_185, %c86_186] : memref<8x768xbf16, #tpu.memory_space<vmem>>, vector<8x512xbf16>
    %c0_187 = arith.constant 0 : index
    %c0_188 = arith.constant 0 : index
    %136 = vector.load %arg7[%c0_187, %c0_188] : memref<200x512xbf16, #tpu.memory_space<vmem>>, vector<8x512xbf16>
    tpu.vector_store %arg7[%c0_187, %c0_188], %135 {strides = array<i32>} : memref<200x512xbf16, #tpu.memory_space<vmem>>, vector<8x512xbf16>,
    %c0_189 = arith.constant 0 : index
    %c87_190 = arith.constant 87 : index
    %137 = vector.load %arg6[%c0_189, %c87_190] : memref<8x768xbf16, #tpu.memory_space<vmem>>, vector<8x512xbf16>
    %c8_191 = arith.constant 8 : index
    %c0_192 = arith.constant 0 : index
    %138 = vector.load %arg7[%c8_191, %c0_192] : memref<200x512xbf16, #tpu.memory_space<vmem>>, vector<8x512xbf16>
    tpu.vector_store %arg7[%c8_191, %c0_192], %137 {strides = array<i32>} : memref<200x512xbf16, #tpu.memory_space<vmem>>, vector<8x512xbf16>,
    %c0_193 = arith.constant 0 : index
    %c88_194 = arith.constant 88 : index
    %139 = vector.load %arg6[%c0_193, %c88_194] : memref<8x768xbf16, #tpu.memory_space<vmem>>, vector<8x512xbf16>
    %c16_195 = arith.constant 16 : index
    %c0_196 = arith.constant 0 : index
    %140 = vector.load %arg7[%c16_195, %c0_196] : memref<200x512xbf16, #tpu.memory_space<vmem>>, vector<8x512xbf16>
    tpu.vector_store %arg7[%c16_195, %c0_196], %139 {strides = array<i32>} : memref<200x512xbf16, #tpu.memory_space<vmem>>, vector<8x512xbf16>,
    %c0_197 = arith.constant 0 : index
    %c89_198 = arith.constant 89 : index
    %141 = vector.load %arg6[%c0_197, %c89_198] : memref<8x768xbf16, #tpu.memory_space<vmem>>, vector<8x512xbf16>
    %c24_199 = arith.constant 24 : index
    %c0_200 = arith.constant 0 : index
    %142 = vector.load %arg7[%c24_199, %c0_200] : memref<200x512xbf16, #tpu.memory_space<vmem>>, vector<8x512xbf16>
    tpu.vector_store %arg7[%c24_199, %c0_200], %141 {strides = array<i32>} : memref<200x512xbf16, #tpu.memory_space<vmem>>, vector<8x512xbf16>,
    %c0_201 = arith.constant 0 : index
    %c90_202 = arith.constant 90 : index
    %143 = vector.load %arg6[%c0_201, %c90_202] : memref<8x768xbf16, #tpu.memory_space<vmem>>, vector<8x512xbf16>
    %c32_203 = arith.constant 32 : index
    %c0_204 = arith.constant 0 : index
    %144 = vector.load %arg7[%c32_203, %c0_204] : memref<200x512xbf16, #tpu.memory_space<vmem>>, vector<8x512xbf16>
    tpu.vector_store %arg7[%c32_203, %c0_204], %143 {strides = array<i32>} : memref<200x512xbf16, #tpu.memory_space<vmem>>, vector<8x512xbf16>,
    %c0_205 = arith.constant 0 : index
    %c106_206 = arith.constant 106 : index
    %145 = vector.load %arg6[%c0_205, %c106_206] : memref<8x768xbf16, #tpu.memory_space<vmem>>, vector<8x512xbf16>
    %c40_207 = arith.constant 40 : index
    %c0_208 = arith.constant 0 : index
    %146 = vector.load %arg7[%c40_207, %c0_208] : memref<200x512xbf16, #tpu.memory_space<vmem>>, vector<8x512xbf16>
    tpu.vector_store %arg7[%c40_207, %c0_208], %145 {strides = array<i32>} : memref<200x512xbf16, #tpu.memory_space<vmem>>, vector<8x512xbf16>,
    %c0_209 = arith.constant 0 : index
    %c107_210 = arith.constant 107 : index
    %147 = vector.load %arg6[%c0_209, %c107_210] : memref<8x768xbf16, #tpu.memory_space<vmem>>, vector<8x512xbf16>
    %c48_211 = arith.constant 48 : index
    %c0_212 = arith.constant 0 : index
    %148 = vector.load %arg7[%c48_211, %c0_212] : memref<200x512xbf16, #tpu.memory_space<vmem>>, vector<8x512xbf16>
    tpu.vector_store %arg7[%c48_211, %c0_212], %147 {strides = array<i32>} : memref<200x512xbf16, #tpu.memory_space<vmem>>, vector<8x512xbf16>,
    %c0_213 = arith.constant 0 : index
    %c108_214 = arith.constant 108 : index
    %149 = vector.load %arg6[%c0_213, %c108_214] : memref<8x768xbf16, #tpu.memory_space<vmem>>, vector<8x512xbf16>
    %c56_215 = arith.constant 56 : index
    %c0_216 = arith.constant 0 : index
    %150 = vector.load %arg7[%c56_215, %c0_216] : memref<200x512xbf16, #tpu.memory_space<vmem>>, vector<8x512xbf16>
    tpu.vector_store %arg7[%c56_215, %c0_216], %149 {strides = array<i32>} : memref<200x512xbf16, #tpu.memory_space<vmem>>, vector<8x512xbf16>,
    %c0_217 = arith.constant 0 : index
    %c109_218 = arith.constant 109 : index
    %151 = vector.load %arg6[%c0_217, %c109_218] : memref<8x768xbf16, #tpu.memory_space<vmem>>, vector<8x512xbf16>
    %c64_219 = arith.constant 64 : index
    %c0_220 = arith.constant 0 : index
    %152 = vector.load %arg7[%c64_219, %c0_220] : memref<200x512xbf16, #tpu.memory_space<vmem>>, vector<8x512xbf16>
    tpu.vector_store %arg7[%c64_219, %c0_220], %151 {strides = array<i32>} : memref<200x512xbf16, #tpu.memory_space<vmem>>, vector<8x512xbf16>,
    %c0_221 = arith.constant 0 : index
    %c110_222 = arith.constant 110 : index
    %153 = vector.load %arg6[%c0_221, %c110_222] : memref<8x768xbf16, #tpu.memory_space<vmem>>, vector<8x512xbf16>
    %c72_223 = arith.constant 72 : index
    %c0_224 = arith.constant 0 : index
    %154 = vector.load %arg7[%c72_223, %c0_224] : memref<200x512xbf16, #tpu.memory_space<vmem>>, vector<8x512xbf16>
    tpu.vector_store %arg7[%c72_223, %c0_224], %153 {strides = array<i32>} : memref<200x512xbf16, #tpu.memory_space<vmem>>, vector<8x512xbf16>,
    %c0_225 = arith.constant 0 : index
    %c126_226 = arith.constant 126 : index
    %155 = vector.load %arg6[%c0_225, %c126_226] : memref<8x768xbf16, #tpu.memory_space<vmem>>, vector<8x512xbf16>
    %c80_227 = arith.constant 80 : index
    %c0_228 = arith.constant 0 : index
    %156 = vector.load %arg7[%c80_227, %c0_228] : memref<200x512xbf16, #tpu.memory_space<vmem>>, vector<8x512xbf16>
    tpu.vector_store %arg7[%c80_227, %c0_228], %155 {strides = array<i32>} : memref<200x512xbf16, #tpu.memory_space<vmem>>, vector<8x512xbf16>,
    %c0_229 = arith.constant 0 : index
    %c127_230 = arith.constant 127 : index
    %157 = vector.load %arg6[%c0_229, %c127_230] : memref<8x768xbf16, #tpu.memory_space<vmem>>, vector<8x512xbf16>
    %c88_231 = arith.constant 88 : index
    %c0_232 = arith.constant 0 : index
    %158 = vector.load %arg7[%c88_231, %c0_232] : memref<200x512xbf16, #tpu.memory_space<vmem>>, vector<8x512xbf16>
    tpu.vector_store %arg7[%c88_231, %c0_232], %157 {strides = array<i32>} : memref<200x512xbf16, #tpu.memory_space<vmem>>, vector<8x512xbf16>,
    %c0_233 = arith.constant 0 : index
    %c128_234 = arith.constant 128 : index
    %159 = vector.load %arg6[%c0_233, %c128_234] : memref<8x768xbf16, #tpu.memory_space<vmem>>, vector<8x512xbf16>
    %c96_235 = arith.constant 96 : index
    %c0_236 = arith.constant 0 : index
    %160 = vector.load %arg7[%c96_235, %c0_236] : memref<200x512xbf16, #tpu.memory_space<vmem>>, vector<8x512xbf16>
    tpu.vector_store %arg7[%c96_235, %c0_236], %159 {strides = array<i32>} : memref<200x512xbf16, #tpu.memory_space<vmem>>, vector<8x512xbf16>,
    %c0_237 = arith.constant 0 : index
    %c129_238 = arith.constant 129 : index
    %161 = vector.load %arg6[%c0_237, %c129_238] : memref<8x768xbf16, #tpu.memory_space<vmem>>, vector<8x512xbf16>
    %c104_239 = arith.constant 104 : index
    %c0_240 = arith.constant 0 : index
    %162 = vector.load %arg7[%c104_239, %c0_240] : memref<200x512xbf16, #tpu.memory_space<vmem>>, vector<8x512xbf16>
    tpu.vector_store %arg7[%c104_239, %c0_240], %161 {strides = array<i32>} : memref<200x512xbf16, #tpu.memory_space<vmem>>, vector<8x512xbf16>,
    %c0_241 = arith.constant 0 : index
    %c130_242 = arith.constant 130 : index
    %163 = vector.load %arg6[%c0_241, %c130_242] : memref<8x768xbf16, #tpu.memory_space<vmem>>, vector<8x512xbf16>
    %c112_243 = arith.constant 112 : index
    %c0_244 = arith.constant 0 : index
    %164 = vector.load %arg7[%c112_243, %c0_244] : memref<200x512xbf16, #tpu.memory_space<vmem>>, vector<8x512xbf16>
    tpu.vector_store %arg7[%c112_243, %c0_244], %163 {strides = array<i32>} : memref<200x512xbf16, #tpu.memory_space<vmem>>, vector<8x512xbf16>,
    %c0_245 = arith.constant 0 : index
    %c146_246 = arith.constant 146 : index
    %165 = vector.load %arg6[%c0_245, %c146_246] : memref<8x768xbf16, #tpu.memory_space<vmem>>, vector<8x512xbf16>
    %c120_247 = arith.constant 120 : index
    %c0_248 = arith.constant 0 : index
    %166 = vector.load %arg7[%c120_247, %c0_248] : memref<200x512xbf16, #tpu.memory_space<vmem>>, vector<8x512xbf16>
    tpu.vector_store %arg7[%c120_247, %c0_248], %165 {strides = array<i32>} : memref<200x512xbf16, #tpu.memory_space<vmem>>, vector<8x512xbf16>,
    %c0_249 = arith.constant 0 : index
    %c147_250 = arith.constant 147 : index
    %167 = vector.load %arg6[%c0_249, %c147_250] : memref<8x768xbf16, #tpu.memory_space<vmem>>, vector<8x512xbf16>
    %c128_251 = arith.constant 128 : index
    %c0_252 = arith.constant 0 : index
    %168 = vector.load %arg7[%c128_251, %c0_252] : memref<200x512xbf16, #tpu.memory_space<vmem>>, vector<8x512xbf16>
    tpu.vector_store %arg7[%c128_251, %c0_252], %167 {strides = array<i32>} : memref<200x512xbf16, #tpu.memory_space<vmem>>, vector<8x512xbf16>,
    %c0_253 = arith.constant 0 : index
    %c148_254 = arith.constant 148 : index
    %169 = vector.load %arg6[%c0_253, %c148_254] : memref<8x768xbf16, #tpu.memory_space<vmem>>, vector<8x512xbf16>
    %c136_255 = arith.constant 136 : index
    %c0_256 = arith.constant 0 : index
    %170 = vector.load %arg7[%c136_255, %c0_256] : memref<200x512xbf16, #tpu.memory_space<vmem>>, vector<8x512xbf16>
    tpu.vector_store %arg7[%c136_255, %c0_256], %169 {strides = array<i32>} : memref<200x512xbf16, #tpu.memory_space<vmem>>, vector<8x512xbf16>,
    %c0_257 = arith.constant 0 : index
    %c149_258 = arith.constant 149 : index
    %171 = vector.load %arg6[%c0_257, %c149_258] : memref<8x768xbf16, #tpu.memory_space<vmem>>, vector<8x512xbf16>
    %c144_259 = arith.constant 144 : index
    %c0_260 = arith.constant 0 : index
    %172 = vector.load %arg7[%c144_259, %c0_260] : memref<200x512xbf16, #tpu.memory_space<vmem>>, vector<8x512xbf16>
    tpu.vector_store %arg7[%c144_259, %c0_260], %171 {strides = array<i32>} : memref<200x512xbf16, #tpu.memory_space<vmem>>, vector<8x512xbf16>,
    %c0_261 = arith.constant 0 : index
    %c150_262 = arith.constant 150 : index
    %173 = vector.load %arg6[%c0_261, %c150_262] : memref<8x768xbf16, #tpu.memory_space<vmem>>, vector<8x512xbf16>
    %c152_263 = arith.constant 152 : index
    %c0_264 = arith.constant 0 : index
    %174 = vector.load %arg7[%c152_263, %c0_264] : memref<200x512xbf16, #tpu.memory_space<vmem>>, vector<8x512xbf16>
    tpu.vector_store %arg7[%c152_263, %c0_264], %173 {strides = array<i32>} : memref<200x512xbf16, #tpu.memory_space<vmem>>, vector<8x512xbf16>,
    %c0_265 = arith.constant 0 : index
    %c166_266 = arith.constant 166 : index
    %175 = vector.load %arg6[%c0_265, %c166_266] : memref<8x768xbf16, #tpu.memory_space<vmem>>, vector<8x512xbf16>
    %c160_267 = arith.constant 160 : index
    %c0_268 = arith.constant 0 : index
    %176 = vector.load %arg7[%c160_267, %c0_268] : memref<200x512xbf16, #tpu.memory_space<vmem>>, vector<8x512xbf16>
    tpu.vector_store %arg7[%c160_267, %c0_268], %175 {strides = array<i32>} : memref<200x512xbf16, #tpu.memory_space<vmem>>, vector<8x512xbf16>,
    %c0_269 = arith.constant 0 : index
    %c167_270 = arith.constant 167 : index
    %177 = vector.load %arg6[%c0_269, %c167_270] : memref<8x768xbf16, #tpu.memory_space<vmem>>, vector<8x512xbf16>
    %c168_271 = arith.constant 168 : index
    %c0_272 = arith.constant 0 : index
    %178 = vector.load %arg7[%c168_271, %c0_272] : memref<200x512xbf16, #tpu.memory_space<vmem>>, vector<8x512xbf16>
    tpu.vector_store %arg7[%c168_271, %c0_272], %177 {strides = array<i32>} : memref<200x512xbf16, #tpu.memory_space<vmem>>, vector<8x512xbf16>,
    %c0_273 = arith.constant 0 : index
    %c168_274 = arith.constant 168 : index
    %179 = vector.load %arg6[%c0_273, %c168_274] : memref<8x768xbf16, #tpu.memory_space<vmem>>, vector<8x512xbf16>
    %c176_275 = arith.constant 176 : index
    %c0_276 = arith.constant 0 : index
    %180 = vector.load %arg7[%c176_275, %c0_276] : memref<200x512xbf16, #tpu.memory_space<vmem>>, vector<8x512xbf16>
    tpu.vector_store %arg7[%c176_275, %c0_276], %179 {strides = array<i32>} : memref<200x512xbf16, #tpu.memory_space<vmem>>, vector<8x512xbf16>,
    %c0_277 = arith.constant 0 : index
    %c169_278 = arith.constant 169 : index
    %181 = vector.load %arg6[%c0_277, %c169_278] : memref<8x768xbf16, #tpu.memory_space<vmem>>, vector<8x512xbf16>
    %c184_279 = arith.constant 184 : index
    %c0_280 = arith.constant 0 : index
    %182 = vector.load %arg7[%c184_279, %c0_280] : memref<200x512xbf16, #tpu.memory_space<vmem>>, vector<8x512xbf16>
    tpu.vector_store %arg7[%c184_279, %c0_280], %181 {strides = array<i32>} : memref<200x512xbf16, #tpu.memory_space<vmem>>, vector<8x512xbf16>,
    %c0_281 = arith.constant 0 : index
    %c170_282 = arith.constant 170 : index
    %183 = vector.load %arg6[%c0_281, %c170_282] : memref<8x768xbf16, #tpu.memory_space<vmem>>, vector<8x512xbf16>
    %c192_283 = arith.constant 192 : index
    %c0_284 = arith.constant 0 : index
    %184 = vector.load %arg7[%c192_283, %c0_284] : memref<200x512xbf16, #tpu.memory_space<vmem>>, vector<8x512xbf16>
    tpu.vector_store %arg7[%c192_283, %c0_284], %183 {strides = array<i32>} : memref<200x512xbf16, #tpu.memory_space<vmem>>, vector<8x512xbf16>,
    %c2 = arith.constant 2 : index
    %c0_285 = arith.constant 0 : index
    %c0_286 = arith.constant 0 : index
    %185 = vector.load %arg3[%c2, %c0_285, %c0_286] : memref<7x8x200xbf16, #tpu.memory_space<vmem>>, vector<1x8x200xbf16>
    %186 = vector.shape_cast %185 : vector<1x8x200xbf16> to vector<8x200xbf16>
    %c0_287 = arith.constant 0 : index
    %c0_288 = arith.constant 0 : index
    %187 = vector.load %arg7[%c0_287, %c0_288] : memref<200x512xbf16, #tpu.memory_space<vmem>>, vector<200x512xbf16>
    %cst_289 = arith.constant dense<0.000000e+00> : vector<8x512xf32>
    %188 = tpu.matmul %186, %187, %cst_289 {dimension_numbers = #tpu.dot_dimension_numbers<[1], [0], [0], [1], [0, 0, 1, 1], [], []>} : vector<8x200xbf16>, vector<200x512xbf16>, vector<8x512xf32> -> vector<8x512xf32>
    %c2_290 = arith.constant 2 : index
    %c0_291 = arith.constant 0 : index
    %c0_292 = arith.constant 0 : index
    %189 = vector.load %arg4[%c2_290, %c0_291, %c0_292] : memref<7x8x1xf32, #tpu.memory_space<vmem>>, vector<1x8x1xf32>
    %190 = vector.shape_cast %189 : vector<1x8x1xf32> to vector<8x1xf32>
    %191 = vector.broadcast %190 : vector<8x1xf32> to vector<8x512xf32>
    %192 = arith.addf %188, %191 : vector<8x512xf32>
    %193 = arith.mulf %192, %5 : vector<8x512xf32>
    %cst_293 = arith.constant 0.000000e+00 : f32
    %194 = vector.broadcast %cst_293 : f32 to vector<8x512xf32>
    %195 = arith.maximumf %193, %194 : vector<8x512xf32>
    %196 = arith.truncf %195 : vector<8x512xf32> to vector<8x512xbf16>
    %c0_294 = arith.constant 0 : index
    %c128_295 = arith.constant 128 : index
    %197 = vector.load %arg6[%c0_294, %c128_295] : memref<8x768xbf16, #tpu.memory_space<vmem>>, vector<8x512xbf16>
    tpu.vector_store %arg6[%c0_294, %c128_295], %196 {strides = array<i32>} : memref<8x768xbf16, #tpu.memory_space<vmem>>, vector<8x512xbf16>,
    %c0_296 = arith.constant 0 : index
    %c86_297 = arith.constant 86 : index
    %198 = vector.load %arg6[%c0_296, %c86_297] : memref<8x768xbf16, #tpu.memory_space<vmem>>, vector<8x512xbf16>
    %c0_298 = arith.constant 0 : index
    %c0_299 = arith.constant 0 : index
    %199 = vector.load %arg7[%c0_298, %c0_299] : memref<200x512xbf16, #tpu.memory_space<vmem>>, vector<8x512xbf16>
    tpu.vector_store %arg7[%c0_298, %c0_299], %198 {strides = array<i32>} : memref<200x512xbf16, #tpu.memory_space<vmem>>, vector<8x512xbf16>,
    %c0_300 = arith.constant 0 : index
    %c87_301 = arith.constant 87 : index
    %200 = vector.load %arg6[%c0_300, %c87_301] : memref<8x768xbf16, #tpu.memory_space<vmem>>, vector<8x512xbf16>
    %c8_302 = arith.constant 8 : index
    %c0_303 = arith.constant 0 : index
    %201 = vector.load %arg7[%c8_302, %c0_303] : memref<200x512xbf16, #tpu.memory_space<vmem>>, vector<8x512xbf16>
    tpu.vector_store %arg7[%c8_302, %c0_303], %200 {strides = array<i32>} : memref<200x512xbf16, #tpu.memory_space<vmem>>, vector<8x512xbf16>,
    %c0_304 = arith.constant 0 : index
    %c88_305 = arith.constant 88 : index
    %202 = vector.load %arg6[%c0_304, %c88_305] : memref<8x768xbf16, #tpu.memory_space<vmem>>, vector<8x512xbf16>
    %c16_306 = arith.constant 16 : index
    %c0_307 = arith.constant 0 : index
    %203 = vector.load %arg7[%c16_306, %c0_307] : memref<200x512xbf16, #tpu.memory_space<vmem>>, vector<8x512xbf16>
    tpu.vector_store %arg7[%c16_306, %c0_307], %202 {strides = array<i32>} : memref<200x512xbf16, #tpu.memory_space<vmem>>, vector<8x512xbf16>,
    %c0_308 = arith.constant 0 : index
    %c89_309 = arith.constant 89 : index
    %204 = vector.load %arg6[%c0_308, %c89_309] : memref<8x768xbf16, #tpu.memory_space<vmem>>, vector<8x512xbf16>
    %c24_310 = arith.constant 24 : index
    %c0_311 = arith.constant 0 : index
    %205 = vector.load %arg7[%c24_310, %c0_311] : memref<200x512xbf16, #tpu.memory_space<vmem>>, vector<8x512xbf16>
    tpu.vector_store %arg7[%c24_310, %c0_311], %204 {strides = array<i32>} : memref<200x512xbf16, #tpu.memory_space<vmem>>, vector<8x512xbf16>,
    %c0_312 = arith.constant 0 : index
    %c90_313 = arith.constant 90 : index
    %206 = vector.load %arg6[%c0_312, %c90_313] : memref<8x768xbf16, #tpu.memory_space<vmem>>, vector<8x512xbf16>
    %c32_314 = arith.constant 32 : index
    %c0_315 = arith.constant 0 : index
    %207 = vector.load %arg7[%c32_314, %c0_315] : memref<200x512xbf16, #tpu.memory_space<vmem>>, vector<8x512xbf16>
    tpu.vector_store %arg7[%c32_314, %c0_315], %206 {strides = array<i32>} : memref<200x512xbf16, #tpu.memory_space<vmem>>, vector<8x512xbf16>,
    %c0_316 = arith.constant 0 : index
    %c106_317 = arith.constant 106 : index
    %208 = vector.load %arg6[%c0_316, %c106_317] : memref<8x768xbf16, #tpu.memory_space<vmem>>, vector<8x512xbf16>
    %c40_318 = arith.constant 40 : index
    %c0_319 = arith.constant 0 : index
    %209 = vector.load %arg7[%c40_318, %c0_319] : memref<200x512xbf16, #tpu.memory_space<vmem>>, vector<8x512xbf16>
    tpu.vector_store %arg7[%c40_318, %c0_319], %208 {strides = array<i32>} : memref<200x512xbf16, #tpu.memory_space<vmem>>, vector<8x512xbf16>,
    %c0_320 = arith.constant 0 : index
    %c107_321 = arith.constant 107 : index
    %210 = vector.load %arg6[%c0_320, %c107_321] : memref<8x768xbf16, #tpu.memory_space<vmem>>, vector<8x512xbf16>
    %c48_322 = arith.constant 48 : index
    %c0_323 = arith.constant 0 : index
    %211 = vector.load %arg7[%c48_322, %c0_323] : memref<200x512xbf16, #tpu.memory_space<vmem>>, vector<8x512xbf16>
    tpu.vector_store %arg7[%c48_322, %c0_323], %210 {strides = array<i32>} : memref<200x512xbf16, #tpu.memory_space<vmem>>, vector<8x512xbf16>,
    %c0_324 = arith.constant 0 : index
    %c108_325 = arith.constant 108 : index
    %212 = vector.load %arg6[%c0_324, %c108_325] : memref<8x768xbf16, #tpu.memory_space<vmem>>, vector<8x512xbf16>
    %c56_326 = arith.constant 56 : index
    %c0_327 = arith.constant 0 : index
    %213 = vector.load %arg7[%c56_326, %c0_327] : memref<200x512xbf16, #tpu.memory_space<vmem>>, vector<8x512xbf16>
    tpu.vector_store %arg7[%c56_326, %c0_327], %212 {strides = array<i32>} : memref<200x512xbf16, #tpu.memory_space<vmem>>, vector<8x512xbf16>,
    %c0_328 = arith.constant 0 : index
    %c109_329 = arith.constant 109 : index
    %214 = vector.load %arg6[%c0_328, %c109_329] : memref<8x768xbf16, #tpu.memory_space<vmem>>, vector<8x512xbf16>
    %c64_330 = arith.constant 64 : index
    %c0_331 = arith.constant 0 : index
    %215 = vector.load %arg7[%c64_330, %c0_331] : memref<200x512xbf16, #tpu.memory_space<vmem>>, vector<8x512xbf16>
    tpu.vector_store %arg7[%c64_330, %c0_331], %214 {strides = array<i32>} : memref<200x512xbf16, #tpu.memory_space<vmem>>, vector<8x512xbf16>,
    %c0_332 = arith.constant 0 : index
    %c110_333 = arith.constant 110 : index
    %216 = vector.load %arg6[%c0_332, %c110_333] : memref<8x768xbf16, #tpu.memory_space<vmem>>, vector<8x512xbf16>
    %c72_334 = arith.constant 72 : index
    %c0_335 = arith.constant 0 : index
    %217 = vector.load %arg7[%c72_334, %c0_335] : memref<200x512xbf16, #tpu.memory_space<vmem>>, vector<8x512xbf16>
    tpu.vector_store %arg7[%c72_334, %c0_335], %216 {strides = array<i32>} : memref<200x512xbf16, #tpu.memory_space<vmem>>, vector<8x512xbf16>,
    %c0_336 = arith.constant 0 : index
    %c126_337 = arith.constant 126 : index
    %218 = vector.load %arg6[%c0_336, %c126_337] : memref<8x768xbf16, #tpu.memory_space<vmem>>, vector<8x512xbf16>
    %c80_338 = arith.constant 80 : index
    %c0_339 = arith.constant 0 : index
    %219 = vector.load %arg7[%c80_338, %c0_339] : memref<200x512xbf16, #tpu.memory_space<vmem>>, vector<8x512xbf16>
    tpu.vector_store %arg7[%c80_338, %c0_339], %218 {strides = array<i32>} : memref<200x512xbf16, #tpu.memory_space<vmem>>, vector<8x512xbf16>,
    %c0_340 = arith.constant 0 : index
    %c127_341 = arith.constant 127 : index
    %220 = vector.load %arg6[%c0_340, %c127_341] : memref<8x768xbf16, #tpu.memory_space<vmem>>, vector<8x512xbf16>
    %c88_342 = arith.constant 88 : index
    %c0_343 = arith.constant 0 : index
    %221 = vector.load %arg7[%c88_342, %c0_343] : memref<200x512xbf16, #tpu.memory_space<vmem>>, vector<8x512xbf16>
    tpu.vector_store %arg7[%c88_342, %c0_343], %220 {strides = array<i32>} : memref<200x512xbf16, #tpu.memory_space<vmem>>, vector<8x512xbf16>,
    %c0_344 = arith.constant 0 : index
    %c128_345 = arith.constant 128 : index
    %222 = vector.load %arg6[%c0_344, %c128_345] : memref<8x768xbf16, #tpu.memory_space<vmem>>, vector<8x512xbf16>
    %c96_346 = arith.constant 96 : index
    %c0_347 = arith.constant 0 : index
    %223 = vector.load %arg7[%c96_346, %c0_347] : memref<200x512xbf16, #tpu.memory_space<vmem>>, vector<8x512xbf16>
    tpu.vector_store %arg7[%c96_346, %c0_347], %222 {strides = array<i32>} : memref<200x512xbf16, #tpu.memory_space<vmem>>, vector<8x512xbf16>,
    %c0_348 = arith.constant 0 : index
    %c129_349 = arith.constant 129 : index
    %224 = vector.load %arg6[%c0_348, %c129_349] : memref<8x768xbf16, #tpu.memory_space<vmem>>, vector<8x512xbf16>
    %c104_350 = arith.constant 104 : index
    %c0_351 = arith.constant 0 : index
    %225 = vector.load %arg7[%c104_350, %c0_351] : memref<200x512xbf16, #tpu.memory_space<vmem>>, vector<8x512xbf16>
    tpu.vector_store %arg7[%c104_350, %c0_351], %224 {strides = array<i32>} : memref<200x512xbf16, #tpu.memory_space<vmem>>, vector<8x512xbf16>,
    %c0_352 = arith.constant 0 : index
    %c130_353 = arith.constant 130 : index
    %226 = vector.load %arg6[%c0_352, %c130_353] : memref<8x768xbf16, #tpu.memory_space<vmem>>, vector<8x512xbf16>
    %c112_354 = arith.constant 112 : index
    %c0_355 = arith.constant 0 : index
    %227 = vector.load %arg7[%c112_354, %c0_355] : memref<200x512xbf16, #tpu.memory_space<vmem>>, vector<8x512xbf16>
    tpu.vector_store %arg7[%c112_354, %c0_355], %226 {strides = array<i32>} : memref<200x512xbf16, #tpu.memory_space<vmem>>, vector<8x512xbf16>,
    %c0_356 = arith.constant 0 : index
    %c146_357 = arith.constant 146 : index
    %228 = vector.load %arg6[%c0_356, %c146_357] : memref<8x768xbf16, #tpu.memory_space<vmem>>, vector<8x512xbf16>
    %c120_358 = arith.constant 120 : index
    %c0_359 = arith.constant 0 : index
    %229 = vector.load %arg7[%c120_358, %c0_359] : memref<200x512xbf16, #tpu.memory_space<vmem>>, vector<8x512xbf16>
    tpu.vector_store %arg7[%c120_358, %c0_359], %228 {strides = array<i32>} : memref<200x512xbf16, #tpu.memory_space<vmem>>, vector<8x512xbf16>,
    %c0_360 = arith.constant 0 : index
    %c147_361 = arith.constant 147 : index
    %230 = vector.load %arg6[%c0_360, %c147_361] : memref<8x768xbf16, #tpu.memory_space<vmem>>, vector<8x512xbf16>
    %c128_362 = arith.constant 128 : index
    %c0_363 = arith.constant 0 : index
    %231 = vector.load %arg7[%c128_362, %c0_363] : memref<200x512xbf16, #tpu.memory_space<vmem>>, vector<8x512xbf16>
    tpu.vector_store %arg7[%c128_362, %c0_363], %230 {strides = array<i32>} : memref<200x512xbf16, #tpu.memory_space<vmem>>, vector<8x512xbf16>,
    %c0_364 = arith.constant 0 : index
    %c148_365 = arith.constant 148 : index
    %232 = vector.load %arg6[%c0_364, %c148_365] : memref<8x768xbf16, #tpu.memory_space<vmem>>, vector<8x512xbf16>
    %c136_366 = arith.constant 136 : index
    %c0_367 = arith.constant 0 : index
    %233 = vector.load %arg7[%c136_366, %c0_367] : memref<200x512xbf16, #tpu.memory_space<vmem>>, vector<8x512xbf16>
    tpu.vector_store %arg7[%c136_366, %c0_367], %232 {strides = array<i32>} : memref<200x512xbf16, #tpu.memory_space<vmem>>, vector<8x512xbf16>,
    %c0_368 = arith.constant 0 : index
    %c149_369 = arith.constant 149 : index
    %234 = vector.load %arg6[%c0_368, %c149_369] : memref<8x768xbf16, #tpu.memory_space<vmem>>, vector<8x512xbf16>
    %c144_370 = arith.constant 144 : index
    %c0_371 = arith.constant 0 : index
    %235 = vector.load %arg7[%c144_370, %c0_371] : memref<200x512xbf16, #tpu.memory_space<vmem>>, vector<8x512xbf16>
    tpu.vector_store %arg7[%c144_370, %c0_371], %234 {strides = array<i32>} : memref<200x512xbf16, #tpu.memory_space<vmem>>, vector<8x512xbf16>,
    %c0_372 = arith.constant 0 : index
    %c150_373 = arith.constant 150 : index
    %236 = vector.load %arg6[%c0_372, %c150_373] : memref<8x768xbf16, #tpu.memory_space<vmem>>, vector<8x512xbf16>
    %c152_374 = arith.constant 152 : index
    %c0_375 = arith.constant 0 : index
    %237 = vector.load %arg7[%c152_374, %c0_375] : memref<200x512xbf16, #tpu.memory_space<vmem>>, vector<8x512xbf16>
    tpu.vector_store %arg7[%c152_374, %c0_375], %236 {strides = array<i32>} : memref<200x512xbf16, #tpu.memory_space<vmem>>, vector<8x512xbf16>,
    %c0_376 = arith.constant 0 : index
    %c166_377 = arith.constant 166 : index
    %238 = vector.load %arg6[%c0_376, %c166_377] : memref<8x768xbf16, #tpu.memory_space<vmem>>, vector<8x512xbf16>
    %c160_378 = arith.constant 160 : index
    %c0_379 = arith.constant 0 : index
    %239 = vector.load %arg7[%c160_378, %c0_379] : memref<200x512xbf16, #tpu.memory_space<vmem>>, vector<8x512xbf16>
    tpu.vector_store %arg7[%c160_378, %c0_379], %238 {strides = array<i32>} : memref<200x512xbf16, #tpu.memory_space<vmem>>, vector<8x512xbf16>,
    %c0_380 = arith.constant 0 : index
    %c167_381 = arith.constant 167 : index
    %240 = vector.load %arg6[%c0_380, %c167_381] : memref<8x768xbf16, #tpu.memory_space<vmem>>, vector<8x512xbf16>
    %c168_382 = arith.constant 168 : index
    %c0_383 = arith.constant 0 : index
    %241 = vector.load %arg7[%c168_382, %c0_383] : memref<200x512xbf16, #tpu.memory_space<vmem>>, vector<8x512xbf16>
    tpu.vector_store %arg7[%c168_382, %c0_383], %240 {strides = array<i32>} : memref<200x512xbf16, #tpu.memory_space<vmem>>, vector<8x512xbf16>,
    %c0_384 = arith.constant 0 : index
    %c168_385 = arith.constant 168 : index
    %242 = vector.load %arg6[%c0_384, %c168_385] : memref<8x768xbf16, #tpu.memory_space<vmem>>, vector<8x512xbf16>
    %c176_386 = arith.constant 176 : index
    %c0_387 = arith.constant 0 : index
    %243 = vector.load %arg7[%c176_386, %c0_387] : memref<200x512xbf16, #tpu.memory_space<vmem>>, vector<8x512xbf16>
    tpu.vector_store %arg7[%c176_386, %c0_387], %242 {strides = array<i32>} : memref<200x512xbf16, #tpu.memory_space<vmem>>, vector<8x512xbf16>,
    %c0_388 = arith.constant 0 : index
    %c169_389 = arith.constant 169 : index
    %244 = vector.load %arg6[%c0_388, %c169_389] : memref<8x768xbf16, #tpu.memory_space<vmem>>, vector<8x512xbf16>
    %c184_390 = arith.constant 184 : index
    %c0_391 = arith.constant 0 : index
    %245 = vector.load %arg7[%c184_390, %c0_391] : memref<200x512xbf16, #tpu.memory_space<vmem>>, vector<8x512xbf16>
    tpu.vector_store %arg7[%c184_390, %c0_391], %244 {strides = array<i32>} : memref<200x512xbf16, #tpu.memory_space<vmem>>, vector<8x512xbf16>,
    %c0_392 = arith.constant 0 : index
    %c170_393 = arith.constant 170 : index
    %246 = vector.load %arg6[%c0_392, %c170_393] : memref<8x768xbf16, #tpu.memory_space<vmem>>, vector<8x512xbf16>
    %c192_394 = arith.constant 192 : index
    %c0_395 = arith.constant 0 : index
    %247 = vector.load %arg7[%c192_394, %c0_395] : memref<200x512xbf16, #tpu.memory_space<vmem>>, vector<8x512xbf16>
    tpu.vector_store %arg7[%c192_394, %c0_395], %246 {strides = array<i32>} : memref<200x512xbf16, #tpu.memory_space<vmem>>, vector<8x512xbf16>,
    %c3 = arith.constant 3 : index
    %c0_396 = arith.constant 0 : index
    %c0_397 = arith.constant 0 : index
    %248 = vector.load %arg3[%c3, %c0_396, %c0_397] : memref<7x8x200xbf16, #tpu.memory_space<vmem>>, vector<1x8x200xbf16>
    %249 = vector.shape_cast %248 : vector<1x8x200xbf16> to vector<8x200xbf16>
    %c0_398 = arith.constant 0 : index
    %c0_399 = arith.constant 0 : index
    %250 = vector.load %arg7[%c0_398, %c0_399] : memref<200x512xbf16, #tpu.memory_space<vmem>>, vector<200x512xbf16>
    %cst_400 = arith.constant dense<0.000000e+00> : vector<8x512xf32>
    %251 = tpu.matmul %249, %250, %cst_400 {dimension_numbers = #tpu.dot_dimension_numbers<[1], [0], [0], [1], [0, 0, 1, 1], [], []>} : vector<8x200xbf16>, vector<200x512xbf16>, vector<8x512xf32> -> vector<8x512xf32>
    %c3_401 = arith.constant 3 : index
    %c0_402 = arith.constant 0 : index
    %c0_403 = arith.constant 0 : index
    %252 = vector.load %arg4[%c3_401, %c0_402, %c0_403] : memref<7x8x1xf32, #tpu.memory_space<vmem>>, vector<1x8x1xf32>
    %253 = vector.shape_cast %252 : vector<1x8x1xf32> to vector<8x1xf32>
    %254 = vector.broadcast %253 : vector<8x1xf32> to vector<8x512xf32>
    %255 = arith.addf %251, %254 : vector<8x512xf32>
    %256 = arith.mulf %255, %5 : vector<8x512xf32>
    %257 = arith.addf %132, %256 : vector<8x512xf32>
    %258 = arith.truncf %257 : vector<8x512xf32> to vector<8x512xbf16>
    %c0_404 = arith.constant 0 : index
    %c128_405 = arith.constant 128 : index
    %259 = vector.load %arg6[%c0_404, %c128_405] : memref<8x768xbf16, #tpu.memory_space<vmem>>, vector<8x512xbf16>
    tpu.vector_store %arg6[%c0_404, %c128_405], %258 {strides = array<i32>} : memref<8x768xbf16, #tpu.memory_space<vmem>>, vector<8x512xbf16>,
    %c0_406 = arith.constant 0 : index
    %c86_407 = arith.constant 86 : index
    %260 = vector.load %arg6[%c0_406, %c86_407] : memref<8x768xbf16, #tpu.memory_space<vmem>>, vector<8x512xbf16>
    %c0_408 = arith.constant 0 : index
    %c0_409 = arith.constant 0 : index
    %261 = vector.load %arg7[%c0_408, %c0_409] : memref<200x512xbf16, #tpu.memory_space<vmem>>, vector<8x512xbf16>
    tpu.vector_store %arg7[%c0_408, %c0_409], %260 {strides = array<i32>} : memref<200x512xbf16, #tpu.memory_space<vmem>>, vector<8x512xbf16>,
    %c0_410 = arith.constant 0 : index
    %c87_411 = arith.constant 87 : index
    %262 = vector.load %arg6[%c0_410, %c87_411] : memref<8x768xbf16, #tpu.memory_space<vmem>>, vector<8x512xbf16>
    %c8_412 = arith.constant 8 : index
    %c0_413 = arith.constant 0 : index
    %263 = vector.load %arg7[%c8_412, %c0_413] : memref<200x512xbf16, #tpu.memory_space<vmem>>, vector<8x512xbf16>
    tpu.vector_store %arg7[%c8_412, %c0_413], %262 {strides = array<i32>} : memref<200x512xbf16, #tpu.memory_space<vmem>>, vector<8x512xbf16>,
    %c0_414 = arith.constant 0 : index
    %c88_415 = arith.constant 88 : index
    %264 = vector.load %arg6[%c0_414, %c88_415] : memref<8x768xbf16, #tpu.memory_space<vmem>>, vector<8x512xbf16>
    %c16_416 = arith.constant 16 : index
    %c0_417 = arith.constant 0 : index
    %265 = vector.load %arg7[%c16_416, %c0_417] : memref<200x512xbf16, #tpu.memory_space<vmem>>, vector<8x512xbf16>
    tpu.vector_store %arg7[%c16_416, %c0_417], %264 {strides = array<i32>} : memref<200x512xbf16, #tpu.memory_space<vmem>>, vector<8x512xbf16>,
    %c0_418 = arith.constant 0 : index
    %c89_419 = arith.constant 89 : index
    %266 = vector.load %arg6[%c0_418, %c89_419] : memref<8x768xbf16, #tpu.memory_space<vmem>>, vector<8x512xbf16>
    %c24_420 = arith.constant 24 : index
    %c0_421 = arith.constant 0 : index
    %267 = vector.load %arg7[%c24_420, %c0_421] : memref<200x512xbf16, #tpu.memory_space<vmem>>, vector<8x512xbf16>
    tpu.vector_store %arg7[%c24_420, %c0_421], %266 {strides = array<i32>} : memref<200x512xbf16, #tpu.memory_space<vmem>>, vector<8x512xbf16>,
    %c0_422 = arith.constant 0 : index
    %c90_423 = arith.constant 90 : index
    %268 = vector.load %arg6[%c0_422, %c90_423] : memref<8x768xbf16, #tpu.memory_space<vmem>>, vector<8x512xbf16>
    %c32_424 = arith.constant 32 : index
    %c0_425 = arith.constant 0 : index
    %269 = vector.load %arg7[%c32_424, %c0_425] : memref<200x512xbf16, #tpu.memory_space<vmem>>, vector<8x512xbf16>
    tpu.vector_store %arg7[%c32_424, %c0_425], %268 {strides = array<i32>} : memref<200x512xbf16, #tpu.memory_space<vmem>>, vector<8x512xbf16>,
    %c0_426 = arith.constant 0 : index
    %c106_427 = arith.constant 106 : index
    %270 = vector.load %arg6[%c0_426, %c106_427] : memref<8x768xbf16, #tpu.memory_space<vmem>>, vector<8x512xbf16>
    %c40_428 = arith.constant 40 : index
    %c0_429 = arith.constant 0 : index
    %271 = vector.load %arg7[%c40_428, %c0_429] : memref<200x512xbf16, #tpu.memory_space<vmem>>, vector<8x512xbf16>
    tpu.vector_store %arg7[%c40_428, %c0_429], %270 {strides = array<i32>} : memref<200x512xbf16, #tpu.memory_space<vmem>>, vector<8x512xbf16>,
    %c0_430 = arith.constant 0 : index
    %c107_431 = arith.constant 107 : index
    %272 = vector.load %arg6[%c0_430, %c107_431] : memref<8x768xbf16, #tpu.memory_space<vmem>>, vector<8x512xbf16>
    %c48_432 = arith.constant 48 : index
    %c0_433 = arith.constant 0 : index
    %273 = vector.load %arg7[%c48_432, %c0_433] : memref<200x512xbf16, #tpu.memory_space<vmem>>, vector<8x512xbf16>
    tpu.vector_store %arg7[%c48_432, %c0_433], %272 {strides = array<i32>} : memref<200x512xbf16, #tpu.memory_space<vmem>>, vector<8x512xbf16>,
    %c0_434 = arith.constant 0 : index
    %c108_435 = arith.constant 108 : index
    %274 = vector.load %arg6[%c0_434, %c108_435] : memref<8x768xbf16, #tpu.memory_space<vmem>>, vector<8x512xbf16>
    %c56_436 = arith.constant 56 : index
    %c0_437 = arith.constant 0 : index
    %275 = vector.load %arg7[%c56_436, %c0_437] : memref<200x512xbf16, #tpu.memory_space<vmem>>, vector<8x512xbf16>
    tpu.vector_store %arg7[%c56_436, %c0_437], %274 {strides = array<i32>} : memref<200x512xbf16, #tpu.memory_space<vmem>>, vector<8x512xbf16>,
    %c0_438 = arith.constant 0 : index
    %c109_439 = arith.constant 109 : index
    %276 = vector.load %arg6[%c0_438, %c109_439] : memref<8x768xbf16, #tpu.memory_space<vmem>>, vector<8x512xbf16>
    %c64_440 = arith.constant 64 : index
    %c0_441 = arith.constant 0 : index
    %277 = vector.load %arg7[%c64_440, %c0_441] : memref<200x512xbf16, #tpu.memory_space<vmem>>, vector<8x512xbf16>
    tpu.vector_store %arg7[%c64_440, %c0_441], %276 {strides = array<i32>} : memref<200x512xbf16, #tpu.memory_space<vmem>>, vector<8x512xbf16>,
    %c0_442 = arith.constant 0 : index
    %c110_443 = arith.constant 110 : index
    %278 = vector.load %arg6[%c0_442, %c110_443] : memref<8x768xbf16, #tpu.memory_space<vmem>>, vector<8x512xbf16>
    %c72_444 = arith.constant 72 : index
    %c0_445 = arith.constant 0 : index
    %279 = vector.load %arg7[%c72_444, %c0_445] : memref<200x512xbf16, #tpu.memory_space<vmem>>, vector<8x512xbf16>
    tpu.vector_store %arg7[%c72_444, %c0_445], %278 {strides = array<i32>} : memref<200x512xbf16, #tpu.memory_space<vmem>>, vector<8x512xbf16>,
    %c0_446 = arith.constant 0 : index
    %c126_447 = arith.constant 126 : index
    %280 = vector.load %arg6[%c0_446, %c126_447] : memref<8x768xbf16, #tpu.memory_space<vmem>>, vector<8x512xbf16>
    %c80_448 = arith.constant 80 : index
    %c0_449 = arith.constant 0 : index
    %281 = vector.load %arg7[%c80_448, %c0_449] : memref<200x512xbf16, #tpu.memory_space<vmem>>, vector<8x512xbf16>
    tpu.vector_store %arg7[%c80_448, %c0_449], %280 {strides = array<i32>} : memref<200x512xbf16, #tpu.memory_space<vmem>>, vector<8x512xbf16>,
    %c0_450 = arith.constant 0 : index
    %c127_451 = arith.constant 127 : index
    %282 = vector.load %arg6[%c0_450, %c127_451] : memref<8x768xbf16, #tpu.memory_space<vmem>>, vector<8x512xbf16>
    %c88_452 = arith.constant 88 : index
    %c0_453 = arith.constant 0 : index
    %283 = vector.load %arg7[%c88_452, %c0_453] : memref<200x512xbf16, #tpu.memory_space<vmem>>, vector<8x512xbf16>
    tpu.vector_store %arg7[%c88_452, %c0_453], %282 {strides = array<i32>} : memref<200x512xbf16, #tpu.memory_space<vmem>>, vector<8x512xbf16>,
    %c0_454 = arith.constant 0 : index
    %c128_455 = arith.constant 128 : index
    %284 = vector.load %arg6[%c0_454, %c128_455] : memref<8x768xbf16, #tpu.memory_space<vmem>>, vector<8x512xbf16>
    %c96_456 = arith.constant 96 : index
    %c0_457 = arith.constant 0 : index
    %285 = vector.load %arg7[%c96_456, %c0_457] : memref<200x512xbf16, #tpu.memory_space<vmem>>, vector<8x512xbf16>
    tpu.vector_store %arg7[%c96_456, %c0_457], %284 {strides = array<i32>} : memref<200x512xbf16, #tpu.memory_space<vmem>>, vector<8x512xbf16>,
    %c0_458 = arith.constant 0 : index
    %c129_459 = arith.constant 129 : index
    %286 = vector.load %arg6[%c0_458, %c129_459] : memref<8x768xbf16, #tpu.memory_space<vmem>>, vector<8x512xbf16>
    %c104_460 = arith.constant 104 : index
    %c0_461 = arith.constant 0 : index
    %287 = vector.load %arg7[%c104_460, %c0_461] : memref<200x512xbf16, #tpu.memory_space<vmem>>, vector<8x512xbf16>
    tpu.vector_store %arg7[%c104_460, %c0_461], %286 {strides = array<i32>} : memref<200x512xbf16, #tpu.memory_space<vmem>>, vector<8x512xbf16>,
    %c0_462 = arith.constant 0 : index
    %c130_463 = arith.constant 130 : index
    %288 = vector.load %arg6[%c0_462, %c130_463] : memref<8x768xbf16, #tpu.memory_space<vmem>>, vector<8x512xbf16>
    %c112_464 = arith.constant 112 : index
    %c0_465 = arith.constant 0 : index
    %289 = vector.load %arg7[%c112_464, %c0_465] : memref<200x512xbf16, #tpu.memory_space<vmem>>, vector<8x512xbf16>
    tpu.vector_store %arg7[%c112_464, %c0_465], %288 {strides = array<i32>} : memref<200x512xbf16, #tpu.memory_space<vmem>>, vector<8x512xbf16>,
    %c0_466 = arith.constant 0 : index
    %c146_467 = arith.constant 146 : index
    %290 = vector.load %arg6[%c0_466, %c146_467] : memref<8x768xbf16, #tpu.memory_space<vmem>>, vector<8x512xbf16>
    %c120_468 = arith.constant 120 : index
    %c0_469 = arith.constant 0 : index
    %291 = vector.load %arg7[%c120_468, %c0_469] : memref<200x512xbf16, #tpu.memory_space<vmem>>, vector<8x512xbf16>
    tpu.vector_store %arg7[%c120_468, %c0_469], %290 {strides = array<i32>} : memref<200x512xbf16, #tpu.memory_space<vmem>>, vector<8x512xbf16>,
    %c0_470 = arith.constant 0 : index
    %c147_471 = arith.constant 147 : index
    %292 = vector.load %arg6[%c0_470, %c147_471] : memref<8x768xbf16, #tpu.memory_space<vmem>>, vector<8x512xbf16>
    %c128_472 = arith.constant 128 : index
    %c0_473 = arith.constant 0 : index
    %293 = vector.load %arg7[%c128_472, %c0_473] : memref<200x512xbf16, #tpu.memory_space<vmem>>, vector<8x512xbf16>
    tpu.vector_store %arg7[%c128_472, %c0_473], %292 {strides = array<i32>} : memref<200x512xbf16, #tpu.memory_space<vmem>>, vector<8x512xbf16>,
    %c0_474 = arith.constant 0 : index
    %c148_475 = arith.constant 148 : index
    %294 = vector.load %arg6[%c0_474, %c148_475] : memref<8x768xbf16, #tpu.memory_space<vmem>>, vector<8x512xbf16>
    %c136_476 = arith.constant 136 : index
    %c0_477 = arith.constant 0 : index
    %295 = vector.load %arg7[%c136_476, %c0_477] : memref<200x512xbf16, #tpu.memory_space<vmem>>, vector<8x512xbf16>
    tpu.vector_store %arg7[%c136_476, %c0_477], %294 {strides = array<i32>} : memref<200x512xbf16, #tpu.memory_space<vmem>>, vector<8x512xbf16>,
    %c0_478 = arith.constant 0 : index
    %c149_479 = arith.constant 149 : index
    %296 = vector.load %arg6[%c0_478, %c149_479] : memref<8x768xbf16, #tpu.memory_space<vmem>>, vector<8x512xbf16>
    %c144_480 = arith.constant 144 : index
    %c0_481 = arith.constant 0 : index
    %297 = vector.load %arg7[%c144_480, %c0_481] : memref<200x512xbf16, #tpu.memory_space<vmem>>, vector<8x512xbf16>
    tpu.vector_store %arg7[%c144_480, %c0_481], %296 {strides = array<i32>} : memref<200x512xbf16, #tpu.memory_space<vmem>>, vector<8x512xbf16>,
    %c0_482 = arith.constant 0 : index
    %c150_483 = arith.constant 150 : index
    %298 = vector.load %arg6[%c0_482, %c150_483] : memref<8x768xbf16, #tpu.memory_space<vmem>>, vector<8x512xbf16>
    %c152_484 = arith.constant 152 : index
    %c0_485 = arith.constant 0 : index
    %299 = vector.load %arg7[%c152_484, %c0_485] : memref<200x512xbf16, #tpu.memory_space<vmem>>, vector<8x512xbf16>
    tpu.vector_store %arg7[%c152_484, %c0_485], %298 {strides = array<i32>} : memref<200x512xbf16, #tpu.memory_space<vmem>>, vector<8x512xbf16>,
    %c0_486 = arith.constant 0 : index
    %c166_487 = arith.constant 166 : index
    %300 = vector.load %arg6[%c0_486, %c166_487] : memref<8x768xbf16, #tpu.memory_space<vmem>>, vector<8x512xbf16>
    %c160_488 = arith.constant 160 : index
    %c0_489 = arith.constant 0 : index
    %301 = vector.load %arg7[%c160_488, %c0_489] : memref<200x512xbf16, #tpu.memory_space<vmem>>, vector<8x512xbf16>
    tpu.vector_store %arg7[%c160_488, %c0_489], %300 {strides = array<i32>} : memref<200x512xbf16, #tpu.memory_space<vmem>>, vector<8x512xbf16>,
    %c0_490 = arith.constant 0 : index
    %c167_491 = arith.constant 167 : index
    %302 = vector.load %arg6[%c0_490, %c167_491] : memref<8x768xbf16, #tpu.memory_space<vmem>>, vector<8x512xbf16>
    %c168_492 = arith.constant 168 : index
    %c0_493 = arith.constant 0 : index
    %303 = vector.load %arg7[%c168_492, %c0_493] : memref<200x512xbf16, #tpu.memory_space<vmem>>, vector<8x512xbf16>
    tpu.vector_store %arg7[%c168_492, %c0_493], %302 {strides = array<i32>} : memref<200x512xbf16, #tpu.memory_space<vmem>>, vector<8x512xbf16>,
    %c0_494 = arith.constant 0 : index
    %c168_495 = arith.constant 168 : index
    %304 = vector.load %arg6[%c0_494, %c168_495] : memref<8x768xbf16, #tpu.memory_space<vmem>>, vector<8x512xbf16>
    %c176_496 = arith.constant 176 : index
    %c0_497 = arith.constant 0 : index
    %305 = vector.load %arg7[%c176_496, %c0_497] : memref<200x512xbf16, #tpu.memory_space<vmem>>, vector<8x512xbf16>
    tpu.vector_store %arg7[%c176_496, %c0_497], %304 {strides = array<i32>} : memref<200x512xbf16, #tpu.memory_space<vmem>>, vector<8x512xbf16>,
    %c0_498 = arith.constant 0 : index
    %c169_499 = arith.constant 169 : index
    %306 = vector.load %arg6[%c0_498, %c169_499] : memref<8x768xbf16, #tpu.memory_space<vmem>>, vector<8x512xbf16>
    %c184_500 = arith.constant 184 : index
    %c0_501 = arith.constant 0 : index
    %307 = vector.load %arg7[%c184_500, %c0_501] : memref<200x512xbf16, #tpu.memory_space<vmem>>, vector<8x512xbf16>
    tpu.vector_store %arg7[%c184_500, %c0_501], %306 {strides = array<i32>} : memref<200x512xbf16, #tpu.memory_space<vmem>>, vector<8x512xbf16>,
    %c0_502 = arith.constant 0 : index
    %c170_503 = arith.constant 170 : index
    %308 = vector.load %arg6[%c0_502, %c170_503] : memref<8x768xbf16, #tpu.memory_space<vmem>>, vector<8x512xbf16>
    %c192_504 = arith.constant 192 : index
    %c0_505 = arith.constant 0 : index
    %309 = vector.load %arg7[%c192_504, %c0_505] : memref<200x512xbf16, #tpu.memory_space<vmem>>, vector<8x512xbf16>
    tpu.vector_store %arg7[%c192_504, %c0_505], %308 {strides = array<i32>} : memref<200x512xbf16, #tpu.memory_space<vmem>>, vector<8x512xbf16>,
    %c4 = arith.constant 4 : index
    %c0_506 = arith.constant 0 : index
    %c0_507 = arith.constant 0 : index
    %310 = vector.load %arg3[%c4, %c0_506, %c0_507] : memref<7x8x200xbf16, #tpu.memory_space<vmem>>, vector<1x8x200xbf16>
    %311 = vector.shape_cast %310 : vector<1x8x200xbf16> to vector<8x200xbf16>
    %c0_508 = arith.constant 0 : index
    %c0_509 = arith.constant 0 : index
    %312 = vector.load %arg7[%c0_508, %c0_509] : memref<200x512xbf16, #tpu.memory_space<vmem>>, vector<200x512xbf16>
    %cst_510 = arith.constant dense<0.000000e+00> : vector<8x512xf32>
    %313 = tpu.matmul %311, %312, %cst_510 {dimension_numbers = #tpu.dot_dimension_numbers<[1], [0], [0], [1], [0, 0, 1, 1], [], []>} : vector<8x200xbf16>, vector<200x512xbf16>, vector<8x512xf32> -> vector<8x512xf32>
    %c4_511 = arith.constant 4 : index
    %c0_512 = arith.constant 0 : index
    %c0_513 = arith.constant 0 : index
    %314 = vector.load %arg4[%c4_511, %c0_512, %c0_513] : memref<7x8x1xf32, #tpu.memory_space<vmem>>, vector<1x8x1xf32>
    %315 = vector.shape_cast %314 : vector<1x8x1xf32> to vector<8x1xf32>
    %316 = vector.broadcast %315 : vector<8x1xf32> to vector<8x512xf32>
    %317 = arith.addf %313, %316 : vector<8x512xf32>
    %318 = arith.mulf %317, %5 : vector<8x512xf32>
    %cst_514 = arith.constant 0.000000e+00 : f32
    %319 = vector.broadcast %cst_514 : f32 to vector<8x512xf32>
    %320 = arith.maximumf %318, %319 : vector<8x512xf32>
    %321 = arith.truncf %320 : vector<8x512xf32> to vector<8x512xbf16>
    %c0_515 = arith.constant 0 : index
    %c128_516 = arith.constant 128 : index
    %322 = vector.load %arg6[%c0_515, %c128_516] : memref<8x768xbf16, #tpu.memory_space<vmem>>, vector<8x512xbf16>
    tpu.vector_store %arg6[%c0_515, %c128_516], %321 {strides = array<i32>} : memref<8x768xbf16, #tpu.memory_space<vmem>>, vector<8x512xbf16>,
    %c0_517 = arith.constant 0 : index
    %c86_518 = arith.constant 86 : index
    %323 = vector.load %arg6[%c0_517, %c86_518] : memref<8x768xbf16, #tpu.memory_space<vmem>>, vector<8x512xbf16>
    %c0_519 = arith.constant 0 : index
    %c0_520 = arith.constant 0 : index
    %324 = vector.load %arg7[%c0_519, %c0_520] : memref<200x512xbf16, #tpu.memory_space<vmem>>, vector<8x512xbf16>
    tpu.vector_store %arg7[%c0_519, %c0_520], %323 {strides = array<i32>} : memref<200x512xbf16, #tpu.memory_space<vmem>>, vector<8x512xbf16>,
    %c0_521 = arith.constant 0 : index
    %c87_522 = arith.constant 87 : index
    %325 = vector.load %arg6[%c0_521, %c87_522] : memref<8x768xbf16, #tpu.memory_space<vmem>>, vector<8x512xbf16>
    %c8_523 = arith.constant 8 : index
    %c0_524 = arith.constant 0 : index
    %326 = vector.load %arg7[%c8_523, %c0_524] : memref<200x512xbf16, #tpu.memory_space<vmem>>, vector<8x512xbf16>
    tpu.vector_store %arg7[%c8_523, %c0_524], %325 {strides = array<i32>} : memref<200x512xbf16, #tpu.memory_space<vmem>>, vector<8x512xbf16>,
    %c0_525 = arith.constant 0 : index
    %c88_526 = arith.constant 88 : index
    %327 = vector.load %arg6[%c0_525, %c88_526] : memref<8x768xbf16, #tpu.memory_space<vmem>>, vector<8x512xbf16>
    %c16_527 = arith.constant 16 : index
    %c0_528 = arith.constant 0 : index
    %328 = vector.load %arg7[%c16_527, %c0_528] : memref<200x512xbf16, #tpu.memory_space<vmem>>, vector<8x512xbf16>
    tpu.vector_store %arg7[%c16_527, %c0_528], %327 {strides = array<i32>} : memref<200x512xbf16, #tpu.memory_space<vmem>>, vector<8x512xbf16>,
    %c0_529 = arith.constant 0 : index
    %c89_530 = arith.constant 89 : index
    %329 = vector.load %arg6[%c0_529, %c89_530] : memref<8x768xbf16, #tpu.memory_space<vmem>>, vector<8x512xbf16>
    %c24_531 = arith.constant 24 : index
    %c0_532 = arith.constant 0 : index
    %330 = vector.load %arg7[%c24_531, %c0_532] : memref<200x512xbf16, #tpu.memory_space<vmem>>, vector<8x512xbf16>
    tpu.vector_store %arg7[%c24_531, %c0_532], %329 {strides = array<i32>} : memref<200x512xbf16, #tpu.memory_space<vmem>>, vector<8x512xbf16>,
    %c0_533 = arith.constant 0 : index
    %c90_534 = arith.constant 90 : index
    %331 = vector.load %arg6[%c0_533, %c90_534] : memref<8x768xbf16, #tpu.memory_space<vmem>>, vector<8x512xbf16>
    %c32_535 = arith.constant 32 : index
    %c0_536 = arith.constant 0 : index
    %332 = vector.load %arg7[%c32_535, %c0_536] : memref<200x512xbf16, #tpu.memory_space<vmem>>, vector<8x512xbf16>
    tpu.vector_store %arg7[%c32_535, %c0_536], %331 {strides = array<i32>} : memref<200x512xbf16, #tpu.memory_space<vmem>>, vector<8x512xbf16>,
    %c0_537 = arith.constant 0 : index
    %c106_538 = arith.constant 106 : index
    %333 = vector.load %arg6[%c0_537, %c106_538] : memref<8x768xbf16, #tpu.memory_space<vmem>>, vector<8x512xbf16>
    %c40_539 = arith.constant 40 : index
    %c0_540 = arith.constant 0 : index
    %334 = vector.load %arg7[%c40_539, %c0_540] : memref<200x512xbf16, #tpu.memory_space<vmem>>, vector<8x512xbf16>
    tpu.vector_store %arg7[%c40_539, %c0_540], %333 {strides = array<i32>} : memref<200x512xbf16, #tpu.memory_space<vmem>>, vector<8x512xbf16>,
    %c0_541 = arith.constant 0 : index
    %c107_542 = arith.constant 107 : index
    %335 = vector.load %arg6[%c0_541, %c107_542] : memref<8x768xbf16, #tpu.memory_space<vmem>>, vector<8x512xbf16>
    %c48_543 = arith.constant 48 : index
    %c0_544 = arith.constant 0 : index
    %336 = vector.load %arg7[%c48_543, %c0_544] : memref<200x512xbf16, #tpu.memory_space<vmem>>, vector<8x512xbf16>
    tpu.vector_store %arg7[%c48_543, %c0_544], %335 {strides = array<i32>} : memref<200x512xbf16, #tpu.memory_space<vmem>>, vector<8x512xbf16>,
    %c0_545 = arith.constant 0 : index
    %c108_546 = arith.constant 108 : index
    %337 = vector.load %arg6[%c0_545, %c108_546] : memref<8x768xbf16, #tpu.memory_space<vmem>>, vector<8x512xbf16>
    %c56_547 = arith.constant 56 : index
    %c0_548 = arith.constant 0 : index
    %338 = vector.load %arg7[%c56_547, %c0_548] : memref<200x512xbf16, #tpu.memory_space<vmem>>, vector<8x512xbf16>
    tpu.vector_store %arg7[%c56_547, %c0_548], %337 {strides = array<i32>} : memref<200x512xbf16, #tpu.memory_space<vmem>>, vector<8x512xbf16>,
    %c0_549 = arith.constant 0 : index
    %c109_550 = arith.constant 109 : index
    %339 = vector.load %arg6[%c0_549, %c109_550] : memref<8x768xbf16, #tpu.memory_space<vmem>>, vector<8x512xbf16>
    %c64_551 = arith.constant 64 : index
    %c0_552 = arith.constant 0 : index
    %340 = vector.load %arg7[%c64_551, %c0_552] : memref<200x512xbf16, #tpu.memory_space<vmem>>, vector<8x512xbf16>
    tpu.vector_store %arg7[%c64_551, %c0_552], %339 {strides = array<i32>} : memref<200x512xbf16, #tpu.memory_space<vmem>>, vector<8x512xbf16>,
    %c0_553 = arith.constant 0 : index
    %c110_554 = arith.constant 110 : index
    %341 = vector.load %arg6[%c0_553, %c110_554] : memref<8x768xbf16, #tpu.memory_space<vmem>>, vector<8x512xbf16>
    %c72_555 = arith.constant 72 : index
    %c0_556 = arith.constant 0 : index
    %342 = vector.load %arg7[%c72_555, %c0_556] : memref<200x512xbf16, #tpu.memory_space<vmem>>, vector<8x512xbf16>
    tpu.vector_store %arg7[%c72_555, %c0_556], %341 {strides = array<i32>} : memref<200x512xbf16, #tpu.memory_space<vmem>>, vector<8x512xbf16>,
    %c0_557 = arith.constant 0 : index
    %c126_558 = arith.constant 126 : index
    %343 = vector.load %arg6[%c0_557, %c126_558] : memref<8x768xbf16, #tpu.memory_space<vmem>>, vector<8x512xbf16>
    %c80_559 = arith.constant 80 : index
    %c0_560 = arith.constant 0 : index
    %344 = vector.load %arg7[%c80_559, %c0_560] : memref<200x512xbf16, #tpu.memory_space<vmem>>, vector<8x512xbf16>
    tpu.vector_store %arg7[%c80_559, %c0_560], %343 {strides = array<i32>} : memref<200x512xbf16, #tpu.memory_space<vmem>>, vector<8x512xbf16>,
    %c0_561 = arith.constant 0 : index
    %c127_562 = arith.constant 127 : index
    %345 = vector.load %arg6[%c0_561, %c127_562] : memref<8x768xbf16, #tpu.memory_space<vmem>>, vector<8x512xbf16>
    %c88_563 = arith.constant 88 : index
    %c0_564 = arith.constant 0 : index
    %346 = vector.load %arg7[%c88_563, %c0_564] : memref<200x512xbf16, #tpu.memory_space<vmem>>, vector<8x512xbf16>
    tpu.vector_store %arg7[%c88_563, %c0_564], %345 {strides = array<i32>} : memref<200x512xbf16, #tpu.memory_space<vmem>>, vector<8x512xbf16>,
    %c0_565 = arith.constant 0 : index
    %c128_566 = arith.constant 128 : index
    %347 = vector.load %arg6[%c0_565, %c128_566] : memref<8x768xbf16, #tpu.memory_space<vmem>>, vector<8x512xbf16>
    %c96_567 = arith.constant 96 : index
    %c0_568 = arith.constant 0 : index
    %348 = vector.load %arg7[%c96_567, %c0_568] : memref<200x512xbf16, #tpu.memory_space<vmem>>, vector<8x512xbf16>
    tpu.vector_store %arg7[%c96_567, %c0_568], %347 {strides = array<i32>} : memref<200x512xbf16, #tpu.memory_space<vmem>>, vector<8x512xbf16>,
    %c0_569 = arith.constant 0 : index
    %c129_570 = arith.constant 129 : index
    %349 = vector.load %arg6[%c0_569, %c129_570] : memref<8x768xbf16, #tpu.memory_space<vmem>>, vector<8x512xbf16>
    %c104_571 = arith.constant 104 : index
    %c0_572 = arith.constant 0 : index
    %350 = vector.load %arg7[%c104_571, %c0_572] : memref<200x512xbf16, #tpu.memory_space<vmem>>, vector<8x512xbf16>
    tpu.vector_store %arg7[%c104_571, %c0_572], %349 {strides = array<i32>} : memref<200x512xbf16, #tpu.memory_space<vmem>>, vector<8x512xbf16>,
    %c0_573 = arith.constant 0 : index
    %c130_574 = arith.constant 130 : index
    %351 = vector.load %arg6[%c0_573, %c130_574] : memref<8x768xbf16, #tpu.memory_space<vmem>>, vector<8x512xbf16>
    %c112_575 = arith.constant 112 : index
    %c0_576 = arith.constant 0 : index
    %352 = vector.load %arg7[%c112_575, %c0_576] : memref<200x512xbf16, #tpu.memory_space<vmem>>, vector<8x512xbf16>
    tpu.vector_store %arg7[%c112_575, %c0_576], %351 {strides = array<i32>} : memref<200x512xbf16, #tpu.memory_space<vmem>>, vector<8x512xbf16>,
    %c0_577 = arith.constant 0 : index
    %c146_578 = arith.constant 146 : index
    %353 = vector.load %arg6[%c0_577, %c146_578] : memref<8x768xbf16, #tpu.memory_space<vmem>>, vector<8x512xbf16>
    %c120_579 = arith.constant 120 : index
    %c0_580 = arith.constant 0 : index
    %354 = vector.load %arg7[%c120_579, %c0_580] : memref<200x512xbf16, #tpu.memory_space<vmem>>, vector<8x512xbf16>
    tpu.vector_store %arg7[%c120_579, %c0_580], %353 {strides = array<i32>} : memref<200x512xbf16, #tpu.memory_space<vmem>>, vector<8x512xbf16>,
    %c0_581 = arith.constant 0 : index
    %c147_582 = arith.constant 147 : index
    %355 = vector.load %arg6[%c0_581, %c147_582] : memref<8x768xbf16, #tpu.memory_space<vmem>>, vector<8x512xbf16>
    %c128_583 = arith.constant 128 : index
    %c0_584 = arith.constant 0 : index
    %356 = vector.load %arg7[%c128_583, %c0_584] : memref<200x512xbf16, #tpu.memory_space<vmem>>, vector<8x512xbf16>
    tpu.vector_store %arg7[%c128_583, %c0_584], %355 {strides = array<i32>} : memref<200x512xbf16, #tpu.memory_space<vmem>>, vector<8x512xbf16>,
    %c0_585 = arith.constant 0 : index
    %c148_586 = arith.constant 148 : index
    %357 = vector.load %arg6[%c0_585, %c148_586] : memref<8x768xbf16, #tpu.memory_space<vmem>>, vector<8x512xbf16>
    %c136_587 = arith.constant 136 : index
    %c0_588 = arith.constant 0 : index
    %358 = vector.load %arg7[%c136_587, %c0_588] : memref<200x512xbf16, #tpu.memory_space<vmem>>, vector<8x512xbf16>
    tpu.vector_store %arg7[%c136_587, %c0_588], %357 {strides = array<i32>} : memref<200x512xbf16, #tpu.memory_space<vmem>>, vector<8x512xbf16>,
    %c0_589 = arith.constant 0 : index
    %c149_590 = arith.constant 149 : index
    %359 = vector.load %arg6[%c0_589, %c149_590] : memref<8x768xbf16, #tpu.memory_space<vmem>>, vector<8x512xbf16>
    %c144_591 = arith.constant 144 : index
    %c0_592 = arith.constant 0 : index
    %360 = vector.load %arg7[%c144_591, %c0_592] : memref<200x512xbf16, #tpu.memory_space<vmem>>, vector<8x512xbf16>
    tpu.vector_store %arg7[%c144_591, %c0_592], %359 {strides = array<i32>} : memref<200x512xbf16, #tpu.memory_space<vmem>>, vector<8x512xbf16>,
    %c0_593 = arith.constant 0 : index
    %c150_594 = arith.constant 150 : index
    %361 = vector.load %arg6[%c0_593, %c150_594] : memref<8x768xbf16, #tpu.memory_space<vmem>>, vector<8x512xbf16>
    %c152_595 = arith.constant 152 : index
    %c0_596 = arith.constant 0 : index
    %362 = vector.load %arg7[%c152_595, %c0_596] : memref<200x512xbf16, #tpu.memory_space<vmem>>, vector<8x512xbf16>
    tpu.vector_store %arg7[%c152_595, %c0_596], %361 {strides = array<i32>} : memref<200x512xbf16, #tpu.memory_space<vmem>>, vector<8x512xbf16>,
    %c0_597 = arith.constant 0 : index
    %c166_598 = arith.constant 166 : index
    %363 = vector.load %arg6[%c0_597, %c166_598] : memref<8x768xbf16, #tpu.memory_space<vmem>>, vector<8x512xbf16>
    %c160_599 = arith.constant 160 : index
    %c0_600 = arith.constant 0 : index
    %364 = vector.load %arg7[%c160_599, %c0_600] : memref<200x512xbf16, #tpu.memory_space<vmem>>, vector<8x512xbf16>
    tpu.vector_store %arg7[%c160_599, %c0_600], %363 {strides = array<i32>} : memref<200x512xbf16, #tpu.memory_space<vmem>>, vector<8x512xbf16>,
    %c0_601 = arith.constant 0 : index
    %c167_602 = arith.constant 167 : index
    %365 = vector.load %arg6[%c0_601, %c167_602] : memref<8x768xbf16, #tpu.memory_space<vmem>>, vector<8x512xbf16>
    %c168_603 = arith.constant 168 : index
    %c0_604 = arith.constant 0 : index
    %366 = vector.load %arg7[%c168_603, %c0_604] : memref<200x512xbf16, #tpu.memory_space<vmem>>, vector<8x512xbf16>
    tpu.vector_store %arg7[%c168_603, %c0_604], %365 {strides = array<i32>} : memref<200x512xbf16, #tpu.memory_space<vmem>>, vector<8x512xbf16>,
    %c0_605 = arith.constant 0 : index
    %c168_606 = arith.constant 168 : index
    %367 = vector.load %arg6[%c0_605, %c168_606] : memref<8x768xbf16, #tpu.memory_space<vmem>>, vector<8x512xbf16>
    %c176_607 = arith.constant 176 : index
    %c0_608 = arith.constant 0 : index
    %368 = vector.load %arg7[%c176_607, %c0_608] : memref<200x512xbf16, #tpu.memory_space<vmem>>, vector<8x512xbf16>
    tpu.vector_store %arg7[%c176_607, %c0_608], %367 {strides = array<i32>} : memref<200x512xbf16, #tpu.memory_space<vmem>>, vector<8x512xbf16>,
    %c0_609 = arith.constant 0 : index
    %c169_610 = arith.constant 169 : index
    %369 = vector.load %arg6[%c0_609, %c169_610] : memref<8x768xbf16, #tpu.memory_space<vmem>>, vector<8x512xbf16>
    %c184_611 = arith.constant 184 : index
    %c0_612 = arith.constant 0 : index
    %370 = vector.load %arg7[%c184_611, %c0_612] : memref<200x512xbf16, #tpu.memory_space<vmem>>, vector<8x512xbf16>
    tpu.vector_store %arg7[%c184_611, %c0_612], %369 {strides = array<i32>} : memref<200x512xbf16, #tpu.memory_space<vmem>>, vector<8x512xbf16>,
    %c0_613 = arith.constant 0 : index
    %c170_614 = arith.constant 170 : index
    %371 = vector.load %arg6[%c0_613, %c170_614] : memref<8x768xbf16, #tpu.memory_space<vmem>>, vector<8x512xbf16>
    %c192_615 = arith.constant 192 : index
    %c0_616 = arith.constant 0 : index
    %372 = vector.load %arg7[%c192_615, %c0_616] : memref<200x512xbf16, #tpu.memory_space<vmem>>, vector<8x512xbf16>
    tpu.vector_store %arg7[%c192_615, %c0_616], %371 {strides = array<i32>} : memref<200x512xbf16, #tpu.memory_space<vmem>>, vector<8x512xbf16>,
    %c5 = arith.constant 5 : index
    %c0_617 = arith.constant 0 : index
    %c0_618 = arith.constant 0 : index
    %373 = vector.load %arg3[%c5, %c0_617, %c0_618] : memref<7x8x200xbf16, #tpu.memory_space<vmem>>, vector<1x8x200xbf16>
    %374 = vector.shape_cast %373 : vector<1x8x200xbf16> to vector<8x200xbf16>
    %c0_619 = arith.constant 0 : index
    %c0_620 = arith.constant 0 : index
    %375 = vector.load %arg7[%c0_619, %c0_620] : memref<200x512xbf16, #tpu.memory_space<vmem>>, vector<200x512xbf16>
    %cst_621 = arith.constant dense<0.000000e+00> : vector<8x512xf32>
    %376 = tpu.matmul %374, %375, %cst_621 {dimension_numbers = #tpu.dot_dimension_numbers<[1], [0], [0], [1], [0, 0, 1, 1], [], []>} : vector<8x200xbf16>, vector<200x512xbf16>, vector<8x512xf32> -> vector<8x512xf32>
    %c5_622 = arith.constant 5 : index
    %c0_623 = arith.constant 0 : index
    %c0_624 = arith.constant 0 : index
    %377 = vector.load %arg4[%c5_622, %c0_623, %c0_624] : memref<7x8x1xf32, #tpu.memory_space<vmem>>, vector<1x8x1xf32>
    %378 = vector.shape_cast %377 : vector<1x8x1xf32> to vector<8x1xf32>
    %379 = vector.broadcast %378 : vector<8x1xf32> to vector<8x512xf32>
    %380 = arith.addf %376, %379 : vector<8x512xf32>
    %381 = arith.mulf %380, %5 : vector<8x512xf32>
    %382 = arith.addf %257, %381 : vector<8x512xf32>
    %383 = arith.truncf %382 : vector<8x512xf32> to vector<8x512xbf16>
    %c0_625 = arith.constant 0 : index
    %c128_626 = arith.constant 128 : index
    %384 = vector.load %arg6[%c0_625, %c128_626] : memref<8x768xbf16, #tpu.memory_space<vmem>>, vector<8x512xbf16>
    tpu.vector_store %arg6[%c0_625, %c128_626], %383 {strides = array<i32>} : memref<8x768xbf16, #tpu.memory_space<vmem>>, vector<8x512xbf16>,
    %c0_627 = arith.constant 0 : index
    %c86_628 = arith.constant 86 : index
    %385 = vector.load %arg6[%c0_627, %c86_628] : memref<8x768xbf16, #tpu.memory_space<vmem>>, vector<8x512xbf16>
    %c0_629 = arith.constant 0 : index
    %c0_630 = arith.constant 0 : index
    %386 = vector.load %arg7[%c0_629, %c0_630] : memref<200x512xbf16, #tpu.memory_space<vmem>>, vector<8x512xbf16>
    tpu.vector_store %arg7[%c0_629, %c0_630], %385 {strides = array<i32>} : memref<200x512xbf16, #tpu.memory_space<vmem>>, vector<8x512xbf16>,
    %c0_631 = arith.constant 0 : index
    %c87_632 = arith.constant 87 : index
    %387 = vector.load %arg6[%c0_631, %c87_632] : memref<8x768xbf16, #tpu.memory_space<vmem>>, vector<8x512xbf16>
    %c8_633 = arith.constant 8 : index
    %c0_634 = arith.constant 0 : index
    %388 = vector.load %arg7[%c8_633, %c0_634] : memref<200x512xbf16, #tpu.memory_space<vmem>>, vector<8x512xbf16>
    tpu.vector_store %arg7[%c8_633, %c0_634], %387 {strides = array<i32>} : memref<200x512xbf16, #tpu.memory_space<vmem>>, vector<8x512xbf16>,
    %c0_635 = arith.constant 0 : index
    %c88_636 = arith.constant 88 : index
    %389 = vector.load %arg6[%c0_635, %c88_636] : memref<8x768xbf16, #tpu.memory_space<vmem>>, vector<8x512xbf16>
    %c16_637 = arith.constant 16 : index
    %c0_638 = arith.constant 0 : index
    %390 = vector.load %arg7[%c16_637, %c0_638] : memref<200x512xbf16, #tpu.memory_space<vmem>>, vector<8x512xbf16>
    tpu.vector_store %arg7[%c16_637, %c0_638], %389 {strides = array<i32>} : memref<200x512xbf16, #tpu.memory_space<vmem>>, vector<8x512xbf16>,
    %c0_639 = arith.constant 0 : index
    %c89_640 = arith.constant 89 : index
    %391 = vector.load %arg6[%c0_639, %c89_640] : memref<8x768xbf16, #tpu.memory_space<vmem>>, vector<8x512xbf16>
    %c24_641 = arith.constant 24 : index
    %c0_642 = arith.constant 0 : index
    %392 = vector.load %arg7[%c24_641, %c0_642] : memref<200x512xbf16, #tpu.memory_space<vmem>>, vector<8x512xbf16>
    tpu.vector_store %arg7[%c24_641, %c0_642], %391 {strides = array<i32>} : memref<200x512xbf16, #tpu.memory_space<vmem>>, vector<8x512xbf16>,
    %c0_643 = arith.constant 0 : index
    %c90_644 = arith.constant 90 : index
    %393 = vector.load %arg6[%c0_643, %c90_644] : memref<8x768xbf16, #tpu.memory_space<vmem>>, vector<8x512xbf16>
    %c32_645 = arith.constant 32 : index
    %c0_646 = arith.constant 0 : index
    %394 = vector.load %arg7[%c32_645, %c0_646] : memref<200x512xbf16, #tpu.memory_space<vmem>>, vector<8x512xbf16>
    tpu.vector_store %arg7[%c32_645, %c0_646], %393 {strides = array<i32>} : memref<200x512xbf16, #tpu.memory_space<vmem>>, vector<8x512xbf16>,
    %c0_647 = arith.constant 0 : index
    %c106_648 = arith.constant 106 : index
    %395 = vector.load %arg6[%c0_647, %c106_648] : memref<8x768xbf16, #tpu.memory_space<vmem>>, vector<8x512xbf16>
    %c40_649 = arith.constant 40 : index
    %c0_650 = arith.constant 0 : index
    %396 = vector.load %arg7[%c40_649, %c0_650] : memref<200x512xbf16, #tpu.memory_space<vmem>>, vector<8x512xbf16>
    tpu.vector_store %arg7[%c40_649, %c0_650], %395 {strides = array<i32>} : memref<200x512xbf16, #tpu.memory_space<vmem>>, vector<8x512xbf16>,
    %c0_651 = arith.constant 0 : index
    %c107_652 = arith.constant 107 : index
    %397 = vector.load %arg6[%c0_651, %c107_652] : memref<8x768xbf16, #tpu.memory_space<vmem>>, vector<8x512xbf16>
    %c48_653 = arith.constant 48 : index
    %c0_654 = arith.constant 0 : index
    %398 = vector.load %arg7[%c48_653, %c0_654] : memref<200x512xbf16, #tpu.memory_space<vmem>>, vector<8x512xbf16>
    tpu.vector_store %arg7[%c48_653, %c0_654], %397 {strides = array<i32>} : memref<200x512xbf16, #tpu.memory_space<vmem>>, vector<8x512xbf16>,
    %c0_655 = arith.constant 0 : index
    %c108_656 = arith.constant 108 : index
    %399 = vector.load %arg6[%c0_655, %c108_656] : memref<8x768xbf16, #tpu.memory_space<vmem>>, vector<8x512xbf16>
    %c56_657 = arith.constant 56 : index
    %c0_658 = arith.constant 0 : index
    %400 = vector.load %arg7[%c56_657, %c0_658] : memref<200x512xbf16, #tpu.memory_space<vmem>>, vector<8x512xbf16>
    tpu.vector_store %arg7[%c56_657, %c0_658], %399 {strides = array<i32>} : memref<200x512xbf16, #tpu.memory_space<vmem>>, vector<8x512xbf16>,
    %c0_659 = arith.constant 0 : index
    %c109_660 = arith.constant 109 : index
    %401 = vector.load %arg6[%c0_659, %c109_660] : memref<8x768xbf16, #tpu.memory_space<vmem>>, vector<8x512xbf16>
    %c64_661 = arith.constant 64 : index
    %c0_662 = arith.constant 0 : index
    %402 = vector.load %arg7[%c64_661, %c0_662] : memref<200x512xbf16, #tpu.memory_space<vmem>>, vector<8x512xbf16>
    tpu.vector_store %arg7[%c64_661, %c0_662], %401 {strides = array<i32>} : memref<200x512xbf16, #tpu.memory_space<vmem>>, vector<8x512xbf16>,
    %c0_663 = arith.constant 0 : index
    %c110_664 = arith.constant 110 : index
    %403 = vector.load %arg6[%c0_663, %c110_664] : memref<8x768xbf16, #tpu.memory_space<vmem>>, vector<8x512xbf16>
    %c72_665 = arith.constant 72 : index
    %c0_666 = arith.constant 0 : index
    %404 = vector.load %arg7[%c72_665, %c0_666] : memref<200x512xbf16, #tpu.memory_space<vmem>>, vector<8x512xbf16>
    tpu.vector_store %arg7[%c72_665, %c0_666], %403 {strides = array<i32>} : memref<200x512xbf16, #tpu.memory_space<vmem>>, vector<8x512xbf16>,
    %c0_667 = arith.constant 0 : index
    %c126_668 = arith.constant 126 : index
    %405 = vector.load %arg6[%c0_667, %c126_668] : memref<8x768xbf16, #tpu.memory_space<vmem>>, vector<8x512xbf16>
    %c80_669 = arith.constant 80 : index
    %c0_670 = arith.constant 0 : index
    %406 = vector.load %arg7[%c80_669, %c0_670] : memref<200x512xbf16, #tpu.memory_space<vmem>>, vector<8x512xbf16>
    tpu.vector_store %arg7[%c80_669, %c0_670], %405 {strides = array<i32>} : memref<200x512xbf16, #tpu.memory_space<vmem>>, vector<8x512xbf16>,
    %c0_671 = arith.constant 0 : index
    %c127_672 = arith.constant 127 : index
    %407 = vector.load %arg6[%c0_671, %c127_672] : memref<8x768xbf16, #tpu.memory_space<vmem>>, vector<8x512xbf16>
    %c88_673 = arith.constant 88 : index
    %c0_674 = arith.constant 0 : index
    %408 = vector.load %arg7[%c88_673, %c0_674] : memref<200x512xbf16, #tpu.memory_space<vmem>>, vector<8x512xbf16>
    tpu.vector_store %arg7[%c88_673, %c0_674], %407 {strides = array<i32>} : memref<200x512xbf16, #tpu.memory_space<vmem>>, vector<8x512xbf16>,
    %c0_675 = arith.constant 0 : index
    %c128_676 = arith.constant 128 : index
    %409 = vector.load %arg6[%c0_675, %c128_676] : memref<8x768xbf16, #tpu.memory_space<vmem>>, vector<8x512xbf16>
    %c96_677 = arith.constant 96 : index
    %c0_678 = arith.constant 0 : index
    %410 = vector.load %arg7[%c96_677, %c0_678] : memref<200x512xbf16, #tpu.memory_space<vmem>>, vector<8x512xbf16>
    tpu.vector_store %arg7[%c96_677, %c0_678], %409 {strides = array<i32>} : memref<200x512xbf16, #tpu.memory_space<vmem>>, vector<8x512xbf16>,
    %c0_679 = arith.constant 0 : index
    %c129_680 = arith.constant 129 : index
    %411 = vector.load %arg6[%c0_679, %c129_680] : memref<8x768xbf16, #tpu.memory_space<vmem>>, vector<8x512xbf16>
    %c104_681 = arith.constant 104 : index
    %c0_682 = arith.constant 0 : index
    %412 = vector.load %arg7[%c104_681, %c0_682] : memref<200x512xbf16, #tpu.memory_space<vmem>>, vector<8x512xbf16>
    tpu.vector_store %arg7[%c104_681, %c0_682], %411 {strides = array<i32>} : memref<200x512xbf16, #tpu.memory_space<vmem>>, vector<8x512xbf16>,
    %c0_683 = arith.constant 0 : index
    %c130_684 = arith.constant 130 : index
    %413 = vector.load %arg6[%c0_683, %c130_684] : memref<8x768xbf16, #tpu.memory_space<vmem>>, vector<8x512xbf16>
    %c112_685 = arith.constant 112 : index
    %c0_686 = arith.constant 0 : index
    %414 = vector.load %arg7[%c112_685, %c0_686] : memref<200x512xbf16, #tpu.memory_space<vmem>>, vector<8x512xbf16>
    tpu.vector_store %arg7[%c112_685, %c0_686], %413 {strides = array<i32>} : memref<200x512xbf16, #tpu.memory_space<vmem>>, vector<8x512xbf16>,
    %c0_687 = arith.constant 0 : index
    %c146_688 = arith.constant 146 : index
    %415 = vector.load %arg6[%c0_687, %c146_688] : memref<8x768xbf16, #tpu.memory_space<vmem>>, vector<8x512xbf16>
    %c120_689 = arith.constant 120 : index
    %c0_690 = arith.constant 0 : index
    %416 = vector.load %arg7[%c120_689, %c0_690] : memref<200x512xbf16, #tpu.memory_space<vmem>>, vector<8x512xbf16>
    tpu.vector_store %arg7[%c120_689, %c0_690], %415 {strides = array<i32>} : memref<200x512xbf16, #tpu.memory_space<vmem>>, vector<8x512xbf16>,
    %c0_691 = arith.constant 0 : index
    %c147_692 = arith.constant 147 : index
    %417 = vector.load %arg6[%c0_691, %c147_692] : memref<8x768xbf16, #tpu.memory_space<vmem>>, vector<8x512xbf16>
    %c128_693 = arith.constant 128 : index
    %c0_694 = arith.constant 0 : index
    %418 = vector.load %arg7[%c128_693, %c0_694] : memref<200x512xbf16, #tpu.memory_space<vmem>>, vector<8x512xbf16>
    tpu.vector_store %arg7[%c128_693, %c0_694], %417 {strides = array<i32>} : memref<200x512xbf16, #tpu.memory_space<vmem>>, vector<8x512xbf16>,
    %c0_695 = arith.constant 0 : index
    %c148_696 = arith.constant 148 : index
    %419 = vector.load %arg6[%c0_695, %c148_696] : memref<8x768xbf16, #tpu.memory_space<vmem>>, vector<8x512xbf16>
    %c136_697 = arith.constant 136 : index
    %c0_698 = arith.constant 0 : index
    %420 = vector.load %arg7[%c136_697, %c0_698] : memref<200x512xbf16, #tpu.memory_space<vmem>>, vector<8x512xbf16>
    tpu.vector_store %arg7[%c136_697, %c0_698], %419 {strides = array<i32>} : memref<200x512xbf16, #tpu.memory_space<vmem>>, vector<8x512xbf16>,
    %c0_699 = arith.constant 0 : index
    %c149_700 = arith.constant 149 : index
    %421 = vector.load %arg6[%c0_699, %c149_700] : memref<8x768xbf16, #tpu.memory_space<vmem>>, vector<8x512xbf16>
    %c144_701 = arith.constant 144 : index
    %c0_702 = arith.constant 0 : index
    %422 = vector.load %arg7[%c144_701, %c0_702] : memref<200x512xbf16, #tpu.memory_space<vmem>>, vector<8x512xbf16>
    tpu.vector_store %arg7[%c144_701, %c0_702], %421 {strides = array<i32>} : memref<200x512xbf16, #tpu.memory_space<vmem>>, vector<8x512xbf16>,
    %c0_703 = arith.constant 0 : index
    %c150_704 = arith.constant 150 : index
    %423 = vector.load %arg6[%c0_703, %c150_704] : memref<8x768xbf16, #tpu.memory_space<vmem>>, vector<8x512xbf16>
    %c152_705 = arith.constant 152 : index
    %c0_706 = arith.constant 0 : index
    %424 = vector.load %arg7[%c152_705, %c0_706] : memref<200x512xbf16, #tpu.memory_space<vmem>>, vector<8x512xbf16>
    tpu.vector_store %arg7[%c152_705, %c0_706], %423 {strides = array<i32>} : memref<200x512xbf16, #tpu.memory_space<vmem>>, vector<8x512xbf16>,
    %c0_707 = arith.constant 0 : index
    %c166_708 = arith.constant 166 : index
    %425 = vector.load %arg6[%c0_707, %c166_708] : memref<8x768xbf16, #tpu.memory_space<vmem>>, vector<8x512xbf16>
    %c160_709 = arith.constant 160 : index
    %c0_710 = arith.constant 0 : index
    %426 = vector.load %arg7[%c160_709, %c0_710] : memref<200x512xbf16, #tpu.memory_space<vmem>>, vector<8x512xbf16>
    tpu.vector_store %arg7[%c160_709, %c0_710], %425 {strides = array<i32>} : memref<200x512xbf16, #tpu.memory_space<vmem>>, vector<8x512xbf16>,
    %c0_711 = arith.constant 0 : index
    %c167_712 = arith.constant 167 : index
    %427 = vector.load %arg6[%c0_711, %c167_712] : memref<8x768xbf16, #tpu.memory_space<vmem>>, vector<8x512xbf16>
    %c168_713 = arith.constant 168 : index
    %c0_714 = arith.constant 0 : index
    %428 = vector.load %arg7[%c168_713, %c0_714] : memref<200x512xbf16, #tpu.memory_space<vmem>>, vector<8x512xbf16>
    tpu.vector_store %arg7[%c168_713, %c0_714], %427 {strides = array<i32>} : memref<200x512xbf16, #tpu.memory_space<vmem>>, vector<8x512xbf16>,
    %c0_715 = arith.constant 0 : index
    %c168_716 = arith.constant 168 : index
    %429 = vector.load %arg6[%c0_715, %c168_716] : memref<8x768xbf16, #tpu.memory_space<vmem>>, vector<8x512xbf16>
    %c176_717 = arith.constant 176 : index
    %c0_718 = arith.constant 0 : index
    %430 = vector.load %arg7[%c176_717, %c0_718] : memref<200x512xbf16, #tpu.memory_space<vmem>>, vector<8x512xbf16>
    tpu.vector_store %arg7[%c176_717, %c0_718], %429 {strides = array<i32>} : memref<200x512xbf16, #tpu.memory_space<vmem>>, vector<8x512xbf16>,
    %c0_719 = arith.constant 0 : index
    %c169_720 = arith.constant 169 : index
    %431 = vector.load %arg6[%c0_719, %c169_720] : memref<8x768xbf16, #tpu.memory_space<vmem>>, vector<8x512xbf16>
    %c184_721 = arith.constant 184 : index
    %c0_722 = arith.constant 0 : index
    %432 = vector.load %arg7[%c184_721, %c0_722] : memref<200x512xbf16, #tpu.memory_space<vmem>>, vector<8x512xbf16>
    tpu.vector_store %arg7[%c184_721, %c0_722], %431 {strides = array<i32>} : memref<200x512xbf16, #tpu.memory_space<vmem>>, vector<8x512xbf16>,
    %c0_723 = arith.constant 0 : index
    %c170_724 = arith.constant 170 : index
    %433 = vector.load %arg6[%c0_723, %c170_724] : memref<8x768xbf16, #tpu.memory_space<vmem>>, vector<8x512xbf16>
    %c192_725 = arith.constant 192 : index
    %c0_726 = arith.constant 0 : index
    %434 = vector.load %arg7[%c192_725, %c0_726] : memref<200x512xbf16, #tpu.memory_space<vmem>>, vector<8x512xbf16>
    tpu.vector_store %arg7[%c192_725, %c0_726], %433 {strides = array<i32>} : memref<200x512xbf16, #tpu.memory_space<vmem>>, vector<8x512xbf16>,
    %c6 = arith.constant 6 : index
    %c0_727 = arith.constant 0 : index
    %c0_728 = arith.constant 0 : index
    %435 = vector.load %arg3[%c6, %c0_727, %c0_728] : memref<7x8x200xbf16, #tpu.memory_space<vmem>>, vector<1x8x200xbf16>
    %436 = vector.shape_cast %435 : vector<1x8x200xbf16> to vector<8x200xbf16>
    %c0_729 = arith.constant 0 : index
    %c0_730 = arith.constant 0 : index
    %437 = vector.load %arg7[%c0_729, %c0_730] : memref<200x512xbf16, #tpu.memory_space<vmem>>, vector<200x512xbf16>
    %cst_731 = arith.constant dense<0.000000e+00> : vector<8x512xf32>
    %438 = tpu.matmul %436, %437, %cst_731 {dimension_numbers = #tpu.dot_dimension_numbers<[1], [0], [0], [1], [0, 0, 1, 1], [], []>} : vector<8x200xbf16>, vector<200x512xbf16>, vector<8x512xf32> -> vector<8x512xf32>
    %c6_732 = arith.constant 6 : index
    %c0_733 = arith.constant 0 : index
    %c0_734 = arith.constant 0 : index
    %439 = vector.load %arg4[%c6_732, %c0_733, %c0_734] : memref<7x8x1xf32, #tpu.memory_space<vmem>>, vector<1x8x1xf32>
    %440 = vector.shape_cast %439 : vector<1x8x1xf32> to vector<8x1xf32>
    %441 = vector.broadcast %440 : vector<8x1xf32> to vector<8x512xf32>
    %442 = arith.addf %438, %441 : vector<8x512xf32>
    %443 = vector.extract_strided_slice %442 {offsets = [0, 0], sizes = [1, 512], strides = [1, 1]} : vector<8x512xf32> to vector<1x512xf32>
    %c0_735 = arith.constant 0 : index
    %c0_736 = arith.constant 0 : index
    %c0_737 = arith.constant 0 : index
    %444 = vector.load %arg5[%c0_735, %c0_736, %c0_737] : memref<1x1x512xf32, #tpu.memory_space<vmem>>, vector<1x1x512xf32>
    %445 = vector.shape_cast %444 : vector<1x1x512xf32> to vector<1x512xf32>
    %446 = vector.shape_cast %443 : vector<1x512xf32> to vector<1x1x512xf32>
    tpu.vector_store %arg5[%c0_735, %c0_736, %c0_737], %446 {strides = array<i32>} : memref<1x1x512xf32, #tpu.memory_space<vmem>>, vector<1x1x512xf32>,
    return
  }
  func.func @transform_0(%arg0: i32) -> (i32, i32, i32) {
    %c0_i32 = arith.constant 0 : i32
    %c0_i32_0 = arith.constant 0 : i32
    %c0_i32_1 = arith.constant 0 : i32
    return %arg0, %c0_i32, %c0_i32_0 : i32, i32, i32
  }
  func.func @transform_1(%arg0: i32) -> (i32, i32) {
    %c0_i32 = arith.constant 0 : i32
    %c0_i32_0 = arith.constant 0 : i32
    %c0_i32_1 = arith.constant 0 : i32
    return %c0_i32, %c0_i32_0 : i32, i32
  }
  func.func @transform_2(%arg0: i32) -> (i32, i32, i32) {
    %c0_i32 = arith.constant 0 : i32
    %c0_i32_0 = arith.constant 0 : i32
    %c0_i32_1 = arith.constant 0 : i32
    %c0_i32_2 = arith.constant 0 : i32
    return %c0_i32, %c0_i32_0, %c0_i32_1 : i32, i32, i32
  }
  func.func @transform_3(%arg0: i32) -> (i32, i32, i32) {
    %c0_i32 = arith.constant 0 : i32
    %c0_i32_0 = arith.constant 0 : i32
    %c0_i32_1 = arith.constant 0 : i32
    %c0_i32_2 = arith.constant 0 : i32
    return %c0_i32, %c0_i32_0, %c0_i32_1 : i32, i32, i32
  }
  func.func @transform_4(%arg0: i32) -> (i32, i32, i32) {
    %c0_i32 = arith.constant 0 : i32
    %c0_i32_0 = arith.constant 0 : i32
    %c0_i32_1 = arith.constant 0 : i32
    return %arg0, %c0_i32, %c0_i32_0 : i32, i32, i32
  }
}

</mosaic_0001>

<llo_original>
// kernel: outblock_pallas.1
$region0: #{outblock_pallas.1}
  #allocation0 [shape = 'u32[]', space=smem, size = 0x4, offset = 0x4, fixed_abs, tag = 'smem constant byte address 0x4 - core index']
  #allocation1 [shape = 'u32[144,128]{1,0:T(1,128)}', space=vmem, size = 0x12000, scoped, tag = 'internal scratch']
  #allocation2 [shape = 'bf16[8,768]{1,0:T(8,128)(2,1)}', space=vmem, size = 0x3000, scoped, tag = 'scratch operand']
  #allocation3 [shape = 'bf16[200,512]{1,0:T(8,128)(2,1)}', space=vmem, size = 0x32000, scoped, tag = 'scratch operand']
  %s0 = inlined_call_operand.vmem [shape: f32[2,8,512], index: 0, kind: input, shape index: {}]
  %s1 = inlined_call_operand.vmem [shape: f32[1,512], index: 1, kind: input, shape index: {}]
  %s2 = inlined_call_operand.vmem [shape: bf16[7,8,200], index: 2, kind: input, shape index: {}]
  %s3 = inlined_call_operand.vmem [shape: f32[7,8,1], index: 3, kind: input, shape index: {}]
  %s4 = inlined_call_operand.vmem [shape: f32[2,1,512], index: 4, kind: output, shape index: {}]
  %s5 = sld [smem:[#allocation0]]
  $region49: #{outblock_pallas.1} parent=0
    _
  %s7 = ssub.s32 1, %s5
  %s8 = scalar_select 0, %s7, %s5
  loop: start=0, step=1, limit=4
  $region2: #{outblock_pallas.1} parent=0 // loop_pre_header
    _
  $region3: #{outblock_pallas.1} parent=0 // loop_header
    %s10 = sphi 0, %s14
    %p11 = scmp.ge.s32.totalorder %s10, 4
    %s20 = sphi 0, %s22
    %s23 = sphi 0, %s20
    %s24 = sphi 0, %s23
    %s40 = sphi 0, %s24
    %s44 = sphi 0, %s44
    %s46 = sphi 0, %s44
    %s47 = sphi 0, %s46
    %s61 = sphi 0, %s47
    %s65 = sphi 0, %s65
    %s67 = sphi 0, %s65
    %s68 = sphi 0, %s67
    %s82 = sphi 0, %s68
    %s86 = sphi 0, %s86
    %s88 = sphi 0, %s86
    %s89 = sphi 0, %s88
    %s103 = sphi 0, %s89
    %s109 = sphi 0, %s111
    %s112 = sphi 0, %s109
    %s113 = sphi 0, %s112
    %s129 = sphi 0, %s113
  $region4: #{outblock_pallas.1} parent=0 // loop_header_branch
    %13 = sbr.rel (%p11) target = $region8
  $region5: #{outblock_pallas.1} parent=0 // loop_body
    %s15 = ssub.s32 %s10, 1
    %s16 = ssub.s32 %s10, 2
    %s17 = sadd.s32 %s10, 1
    %s18 = ssub.s32 %s10, %s17
    %p19 = scmp.eq.s32.totalorder %s18, 0
    %s21 = sadd.s32 %s20, 1
    %s22 = scalar_select %p19, %s20, %s21
    %p25 = pneg %p19
    %p26 = scmp.eq.s32.totalorder %s10, 1
    %p27 = por %p25, %p26
    %p28 = scmp.ne.s32.totalorder %s20, %s23
    %p29 = scmp.eq.s32.totalorder %s10, 0
    %p30 = por %p28, %p29
    %p31 = scmp.ne.s32.totalorder %s20, %s23
    %p32 = scmp.eq.s32.totalorder %s15, 1
    %p33 = por %p31, %p32
    %p34 = scmp.ne.s32.totalorder %s23, %s24
    %p35 = scmp.eq.s32.totalorder %s15, 0
    %p36 = por %p34, %p35
    %p37 = scmp.ne.s32.totalorder %s23, %s24
    %p38 = scmp.eq.s32.totalorder %s16, 1
    %p39 = por %p37, %p38
    %p41 = scmp.ne.s32.totalorder %s24, %s40
    %p42 = scmp.eq.s32.totalorder %s16, 0
    %p43 = por %p41, %p42
    %s45 = sadd.s32 %s44, 1
    %p48 = scmp.eq.s32.totalorder %s10, 1
    %p49 = scmp.ne.s32.totalorder %s44, %s46
    %p50 = scmp.eq.s32.totalorder %s10, 0
    %p51 = por %p49, %p50
    %p52 = scmp.ne.s32.totalorder %s44, %s46
    %p53 = scmp.eq.s32.totalorder %s15, 1
    %p54 = por %p52, %p53
    %p55 = scmp.ne.s32.totalorder %s46, %s47
    %p56 = scmp.eq.s32.totalorder %s15, 0
    %p57 = por %p55, %p56
    %p58 = scmp.ne.s32.totalorder %s46, %s47
    %p59 = scmp.eq.s32.totalorder %s16, 1
    %p60 = por %p58, %p59
    %p62 = scmp.ne.s32.totalorder %s47, %s61
    %p63 = scmp.eq.s32.totalorder %s16, 0
    %p64 = por %p62, %p63
    %s66 = sadd.s32 %s65, 1
    %p69 = scmp.eq.s32.totalorder %s10, 1
    %p70 = scmp.ne.s32.totalorder %s65, %s67
    %p71 = scmp.eq.s32.totalorder %s10, 0
    %p72 = por %p70, %p71
    %p73 = scmp.ne.s32.totalorder %s65, %s67
    %p74 = scmp.eq.s32.totalorder %s15, 1
    %p75 = por %p73, %p74
    %p76 = scmp.ne.s32.totalorder %s67, %s68
    %p77 = scmp.eq.s32.totalorder %s15, 0
    %p78 = por %p76, %p77
    %p79 = scmp.ne.s32.totalorder %s67, %s68
    %p80 = scmp.eq.s32.totalorder %s16, 1
    %p81 = por %p79, %p80
    %p83 = scmp.ne.s32.totalorder %s68, %s82
    %p84 = scmp.eq.s32.totalorder %s16, 0
    %p85 = por %p83, %p84
    %s87 = sadd.s32 %s86, 1
    %p90 = scmp.eq.s32.totalorder %s10, 1
    %p91 = scmp.ne.s32.totalorder %s86, %s88
    %p92 = scmp.eq.s32.totalorder %s10, 0
    %p93 = por %p91, %p92
    %p94 = scmp.ne.s32.totalorder %s86, %s88
    %p95 = scmp.eq.s32.totalorder %s15, 1
    %p96 = por %p94, %p95
    %p97 = scmp.ne.s32.totalorder %s88, %s89
    %p98 = scmp.eq.s32.totalorder %s15, 0
    %p99 = por %p97, %p98
    %p100 = scmp.ne.s32.totalorder %s88, %s89
    %p101 = scmp.eq.s32.totalorder %s16, 1
    %p102 = por %p100, %p101
    %p104 = scmp.ne.s32.totalorder %s89, %s103
    %p105 = scmp.eq.s32.totalorder %s16, 0
    %p106 = por %p104, %p105
    %s107 = ssub.s32 %s10, %s17
    %p108 = scmp.eq.s32.totalorder %s107, 0
    %s110 = sadd.s32 %s109, 1
    %s111 = scalar_select %p108, %s109, %s110
    %p114 = pneg %p108
    %p115 = scmp.eq.s32.totalorder %s10, 1
    %p116 = por %p114, %p115
    %p117 = scmp.ne.s32.totalorder %s109, %s112
    %p118 = scmp.eq.s32.totalorder %s10, 0
    %p119 = por %p117, %p118
    %p120 = scmp.ne.s32.totalorder %s109, %s112
    %p121 = scmp.eq.s32.totalorder %s15, 1
    %p122 = por %p120, %p121
    %p123 = scmp.ne.s32.totalorder %s112, %s113
    %p124 = scmp.eq.s32.totalorder %s15, 0
    %p125 = por %p123, %p124
    %p126 = scmp.ne.s32.totalorder %s112, %s113
    %p127 = scmp.eq.s32.totalorder %s16, 1
    %p128 = por %p126, %p127
    %p130 = scmp.ne.s32.totalorder %s113, %s129
    %p131 = scmp.eq.s32.totalorder %s16, 0
    %p132 = por %p130, %p131
    %p133 = scmp.le.s32.totalorder 1, %s10
    %p134 = scmp.lt.s32.totalorder %s10, 3
    %p135 = pnand %p133, %p134
    %p136 = pneg %p135
    // Predicated region
    $region9: #{outblock_pallas.1} parent=5 // pred_check
      _
    $region10: #{outblock_pallas.1} parent=5 // pred_check_branch
      %138 = sbr.rel (%p135) target = $region12
    $region11: #{outblock_pallas.1} parent=5 // pred_region
      %s139 = ssub.s32 %s10, 1
      // Predicated region
      $region13: #{outblock_pallas.1} parent=11 // pred_check
        %p140 = pneg %p57
      $region14: #{outblock_pallas.1} parent=11 // pred_check_branch
        %142 = sbr.rel (%p140) target = $region16
      $region15: #{outblock_pallas.1} parent=11 // pred_region
        _
      $region16: #{outblock_pallas.1} parent=11 // pred_fallthru
        _
      // Predicated region
      $region17: #{outblock_pallas.1} parent=11 // pred_check
        %p143 = pneg %p78
      $region18: #{outblock_pallas.1} parent=11 // pred_check_branch
        %145 = sbr.rel (%p143) target = $region20
      $region19: #{outblock_pallas.1} parent=11 // pred_region
        _
      $region20: #{outblock_pallas.1} parent=11 // pred_fallthru
        _
      // Predicated region
      $region21: #{outblock_pallas.1} parent=11 // pred_check
        %p146 = pneg %p99
      $region22: #{outblock_pallas.1} parent=11 // pred_check_branch
        %148 = sbr.rel (%p146) target = $region24
      $region23: #{outblock_pallas.1} parent=11 // pred_region
        _
      $region24: #{outblock_pallas.1} parent=11 // pred_fallthru
        _
    $region12: #{outblock_pallas.1} parent=5 // pred_fallthru
      _
    %p149 = scmp.lt.s32.totalorder %s10, 2
    // Predicated region
    $region25: #{outblock_pallas.1} parent=5 // pred_check
      %p150 = pneg %p149
    $region26: #{outblock_pallas.1} parent=5 // pred_check_branch
      %152 = sbr.rel (%p150) target = $region28
    $region27: #{outblock_pallas.1} parent=5 // pred_region
      // Predicated region
      $region29: #{outblock_pallas.1} parent=27 // pred_check
        %p153 = pneg %p30
      $region30: #{outblock_pallas.1} parent=27 // pred_check_branch
        %155 = sbr.rel (%p153) target = $region32
      $region31: #{outblock_pallas.1} parent=27 // pred_region
        %p156 = scmp.lt.s32.totalorder %s10, 1
        %s157 = scalar_select %p156, %s10, 1
        %s158 = smul.addr %s157, 4
        %s159 = smul.addr %s158, 8
        %s160 = scalar_lea.vmem %s0, %s159
      $region32: #{outblock_pallas.1} parent=27 // pred_fallthru
        _
    $region28: #{outblock_pallas.1} parent=5 // pred_fallthru
      _
    %p161 = scmp.le.s32.totalorder 1, %s10
    %p162 = scmp.lt.s32.totalorder %s10, 3
    %p163 = pnand %p161, %p162
    %p164 = pneg %p163
    // Predicated region
    $region33: #{outblock_pallas.1} parent=5 // pred_check
      _
    $region34: #{outblock_pallas.1} parent=5 // pred_check_branch
      %166 = sbr.rel (%p163) target = $region36
    $region35: #{outblock_pallas.1} parent=5 // pred_region
      %s167 = ssub.s32 %s10, 1
      %p168 = scmp.lt.s32.totalorder %s15, 1
      %s169 = scalar_select %p168, %s15, 1
      %s170 = smul.addr %s169, 4
      %s171 = smul.addr %s170, 8
      %s172 = scalar_lea.vmem %s0, %s171
      %p173 = pneg %p36
      %p174 = pneg %p33
      %p175 = pneg %p57
      %p176 = pneg %p54
      %p177 = pneg %p78
      %p178 = pneg %p75
      %p179 = pneg %p99
      %p180 = pneg %p96
      %p181 = pneg %p125
      %p182 = pneg %p122
      %p183 = scmp.lt.s32.totalorder %s15, 1
      %s184 = scalar_select %p183, %s15, 1
      %s185 = smul.addr %s184, 4
      %s186 = scalar_lea.vmem %s4, %s185
      %p187 = scmp.lt.s32.totalorder %s15, 1
      %s188 = scalar_select %p187, %s15, 1
      %s189 = smul.addr %s188, 4
      %s190 = smul.addr %s189, 8
      %s191 = scalar_lea.vmem %s0, %s190
      %p192 = scmp.lt.s32.totalorder %s15, 1
      %s193 = scalar_select %p192, %s15, 1
      %s194 = smul.addr %s193, 4
      %s195 = scalar_lea.vmem %s4, %s194
      %197 = vst [vmem:[#allocation2] sm:$0xf] 0
      %198 = vst [vmem:[#allocation2 + $0x14] sm:$0xf] 0
      %v199 = vld [vmem:[%s1] sm:$0xf]
      %v201 = vlaneseq
      %v202 = vshrl.u32 %v201, 7
      %v203 = vsub.s32 0, %v202
      %v204 = vrot.slane %v199, %v203
      %v205 = vlaneseq
      %v206 = vshrl.u32 %v205, 7
      %v207 = vsub.s32 1, %v206
      %v208 = vrot.slane %v199, %v207
      %v209 = vlaneseq
      %v210 = vshrl.u32 %v209, 7
      %v211 = vsub.s32 2, %v210
      %v212 = vrot.slane %v199, %v211
      %v213 = vlaneseq
      %v214 = vshrl.u32 %v213, 7
      %v215 = vsub.s32 3, %v214
      %v216 = vrot.slane %v199, %v215
      %v221 = vld [vmem:[%s191] sm:$0xff]
      %v222 = vld [vmem:[%s191 + $0x8] sm:$0xff]
      %v223 = vld [vmem:[%s191 + $0x10] sm:$0xff]
      %v224 = vld [vmem:[%s191 + $0x18] sm:$0xff]
      %v225 = vpack.c.bf16 %v221, %v221
      %v226 = vpack.c.bf16 %v222, %v222
      %v227 = vpack.c.bf16 %v223, %v223
      %v228 = vpack.c.bf16 %v224, %v224
      %v233 = vunpack.c.l.b16 %v225
      %v234 = vunpack.c.l.b16 %v226
      %v235 = vunpack.c.l.b16 %v227
      %v236 = vunpack.c.l.b16 %v228
      %v237 = vpack.c.b16 %v234, %v233
      %v238 = vpack.c.b16 %v236, %v235
      %241 = vst [vmem:[#allocation2 + $0x4] sm:$0xff] %v237
      %242 = vst [vmem:[#allocation2 + $0xc] sm:$0xff] %v238
      %v243 = vld [vmem:[#allocation2] sm:$0xff]
      %v244 = vld [vmem:[#allocation2 + $0x8] sm:$0xff]
      %v245 = vld [vmem:[#allocation2 + $0x10] sm:$0xf]
      %249 = vrot.lane.b32.xlu0 %v243, 42
      %v250 = vpop.permute.xlu0 %249
      %251 = vrot.lane.b32.xlu0 %v244, 42
      %v252 = vpop.permute.xlu0 %251
      %253 = vrot.lane.b32.xlu0 %v245, 42
      %v254 = vpop.permute.xlu0 %253
      %v255 = vrot.slane %v250, 4
      %v256 = vrot.slane %v252, 4
      %v257 = vrot.slane %v254, 4
      %vm258 = vcmask 1043456
      %v259 = vsel %vm258, %v255, %v256
      %vm260 = vcmask 343040
      %v261 = vsel %vm260, %v250, %v259
      %v262 = vsel %vm258, %v256, %v257
      %v263 = vsel %vm260, %v252, %v262
      %266 = vst [vmem:[#allocation3] sm:$0xff] %v261
      %267 = vst [vmem:[#allocation3 + $0x8] sm:$0xff] %v263
      %v268 = vld [vmem:[#allocation2] sm:$0xff]
      %v269 = vld [vmem:[#allocation2 + $0x8] sm:$0xff]
      %v270 = vld [vmem:[#allocation2 + $0x10] sm:$0xf]
      %274 = vrot.lane.b32.xlu0 %v268, 41
      %v275 = vpop.permute.xlu0 %274
      %276 = vrot.lane.b32.xlu0 %v269, 41
      %v277 = vpop.permute.xlu0 %276
      %278 = vrot.lane.b32.xlu0 %v270, 41
      %v279 = vpop.permute.xlu0 %278
      %v280 = vrot.slane %v275, 4
      %v281 = vrot.slane %v277, 4
      %v282 = vrot.slane %v279, 4
      %v283 = vsel %vm258, %v280, %v281
      %vm284 = vcmask 334848
      %v285 = vsel %vm284, %v275, %v283
      %v286 = vsel %vm258, %v281, %v282
      %v287 = vsel %vm284, %v277, %v286
      %290 = vst [vmem:[#allocation3 + $0x10] sm:$0xff] %v285
      %291 = vst [vmem:[#allocation3 + $0x18] sm:$0xff] %v287
      %v292 = vld [vmem:[#allocation2] sm:$0xff]
      %v293 = vld [vmem:[#allocation2 + $0x8] sm:$0xff]
      %v294 = vld [vmem:[#allocation2 + $0x10] sm:$0xf]
      %298 = vrot.lane.b32.xlu0 %v292, 40
      %v299 = vpop.permute.xlu0 %298
      %300 = vrot.lane.b32.xlu0 %v293, 40
      %v301 = vpop.permute.xlu0 %300
      %302 = vrot.lane.b32.xlu0 %v294, 40
      %v303 = vpop.permute.xlu0 %302
      %v304 = vrot.slane %v299, 4
      %v305 = vrot.slane %v301, 4
      %v306 = vrot.slane %v303, 4
      %v307 = vsel %vm258, %v304, %v305
      %vm308 = vcmask 326656
      %v309 = vsel %vm308, %v299, %v307
      %v310 = vsel %vm258, %v305, %v306
      %v311 = vsel %vm308, %v301, %v310
      %314 = vst [vmem:[#allocation3 + $0x20] sm:$0xff] %v309
      %315 = vst [vmem:[#allocation3 + $0x28] sm:$0xff] %v311
      %v316 = vld [vmem:[#allocation2] sm:$0xff]
      %v317 = vld [vmem:[#allocation2 + $0x8] sm:$0xff]
      %v318 = vld [vmem:[#allocation2 + $0x10] sm:$0xf]
      %322 = vrot.lane.b32.xlu0 %v316, 39
      %v323 = vpop.permute.xlu0 %322
      %324 = vrot.lane.b32.xlu0 %v317, 39
      %v325 = vpop.permute.xlu0 %324
      %326 = vrot.lane.b32.xlu0 %v318, 39
      %v327 = vpop.permute.xlu0 %326
      %v328 = vrot.slane %v323, 4
      %v329 = vrot.slane %v325, 4
      %v330 = vrot.slane %v327, 4
      %v331 = vsel %vm258, %v328, %v329
      %vm332 = vcmask 318464
      %v333 = vsel %vm332, %v323, %v331
      %v334 = vsel %vm258, %v329, %v330
      %v335 = vsel %vm332, %v325, %v334
      %338 = vst [vmem:[#allocation3 + $0x30] sm:$0xff] %v333
      %339 = vst [vmem:[#allocation3 + $0x38] sm:$0xff] %v335
      %v340 = vld [vmem:[#allocation2] sm:$0xff]
      %v341 = vld [vmem:[#allocation2 + $0x8] sm:$0xff]
      %v342 = vld [vmem:[#allocation2 + $0x10] sm:$0xf]
      %346 = vrot.lane.b32.xlu0 %v340, 38
      %v347 = vpop.permute.xlu0 %346
      %348 = vrot.lane.b32.xlu0 %v341, 38
      %v349 = vpop.permute.xlu0 %348
      %350 = vrot.lane.b32.xlu0 %v342, 38
      %v351 = vpop.permute.xlu0 %350
      %v352 = vrot.slane %v347, 4
      %v353 = vrot.slane %v349, 4
      %v354 = vrot.slane %v351, 4
      %v355 = vsel %vm258, %v352, %v353
      %vm356 = vcmask 310272
      %v357 = vsel %vm356, %v347, %v355
      %v358 = vsel %vm258, %v353, %v354
      %v359 = vsel %vm356, %v349, %v358
      %362 = vst [vmem:[#allocation3 + $0x40] sm:$0xff] %v357
      %363 = vst [vmem:[#allocation3 + $0x48] sm:$0xff] %v359
      %v364 = vld [vmem:[#allocation2] sm:$0xff]
      %v365 = vld [vmem:[#allocation2 + $0x8] sm:$0xff]
      %v366 = vld [vmem:[#allocation2 + $0x10] sm:$0xf]
      %370 = vrot.lane.b32.xlu0 %v364, 22
      %v371 = vpop.permute.xlu0 %370
      %372 = vrot.lane.b32.xlu0 %v365, 22
      %v373 = vpop.permute.xlu0 %372
      %374 = vrot.lane.b32.xlu0 %v366, 22
      %v375 = vpop.permute.xlu0 %374
      %v376 = vrot.slane %v371, 4
      %v377 = vrot.slane %v373, 4
      %v378 = vrot.slane %v375, 4
      %v379 = vsel %vm258, %v376, %v377
      %vm380 = vcmask 179200
      %v381 = vsel %vm380, %v371, %v379
      %v382 = vsel %vm258, %v377, %v378
      %v383 = vsel %vm380, %v373, %v382
      %386 = vst [vmem:[#allocation3 + $0x50] sm:$0xff] %v381
      %387 = vst [vmem:[#allocation3 + $0x58] sm:$0xff] %v383
      %v388 = vld [vmem:[#allocation2] sm:$0xff]
      %v389 = vld [vmem:[#allocation2 + $0x8] sm:$0xff]
      %v390 = vld [vmem:[#allocation2 + $0x10] sm:$0xf]
      %394 = vrot.lane.b32.xlu0 %v388, 21
      %v395 = vpop.permute.xlu0 %394
      %396 = vrot.lane.b32.xlu0 %v389, 21
      %v397 = vpop.permute.xlu0 %396
      %398 = vrot.lane.b32.xlu0 %v390, 21
      %v399 = vpop.permute.xlu0 %398
      %v400 = vrot.slane %v395, 4
      %v401 = vrot.slane %v397, 4
      %v402 = vrot.slane %v399, 4
      %v403 = vsel %vm258, %v400, %v401
      %vm404 = vcmask 171008
      %v405 = vsel %vm404, %v395, %v403
      %v406 = vsel %vm258, %v401, %v402
      %v407 = vsel %vm404, %v397, %v406
      %410 = vst [vmem:[#allocation3 + $0x60] sm:$0xff] %v405
      %411 = vst [vmem:[#allocation3 + $0x68] sm:$0xff] %v407
      %v412 = vld [vmem:[#allocation2] sm:$0xff]
      %v413 = vld [vmem:[#allocation2 + $0x8] sm:$0xff]
      %v414 = vld [vmem:[#allocation2 + $0x10] sm:$0xf]
      %418 = vrot.lane.b32.xlu0 %v412, 20
      %v419 = vpop.permute.xlu0 %418
      %420 = vrot.lane.b32.xlu0 %v413, 20
      %v421 = vpop.permute.xlu0 %420
      %422 = vrot.lane.b32.xlu0 %v414, 20
      %v423 = vpop.permute.xlu0 %422
      %v424 = vrot.slane %v419, 4
      %v425 = vrot.slane %v421, 4
      %v426 = vrot.slane %v423, 4
      %v427 = vsel %vm258, %v424, %v425
      %vm428 = vcmask 162816
      %v429 = vsel %vm428, %v419, %v427
      %v430 = vsel %vm258, %v425, %v426
      %v431 = vsel %vm428, %v421, %v430
      %434 = vst [vmem:[#allocation3 + $0x70] sm:$0xff] %v429
      %435 = vst [vmem:[#allocation3 + $0x78] sm:$0xff] %v431
      %v436 = vld [vmem:[#allocation2] sm:$0xff]
      %v437 = vld [vmem:[#allocation2 + $0x8] sm:$0xff]
      %v438 = vld [vmem:[#allocation2 + $0x10] sm:$0xf]
      %442 = vrot.lane.b32.xlu0 %v436, 19
      %v443 = vpop.permute.xlu0 %442
      %444 = vrot.lane.b32.xlu0 %v437, 19
      %v445 = vpop.permute.xlu0 %444
      %446 = vrot.lane.b32.xlu0 %v438, 19
      %v447 = vpop.permute.xlu0 %446
      %v448 = vrot.slane %v443, 4
      %v449 = vrot.slane %v445, 4
      %v450 = vrot.slane %v447, 4
      %v451 = vsel %vm258, %v448, %v449
      %vm452 = vcmask 154624
      %v453 = vsel %vm452, %v443, %v451
      %v454 = vsel %vm258, %v449, %v450
      %v455 = vsel %vm452, %v445, %v454
      %458 = vst [vmem:[#allocation3 + $0x80] sm:$0xff] %v453
      %459 = vst [vmem:[#allocation3 + $0x88] sm:$0xff] %v455
      %v460 = vld [vmem:[#allocation2] sm:$0xff]
      %v461 = vld [vmem:[#allocation2 + $0x8] sm:$0xff]
      %v462 = vld [vmem:[#allocation2 + $0x10] sm:$0xf]
      %466 = vrot.lane.b32.xlu0 %v460, 18
      %v467 = vpop.permute.xlu0 %466
      %468 = vrot.lane.b32.xlu0 %v461, 18
      %v469 = vpop.permute.xlu0 %468
      %470 = vrot.lane.b32.xlu0 %v462, 18
      %v471 = vpop.permute.xlu0 %470
      %v472 = vrot.slane %v467, 4
      %v473 = vrot.slane %v469, 4
      %v474 = vrot.slane %v471, 4
      %v475 = vsel %vm258, %v472, %v473
      %vm476 = vcmask 146432
      %v477 = vsel %vm476, %v467, %v475
      %v478 = vsel %vm258, %v473, %v474
      %v479 = vsel %vm476, %v469, %v478
      %482 = vst [vmem:[#allocation3 + $0x90] sm:$0xff] %v477
      %483 = vst [vmem:[#allocation3 + $0x98] sm:$0xff] %v479
      %v484 = vld [vmem:[#allocation2] sm:$0xff]
      %v485 = vld [vmem:[#allocation2 + $0x8] sm:$0xff]
      %v486 = vld [vmem:[#allocation2 + $0x10] sm:$0xf]
      %490 = vrot.lane.b32.xlu0 %v484, 2
      %v491 = vpop.permute.xlu0 %490
      %492 = vrot.lane.b32.xlu0 %v485, 2
      %v493 = vpop.permute.xlu0 %492
      %494 = vrot.lane.b32.xlu0 %v486, 2
      %v495 = vpop.permute.xlu0 %494
      %v496 = vrot.slane %v491, 4
      %v497 = vrot.slane %v493, 4
      %v498 = vrot.slane %v495, 4
      %v499 = vsel %vm258, %v496, %v497
      %vm500 = vcmask 15360
      %v501 = vsel %vm500, %v491, %v499
      %v502 = vsel %vm258, %v497, %v498
      %v503 = vsel %vm500, %v493, %v502
      %506 = vst [vmem:[#allocation3 + $0xa0] sm:$0xff] %v501
      %507 = vst [vmem:[#allocation3 + $0xa8] sm:$0xff] %v503
      %v508 = vld [vmem:[#allocation2] sm:$0xff]
      %v509 = vld [vmem:[#allocation2 + $0x8] sm:$0xff]
      %v510 = vld [vmem:[#allocation2 + $0x10] sm:$0xf]
      %514 = vrot.lane.b32.xlu0 %v508, 1
      %v515 = vpop.permute.xlu0 %514
      %516 = vrot.lane.b32.xlu0 %v509, 1
      %v517 = vpop.permute.xlu0 %516
      %518 = vrot.lane.b32.xlu0 %v510, 1
      %v519 = vpop.permute.xlu0 %518
      %v520 = vrot.slane %v515, 4
      %v521 = vrot.slane %v517, 4
      %v522 = vrot.slane %v519, 4
      %v523 = vsel %vm258, %v520, %v521
      %vm524 = vcmask 7168
      %v525 = vsel %vm524, %v515, %v523
      %v526 = vsel %vm258, %v521, %v522
      %v527 = vsel %vm524, %v517, %v526
      %530 = vst [vmem:[#allocation3 + $0xb0] sm:$0xff] %v525
      %531 = vst [vmem:[#allocation3 + $0xb8] sm:$0xff] %v527
      %v532 = vld [vmem:[#allocation2 + $0x4] sm:$0xff]
      %v533 = vld [vmem:[#allocation2 + $0xc] sm:$0xff]
      %534 = vst [vmem:[#allocation3 + $0xc0] sm:$0xff] %v532
      %535 = vst [vmem:[#allocation3 + $0xc8] sm:$0xff] %v533
      %v536 = vld [vmem:[#allocation2 + $0x4] sm:$0xff]
      %v537 = vld [vmem:[#allocation2 + $0xc] sm:$0xff]
      %v538 = vld [vmem:[#allocation2 + $0x14] sm:$0xf]
      %542 = vrot.lane.b32.xlu0 %v536, 127
      %v543 = vpop.permute.xlu0 %542
      %544 = vrot.lane.b32.xlu0 %v537, 127
      %v545 = vpop.permute.xlu0 %544
      %546 = vrot.lane.b32.xlu0 %v538, 127
      %v547 = vpop.permute.xlu0 %546
      %v548 = vrot.slane %v543, 4
      %v549 = vrot.slane %v545, 4
      %v550 = vrot.slane %v547, 4
      %v551 = vsel %vm258, %v548, %v549
      %vm552 = vcmask 1039360
      %v553 = vsel %vm552, %v543, %v551
      %v554 = vsel %vm258, %v549, %v550
      %v555 = vsel %vm552, %v545, %v554
      %558 = vst [vmem:[#allocation3 + $0xd0] sm:$0xff] %v553
      %559 = vst [vmem:[#allocation3 + $0xd8] sm:$0xff] %v555
      %v560 = vld [vmem:[#allocation2 + $0x4] sm:$0xff]
      %v561 = vld [vmem:[#allocation2 + $0xc] sm:$0xff]
      %v562 = vld [vmem:[#allocation2 + $0x14] sm:$0xf]
      %566 = vrot.lane.b32.xlu0 %v560, 126
      %v567 = vpop.permute.xlu0 %566
      %568 = vrot.lane.b32.xlu0 %v561, 126
      %v569 = vpop.permute.xlu0 %568
      %570 = vrot.lane.b32.xlu0 %v562, 126
      %v571 = vpop.permute.xlu0 %570
      %v572 = vrot.slane %v567, 4
      %v573 = vrot.slane %v569, 4
      %v574 = vrot.slane %v571, 4
      %v575 = vsel %vm258, %v572, %v573
      %vm576 = vcmask 1031168
      %v577 = vsel %vm576, %v567, %v575
      %v578 = vsel %vm258, %v573, %v574
      %v579 = vsel %vm576, %v569, %v578
      %582 = vst [vmem:[#allocation3 + $0xe0] sm:$0xff] %v577
      %583 = vst [vmem:[#allocation3 + $0xe8] sm:$0xff] %v579
      %v584 = vld [vmem:[#allocation2 + $0x4] sm:$0xff]
      %v585 = vld [vmem:[#allocation2 + $0xc] sm:$0xff]
      %v586 = vld [vmem:[#allocation2 + $0x14] sm:$0xf]
      %590 = vrot.lane.b32.xlu0 %v584, 110
      %v591 = vpop.permute.xlu0 %590
      %592 = vrot.lane.b32.xlu0 %v585, 110
      %v593 = vpop.permute.xlu0 %592
      %594 = vrot.lane.b32.xlu0 %v586, 110
      %v595 = vpop.permute.xlu0 %594
      %v596 = vrot.slane %v591, 4
      %v597 = vrot.slane %v593, 4
      %v598 = vrot.slane %v595, 4
      %v599 = vsel %vm258, %v596, %v597
      %vm600 = vcmask 900096
      %v601 = vsel %vm600, %v591, %v599
      %v602 = vsel %vm258, %v597, %v598
      %v603 = vsel %vm600, %v593, %v602
      %606 = vst [vmem:[#allocation3 + $0xf0] sm:$0xff] %v601
      %607 = vst [vmem:[#allocation3 + $0xf8] sm:$0xff] %v603
      %v608 = vld [vmem:[#allocation2 + $0x4] sm:$0xff]
      %v609 = vld [vmem:[#allocation2 + $0xc] sm:$0xff]
      %v610 = vld [vmem:[#allocation2 + $0x14] sm:$0xf]
      %614 = vrot.lane.b32.xlu0 %v608, 109
      %v615 = vpop.permute.xlu0 %614
      %616 = vrot.lane.b32.xlu0 %v609, 109
      %v617 = vpop.permute.xlu0 %616
      %618 = vrot.lane.b32.xlu0 %v610, 109
      %v619 = vpop.permute.xlu0 %618
      %v620 = vrot.slane %v615, 4
      %v621 = vrot.slane %v617, 4
      %v622 = vrot.slane %v619, 4
      %v623 = vsel %vm258, %v620, %v621
      %vm624 = vcmask 891904
      %v625 = vsel %vm624, %v615, %v623
      %v626 = vsel %vm258, %v621, %v622
      %v627 = vsel %vm624, %v617, %v626
      %630 = vst [vmem:[#allocation3 + $0x100] sm:$0xff] %v625
      %631 = vst [vmem:[#allocation3 + $0x108] sm:$0xff] %v627
      %v632 = vld [vmem:[#allocation2 + $0x4] sm:$0xff]
      %v633 = vld [vmem:[#allocation2 + $0xc] sm:$0xff]
      %v634 = vld [vmem:[#allocation2 + $0x14] sm:$0xf]
      %638 = vrot.lane.b32.xlu0 %v632, 108
      %v639 = vpop.permute.xlu0 %638
      %640 = vrot.lane.b32.xlu0 %v633, 108
      %v641 = vpop.permute.xlu0 %640
      %642 = vrot.lane.b32.xlu0 %v634, 108
      %v643 = vpop.permute.xlu0 %642
      %v644 = vrot.slane %v639, 4
      %v645 = vrot.slane %v641, 4
      %v646 = vrot.slane %v643, 4
      %v647 = vsel %vm258, %v644, %v645
      %vm648 = vcmask 883712
      %v649 = vsel %vm648, %v639, %v647
      %v650 = vsel %vm258, %v645, %v646
      %v651 = vsel %vm648, %v641, %v650
      %654 = vst [vmem:[#allocation3 + $0x110] sm:$0xff] %v649
      %655 = vst [vmem:[#allocation3 + $0x118] sm:$0xff] %v651
      %v656 = vld [vmem:[#allocation2 + $0x4] sm:$0xff]
      %v657 = vld [vmem:[#allocation2 + $0xc] sm:$0xff]
      %v658 = vld [vmem:[#allocation2 + $0x14] sm:$0xf]
      %662 = vrot.lane.b32.xlu0 %v656, 107
      %v663 = vpop.permute.xlu0 %662
      %664 = vrot.lane.b32.xlu0 %v657, 107
      %v665 = vpop.permute.xlu0 %664
      %666 = vrot.lane.b32.xlu0 %v658, 107
      %v667 = vpop.permute.xlu0 %666
      %v668 = vrot.slane %v663, 4
      %v669 = vrot.slane %v665, 4
      %v670 = vrot.slane %v667, 4
      %v671 = vsel %vm258, %v668, %v669
      %vm672 = vcmask 875520
      %v673 = vsel %vm672, %v663, %v671
      %v674 = vsel %vm258, %v669, %v670
      %v675 = vsel %vm672, %v665, %v674
      %678 = vst [vmem:[#allocation3 + $0x120] sm:$0xff] %v673
      %679 = vst [vmem:[#allocation3 + $0x128] sm:$0xff] %v675
      %v680 = vld [vmem:[#allocation2 + $0x4] sm:$0xff]
      %v681 = vld [vmem:[#allocation2 + $0xc] sm:$0xff]
      %v682 = vld [vmem:[#allocation2 + $0x14] sm:$0xf]
      %686 = vrot.lane.b32.xlu0 %v680, 106
      %v687 = vpop.permute.xlu0 %686
      %688 = vrot.lane.b32.xlu0 %v681, 106
      %v689 = vpop.permute.xlu0 %688
      %690 = vrot.lane.b32.xlu0 %v682, 106
      %v691 = vpop.permute.xlu0 %690
      %v692 = vrot.slane %v687, 4
      %v693 = vrot.slane %v689, 4
      %v694 = vrot.slane %v691, 4
      %v695 = vsel %vm258, %v692, %v693
      %vm696 = vcmask 867328
      %v697 = vsel %vm696, %v687, %v695
      %v698 = vsel %vm258, %v693, %v694
      %v699 = vsel %vm696, %v689, %v698
      %702 = vst [vmem:[#allocation3 + $0x130] sm:$0xff] %v697
      %703 = vst [vmem:[#allocation3 + $0x138] sm:$0xff] %v699
      %v704 = vld [vmem:[#allocation2 + $0x4] sm:$0xff]
      %v705 = vld [vmem:[#allocation2 + $0xc] sm:$0xff]
      %v706 = vld [vmem:[#allocation2 + $0x14] sm:$0xf]
      %710 = vrot.lane.b32.xlu0 %v704, 90
      %v711 = vpop.permute.xlu0 %710
      %712 = vrot.lane.b32.xlu0 %v705, 90
      %v713 = vpop.permute.xlu0 %712
      %714 = vrot.lane.b32.xlu0 %v706, 90
      %v715 = vpop.permute.xlu0 %714
      %v716 = vrot.slane %v711, 4
      %v717 = vrot.slane %v713, 4
      %v718 = vrot.slane %v715, 4
      %v719 = vsel %vm258, %v716, %v717
      %vm720 = vcmask 736256
      %v721 = vsel %vm720, %v711, %v719
      %v722 = vsel %vm258, %v717, %v718
      %v723 = vsel %vm720, %v713, %v722
      %726 = vst [vmem:[#allocation3 + $0x140] sm:$0xff] %v721
      %727 = vst [vmem:[#allocation3 + $0x148] sm:$0xff] %v723
      %v728 = vld [vmem:[#allocation2 + $0x4] sm:$0xff]
      %v729 = vld [vmem:[#allocation2 + $0xc] sm:$0xff]
      %v730 = vld [vmem:[#allocation2 + $0x14] sm:$0xf]
      %734 = vrot.lane.b32.xlu0 %v728, 89
      %v735 = vpop.permute.xlu0 %734
      %736 = vrot.lane.b32.xlu0 %v729, 89
      %v737 = vpop.permute.xlu0 %736
      %738 = vrot.lane.b32.xlu0 %v730, 89
      %v739 = vpop.permute.xlu0 %738
      %v740 = vrot.slane %v735, 4
      %v741 = vrot.slane %v737, 4
      %v742 = vrot.slane %v739, 4
      %v743 = vsel %vm258, %v740, %v741
      %vm744 = vcmask 728064
      %v745 = vsel %vm744, %v735, %v743
      %v746 = vsel %vm258, %v741, %v742
      %v747 = vsel %vm744, %v737, %v746
      %750 = vst [vmem:[#allocation3 + $0x150] sm:$0xff] %v745
      %751 = vst [vmem:[#allocation3 + $0x158] sm:$0xff] %v747
      %v752 = vld [vmem:[#allocation2 + $0x4] sm:$0xff]
      %v753 = vld [vmem:[#allocation2 + $0xc] sm:$0xff]
      %v754 = vld [vmem:[#allocation2 + $0x14] sm:$0xf]
      %758 = vrot.lane.b32.xlu0 %v752, 88
      %v759 = vpop.permute.xlu0 %758
      %760 = vrot.lane.b32.xlu0 %v753, 88
      %v761 = vpop.permute.xlu0 %760
      %762 = vrot.lane.b32.xlu0 %v754, 88
      %v763 = vpop.permute.xlu0 %762
      %v764 = vrot.slane %v759, 4
      %v765 = vrot.slane %v761, 4
      %v766 = vrot.slane %v763, 4
      %v767 = vsel %vm258, %v764, %v765
      %vm768 = vcmask 719872
      %v769 = vsel %vm768, %v759, %v767
      %v770 = vsel %vm258, %v765, %v766
      %v771 = vsel %vm768, %v761, %v770
      %774 = vst [vmem:[#allocation3 + $0x160] sm:$0xff] %v769
      %775 = vst [vmem:[#allocation3 + $0x168] sm:$0xff] %v771
      %v776 = vld [vmem:[#allocation2 + $0x4] sm:$0xff]
      %v777 = vld [vmem:[#allocation2 + $0xc] sm:$0xff]
      %v778 = vld [vmem:[#allocation2 + $0x14] sm:$0xf]
      %782 = vrot.lane.b32.xlu0 %v776, 87
      %v783 = vpop.permute.xlu0 %782
      %784 = vrot.lane.b32.xlu0 %v777, 87
      %v785 = vpop.permute.xlu0 %784
      %786 = vrot.lane.b32.xlu0 %v778, 87
      %v787 = vpop.permute.xlu0 %786
      %v788 = vrot.slane %v783, 4
      %v789 = vrot.slane %v785, 4
      %v790 = vrot.slane %v787, 4
      %v791 = vsel %vm258, %v788, %v789
      %vm792 = vcmask 711680
      %v793 = vsel %vm792, %v783, %v791
      %v794 = vsel %vm258, %v789, %v790
      %v795 = vsel %vm792, %v785, %v794
      %798 = vst [vmem:[#allocation3 + $0x170] sm:$0xff] %v793
      %799 = vst [vmem:[#allocation3 + $0x178] sm:$0xff] %v795
      %v800 = vld [vmem:[#allocation2 + $0x4] sm:$0xff]
      %v801 = vld [vmem:[#allocation2 + $0xc] sm:$0xff]
      %v802 = vld [vmem:[#allocation2 + $0x14] sm:$0xf]
      %806 = vrot.lane.b32.xlu0 %v800, 86
      %v807 = vpop.permute.xlu0 %806
      %808 = vrot.lane.b32.xlu0 %v801, 86
      %v809 = vpop.permute.xlu0 %808
      %810 = vrot.lane.b32.xlu0 %v802, 86
      %v811 = vpop.permute.xlu0 %810
      %v812 = vrot.slane %v807, 4
      %v813 = vrot.slane %v809, 4
      %v814 = vrot.slane %v811, 4
      %v815 = vsel %vm258, %v812, %v813
      %vm816 = vcmask 703488
      %v817 = vsel %vm816, %v807, %v815
      %v818 = vsel %vm258, %v813, %v814
      %v819 = vsel %vm816, %v809, %v818
      %822 = vst [vmem:[#allocation3 + $0x180] sm:$0xff] %v817
      %823 = vst [vmem:[#allocation3 + $0x188] sm:$0xff] %v819
      %v824 = vld [vmem:[%s2] sm:$0xff]
      %v825 = vld [vmem:[#allocation3] sm:$0xff]
      %v826 = vld [vmem:[#allocation3 + $0x8] sm:$0xff]
      %v827 = vld [vmem:[#allocation3 + $0x10] sm:$0xff]
      %v828 = vld [vmem:[#allocation3 + $0x18] sm:$0xff]
      %v829 = vld [vmem:[#allocation3 + $0x20] sm:$0xff]
      %v830 = vld [vmem:[#allocation3 + $0x28] sm:$0xff]
      %v831 = vld [vmem:[#allocation3 + $0x30] sm:$0xff]
      %v832 = vld [vmem:[#allocation3 + $0x38] sm:$0xff]
      %v833 = vld [vmem:[#allocation3 + $0x40] sm:$0xff]
      %v834 = vld [vmem:[#allocation3 + $0x48] sm:$0xff]
      %v835 = vld [vmem:[#allocation3 + $0x50] sm:$0xff]
      %v836 = vld [vmem:[#allocation3 + $0x58] sm:$0xff]
      %v837 = vld [vmem:[#allocation3 + $0x60] sm:$0xff]
      %v838 = vld [vmem:[#allocation3 + $0x68] sm:$0xff]
      %v839 = vld [vmem:[#allocation3 + $0x70] sm:$0xff]
      %v840 = vld [vmem:[#allocation3 + $0x78] sm:$0xff]
      %v841 = vld [vmem:[#allocation3 + $0x80] sm:$0xff]
      %v842 = vld [vmem:[#allocation3 + $0x88] sm:$0xff]
      %v843 = vld [vmem:[#allocation3 + $0x90] sm:$0xff]
      %v844 = vld [vmem:[#allocation3 + $0x98] sm:$0xff]
      %v845 = vld [vmem:[#allocation3 + $0xa0] sm:$0xff]
      %v846 = vld [vmem:[#allocation3 + $0xa8] sm:$0xff]
      %v847 = vld [vmem:[#allocation3 + $0xb0] sm:$0xff]
      %v848 = vld [vmem:[#allocation3 + $0xb8] sm:$0xff]
      %v849 = vld [vmem:[#allocation3 + $0xc0] sm:$0xff]
      %v850 = vld [vmem:[#allocation3 + $0xc8] sm:$0xff]
      %v851 = vld [vmem:[#allocation3 + $0xd0] sm:$0xff]
      %v852 = vld [vmem:[#allocation3 + $0xd8] sm:$0xff]
      %v853 = vld [vmem:[#allocation3 + $0xe0] sm:$0xff]
      %v854 = vld [vmem:[#allocation3 + $0xe8] sm:$0xff]
      %v855 = vld [vmem:[#allocation3 + $0xf0] sm:$0xff]
      %v856 = vld [vmem:[#allocation3 + $0xf8] sm:$0xff]
      %v857 = vld [vmem:[#allocation3 + $0x100] sm:$0xff]
      %v858 = vld [vmem:[#allocation3 + $0x108] sm:$0xff]
      %v859 = vld [vmem:[#allocation3 + $0x110] sm:$0xff]
      %v860 = vld [vmem:[#allocation3 + $0x118] sm:$0xff]
      %v861 = vld [vmem:[#allocation3 + $0x120] sm:$0xff]
      %v862 = vld [vmem:[#allocation3 + $0x128] sm:$0xff]
      %v863 = vld [vmem:[#allocation3 + $0x130] sm:$0xff]
      %v864 = vld [vmem:[#allocation3 + $0x138] sm:$0xff]
      %v865 = vld [vmem:[#allocation3 + $0x140] sm:$0xff]
      %v866 = vld [vmem:[#allocation3 + $0x148] sm:$0xff]
      %v867 = vld [vmem:[#allocation3 + $0x150] sm:$0xff]
      %v868 = vld [vmem:[#allocation3 + $0x158] sm:$0xff]
      %v869 = vld [vmem:[#allocation3 + $0x160] sm:$0xff]
      %v870 = vld [vmem:[#allocation3 + $0x168] sm:$0xff]
      %v871 = vld [vmem:[#allocation3 + $0x170] sm:$0xff]
      %v872 = vld [vmem:[#allocation3 + $0x178] sm:$0xff]
      %v873 = vld [vmem:[#allocation3 + $0x180] sm:$0xff]
      %v874 = vld [vmem:[#allocation3 + $0x188] sm:$0xff]
      %v875 = vld [vmem:[%s3] sm:$0xff]
      %877 = vset.pattern.permute.xlu0 0
      %878 = vperm.xlu0 %877, %v875
      %v879 = vpop.permute.xlu0 %878
      %v882 = vunpack.c.l.b16 %v824
      %v883 = vunpack.c.h.b16 %v824
      %v884 = vpack.c.b16 %v882, %v882
      %v885 = vpack.c.b16 %v883, %v883
      %v937 = vunpack.c.l.b16 %v825
      %v938 = vunpack.c.h.b16 %v825
      %v939 = vunpack.c.l.b16 %v826
      %v940 = vunpack.c.h.b16 %v826
      %v941 = vunpack.c.l.b16 %v827
      %v942 = vunpack.c.h.b16 %v827
      %v943 = vunpack.c.l.b16 %v828
      %v944 = vunpack.c.h.b16 %v828
      %v945 = vunpack.c.l.b16 %v829
      %v946 = vunpack.c.h.b16 %v829
      %v947 = vunpack.c.l.b16 %v830
      %v948 = vunpack.c.h.b16 %v830
      %v949 = vunpack.c.l.b16 %v831
      %v950 = vunpack.c.h.b16 %v831
      %v951 = vunpack.c.l.b16 %v832
      %v952 = vunpack.c.h.b16 %v832
      %v953 = vunpack.c.l.b16 %v833
      %v954 = vunpack.c.h.b16 %v833
      %v955 = vunpack.c.l.b16 %v834
      %v956 = vunpack.c.h.b16 %v834
      %v957 = vunpack.c.l.b16 %v835
      %v958 = vunpack.c.h.b16 %v835
      %v959 = vunpack.c.l.b16 %v836
      %v960 = vunpack.c.h.b16 %v836
      %v961 = vunpack.c.l.b16 %v837
      %v962 = vunpack.c.h.b16 %v837
      %v963 = vunpack.c.l.b16 %v838
      %v964 = vunpack.c.h.b16 %v838
      %v965 = vunpack.c.l.b16 %v839
      %v966 = vunpack.c.h.b16 %v839
      %v967 = vunpack.c.l.b16 %v840
      %v968 = vunpack.c.h.b16 %v840
      %v969 = vunpack.c.l.b16 %v841
      %v970 = vunpack.c.h.b16 %v841
      %v971 = vunpack.c.l.b16 %v842
      %v972 = vunpack.c.h.b16 %v842
      %v973 = vunpack.c.l.b16 %v843
      %v974 = vunpack.c.h.b16 %v843
      %v975 = vunpack.c.l.b16 %v844
      %v976 = vunpack.c.h.b16 %v844
      %v977 = vunpack.c.l.b16 %v845
      %v978 = vunpack.c.h.b16 %v845
      %v979 = vunpack.c.l.b16 %v846
      %v980 = vunpack.c.h.b16 %v846
      %v981 = vunpack.c.l.b16 %v847
      %v982 = vunpack.c.h.b16 %v847
      %v983 = vunpack.c.l.b16 %v848
      %v984 = vunpack.c.h.b16 %v848
      %v985 = vunpack.c.l.b16 %v849
      %v986 = vunpack.c.h.b16 %v849
      %v987 = vunpack.c.l.b16 %v850
      %v988 = vunpack.c.h.b16 %v850
      %v989 = vunpack.c.l.b16 %v851
      %v990 = vunpack.c.h.b16 %v851
      %v991 = vunpack.c.l.b16 %v852
      %v992 = vunpack.c.h.b16 %v852
      %v993 = vunpack.c.l.b16 %v853
      %v994 = vunpack.c.h.b16 %v853
      %v995 = vunpack.c.l.b16 %v854
      %v996 = vunpack.c.h.b16 %v854
      %v997 = vunpack.c.l.b16 %v855
      %v998 = vunpack.c.h.b16 %v855
      %v999 = vunpack.c.l.b16 %v856
      %v1000 = vunpack.c.h.b16 %v856
      %v1001 = vunpack.c.l.b16 %v857
      %v1002 = vunpack.c.h.b16 %v857
      %v1003 = vunpack.c.l.b16 %v858
      %v1004 = vunpack.c.h.b16 %v858
      %v1005 = vunpack.c.l.b16 %v859
      %v1006 = vunpack.c.h.b16 %v859
      %v1007 = vunpack.c.l.b16 %v860
      %v1008 = vunpack.c.h.b16 %v860
      %v1009 = vunpack.c.l.b16 %v861
      %v1010 = vunpack.c.h.b16 %v861
      %v1011 = vunpack.c.l.b16 %v862
      %v1012 = vunpack.c.h.b16 %v862
      %v1013 = vunpack.c.l.b16 %v863
      %v1014 = vunpack.c.h.b16 %v863
      %v1015 = vunpack.c.l.b16 %v864
      %v1016 = vunpack.c.h.b16 %v864
      %v1017 = vunpack.c.l.b16 %v865
      %v1018 = vunpack.c.h.b16 %v865
      %v1019 = vunpack.c.l.b16 %v866
      %v1020 = vunpack.c.h.b16 %v866
      %v1021 = vunpack.c.l.b16 %v867
      %v1022 = vunpack.c.h.b16 %v867
      %v1023 = vunpack.c.l.b16 %v868
      %v1024 = vunpack.c.h.b16 %v868
      %v1025 = vunpack.c.l.b16 %v869
      %v1026 = vunpack.c.h.b16 %v869
      %v1027 = vunpack.c.l.b16 %v870
      %v1028 = vunpack.c.h.b16 %v870
      %v1029 = vunpack.c.l.b16 %v871
      %v1030 = vunpack.c.h.b16 %v871
      %v1031 = vunpack.c.l.b16 %v872
      %v1032 = vunpack.c.h.b16 %v872
      %v1033 = vunpack.c.l.b16 %v873
      %v1034 = vunpack.c.h.b16 %v873
      %v1035 = vunpack.c.l.b16 %v874
      %v1036 = vunpack.c.h.b16 %v874
      %v1037 = vpack.c.b16 %v941, %v937
      %v1038 = vpack.c.b16 %v942, %v938
      %v1039 = vpack.c.b16 %v943, %v939
      %v1040 = vpack.c.b16 %v944, %v940
      %v1041 = vpack.c.b16 %v949, %v945
      %v1042 = vpack.c.b16 %v950, %v946
      %v1043 = vpack.c.b16 %v951, %v947
      %v1044 = vpack.c.b16 %v952, %v948
      %v1045 = vpack.c.b16 %v957, %v953
      %v1046 = vpack.c.b16 %v958, %v954
      %v1047 = vpack.c.b16 %v959, %v955
      %v1048 = vpack.c.b16 %v960, %v956
      %v1049 = vpack.c.b16 %v965, %v961
      %v1050 = vpack.c.b16 %v966, %v962
      %v1051 = vpack.c.b16 %v967, %v963
      %v1052 = vpack.c.b16 %v968, %v964
      %v1053 = vpack.c.b16 %v973, %v969
      %v1054 = vpack.c.b16 %v974, %v970
      %v1055 = vpack.c.b16 %v975, %v971
      %v1056 = vpack.c.b16 %v976, %v972
      %v1057 = vpack.c.b16 %v981, %v977
      %v1058 = vpack.c.b16 %v982, %v978
      %v1059 = vpack.c.b16 %v983, %v979
      %v1060 = vpack.c.b16 %v984, %v980
      %v1061 = vpack.c.b16 %v989, %v985
      %v1062 = vpack.c.b16 %v990, %v986
      %v1063 = vpack.c.b16 %v991, %v987
      %v1064 = vpack.c.b16 %v992, %v988
      %v1065 = vpack.c.b16 %v997, %v993
      %v1066 = vpack.c.b16 %v998, %v994
      %v1067 = vpack.c.b16 %v999, %v995
      %v1068 = vpack.c.b16 %v1000, %v996
      %v1069 = vpack.c.b16 %v1005, %v1001
      %v1070 = vpack.c.b16 %v1006, %v1002
      %v1071 = vpack.c.b16 %v1007, %v1003
      %v1072 = vpack.c.b16 %v1008, %v1004
      %v1073 = vpack.c.b16 %v1013, %v1009
      %v1074 = vpack.c.b16 %v1014, %v1010
      %v1075 = vpack.c.b16 %v1015, %v1011
      %v1076 = vpack.c.b16 %v1016, %v1012
      %v1077 = vpack.c.b16 %v1021, %v1017
      %v1078 = vpack.c.b16 %v1022, %v1018
      %v1079 = vpack.c.b16 %v1023, %v1019
      %v1080 = vpack.c.b16 %v1024, %v1020
      %v1081 = vpack.c.b16 %v1029, %v1025
      %v1082 = vpack.c.b16 %v1030, %v1026
      %v1083 = vpack.c.b16 %v1031, %v1027
      %v1084 = vpack.c.b16 %v1032, %v1028
      %v1085 = vpack.c.b16 %v1033, %v1033
      %v1086 = vpack.c.b16 %v1034, %v1034
      %v1087 = vpack.c.b16 %v1035, %v1035
      %v1088 = vpack.c.b16 %v1036, %v1036
      %vm1137 = vcmask 588800
      %v1139 = vsel %vm1137, %v885, 0
      %vm1141 = vcmask 1043456
      %v1143 = vsel %vm1141, %v1085, 0
      %v1146 = vsel %vm1141, %v1086, 0
      %v1149 = vsel %vm1141, %v1087, 0
      %v1152 = vsel %vm1141, %v1088, 0
      %1154 = vmatprep.subr.bf16.mxu0 %v1066
      %1155 = vmatpush1.bf16.msra.mxu0 %v1065
      %1156 = vmatprep.subr.bf16.mxu0 %v1062
      %1157 = vmatpush1.bf16.msra.mxu0 %v1061
      %1158 = vmatprep.subr.bf16.mxu0 %v1058
      %1159 = vmatpush1.bf16.msra.mxu0 %v1057
      %1160 = vmatprep.subr.bf16.mxu0 %v1054
      %1161 = vmatpush1.bf16.msra.mxu0 %v1053
      %1162 = vmatprep.subr.bf16.mxu0 %v1050
      %1163 = vmatpush1.bf16.msra.mxu0 %v1049
      %1164 = vmatprep.subr.bf16.mxu0 %v1046
      %1165 = vmatpush1.bf16.msra.mxu0 %v1045
      %1166 = vmatprep.subr.bf16.mxu0 %v1042
      %1167 = vmatpush1.bf16.msra.mxu0 %v1041
      %1168 = vmatprep.subr.bf16.mxu0 %v1038
      %1169 = vmatpush1.bf16.msra.mxu0 %v1037
      %1170 = vmatprep.subr.bf16.mxu0 0
      %1171 = vmatpush2.bf16.msra.mxu0 0
      %1172 = vmatprep.subr.bf16.mxu0 0
      %1173 = vmatpush2.bf16.msra.mxu0 0
      %1174 = vmatprep.subr.bf16.mxu0 0
      %1175 = vmatpush2.bf16.msra.mxu0 0
      %1176 = vmatprep.subr.bf16.mxu0 %v1146
      %1177 = vmatpush2.bf16.msra.mxu0 %v1143
      %1178 = vmatprep.subr.bf16.mxu0 %v1082
      %1179 = vmatpush2.bf16.msra.mxu0 %v1081
      %1180 = vmatprep.subr.bf16.mxu0 %v1078
      %1181 = vmatpush2.bf16.msra.mxu0 %v1077
      %1182 = vmatprep.subr.bf16.mxu0 %v1074
      %1183 = vmatpush2.bf16.msra.mxu0 %v1073
      %1184 = vmatprep.subr.bf16.mxu0 %v1070
      %1185 = vmatpush2.bf16.msra.mxu0 %v1069
      %1186 = vmatprep.mubr.bf16.mxu0 %v1139
      %1187 = vmatmul.mubr.bf16.gmra.mxu0 %v884
      %v1188 = vpop.f32.mrf.mxu0
      %v1189 = vadd.f32 %v879, %v1188
      %v1190 = vpop.f32.mrf.mxu0
      %v1191 = vadd.f32 %v879, %v1190
      %v1192 = vpop.f32.mrf.mxu0
      %v1193 = vpop.f32.mrf.mxu0
      %1194 = vdwg.mxu0
      %1195 = vmatprep.subr.bf16.mxu0 %v1068
      %1196 = vmatpush1.bf16.msra.mxu0 %v1067
      %1197 = vmatprep.subr.bf16.mxu0 %v1064
      %1198 = vmatpush1.bf16.msra.mxu0 %v1063
      %1199 = vmatprep.subr.bf16.mxu0 %v1060
      %1200 = vmatpush1.bf16.msra.mxu0 %v1059
      %1201 = vmatprep.subr.bf16.mxu0 %v1056
      %1202 = vmatpush1.bf16.msra.mxu0 %v1055
      %1203 = vmatprep.subr.bf16.mxu0 %v1052
      %1204 = vmatpush1.bf16.msra.mxu0 %v1051
      %1205 = vmatprep.subr.bf16.mxu0 %v1048
      %1206 = vmatpush1.bf16.msra.mxu0 %v1047
      %1207 = vmatprep.subr.bf16.mxu0 %v1044
      %1208 = vmatpush1.bf16.msra.mxu0 %v1043
      %1209 = vmatprep.subr.bf16.mxu0 %v1040
      %1210 = vmatpush1.bf16.msra.mxu0 %v1039
      %1211 = vmatprep.subr.bf16.mxu0 0
      %1212 = vmatpush2.bf16.msra.mxu0 0
      %1213 = vmatprep.subr.bf16.mxu0 0
      %1214 = vmatpush2.bf16.msra.mxu0 0
      %1215 = vmatprep.subr.bf16.mxu0 0
      %1216 = vmatpush2.bf16.msra.mxu0 0
      %1217 = vmatprep.subr.bf16.mxu0 %v1152
      %1218 = vmatpush2.bf16.msra.mxu0 %v1149
      %1219 = vmatprep.subr.bf16.mxu0 %v1084
      %1220 = vmatpush2.bf16.msra.mxu0 %v1083
      %1221 = vmatprep.subr.bf16.mxu0 %v1080
      %1222 = vmatpush2.bf16.msra.mxu0 %v1079
      %1223 = vmatprep.subr.bf16.mxu0 %v1076
      %1224 = vmatpush2.bf16.msra.mxu0 %v1075
      %1225 = vmatprep.subr.bf16.mxu0 %v1072
      %1226 = vmatpush2.bf16.msra.mxu0 %v1071
      %1227 = vmatprep.mubr.bf16.mxu0 %v1139
      %1228 = vmatmul.mubr.bf16.gmra.mxu0 %v884
      %v1229 = vpop.f32.mrf.mxu0
      %v1230 = vadd.f32 %v879, %v1229
      %v1231 = vpop.f32.mrf.mxu0
      %v1232 = vadd.f32 %v879, %v1231
      %v1233 = vpop.f32.mrf.mxu0
      %v1234 = vpop.f32.mrf.mxu0
      %1235 = vdwg.mxu0
      %v1236 = vmul.f32 %v1189, %v204
      %v1237 = vmul.f32 %v1191, %v208
      %v1238 = vmul.f32 %v1230, %v212
      %v1239 = vmul.f32 %v1232, %v216
      %v1240 = vmax.f32 %v1236, 0.0
      %v1241 = vmax.f32 %v1237, 0.0
      %v1242 = vmax.f32 %v1238, 0.0
      %v1243 = vmax.f32 %v1239, 0.0
      %v1244 = vpack.c.bf16 %v1240, %v1240
      %v1245 = vpack.c.bf16 %v1241, %v1241
      %v1246 = vpack.c.bf16 %v1242, %v1242
      %v1247 = vpack.c.bf16 %v1243, %v1243
      %v1252 = vunpack.c.l.b16 %v1244
      %v1253 = vunpack.c.l.b16 %v1245
      %v1254 = vunpack.c.l.b16 %v1246
      %v1255 = vunpack.c.l.b16 %v1247
      %v1256 = vpack.c.b16 %v1253, %v1252
      %v1257 = vpack.c.b16 %v1255, %v1254
      %1260 = vst [vmem:[#allocation2 + $0x4] sm:$0xff] %v1256
      %1261 = vst [vmem:[#allocation2 + $0xc] sm:$0xff] %v1257
      %v1262 = vld [vmem:[#allocation2] sm:$0xff]
      %v1263 = vld [vmem:[#allocation2 + $0x8] sm:$0xff]
      %v1264 = vld [vmem:[#allocation2 + $0x10] sm:$0xf]
      %1268 = vrot.lane.b32.xlu0 %v1262, 42
      %v1269 = vpop.permute.xlu0 %1268
      %1270 = vrot.lane.b32.xlu0 %v1263, 42
      %v1271 = vpop.permute.xlu0 %1270
      %1272 = vrot.lane.b32.xlu0 %v1264, 42
      %v1273 = vpop.permute.xlu0 %1272
      %v1274 = vrot.slane %v1269, 4
      %v1275 = vrot.slane %v1271, 4
      %v1276 = vrot.slane %v1273, 4
      %v1277 = vsel %vm258, %v1274, %v1275
      %v1278 = vsel %vm260, %v1269, %v1277
      %v1279 = vsel %vm258, %v1275, %v1276
      %v1280 = vsel %vm260, %v1271, %v1279
      %1283 = vst [vmem:[#allocation3] sm:$0xff] %v1278
      %1284 = vst [vmem:[#allocation3 + $0x8] sm:$0xff] %v1280
      %v1285 = vld [vmem:[#allocation2] sm:$0xff]
      %v1286 = vld [vmem:[#allocation2 + $0x8] sm:$0xff]
      %v1287 = vld [vmem:[#allocation2 + $0x10] sm:$0xf]
      %1291 = vrot.lane.b32.xlu0 %v1285, 41
      %v1292 = vpop.permute.xlu0 %1291
      %1293 = vrot.lane.b32.xlu0 %v1286, 41
      %v1294 = vpop.permute.xlu0 %1293
      %1295 = vrot.lane.b32.xlu0 %v1287, 41
      %v1296 = vpop.permute.xlu0 %1295
      %v1297 = vrot.slane %v1292, 4
      %v1298 = vrot.slane %v1294, 4
      %v1299 = vrot.slane %v1296, 4
      %v1300 = vsel %vm258, %v1297, %v1298
      %v1301 = vsel %vm284, %v1292, %v1300
      %v1302 = vsel %vm258, %v1298, %v1299
      %v1303 = vsel %vm284, %v1294, %v1302
      %1306 = vst [vmem:[#allocation3 + $0x10] sm:$0xff] %v1301
      %1307 = vst [vmem:[#allocation3 + $0x18] sm:$0xff] %v1303
      %v1308 = vld [vmem:[#allocation2] sm:$0xff]
      %v1309 = vld [vmem:[#allocation2 + $0x8] sm:$0xff]
      %v1310 = vld [vmem:[#allocation2 + $0x10] sm:$0xf]
      %1314 = vrot.lane.b32.xlu0 %v1308, 40
      %v1315 = vpop.permute.xlu0 %1314
      %1316 = vrot.lane.b32.xlu0 %v1309, 40
      %v1317 = vpop.permute.xlu0 %1316
      %1318 = vrot.lane.b32.xlu0 %v1310, 40
      %v1319 = vpop.permute.xlu0 %1318
      %v1320 = vrot.slane %v1315, 4
      %v1321 = vrot.slane %v1317, 4
      %v1322 = vrot.slane %v1319, 4
      %v1323 = vsel %vm258, %v1320, %v1321
      %v1324 = vsel %vm308, %v1315, %v1323
      %v1325 = vsel %vm258, %v1321, %v1322
      %v1326 = vsel %vm308, %v1317, %v1325
      %1329 = vst [vmem:[#allocation3 + $0x20] sm:$0xff] %v1324
      %1330 = vst [vmem:[#allocation3 + $0x28] sm:$0xff] %v1326
      %v1331 = vld [vmem:[#allocation2] sm:$0xff]
      %v1332 = vld [vmem:[#allocation2 + $0x8] sm:$0xff]
      %v1333 = vld [vmem:[#allocation2 + $0x10] sm:$0xf]
      %1337 = vrot.lane.b32.xlu0 %v1331, 39
      %v1338 = vpop.permute.xlu0 %1337
      %1339 = vrot.lane.b32.xlu0 %v1332, 39
      %v1340 = vpop.permute.xlu0 %1339
      %1341 = vrot.lane.b32.xlu0 %v1333, 39
      %v1342 = vpop.permute.xlu0 %1341
      %v1343 = vrot.slane %v1338, 4
      %v1344 = vrot.slane %v1340, 4
      %v1345 = vrot.slane %v1342, 4
      %v1346 = vsel %vm258, %v1343, %v1344
      %v1347 = vsel %vm332, %v1338, %v1346
      %v1348 = vsel %vm258, %v1344, %v1345
      %v1349 = vsel %vm332, %v1340, %v1348
      %1352 = vst [vmem:[#allocation3 + $0x30] sm:$0xff] %v1347
      %1353 = vst [vmem:[#allocation3 + $0x38] sm:$0xff] %v1349
      %v1354 = vld [vmem:[#allocation2] sm:$0xff]
      %v1355 = vld [vmem:[#allocation2 + $0x8] sm:$0xff]
      %v1356 = vld [vmem:[#allocation2 + $0x10] sm:$0xf]
      %1360 = vrot.lane.b32.xlu0 %v1354, 38
      %v1361 = vpop.permute.xlu0 %1360
      %1362 = vrot.lane.b32.xlu0 %v1355, 38
      %v1363 = vpop.permute.xlu0 %1362
      %1364 = vrot.lane.b32.xlu0 %v1356, 38
      %v1365 = vpop.permute.xlu0 %1364
      %v1366 = vrot.slane %v1361, 4
      %v1367 = vrot.slane %v1363, 4
      %v1368 = vrot.slane %v1365, 4
      %v1369 = vsel %vm258, %v1366, %v1367
      %v1370 = vsel %vm356, %v1361, %v1369
      %v1371 = vsel %vm258, %v1367, %v1368
      %v1372 = vsel %vm356, %v1363, %v1371
      %1375 = vst [vmem:[#allocation3 + $0x40] sm:$0xff] %v1370
      %1376 = vst [vmem:[#allocation3 + $0x48] sm:$0xff] %v1372
      %v1377 = vld [vmem:[#allocation2] sm:$0xff]
      %v1378 = vld [vmem:[#allocation2 + $0x8] sm:$0xff]
      %v1379 = vld [vmem:[#allocation2 + $0x10] sm:$0xf]
      %1383 = vrot.lane.b32.xlu0 %v1377, 22
      %v1384 = vpop.permute.xlu0 %1383
      %1385 = vrot.lane.b32.xlu0 %v1378, 22
      %v1386 = vpop.permute.xlu0 %1385
      %1387 = vrot.lane.b32.xlu0 %v1379, 22
      %v1388 = vpop.permute.xlu0 %1387
      %v1389 = vrot.slane %v1384, 4
      %v1390 = vrot.slane %v1386, 4
      %v1391 = vrot.slane %v1388, 4
      %v1392 = vsel %vm258, %v1389, %v1390
      %v1393 = vsel %vm380, %v1384, %v1392
      %v1394 = vsel %vm258, %v1390, %v1391
      %v1395 = vsel %vm380, %v1386, %v1394
      %1398 = vst [vmem:[#allocation3 + $0x50] sm:$0xff] %v1393
      %1399 = vst [vmem:[#allocation3 + $0x58] sm:$0xff] %v1395
      %v1400 = vld [vmem:[#allocation2] sm:$0xff]
      %v1401 = vld [vmem:[#allocation2 + $0x8] sm:$0xff]
      %v1402 = vld [vmem:[#allocation2 + $0x10] sm:$0xf]
      %1406 = vrot.lane.b32.xlu0 %v1400, 21
      %v1407 = vpop.permute.xlu0 %1406
      %1408 = vrot.lane.b32.xlu0 %v1401, 21
      %v1409 = vpop.permute.xlu0 %1408
      %1410 = vrot.lane.b32.xlu0 %v1402, 21
      %v1411 = vpop.permute.xlu0 %1410
      %v1412 = vrot.slane %v1407, 4
      %v1413 = vrot.slane %v1409, 4
      %v1414 = vrot.slane %v1411, 4
      %v1415 = vsel %vm258, %v1412, %v1413
      %v1416 = vsel %vm404, %v1407, %v1415
      %v1417 = vsel %vm258, %v1413, %v1414
      %v1418 = vsel %vm404, %v1409, %v1417
      %1421 = vst [vmem:[#allocation3 + $0x60] sm:$0xff] %v1416
      %1422 = vst [vmem:[#allocation3 + $0x68] sm:$0xff] %v1418
      %v1423 = vld [vmem:[#allocation2] sm:$0xff]
      %v1424 = vld [vmem:[#allocation2 + $0x8] sm:$0xff]
      %v1425 = vld [vmem:[#allocation2 + $0x10] sm:$0xf]
      %1429 = vrot.lane.b32.xlu0 %v1423, 20
      %v1430 = vpop.permute.xlu0 %1429
      %1431 = vrot.lane.b32.xlu0 %v1424, 20
      %v1432 = vpop.permute.xlu0 %1431
      %1433 = vrot.lane.b32.xlu0 %v1425, 20
      %v1434 = vpop.permute.xlu0 %1433
      %v1435 = vrot.slane %v1430, 4
      %v1436 = vrot.slane %v1432, 4
      %v1437 = vrot.slane %v1434, 4
      %v1438 = vsel %vm258, %v1435, %v1436
      %v1439 = vsel %vm428, %v1430, %v1438
      %v1440 = vsel %vm258, %v1436, %v1437
      %v1441 = vsel %vm428, %v1432, %v1440
      %1444 = vst [vmem:[#allocation3 + $0x70] sm:$0xff] %v1439
      %1445 = vst [vmem:[#allocation3 + $0x78] sm:$0xff] %v1441
      %v1446 = vld [vmem:[#allocation2] sm:$0xff]
      %v1447 = vld [vmem:[#allocation2 + $0x8] sm:$0xff]
      %v1448 = vld [vmem:[#allocation2 + $0x10] sm:$0xf]
      %1452 = vrot.lane.b32.xlu0 %v1446, 19
      %v1453 = vpop.permute.xlu0 %1452
      %1454 = vrot.lane.b32.xlu0 %v1447, 19
      %v1455 = vpop.permute.xlu0 %1454
      %1456 = vrot.lane.b32.xlu0 %v1448, 19
      %v1457 = vpop.permute.xlu0 %1456
      %v1458 = vrot.slane %v1453, 4
      %v1459 = vrot.slane %v1455, 4
      %v1460 = vrot.slane %v1457, 4
      %v1461 = vsel %vm258, %v1458, %v1459
      %v1462 = vsel %vm452, %v1453, %v1461
      %v1463 = vsel %vm258, %v1459, %v1460
      %v1464 = vsel %vm452, %v1455, %v1463
      %1467 = vst [vmem:[#allocation3 + $0x80] sm:$0xff] %v1462
      %1468 = vst [vmem:[#allocation3 + $0x88] sm:$0xff] %v1464
      %v1469 = vld [vmem:[#allocation2] sm:$0xff]
      %v1470 = vld [vmem:[#allocation2 + $0x8] sm:$0xff]
      %v1471 = vld [vmem:[#allocation2 + $0x10] sm:$0xf]
      %1475 = vrot.lane.b32.xlu0 %v1469, 18
      %v1476 = vpop.permute.xlu0 %1475
      %1477 = vrot.lane.b32.xlu0 %v1470, 18
      %v1478 = vpop.permute.xlu0 %1477
      %1479 = vrot.lane.b32.xlu0 %v1471, 18
      %v1480 = vpop.permute.xlu0 %1479
      %v1481 = vrot.slane %v1476, 4
      %v1482 = vrot.slane %v1478, 4
      %v1483 = vrot.slane %v1480, 4
      %v1484 = vsel %vm258, %v1481, %v1482
      %v1485 = vsel %vm476, %v1476, %v1484
      %v1486 = vsel %vm258, %v1482, %v1483
      %v1487 = vsel %vm476, %v1478, %v1486
      %1490 = vst [vmem:[#allocation3 + $0x90] sm:$0xff] %v1485
      %1491 = vst [vmem:[#allocation3 + $0x98] sm:$0xff] %v1487
      %v1492 = vld [vmem:[#allocation2] sm:$0xff]
      %v1493 = vld [vmem:[#allocation2 + $0x8] sm:$0xff]
      %v1494 = vld [vmem:[#allocation2 + $0x10] sm:$0xf]
      %1498 = vrot.lane.b32.xlu0 %v1492, 2
      %v1499 = vpop.permute.xlu0 %1498
      %1500 = vrot.lane.b32.xlu0 %v1493, 2
      %v1501 = vpop.permute.xlu0 %1500
      %1502 = vrot.lane.b32.xlu0 %v1494, 2
      %v1503 = vpop.permute.xlu0 %1502
      %v1504 = vrot.slane %v1499, 4
      %v1505 = vrot.slane %v1501, 4
      %v1506 = vrot.slane %v1503, 4
      %v1507 = vsel %vm258, %v1504, %v1505
      %v1508 = vsel %vm500, %v1499, %v1507
      %v1509 = vsel %vm258, %v1505, %v1506
      %v1510 = vsel %vm500, %v1501, %v1509
      %1513 = vst [vmem:[#allocation3 + $0xa0] sm:$0xff] %v1508
      %1514 = vst [vmem:[#allocation3 + $0xa8] sm:$0xff] %v1510
      %v1515 = vld [vmem:[#allocation2] sm:$0xff]
      %v1516 = vld [vmem:[#allocation2 + $0x8] sm:$0xff]
      %v1517 = vld [vmem:[#allocation2 + $0x10] sm:$0xf]
      %1521 = vrot.lane.b32.xlu0 %v1515, 1
      %v1522 = vpop.permute.xlu0 %1521
      %1523 = vrot.lane.b32.xlu0 %v1516, 1
      %v1524 = vpop.permute.xlu0 %1523
      %1525 = vrot.lane.b32.xlu0 %v1517, 1
      %v1526 = vpop.permute.xlu0 %1525
      %v1527 = vrot.slane %v1522, 4
      %v1528 = vrot.slane %v1524, 4
      %v1529 = vrot.slane %v1526, 4
      %v1530 = vsel %vm258, %v1527, %v1528
      %v1531 = vsel %vm524, %v1522, %v1530
      %v1532 = vsel %vm258, %v1528, %v1529
      %v1533 = vsel %vm524, %v1524, %v1532
      %1536 = vst [vmem:[#allocation3 + $0xb0] sm:$0xff] %v1531
      %1537 = vst [vmem:[#allocation3 + $0xb8] sm:$0xff] %v1533
      %v1538 = vld [vmem:[#allocation2 + $0x4] sm:$0xff]
      %v1539 = vld [vmem:[#allocation2 + $0xc] sm:$0xff]
      %1540 = vst [vmem:[#allocation3 + $0xc0] sm:$0xff] %v1538
      %1541 = vst [vmem:[#allocation3 + $0xc8] sm:$0xff] %v1539
      %v1542 = vld [vmem:[#allocation2 + $0x4] sm:$0xff]
      %v1543 = vld [vmem:[#allocation2 + $0xc] sm:$0xff]
      %v1544 = vld [vmem:[#allocation2 + $0x14] sm:$0xf]
      %1548 = vrot.lane.b32.xlu0 %v1542, 127
      %v1549 = vpop.permute.xlu0 %1548
      %1550 = vrot.lane.b32.xlu0 %v1543, 127
      %v1551 = vpop.permute.xlu0 %1550
      %1552 = vrot.lane.b32.xlu0 %v1544, 127
      %v1553 = vpop.permute.xlu0 %1552
      %v1554 = vrot.slane %v1549, 4
      %v1555 = vrot.slane %v1551, 4
      %v1556 = vrot.slane %v1553, 4
      %v1557 = vsel %vm258, %v1554, %v1555
      %v1558 = vsel %vm552, %v1549, %v1557
      %v1559 = vsel %vm258, %v1555, %v1556
      %v1560 = vsel %vm552, %v1551, %v1559
      %1563 = vst [vmem:[#allocation3 + $0xd0] sm:$0xff] %v1558
      %1564 = vst [vmem:[#allocation3 + $0xd8] sm:$0xff] %v1560
      %v1565 = vld [vmem:[#allocation2 + $0x4] sm:$0xff]
      %v1566 = vld [vmem:[#allocation2 + $0xc] sm:$0xff]
      %v1567 = vld [vmem:[#allocation2 + $0x14] sm:$0xf]
      %1571 = vrot.lane.b32.xlu0 %v1565, 126
      %v1572 = vpop.permute.xlu0 %1571
      %1573 = vrot.lane.b32.xlu0 %v1566, 126
      %v1574 = vpop.permute.xlu0 %1573
      %1575 = vrot.lane.b32.xlu0 %v1567, 126
      %v1576 = vpop.permute.xlu0 %1575
      %v1577 = vrot.slane %v1572, 4
      %v1578 = vrot.slane %v1574, 4
      %v1579 = vrot.slane %v1576, 4
      %v1580 = vsel %vm258, %v1577, %v1578
      %v1581 = vsel %vm576, %v1572, %v1580
      %v1582 = vsel %vm258, %v1578, %v1579
      %v1583 = vsel %vm576, %v1574, %v1582
      %1586 = vst [vmem:[#allocation3 + $0xe0] sm:$0xff] %v1581
      %1587 = vst [vmem:[#allocation3 + $0xe8] sm:$0xff] %v1583
      %v1588 = vld [vmem:[#allocation2 + $0x4] sm:$0xff]
      %v1589 = vld [vmem:[#allocation2 + $0xc] sm:$0xff]
      %v1590 = vld [vmem:[#allocation2 + $0x14] sm:$0xf]
      %1594 = vrot.lane.b32.xlu0 %v1588, 110
      %v1595 = vpop.permute.xlu0 %1594
      %1596 = vrot.lane.b32.xlu0 %v1589, 110
      %v1597 = vpop.permute.xlu0 %1596
      %1598 = vrot.lane.b32.xlu0 %v1590, 110
      %v1599 = vpop.permute.xlu0 %1598
      %v1600 = vrot.slane %v1595, 4
      %v1601 = vrot.slane %v1597, 4
      %v1602 = vrot.slane %v1599, 4
      %v1603 = vsel %vm258, %v1600, %v1601
      %v1604 = vsel %vm600, %v1595, %v1603
      %v1605 = vsel %vm258, %v1601, %v1602
      %v1606 = vsel %vm600, %v1597, %v1605
      %1609 = vst [vmem:[#allocation3 + $0xf0] sm:$0xff] %v1604
      %1610 = vst [vmem:[#allocation3 + $0xf8] sm:$0xff] %v1606
      %v1611 = vld [vmem:[#allocation2 + $0x4] sm:$0xff]
      %v1612 = vld [vmem:[#allocation2 + $0xc] sm:$0xff]
      %v1613 = vld [vmem:[#allocation2 + $0x14] sm:$0xf]
      %1617 = vrot.lane.b32.xlu0 %v1611, 109
      %v1618 = vpop.permute.xlu0 %1617
      %1619 = vrot.lane.b32.xlu0 %v1612, 109
      %v1620 = vpop.permute.xlu0 %1619
      %1621 = vrot.lane.b32.xlu0 %v1613, 109
      %v1622 = vpop.permute.xlu0 %1621
      %v1623 = vrot.slane %v1618, 4
      %v1624 = vrot.slane %v1620, 4
      %v1625 = vrot.slane %v1622, 4
      %v1626 = vsel %vm258, %v1623, %v1624
      %v1627 = vsel %vm624, %v1618, %v1626
      %v1628 = vsel %vm258, %v1624, %v1625
      %v1629 = vsel %vm624, %v1620, %v1628
      %1632 = vst [vmem:[#allocation3 + $0x100] sm:$0xff] %v1627
      %1633 = vst [vmem:[#allocation3 + $0x108] sm:$0xff] %v1629
      %v1634 = vld [vmem:[#allocation2 + $0x4] sm:$0xff]
      %v1635 = vld [vmem:[#allocation2 + $0xc] sm:$0xff]
      %v1636 = vld [vmem:[#allocation2 + $0x14] sm:$0xf]
      %1640 = vrot.lane.b32.xlu0 %v1634, 108
      %v1641 = vpop.permute.xlu0 %1640
      %1642 = vrot.lane.b32.xlu0 %v1635, 108
      %v1643 = vpop.permute.xlu0 %1642
      %1644 = vrot.lane.b32.xlu0 %v1636, 108
      %v1645 = vpop.permute.xlu0 %1644
      %v1646 = vrot.slane %v1641, 4
      %v1647 = vrot.slane %v1643, 4
      %v1648 = vrot.slane %v1645, 4
      %v1649 = vsel %vm258, %v1646, %v1647
      %v1650 = vsel %vm648, %v1641, %v1649
      %v1651 = vsel %vm258, %v1647, %v1648
      %v1652 = vsel %vm648, %v1643, %v1651
      %1655 = vst [vmem:[#allocation3 + $0x110] sm:$0xff] %v1650
      %1656 = vst [vmem:[#allocation3 + $0x118] sm:$0xff] %v1652
      %v1657 = vld [vmem:[#allocation2 + $0x4] sm:$0xff]
      %v1658 = vld [vmem:[#allocation2 + $0xc] sm:$0xff]
      %v1659 = vld [vmem:[#allocation2 + $0x14] sm:$0xf]
      %1663 = vrot.lane.b32.xlu0 %v1657, 107
      %v1664 = vpop.permute.xlu0 %1663
      %1665 = vrot.lane.b32.xlu0 %v1658, 107
      %v1666 = vpop.permute.xlu0 %1665
      %1667 = vrot.lane.b32.xlu0 %v1659, 107
      %v1668 = vpop.permute.xlu0 %1667
      %v1669 = vrot.slane %v1664, 4
      %v1670 = vrot.slane %v1666, 4
      %v1671 = vrot.slane %v1668, 4
      %v1672 = vsel %vm258, %v1669, %v1670
      %v1673 = vsel %vm672, %v1664, %v1672
      %v1674 = vsel %vm258, %v1670, %v1671
      %v1675 = vsel %vm672, %v1666, %v1674
      %1678 = vst [vmem:[#allocation3 + $0x120] sm:$0xff] %v1673
      %1679 = vst [vmem:[#allocation3 + $0x128] sm:$0xff] %v1675
      %v1680 = vld [vmem:[#allocation2 + $0x4] sm:$0xff]
      %v1681 = vld [vmem:[#allocation2 + $0xc] sm:$0xff]
      %v1682 = vld [vmem:[#allocation2 + $0x14] sm:$0xf]
      %1686 = vrot.lane.b32.xlu0 %v1680, 106
      %v1687 = vpop.permute.xlu0 %1686
      %1688 = vrot.lane.b32.xlu0 %v1681, 106
      %v1689 = vpop.permute.xlu0 %1688
      %1690 = vrot.lane.b32.xlu0 %v1682, 106
      %v1691 = vpop.permute.xlu0 %1690
      %v1692 = vrot.slane %v1687, 4
      %v1693 = vrot.slane %v1689, 4
      %v1694 = vrot.slane %v1691, 4
      %v1695 = vsel %vm258, %v1692, %v1693
      %v1696 = vsel %vm696, %v1687, %v1695
      %v1697 = vsel %vm258, %v1693, %v1694
      %v1698 = vsel %vm696, %v1689, %v1697
      %1701 = vst [vmem:[#allocation3 + $0x130] sm:$0xff] %v1696
      %1702 = vst [vmem:[#allocation3 + $0x138] sm:$0xff] %v1698
      %v1703 = vld [vmem:[#allocation2 + $0x4] sm:$0xff]
      %v1704 = vld [vmem:[#allocation2 + $0xc] sm:$0xff]
      %v1705 = vld [vmem:[#allocation2 + $0x14] sm:$0xf]
      %1709 = vrot.lane.b32.xlu0 %v1703, 90
      %v1710 = vpop.permute.xlu0 %1709
      %1711 = vrot.lane.b32.xlu0 %v1704, 90
      %v1712 = vpop.permute.xlu0 %1711
      %1713 = vrot.lane.b32.xlu0 %v1705, 90
      %v1714 = vpop.permute.xlu0 %1713
      %v1715 = vrot.slane %v1710, 4
      %v1716 = vrot.slane %v1712, 4
      %v1717 = vrot.slane %v1714, 4
      %v1718 = vsel %vm258, %v1715, %v1716
      %v1719 = vsel %vm720, %v1710, %v1718
      %v1720 = vsel %vm258, %v1716, %v1717
      %v1721 = vsel %vm720, %v1712, %v1720
      %1724 = vst [vmem:[#allocation3 + $0x140] sm:$0xff] %v1719
      %1725 = vst [vmem:[#allocation3 + $0x148] sm:$0xff] %v1721
      %v1726 = vld [vmem:[#allocation2 + $0x4] sm:$0xff]
      %v1727 = vld [vmem:[#allocation2 + $0xc] sm:$0xff]
      %v1728 = vld [vmem:[#allocation2 + $0x14] sm:$0xf]
      %1732 = vrot.lane.b32.xlu0 %v1726, 89
      %v1733 = vpop.permute.xlu0 %1732
      %1734 = vrot.lane.b32.xlu0 %v1727, 89
      %v1735 = vpop.permute.xlu0 %1734
      %1736 = vrot.lane.b32.xlu0 %v1728, 89
      %v1737 = vpop.permute.xlu0 %1736
      %v1738 = vrot.slane %v1733, 4
      %v1739 = vrot.slane %v1735, 4
      %v1740 = vrot.slane %v1737, 4
      %v1741 = vsel %vm258, %v1738, %v1739
      %v1742 = vsel %vm744, %v1733, %v1741
      %v1743 = vsel %vm258, %v1739, %v1740
      %v1744 = vsel %vm744, %v1735, %v1743
      %1747 = vst [vmem:[#allocation3 + $0x150] sm:$0xff] %v1742
      %1748 = vst [vmem:[#allocation3 + $0x158] sm:$0xff] %v1744
      %v1749 = vld [vmem:[#allocation2 + $0x4] sm:$0xff]
      %v1750 = vld [vmem:[#allocation2 + $0xc] sm:$0xff]
      %v1751 = vld [vmem:[#allocation2 + $0x14] sm:$0xf]
      %1755 = vrot.lane.b32.xlu0 %v1749, 88
      %v1756 = vpop.permute.xlu0 %1755
      %1757 = vrot.lane.b32.xlu0 %v1750, 88
      %v1758 = vpop.permute.xlu0 %1757
      %1759 = vrot.lane.b32.xlu0 %v1751, 88
      %v1760 = vpop.permute.xlu0 %1759
      %v1761 = vrot.slane %v1756, 4
      %v1762 = vrot.slane %v1758, 4
      %v1763 = vrot.slane %v1760, 4
      %v1764 = vsel %vm258, %v1761, %v1762
      %v1765 = vsel %vm768, %v1756, %v1764
      %v1766 = vsel %vm258, %v1762, %v1763
      %v1767 = vsel %vm768, %v1758, %v1766
      %1770 = vst [vmem:[#allocation3 + $0x160] sm:$0xff] %v1765
      %1771 = vst [vmem:[#allocation3 + $0x168] sm:$0xff] %v1767
      %v1772 = vld [vmem:[#allocation2 + $0x4] sm:$0xff]
      %v1773 = vld [vmem:[#allocation2 + $0xc] sm:$0xff]
      %v1774 = vld [vmem:[#allocation2 + $0x14] sm:$0xf]
      %1778 = vrot.lane.b32.xlu0 %v1772, 87
      %v1779 = vpop.permute.xlu0 %1778
      %1780 = vrot.lane.b32.xlu0 %v1773, 87
      %v1781 = vpop.permute.xlu0 %1780
      %1782 = vrot.lane.b32.xlu0 %v1774, 87
      %v1783 = vpop.permute.xlu0 %1782
      %v1784 = vrot.slane %v1779, 4
      %v1785 = vrot.slane %v1781, 4
      %v1786 = vrot.slane %v1783, 4
      %v1787 = vsel %vm258, %v1784, %v1785
      %v1788 = vsel %vm792, %v1779, %v1787
      %v1789 = vsel %vm258, %v1785, %v1786
      %v1790 = vsel %vm792, %v1781, %v1789
      %1793 = vst [vmem:[#allocation3 + $0x170] sm:$0xff] %v1788
      %1794 = vst [vmem:[#allocation3 + $0x178] sm:$0xff] %v1790
      %v1795 = vld [vmem:[#allocation2 + $0x4] sm:$0xff]
      %v1796 = vld [vmem:[#allocation2 + $0xc] sm:$0xff]
      %v1797 = vld [vmem:[#allocation2 + $0x14] sm:$0xf]
      %1801 = vrot.lane.b32.xlu0 %v1795, 86
      %v1802 = vpop.permute.xlu0 %1801
      %1803 = vrot.lane.b32.xlu0 %v1796, 86
      %v1804 = vpop.permute.xlu0 %1803
      %1805 = vrot.lane.b32.xlu0 %v1797, 86
      %v1806 = vpop.permute.xlu0 %1805
      %v1807 = vrot.slane %v1802, 4
      %v1808 = vrot.slane %v1804, 4
      %v1809 = vrot.slane %v1806, 4
      %v1810 = vsel %vm258, %v1807, %v1808
      %v1811 = vsel %vm816, %v1802, %v1810
      %v1812 = vsel %vm258, %v1808, %v1809
      %v1813 = vsel %vm816, %v1804, %v1812
      %1816 = vst [vmem:[#allocation3 + $0x180] sm:$0xff] %v1811
      %1817 = vst [vmem:[#allocation3 + $0x188] sm:$0xff] %v1813
      %s1818 = scalar_lea.vmem %s2, 8
      %v1819 = vld [vmem:[%s1818] sm:$0xff]
      %v1820 = vld [vmem:[#allocation3] sm:$0xff]
      %v1821 = vld [vmem:[#allocation3 + $0x8] sm:$0xff]
      %v1822 = vld [vmem:[#allocation3 + $0x10] sm:$0xff]
      %v1823 = vld [vmem:[#allocation3 + $0x18] sm:$0xff]
      %v1824 = vld [vmem:[#allocation3 + $0x20] sm:$0xff]
      %v1825 = vld [vmem:[#allocation3 + $0x28] sm:$0xff]
      %v1826 = vld [vmem:[#allocation3 + $0x30] sm:$0xff]
      %v1827 = vld [vmem:[#allocation3 + $0x38] sm:$0xff]
      %v1828 = vld [vmem:[#allocation3 + $0x40] sm:$0xff]
      %v1829 = vld [vmem:[#allocation3 + $0x48] sm:$0xff]
      %v1830 = vld [vmem:[#allocation3 + $0x50] sm:$0xff]
      %v1831 = vld [vmem:[#allocation3 + $0x58] sm:$0xff]
      %v1832 = vld [vmem:[#allocation3 + $0x60] sm:$0xff]
      %v1833 = vld [vmem:[#allocation3 + $0x68] sm:$0xff]
      %v1834 = vld [vmem:[#allocation3 + $0x70] sm:$0xff]
      %v1835 = vld [vmem:[#allocation3 + $0x78] sm:$0xff]
      %v1836 = vld [vmem:[#allocation3 + $0x80] sm:$0xff]
      %v1837 = vld [vmem:[#allocation3 + $0x88] sm:$0xff]
      %v1838 = vld [vmem:[#allocation3 + $0x90] sm:$0xff]
      %v1839 = vld [vmem:[#allocation3 + $0x98] sm:$0xff]
      %v1840 = vld [vmem:[#allocation3 + $0xa0] sm:$0xff]
      %v1841 = vld [vmem:[#allocation3 + $0xa8] sm:$0xff]
      %v1842 = vld [vmem:[#allocation3 + $0xb0] sm:$0xff]
      %v1843 = vld [vmem:[#allocation3 + $0xb8] sm:$0xff]
      %v1844 = vld [vmem:[#allocation3 + $0xc0] sm:$0xff]
      %v1845 = vld [vmem:[#allocation3 + $0xc8] sm:$0xff]
      %v1846 = vld [vmem:[#allocation3 + $0xd0] sm:$0xff]
      %v1847 = vld [vmem:[#allocation3 + $0xd8] sm:$0xff]
      %v1848 = vld [vmem:[#allocation3 + $0xe0] sm:$0xff]
      %v1849 = vld [vmem:[#allocation3 + $0xe8] sm:$0xff]
      %v1850 = vld [vmem:[#allocation3 + $0xf0] sm:$0xff]
      %v1851 = vld [vmem:[#allocation3 + $0xf8] sm:$0xff]
      %v1852 = vld [vmem:[#allocation3 + $0x100] sm:$0xff]
      %v1853 = vld [vmem:[#allocation3 + $0x108] sm:$0xff]
      %v1854 = vld [vmem:[#allocation3 + $0x110] sm:$0xff]
      %v1855 = vld [vmem:[#allocation3 + $0x118] sm:$0xff]
      %v1856 = vld [vmem:[#allocation3 + $0x120] sm:$0xff]
      %v1857 = vld [vmem:[#allocation3 + $0x128] sm:$0xff]
      %v1858 = vld [vmem:[#allocation3 + $0x130] sm:$0xff]
      %v1859 = vld [vmem:[#allocation3 + $0x138] sm:$0xff]
      %v1860 = vld [vmem:[#allocation3 + $0x140] sm:$0xff]
      %v1861 = vld [vmem:[#allocation3 + $0x148] sm:$0xff]
      %v1862 = vld [vmem:[#allocation3 + $0x150] sm:$0xff]
      %v1863 = vld [vmem:[#allocation3 + $0x158] sm:$0xff]
      %v1864 = vld [vmem:[#allocation3 + $0x160] sm:$0xff]
      %v1865 = vld [vmem:[#allocation3 + $0x168] sm:$0xff]
      %v1866 = vld [vmem:[#allocation3 + $0x170] sm:$0xff]
      %v1867 = vld [vmem:[#allocation3 + $0x178] sm:$0xff]
      %v1868 = vld [vmem:[#allocation3 + $0x180] sm:$0xff]
      %v1869 = vld [vmem:[#allocation3 + $0x188] sm:$0xff]
      %s1870 = scalar_lea.vmem %s3, 8
      %v1871 = vld [vmem:[%s1870] sm:$0xff]
      %1873 = vset.pattern.permute.xlu0 0
      %1874 = vperm.xlu0 %1873, %v1871
      %v1875 = vpop.permute.xlu0 %1874
      %v1878 = vunpack.c.l.b16 %v1819
      %v1879 = vunpack.c.h.b16 %v1819
      %v1880 = vpack.c.b16 %v1878, %v1878
      %v1881 = vpack.c.b16 %v1879, %v1879
      %v1933 = vunpack.c.l.b16 %v1820
      %v1934 = vunpack.c.h.b16 %v1820
      %v1935 = vunpack.c.l.b16 %v1821
      %v1936 = vunpack.c.h.b16 %v1821
      %v1937 = vunpack.c.l.b16 %v1822
      %v1938 = vunpack.c.h.b16 %v1822
      %v1939 = vunpack.c.l.b16 %v1823
      %v1940 = vunpack.c.h.b16 %v1823
      %v1941 = vunpack.c.l.b16 %v1824
      %v1942 = vunpack.c.h.b16 %v1824
      %v1943 = vunpack.c.l.b16 %v1825
      %v1944 = vunpack.c.h.b16 %v1825
      %v1945 = vunpack.c.l.b16 %v1826
      %v1946 = vunpack.c.h.b16 %v1826
      %v1947 = vunpack.c.l.b16 %v1827
      %v1948 = vunpack.c.h.b16 %v1827
      %v1949 = vunpack.c.l.b16 %v1828
      %v1950 = vunpack.c.h.b16 %v1828
      %v1951 = vunpack.c.l.b16 %v1829
      %v1952 = vunpack.c.h.b16 %v1829
      %v1953 = vunpack.c.l.b16 %v1830
      %v1954 = vunpack.c.h.b16 %v1830
      %v1955 = vunpack.c.l.b16 %v1831
      %v1956 = vunpack.c.h.b16 %v1831
      %v1957 = vunpack.c.l.b16 %v1832
      %v1958 = vunpack.c.h.b16 %v1832
      %v1959 = vunpack.c.l.b16 %v1833
      %v1960 = vunpack.c.h.b16 %v1833
      %v1961 = vunpack.c.l.b16 %v1834
      %v1962 = vunpack.c.h.b16 %v1834
      %v1963 = vunpack.c.l.b16 %v1835
      %v1964 = vunpack.c.h.b16 %v1835
      %v1965 = vunpack.c.l.b16 %v1836
      %v1966 = vunpack.c.h.b16 %v1836
      %v1967 = vunpack.c.l.b16 %v1837
      %v1968 = vunpack.c.h.b16 %v1837
      %v1969 = vunpack.c.l.b16 %v1838
      %v1970 = vunpack.c.h.b16 %v1838
      %v1971 = vunpack.c.l.b16 %v1839
      %v1972 = vunpack.c.h.b16 %v1839
      %v1973 = vunpack.c.l.b16 %v1840
      %v1974 = vunpack.c.h.b16 %v1840
      %v1975 = vunpack.c.l.b16 %v1841
      %v1976 = vunpack.c.h.b16 %v1841
      %v1977 = vunpack.c.l.b16 %v1842
      %v1978 = vunpack.c.h.b16 %v1842
      %v1979 = vunpack.c.l.b16 %v1843
      %v1980 = vunpack.c.h.b16 %v1843
      %v1981 = vunpack.c.l.b16 %v1844
      %v1982 = vunpack.c.h.b16 %v1844
      %v1983 = vunpack.c.l.b16 %v1845
      %v1984 = vunpack.c.h.b16 %v1845
      %v1985 = vunpack.c.l.b16 %v1846
      %v1986 = vunpack.c.h.b16 %v1846
      %v1987 = vunpack.c.l.b16 %v1847
      %v1988 = vunpack.c.h.b16 %v1847
      %v1989 = vunpack.c.l.b16 %v1848
      %v1990 = vunpack.c.h.b16 %v1848
      %v1991 = vunpack.c.l.b16 %v1849
      %v1992 = vunpack.c.h.b16 %v1849
      %v1993 = vunpack.c.l.b16 %v1850
      %v1994 = vunpack.c.h.b16 %v1850
      %v1995 = vunpack.c.l.b16 %v1851
      %v1996 = vunpack.c.h.b16 %v1851
      %v1997 = vunpack.c.l.b16 %v1852
      %v1998 = vunpack.c.h.b16 %v1852
      %v1999 = vunpack.c.l.b16 %v1853
      %v2000 = vunpack.c.h.b16 %v1853
      %v2001 = vunpack.c.l.b16 %v1854
      %v2002 = vunpack.c.h.b16 %v1854
      %v2003 = vunpack.c.l.b16 %v1855
      %v2004 = vunpack.c.h.b16 %v1855
      %v2005 = vunpack.c.l.b16 %v1856
      %v2006 = vunpack.c.h.b16 %v1856
      %v2007 = vunpack.c.l.b16 %v1857
      %v2008 = vunpack.c.h.b16 %v1857
      %v2009 = vunpack.c.l.b16 %v1858
      %v2010 = vunpack.c.h.b16 %v1858
      %v2011 = vunpack.c.l.b16 %v1859
      %v2012 = vunpack.c.h.b16 %v1859
      %v2013 = vunpack.c.l.b16 %v1860
      %v2014 = vunpack.c.h.b16 %v1860
      %v2015 = vunpack.c.l.b16 %v1861
      %v2016 = vunpack.c.h.b16 %v1861
      %v2017 = vunpack.c.l.b16 %v1862
      %v2018 = vunpack.c.h.b16 %v1862
      %v2019 = vunpack.c.l.b16 %v1863
      %v2020 = vunpack.c.h.b16 %v1863
      %v2021 = vunpack.c.l.b16 %v1864
      %v2022 = vunpack.c.h.b16 %v1864
      %v2023 = vunpack.c.l.b16 %v1865
      %v2024 = vunpack.c.h.b16 %v1865
      %v2025 = vunpack.c.l.b16 %v1866
      %v2026 = vunpack.c.h.b16 %v1866
      %v2027 = vunpack.c.l.b16 %v1867
      %v2028 = vunpack.c.h.b16 %v1867
      %v2029 = vunpack.c.l.b16 %v1868
      %v2030 = vunpack.c.h.b16 %v1868
      %v2031 = vunpack.c.l.b16 %v1869
      %v2032 = vunpack.c.h.b16 %v1869
      %v2033 = vpack.c.b16 %v1937, %v1933
      %v2034 = vpack.c.b16 %v1938, %v1934
      %v2035 = vpack.c.b16 %v1939, %v1935
      %v2036 = vpack.c.b16 %v1940, %v1936
      %v2037 = vpack.c.b16 %v1945, %v1941
      %v2038 = vpack.c.b16 %v1946, %v1942
      %v2039 = vpack.c.b16 %v1947, %v1943
      %v2040 = vpack.c.b16 %v1948, %v1944
      %v2041 = vpack.c.b16 %v1953, %v1949
      %v2042 = vpack.c.b16 %v1954, %v1950
      %v2043 = vpack.c.b16 %v1955, %v1951
      %v2044 = vpack.c.b16 %v1956, %v1952
      %v2045 = vpack.c.b16 %v1961, %v1957
      %v2046 = vpack.c.b16 %v1962, %v1958
      %v2047 = vpack.c.b16 %v1963, %v1959
      %v2048 = vpack.c.b16 %v1964, %v1960
      %v2049 = vpack.c.b16 %v1969, %v1965
      %v2050 = vpack.c.b16 %v1970, %v1966
      %v2051 = vpack.c.b16 %v1971, %v1967
      %v2052 = vpack.c.b16 %v1972, %v1968
      %v2053 = vpack.c.b16 %v1977, %v1973
      %v2054 = vpack.c.b16 %v1978, %v1974
      %v2055 = vpack.c.b16 %v1979, %v1975
      %v2056 = vpack.c.b16 %v1980, %v1976
      %v2057 = vpack.c.b16 %v1985, %v1981
      %v2058 = vpack.c.b16 %v1986, %v1982
      %v2059 = vpack.c.b16 %v1987, %v1983
      %v2060 = vpack.c.b16 %v1988, %v1984
      %v2061 = vpack.c.b16 %v1993, %v1989
      %v2062 = vpack.c.b16 %v1994, %v1990
      %v2063 = vpack.c.b16 %v1995, %v1991
      %v2064 = vpack.c.b16 %v1996, %v1992
      %v2065 = vpack.c.b16 %v2001, %v1997
      %v2066 = vpack.c.b16 %v2002, %v1998
      %v2067 = vpack.c.b16 %v2003, %v1999
      %v2068 = vpack.c.b16 %v2004, %v2000
      %v2069 = vpack.c.b16 %v2009, %v2005
      %v2070 = vpack.c.b16 %v2010, %v2006
      %v2071 = vpack.c.b16 %v2011, %v2007
      %v2072 = vpack.c.b16 %v2012, %v2008
      %v2073 = vpack.c.b16 %v2017, %v2013
      %v2074 = vpack.c.b16 %v2018, %v2014
      %v2075 = vpack.c.b16 %v2019, %v2015
      %v2076 = vpack.c.b16 %v2020, %v2016
      %v2077 = vpack.c.b16 %v2025, %v2021
      %v2078 = vpack.c.b16 %v2026, %v2022
      %v2079 = vpack.c.b16 %v2027, %v2023
      %v2080 = vpack.c.b16 %v2028, %v2024
      %v2081 = vpack.c.b16 %v2029, %v2029
      %v2082 = vpack.c.b16 %v2030, %v2030
      %v2083 = vpack.c.b16 %v2031, %v2031
      %v2084 = vpack.c.b16 %v2032, %v2032
      %v2134 = vsel %vm1137, %v1881, 0
      %v2137 = vsel %vm1141, %v2081, 0
      %v2140 = vsel %vm1141, %v2082, 0
      %v2143 = vsel %vm1141, %v2083, 0
      %v2146 = vsel %vm1141, %v2084, 0
      %2148 = vmatprep.subr.bf16.mxu0 %v2062
      %2149 = vmatpush1.bf16.msra.mxu0 %v2061
      %2150 = vmatprep.subr.bf16.mxu0 %v2058
      %2151 = vmatpush1.bf16.msra.mxu0 %v2057
      %2152 = vmatprep.subr.bf16.mxu0 %v2054
      %2153 = vmatpush1.bf16.msra.mxu0 %v2053
      %2154 = vmatprep.subr.bf16.mxu0 %v2050
      %2155 = vmatpush1.bf16.msra.mxu0 %v2049
      %2156 = vmatprep.subr.bf16.mxu0 %v2046
      %2157 = vmatpush1.bf16.msra.mxu0 %v2045
      %2158 = vmatprep.subr.bf16.mxu0 %v2042
      %2159 = vmatpush1.bf16.msra.mxu0 %v2041
      %2160 = vmatprep.subr.bf16.mxu0 %v2038
      %2161 = vmatpush1.bf16.msra.mxu0 %v2037
      %2162 = vmatprep.subr.bf16.mxu0 %v2034
      %2163 = vmatpush1.bf16.msra.mxu0 %v2033
      %2164 = vmatprep.subr.bf16.mxu0 0
      %2165 = vmatpush2.bf16.msra.mxu0 0
      %2166 = vmatprep.subr.bf16.mxu0 0
      %2167 = vmatpush2.bf16.msra.mxu0 0
      %2168 = vmatprep.subr.bf16.mxu0 0
      %2169 = vmatpush2.bf16.msra.mxu0 0
      %2170 = vmatprep.subr.bf16.mxu0 %v2140
      %2171 = vmatpush2.bf16.msra.mxu0 %v2137
      %2172 = vmatprep.subr.bf16.mxu0 %v2078
      %2173 = vmatpush2.bf16.msra.mxu0 %v2077
      %2174 = vmatprep.subr.bf16.mxu0 %v2074
      %2175 = vmatpush2.bf16.msra.mxu0 %v2073
      %2176 = vmatprep.subr.bf16.mxu0 %v2070
      %2177 = vmatpush2.bf16.msra.mxu0 %v2069
      %2178 = vmatprep.subr.bf16.mxu0 %v2066
      %2179 = vmatpush2.bf16.msra.mxu0 %v2065
      %2180 = vmatprep.mubr.bf16.mxu0 %v2134
      %2181 = vmatmul.mubr.bf16.gmra.mxu0 %v1880
      %v2182 = vpop.f32.mrf.mxu0
      %v2183 = vadd.f32 %v1875, %v2182
      %v2184 = vpop.f32.mrf.mxu0
      %v2185 = vadd.f32 %v1875, %v2184
      %v2186 = vpop.f32.mrf.mxu0
      %v2187 = vpop.f32.mrf.mxu0
      %2188 = vdwg.mxu0
      %2189 = vmatprep.subr.bf16.mxu0 %v2064
      %2190 = vmatpush1.bf16.msra.mxu0 %v2063
      %2191 = vmatprep.subr.bf16.mxu0 %v2060
      %2192 = vmatpush1.bf16.msra.mxu0 %v2059
      %2193 = vmatprep.subr.bf16.mxu0 %v2056
      %2194 = vmatpush1.bf16.msra.mxu0 %v2055
      %2195 = vmatprep.subr.bf16.mxu0 %v2052
      %2196 = vmatpush1.bf16.msra.mxu0 %v2051
      %2197 = vmatprep.subr.bf16.mxu0 %v2048
      %2198 = vmatpush1.bf16.msra.mxu0 %v2047
      %2199 = vmatprep.subr.bf16.mxu0 %v2044
      %2200 = vmatpush1.bf16.msra.mxu0 %v2043
      %2201 = vmatprep.subr.bf16.mxu0 %v2040
      %2202 = vmatpush1.bf16.msra.mxu0 %v2039
      %2203 = vmatprep.subr.bf16.mxu0 %v2036
      %2204 = vmatpush1.bf16.msra.mxu0 %v2035
      %2205 = vmatprep.subr.bf16.mxu0 0
      %2206 = vmatpush2.bf16.msra.mxu0 0
      %2207 = vmatprep.subr.bf16.mxu0 0
      %2208 = vmatpush2.bf16.msra.mxu0 0
      %2209 = vmatprep.subr.bf16.mxu0 0
      %2210 = vmatpush2.bf16.msra.mxu0 0
      %2211 = vmatprep.subr.bf16.mxu0 %v2146
      %2212 = vmatpush2.bf16.msra.mxu0 %v2143
      %2213 = vmatprep.subr.bf16.mxu0 %v2080
      %2214 = vmatpush2.bf16.msra.mxu0 %v2079
      %2215 = vmatprep.subr.bf16.mxu0 %v2076
      %2216 = vmatpush2.bf16.msra.mxu0 %v2075
      %2217 = vmatprep.subr.bf16.mxu0 %v2072
      %2218 = vmatpush2.bf16.msra.mxu0 %v2071
      %2219 = vmatprep.subr.bf16.mxu0 %v2068
      %2220 = vmatpush2.bf16.msra.mxu0 %v2067
      %2221 = vmatprep.mubr.bf16.mxu0 %v2134
      %2222 = vmatmul.mubr.bf16.gmra.mxu0 %v1880
      %v2223 = vpop.f32.mrf.mxu0
      %v2224 = vadd.f32 %v1875, %v2223
      %v2225 = vpop.f32.mrf.mxu0
      %v2226 = vadd.f32 %v1875, %v2225
      %v2227 = vpop.f32.mrf.mxu0
      %v2228 = vpop.f32.mrf.mxu0
      %2229 = vdwg.mxu0
      %v2230 = vmul.f32 %v2183, %v204
      %v2231 = vmul.f32 %v2185, %v208
      %v2232 = vmul.f32 %v2224, %v212
      %v2233 = vmul.f32 %v2226, %v216
      %v2234 = vadd.f32 %v221, %v2230
      %v2235 = vadd.f32 %v222, %v2231
      %v2236 = vadd.f32 %v223, %v2232
      %v2237 = vadd.f32 %v224, %v2233
      %v2238 = vpack.c.bf16 %v2234, %v2234
      %v2239 = vpack.c.bf16 %v2235, %v2235
      %v2240 = vpack.c.bf16 %v2236, %v2236
      %v2241 = vpack.c.bf16 %v2237, %v2237
      %v2246 = vunpack.c.l.b16 %v2238
      %v2247 = vunpack.c.l.b16 %v2239
      %v2248 = vunpack.c.l.b16 %v2240
      %v2249 = vunpack.c.l.b16 %v2241
      %v2250 = vpack.c.b16 %v2247, %v2246
      %v2251 = vpack.c.b16 %v2249, %v2248
      %2254 = vst [vmem:[#allocation2 + $0x4] sm:$0xff] %v2250
      %2255 = vst [vmem:[#allocation2 + $0xc] sm:$0xff] %v2251
      %v2256 = vld [vmem:[#allocation2] sm:$0xff]
      %v2257 = vld [vmem:[#allocation2 + $0x8] sm:$0xff]
      %v2258 = vld [vmem:[#allocation2 + $0x10] sm:$0xf]
      %2262 = vrot.lane.b32.xlu0 %v2256, 42
      %v2263 = vpop.permute.xlu0 %2262
      %2264 = vrot.lane.b32.xlu0 %v2257, 42
      %v2265 = vpop.permute.xlu0 %2264
      %2266 = vrot.lane.b32.xlu0 %v2258, 42
      %v2267 = vpop.permute.xlu0 %2266
      %v2268 = vrot.slane %v2263, 4
      %v2269 = vrot.slane %v2265, 4
      %v2270 = vrot.slane %v2267, 4
      %v2271 = vsel %vm258, %v2268, %v2269
      %v2272 = vsel %vm260, %v2263, %v2271
      %v2273 = vsel %vm258, %v2269, %v2270
      %v2274 = vsel %vm260, %v2265, %v2273
      %2277 = vst [vmem:[#allocation3] sm:$0xff] %v2272
      %2278 = vst [vmem:[#allocation3 + $0x8] sm:$0xff] %v2274
      %v2279 = vld [vmem:[#allocation2] sm:$0xff]
      %v2280 = vld [vmem:[#allocation2 + $0x8] sm:$0xff]
      %v2281 = vld [vmem:[#allocation2 + $0x10] sm:$0xf]
      %2285 = vrot.lane.b32.xlu0 %v2279, 41
      %v2286 = vpop.permute.xlu0 %2285
      %2287 = vrot.lane.b32.xlu0 %v2280, 41
      %v2288 = vpop.permute.xlu0 %2287
      %2289 = vrot.lane.b32.xlu0 %v2281, 41
      %v2290 = vpop.permute.xlu0 %2289
      %v2291 = vrot.slane %v2286, 4
      %v2292 = vrot.slane %v2288, 4
      %v2293 = vrot.slane %v2290, 4
      %v2294 = vsel %vm258, %v2291, %v2292
      %v2295 = vsel %vm284, %v2286, %v2294
      %v2296 = vsel %vm258, %v2292, %v2293
      %v2297 = vsel %vm284, %v2288, %v2296
      %2300 = vst [vmem:[#allocation3 + $0x10] sm:$0xff] %v2295
      %2301 = vst [vmem:[#allocation3 + $0x18] sm:$0xff] %v2297
      %v2302 = vld [vmem:[#allocation2] sm:$0xff]
      %v2303 = vld [vmem:[#allocation2 + $0x8] sm:$0xff]
      %v2304 = vld [vmem:[#allocation2 + $0x10] sm:$0xf]
      %2308 = vrot.lane.b32.xlu0 %v2302, 40
      %v2309 = vpop.permute.xlu0 %2308
      %2310 = vrot.lane.b32.xlu0 %v2303, 40
      %v2311 = vpop.permute.xlu0 %2310
      %2312 = vrot.lane.b32.xlu0 %v2304, 40
      %v2313 = vpop.permute.xlu0 %2312
      %v2314 = vrot.slane %v2309, 4
      %v2315 = vrot.slane %v2311, 4
      %v2316 = vrot.slane %v2313, 4
      %v2317 = vsel %vm258, %v2314, %v2315
      %v2318 = vsel %vm308, %v2309, %v2317
      %v2319 = vsel %vm258, %v2315, %v2316
      %v2320 = vsel %vm308, %v2311, %v2319
      %2323 = vst [vmem:[#allocation3 + $0x20] sm:$0xff] %v2318
      %2324 = vst [vmem:[#allocation3 + $0x28] sm:$0xff] %v2320
      %v2325 = vld [vmem:[#allocation2] sm:$0xff]
      %v2326 = vld [vmem:[#allocation2 + $0x8] sm:$0xff]
      %v2327 = vld [vmem:[#allocation2 + $0x10] sm:$0xf]
      %2331 = vrot.lane.b32.xlu0 %v2325, 39
      %v2332 = vpop.permute.xlu0 %2331
      %2333 = vrot.lane.b32.xlu0 %v2326, 39
      %v2334 = vpop.permute.xlu0 %2333
      %2335 = vrot.lane.b32.xlu0 %v2327, 39
      %v2336 = vpop.permute.xlu0 %2335
      %v2337 = vrot.slane %v2332, 4
      %v2338 = vrot.slane %v2334, 4
      %v2339 = vrot.slane %v2336, 4
      %v2340 = vsel %vm258, %v2337, %v2338
      %v2341 = vsel %vm332, %v2332, %v2340
      %v2342 = vsel %vm258, %v2338, %v2339
      %v2343 = vsel %vm332, %v2334, %v2342
      %2346 = vst [vmem:[#allocation3 + $0x30] sm:$0xff] %v2341
      %2347 = vst [vmem:[#allocation3 + $0x38] sm:$0xff] %v2343
      %v2348 = vld [vmem:[#allocation2] sm:$0xff]
      %v2349 = vld [vmem:[#allocation2 + $0x8] sm:$0xff]
      %v2350 = vld [vmem:[#allocation2 + $0x10] sm:$0xf]
      %2354 = vrot.lane.b32.xlu0 %v2348, 38
      %v2355 = vpop.permute.xlu0 %2354
      %2356 = vrot.lane.b32.xlu0 %v2349, 38
      %v2357 = vpop.permute.xlu0 %2356
      %2358 = vrot.lane.b32.xlu0 %v2350, 38
      %v2359 = vpop.permute.xlu0 %2358
      %v2360 = vrot.slane %v2355, 4
      %v2361 = vrot.slane %v2357, 4
      %v2362 = vrot.slane %v2359, 4
      %v2363 = vsel %vm258, %v2360, %v2361
      %v2364 = vsel %vm356, %v2355, %v2363
      %v2365 = vsel %vm258, %v2361, %v2362
      %v2366 = vsel %vm356, %v2357, %v2365
      %2369 = vst [vmem:[#allocation3 + $0x40] sm:$0xff] %v2364
      %2370 = vst [vmem:[#allocation3 + $0x48] sm:$0xff] %v2366
      %v2371 = vld [vmem:[#allocation2] sm:$0xff]
      %v2372 = vld [vmem:[#allocation2 + $0x8] sm:$0xff]
      %v2373 = vld [vmem:[#allocation2 + $0x10] sm:$0xf]
      %2377 = vrot.lane.b32.xlu0 %v2371, 22
      %v2378 = vpop.permute.xlu0 %2377
      %2379 = vrot.lane.b32.xlu0 %v2372, 22
      %v2380 = vpop.permute.xlu0 %2379
      %2381 = vrot.lane.b32.xlu0 %v2373, 22
      %v2382 = vpop.permute.xlu0 %2381
      %v2383 = vrot.slane %v2378, 4
      %v2384 = vrot.slane %v2380, 4
      %v2385 = vrot.slane %v2382, 4
      %v2386 = vsel %vm258, %v2383, %v2384
      %v2387 = vsel %vm380, %v2378, %v2386
      %v2388 = vsel %vm258, %v2384, %v2385
      %v2389 = vsel %vm380, %v2380, %v2388
      %2392 = vst [vmem:[#allocation3 + $0x50] sm:$0xff] %v2387
      %2393 = vst [vmem:[#allocation3 + $0x58] sm:$0xff] %v2389
      %v2394 = vld [vmem:[#allocation2] sm:$0xff]
      %v2395 = vld [vmem:[#allocation2 + $0x8] sm:$0xff]
      %v2396 = vld [vmem:[#allocation2 + $0x10] sm:$0xf]
      %2400 = vrot.lane.b32.xlu0 %v2394, 21
      %v2401 = vpop.permute.xlu0 %2400
      %2402 = vrot.lane.b32.xlu0 %v2395, 21
      %v2403 = vpop.permute.xlu0 %2402
      %2404 = vrot.lane.b32.xlu0 %v2396, 21
      %v2405 = vpop.permute.xlu0 %2404
      %v2406 = vrot.slane %v2401, 4
      %v2407 = vrot.slane %v2403, 4
      %v2408 = vrot.slane %v2405, 4
      %v2409 = vsel %vm258, %v2406, %v2407
      %v2410 = vsel %vm404, %v2401, %v2409
      %v2411 = vsel %vm258, %v2407, %v2408
      %v2412 = vsel %vm404, %v2403, %v2411
      %2415 = vst [vmem:[#allocation3 + $0x60] sm:$0xff] %v2410
      %2416 = vst [vmem:[#allocation3 + $0x68] sm:$0xff] %v2412
      %v2417 = vld [vmem:[#allocation2] sm:$0xff]
      %v2418 = vld [vmem:[#allocation2 + $0x8] sm:$0xff]
      %v2419 = vld [vmem:[#allocation2 + $0x10] sm:$0xf]
      %2423 = vrot.lane.b32.xlu0 %v2417, 20
      %v2424 = vpop.permute.xlu0 %2423
      %2425 = vrot.lane.b32.xlu0 %v2418, 20
      %v2426 = vpop.permute.xlu0 %2425
      %2427 = vrot.lane.b32.xlu0 %v2419, 20
      %v2428 = vpop.permute.xlu0 %2427
      %v2429 = vrot.slane %v2424, 4
      %v2430 = vrot.slane %v2426, 4
      %v2431 = vrot.slane %v2428, 4
      %v2432 = vsel %vm258, %v2429, %v2430
      %v2433 = vsel %vm428, %v2424, %v2432
      %v2434 = vsel %vm258, %v2430, %v2431
      %v2435 = vsel %vm428, %v2426, %v2434
      %2438 = vst [vmem:[#allocation3 + $0x70] sm:$0xff] %v2433
      %2439 = vst [vmem:[#allocation3 + $0x78] sm:$0xff] %v2435
      %v2440 = vld [vmem:[#allocation2] sm:$0xff]
      %v2441 = vld [vmem:[#allocation2 + $0x8] sm:$0xff]
      %v2442 = vld [vmem:[#allocation2 + $0x10] sm:$0xf]
      %2446 = vrot.lane.b32.xlu0 %v2440, 19
      %v2447 = vpop.permute.xlu0 %2446
      %2448 = vrot.lane.b32.xlu0 %v2441, 19
      %v2449 = vpop.permute.xlu0 %2448
      %2450 = vrot.lane.b32.xlu0 %v2442, 19
      %v2451 = vpop.permute.xlu0 %2450
      %v2452 = vrot.slane %v2447, 4
      %v2453 = vrot.slane %v2449, 4
      %v2454 = vrot.slane %v2451, 4
      %v2455 = vsel %vm258, %v2452, %v2453
      %v2456 = vsel %vm452, %v2447, %v2455
      %v2457 = vsel %vm258, %v2453, %v2454
      %v2458 = vsel %vm452, %v2449, %v2457
      %2461 = vst [vmem:[#allocation3 + $0x80] sm:$0xff] %v2456
      %2462 = vst [vmem:[#allocation3 + $0x88] sm:$0xff] %v2458
      %v2463 = vld [vmem:[#allocation2] sm:$0xff]
      %v2464 = vld [vmem:[#allocation2 + $0x8] sm:$0xff]
      %v2465 = vld [vmem:[#allocation2 + $0x10] sm:$0xf]
      %2469 = vrot.lane.b32.xlu0 %v2463, 18
      %v2470 = vpop.permute.xlu0 %2469
      %2471 = vrot.lane.b32.xlu0 %v2464, 18
      %v2472 = vpop.permute.xlu0 %2471
      %2473 = vrot.lane.b32.xlu0 %v2465, 18
      %v2474 = vpop.permute.xlu0 %2473
      %v2475 = vrot.slane %v2470, 4
      %v2476 = vrot.slane %v2472, 4
      %v2477 = vrot.slane %v2474, 4
      %v2478 = vsel %vm258, %v2475, %v2476
      %v2479 = vsel %vm476, %v2470, %v2478
      %v2480 = vsel %vm258, %v2476, %v2477
      %v2481 = vsel %vm476, %v2472, %v2480
      %2484 = vst [vmem:[#allocation3 + $0x90] sm:$0xff] %v2479
      %2485 = vst [vmem:[#allocation3 + $0x98] sm:$0xff] %v2481
      %v2486 = vld [vmem:[#allocation2] sm:$0xff]
      %v2487 = vld [vmem:[#allocation2 + $0x8] sm:$0xff]
      %v2488 = vld [vmem:[#allocation2 + $0x10] sm:$0xf]
      %2492 = vrot.lane.b32.xlu0 %v2486, 2
      %v2493 = vpop.permute.xlu0 %2492
      %2494 = vrot.lane.b32.xlu0 %v2487, 2
      %v2495 = vpop.permute.xlu0 %2494
      %2496 = vrot.lane.b32.xlu0 %v2488, 2
      %v2497 = vpop.permute.xlu0 %2496
      %v2498 = vrot.slane %v2493, 4
      %v2499 = vrot.slane %v2495, 4
      %v2500 = vrot.slane %v2497, 4
      %v2501 = vsel %vm258, %v2498, %v2499
      %v2502 = vsel %vm500, %v2493, %v2501
      %v2503 = vsel %vm258, %v2499, %v2500
      %v2504 = vsel %vm500, %v2495, %v2503
      %2507 = vst [vmem:[#allocation3 + $0xa0] sm:$0xff] %v2502
      %2508 = vst [vmem:[#allocation3 + $0xa8] sm:$0xff] %v2504
      %v2509 = vld [vmem:[#allocation2] sm:$0xff]
      %v2510 = vld [vmem:[#allocation2 + $0x8] sm:$0xff]
      %v2511 = vld [vmem:[#allocation2 + $0x10] sm:$0xf]
      %2515 = vrot.lane.b32.xlu0 %v2509, 1
      %v2516 = vpop.permute.xlu0 %2515
      %2517 = vrot.lane.b32.xlu0 %v2510, 1
      %v2518 = vpop.permute.xlu0 %2517
      %2519 = vrot.lane.b32.xlu0 %v2511, 1
      %v2520 = vpop.permute.xlu0 %2519
      %v2521 = vrot.slane %v2516, 4
      %v2522 = vrot.slane %v2518, 4
      %v2523 = vrot.slane %v2520, 4
      %v2524 = vsel %vm258, %v2521, %v2522
      %v2525 = vsel %vm524, %v2516, %v2524
      %v2526 = vsel %vm258, %v2522, %v2523
      %v2527 = vsel %vm524, %v2518, %v2526
      %2530 = vst [vmem:[#allocation3 + $0xb0] sm:$0xff] %v2525
      %2531 = vst [vmem:[#allocation3 + $0xb8] sm:$0xff] %v2527
      %v2532 = vld [vmem:[#allocation2 + $0x4] sm:$0xff]
      %v2533 = vld [vmem:[#allocation2 + $0xc] sm:$0xff]
      %2534 = vst [vmem:[#allocation3 + $0xc0] sm:$0xff] %v2532
      %2535 = vst [vmem:[#allocation3 + $0xc8] sm:$0xff] %v2533
      %v2536 = vld [vmem:[#allocation2 + $0x4] sm:$0xff]
      %v2537 = vld [vmem:[#allocation2 + $0xc] sm:$0xff]
      %v2538 = vld [vmem:[#allocation2 + $0x14] sm:$0xf]
      %2542 = vrot.lane.b32.xlu0 %v2536, 127
      %v2543 = vpop.permute.xlu0 %2542
      %2544 = vrot.lane.b32.xlu0 %v2537, 127
      %v2545 = vpop.permute.xlu0 %2544
      %2546 = vrot.lane.b32.xlu0 %v2538, 127
      %v2547 = vpop.permute.xlu0 %2546
      %v2548 = vrot.slane %v2543, 4
      %v2549 = vrot.slane %v2545, 4
      %v2550 = vrot.slane %v2547, 4
      %v2551 = vsel %vm258, %v2548, %v2549
      %v2552 = vsel %vm552, %v2543, %v2551
      %v2553 = vsel %vm258, %v2549, %v2550
      %v2554 = vsel %vm552, %v2545, %v2553
      %2557 = vst [vmem:[#allocation3 + $0xd0] sm:$0xff] %v2552
      %2558 = vst [vmem:[#allocation3 + $0xd8] sm:$0xff] %v2554
      %v2559 = vld [vmem:[#allocation2 + $0x4] sm:$0xff]
      %v2560 = vld [vmem:[#allocation2 + $0xc] sm:$0xff]
      %v2561 = vld [vmem:[#allocation2 + $0x14] sm:$0xf]
      %2565 = vrot.lane.b32.xlu0 %v2559, 126
      %v2566 = vpop.permute.xlu0 %2565
      %2567 = vrot.lane.b32.xlu0 %v2560, 126
      %v2568 = vpop.permute.xlu0 %2567
      %2569 = vrot.lane.b32.xlu0 %v2561, 126
      %v2570 = vpop.permute.xlu0 %2569
      %v2571 = vrot.slane %v2566, 4
      %v2572 = vrot.slane %v2568, 4
      %v2573 = vrot.slane %v2570, 4
      %v2574 = vsel %vm258, %v2571, %v2572
      %v2575 = vsel %vm576, %v2566, %v2574
      %v2576 = vsel %vm258, %v2572, %v2573
      %v2577 = vsel %vm576, %v2568, %v2576
      %2580 = vst [vmem:[#allocation3 + $0xe0] sm:$0xff] %v2575
      %2581 = vst [vmem:[#allocation3 + $0xe8] sm:$0xff] %v2577
      %v2582 = vld [vmem:[#allocation2 + $0x4] sm:$0xff]
      %v2583 = vld [vmem:[#allocation2 + $0xc] sm:$0xff]
      %v2584 = vld [vmem:[#allocation2 + $0x14] sm:$0xf]
      %2588 = vrot.lane.b32.xlu0 %v2582, 110
      %v2589 = vpop.permute.xlu0 %2588
      %2590 = vrot.lane.b32.xlu0 %v2583, 110
      %v2591 = vpop.permute.xlu0 %2590
      %2592 = vrot.lane.b32.xlu0 %v2584, 110
      %v2593 = vpop.permute.xlu0 %2592
      %v2594 = vrot.slane %v2589, 4
      %v2595 = vrot.slane %v2591, 4
      %v2596 = vrot.slane %v2593, 4
      %v2597 = vsel %vm258, %v2594, %v2595
      %v2598 = vsel %vm600, %v2589, %v2597
      %v2599 = vsel %vm258, %v2595, %v2596
      %v2600 = vsel %vm600, %v2591, %v2599
      %2603 = vst [vmem:[#allocation3 + $0xf0] sm:$0xff] %v2598
      %2604 = vst [vmem:[#allocation3 + $0xf8] sm:$0xff] %v2600
      %v2605 = vld [vmem:[#allocation2 + $0x4] sm:$0xff]
      %v2606 = vld [vmem:[#allocation2 + $0xc] sm:$0xff]
      %v2607 = vld [vmem:[#allocation2 + $0x14] sm:$0xf]
      %2611 = vrot.lane.b32.xlu0 %v2605, 109
      %v2612 = vpop.permute.xlu0 %2611
      %2613 = vrot.lane.b32.xlu0 %v2606, 109
      %v2614 = vpop.permute.xlu0 %2613
      %2615 = vrot.lane.b32.xlu0 %v2607, 109
      %v2616 = vpop.permute.xlu0 %2615
      %v2617 = vrot.slane %v2612, 4
      %v2618 = vrot.slane %v2614, 4
      %v2619 = vrot.slane %v2616, 4
      %v2620 = vsel %vm258, %v2617, %v2618
      %v2621 = vsel %vm624, %v2612, %v2620
      %v2622 = vsel %vm258, %v2618, %v2619
      %v2623 = vsel %vm624, %v2614, %v2622
      %2626 = vst [vmem:[#allocation3 + $0x100] sm:$0xff] %v2621
      %2627 = vst [vmem:[#allocation3 + $0x108] sm:$0xff] %v2623
      %v2628 = vld [vmem:[#allocation2 + $0x4] sm:$0xff]
      %v2629 = vld [vmem:[#allocation2 + $0xc] sm:$0xff]
      %v2630 = vld [vmem:[#allocation2 + $0x14] sm:$0xf]
      %2634 = vrot.lane.b32.xlu0 %v2628, 108
      %v2635 = vpop.permute.xlu0 %2634
      %2636 = vrot.lane.b32.xlu0 %v2629, 108
      %v2637 = vpop.permute.xlu0 %2636
      %2638 = vrot.lane.b32.xlu0 %v2630, 108
      %v2639 = vpop.permute.xlu0 %2638
      %v2640 = vrot.slane %v2635, 4
      %v2641 = vrot.slane %v2637, 4
      %v2642 = vrot.slane %v2639, 4
      %v2643 = vsel %vm258, %v2640, %v2641
      %v2644 = vsel %vm648, %v2635, %v2643
      %v2645 = vsel %vm258, %v2641, %v2642
      %v2646 = vsel %vm648, %v2637, %v2645
      %2649 = vst [vmem:[#allocation3 + $0x110] sm:$0xff] %v2644
      %2650 = vst [vmem:[#allocation3 + $0x118] sm:$0xff] %v2646
      %v2651 = vld [vmem:[#allocation2 + $0x4] sm:$0xff]
      %v2652 = vld [vmem:[#allocation2 + $0xc] sm:$0xff]
      %v2653 = vld [vmem:[#allocation2 + $0x14] sm:$0xf]
      %2657 = vrot.lane.b32.xlu0 %v2651, 107
      %v2658 = vpop.permute.xlu0 %2657
      %2659 = vrot.lane.b32.xlu0 %v2652, 107
      %v2660 = vpop.permute.xlu0 %2659
      %2661 = vrot.lane.b32.xlu0 %v2653, 107
      %v2662 = vpop.permute.xlu0 %2661
      %v2663 = vrot.slane %v2658, 4
      %v2664 = vrot.slane %v2660, 4
      %v2665 = vrot.slane %v2662, 4
      %v2666 = vsel %vm258, %v2663, %v2664
      %v2667 = vsel %vm672, %v2658, %v2666
      %v2668 = vsel %vm258, %v2664, %v2665
      %v2669 = vsel %vm672, %v2660, %v2668
      %2672 = vst [vmem:[#allocation3 + $0x120] sm:$0xff] %v2667
      %2673 = vst [vmem:[#allocation3 + $0x128] sm:$0xff] %v2669
      %v2674 = vld [vmem:[#allocation2 + $0x4] sm:$0xff]
      %v2675 = vld [vmem:[#allocation2 + $0xc] sm:$0xff]
      %v2676 = vld [vmem:[#allocation2 + $0x14] sm:$0xf]
      %2680 = vrot.lane.b32.xlu0 %v2674, 106
      %v2681 = vpop.permute.xlu0 %2680
      %2682 = vrot.lane.b32.xlu0 %v2675, 106
      %v2683 = vpop.permute.xlu0 %2682
      %2684 = vrot.lane.b32.xlu0 %v2676, 106
      %v2685 = vpop.permute.xlu0 %2684
      %v2686 = vrot.slane %v2681, 4
      %v2687 = vrot.slane %v2683, 4
      %v2688 = vrot.slane %v2685, 4
      %v2689 = vsel %vm258, %v2686, %v2687
      %v2690 = vsel %vm696, %v2681, %v2689
      %v2691 = vsel %vm258, %v2687, %v2688
      %v2692 = vsel %vm696, %v2683, %v2691
      %2695 = vst [vmem:[#allocation3 + $0x130] sm:$0xff] %v2690
      %2696 = vst [vmem:[#allocation3 + $0x138] sm:$0xff] %v2692
      %v2697 = vld [vmem:[#allocation2 + $0x4] sm:$0xff]
      %v2698 = vld [vmem:[#allocation2 + $0xc] sm:$0xff]
      %v2699 = vld [vmem:[#allocation2 + $0x14] sm:$0xf]
      %2703 = vrot.lane.b32.xlu0 %v2697, 90
      %v2704 = vpop.permute.xlu0 %2703
      %2705 = vrot.lane.b32.xlu0 %v2698, 90
      %v2706 = vpop.permute.xlu0 %2705
      %2707 = vrot.lane.b32.xlu0 %v2699, 90
      %v2708 = vpop.permute.xlu0 %2707
      %v2709 = vrot.slane %v2704, 4
      %v2710 = vrot.slane %v2706, 4
      %v2711 = vrot.slane %v2708, 4
      %v2712 = vsel %vm258, %v2709, %v2710
      %v2713 = vsel %vm720, %v2704, %v2712
      %v2714 = vsel %vm258, %v2710, %v2711
      %v2715 = vsel %vm720, %v2706, %v2714
      %2718 = vst [vmem:[#allocation3 + $0x140] sm:$0xff] %v2713
      %2719 = vst [vmem:[#allocation3 + $0x148] sm:$0xff] %v2715
      %v2720 = vld [vmem:[#allocation2 + $0x4] sm:$0xff]
      %v2721 = vld [vmem:[#allocation2 + $0xc] sm:$0xff]
      %v2722 = vld [vmem:[#allocation2 + $0x14] sm:$0xf]
      %2726 = vrot.lane.b32.xlu0 %v2720, 89
      %v2727 = vpop.permute.xlu0 %2726
      %2728 = vrot.lane.b32.xlu0 %v2721, 89
      %v2729 = vpop.permute.xlu0 %2728
      %2730 = vrot.lane.b32.xlu0 %v2722, 89
      %v2731 = vpop.permute.xlu0 %2730
      %v2732 = vrot.slane %v2727, 4
      %v2733 = vrot.slane %v2729, 4
      %v2734 = vrot.slane %v2731, 4
      %v2735 = vsel %vm258, %v2732, %v2733
      %v2736 = vsel %vm744, %v2727, %v2735
      %v2737 = vsel %vm258, %v2733, %v2734
      %v2738 = vsel %vm744, %v2729, %v2737
      %2741 = vst [vmem:[#allocation3 + $0x150] sm:$0xff] %v2736
      %2742 = vst [vmem:[#allocation3 + $0x158] sm:$0xff] %v2738
      %v2743 = vld [vmem:[#allocation2 + $0x4] sm:$0xff]
      %v2744 = vld [vmem:[#allocation2 + $0xc] sm:$0xff]
      %v2745 = vld [vmem:[#allocation2 + $0x14] sm:$0xf]
      %2749 = vrot.lane.b32.xlu0 %v2743, 88
      %v2750 = vpop.permute.xlu0 %2749
      %2751 = vrot.lane.b32.xlu0 %v2744, 88
      %v2752 = vpop.permute.xlu0 %2751
      %2753 = vrot.lane.b32.xlu0 %v2745, 88
      %v2754 = vpop.permute.xlu0 %2753
      %v2755 = vrot.slane %v2750, 4
      %v2756 = vrot.slane %v2752, 4
      %v2757 = vrot.slane %v2754, 4
      %v2758 = vsel %vm258, %v2755, %v2756
      %v2759 = vsel %vm768, %v2750, %v2758
      %v2760 = vsel %vm258, %v2756, %v2757
      %v2761 = vsel %vm768, %v2752, %v2760
      %2764 = vst [vmem:[#allocation3 + $0x160] sm:$0xff] %v2759
      %2765 = vst [vmem:[#allocation3 + $0x168] sm:$0xff] %v2761
      %v2766 = vld [vmem:[#allocation2 + $0x4] sm:$0xff]
      %v2767 = vld [vmem:[#allocation2 + $0xc] sm:$0xff]
      %v2768 = vld [vmem:[#allocation2 + $0x14] sm:$0xf]
      %2772 = vrot.lane.b32.xlu0 %v2766, 87
      %v2773 = vpop.permute.xlu0 %2772
      %2774 = vrot.lane.b32.xlu0 %v2767, 87
      %v2775 = vpop.permute.xlu0 %2774
      %2776 = vrot.lane.b32.xlu0 %v2768, 87
      %v2777 = vpop.permute.xlu0 %2776
      %v2778 = vrot.slane %v2773, 4
      %v2779 = vrot.slane %v2775, 4
      %v2780 = vrot.slane %v2777, 4
      %v2781 = vsel %vm258, %v2778, %v2779
      %v2782 = vsel %vm792, %v2773, %v2781
      %v2783 = vsel %vm258, %v2779, %v2780
      %v2784 = vsel %vm792, %v2775, %v2783
      %2787 = vst [vmem:[#allocation3 + $0x170] sm:$0xff] %v2782
      %2788 = vst [vmem:[#allocation3 + $0x178] sm:$0xff] %v2784
      %v2789 = vld [vmem:[#allocation2 + $0x4] sm:$0xff]
      %v2790 = vld [vmem:[#allocation2 + $0xc] sm:$0xff]
      %v2791 = vld [vmem:[#allocation2 + $0x14] sm:$0xf]
      %2795 = vrot.lane.b32.xlu0 %v2789, 86
      %v2796 = vpop.permute.xlu0 %2795
      %2797 = vrot.lane.b32.xlu0 %v2790, 86
      %v2798 = vpop.permute.xlu0 %2797
      %2799 = vrot.lane.b32.xlu0 %v2791, 86
      %v2800 = vpop.permute.xlu0 %2799
      %v2801 = vrot.slane %v2796, 4
      %v2802 = vrot.slane %v2798, 4
      %v2803 = vrot.slane %v2800, 4
      %v2804 = vsel %vm258, %v2801, %v2802
      %v2805 = vsel %vm816, %v2796, %v2804
      %v2806 = vsel %vm258, %v2802, %v2803
      %v2807 = vsel %vm816, %v2798, %v2806
      %2810 = vst [vmem:[#allocation3 + $0x180] sm:$0xff] %v2805
      %2811 = vst [vmem:[#allocation3 + $0x188] sm:$0xff] %v2807
      %s2812 = scalar_lea.vmem %s2, 16
      %v2813 = vld [vmem:[%s2812] sm:$0xff]
      %v2814 = vld [vmem:[#allocation3] sm:$0xff]
      %v2815 = vld [vmem:[#allocation3 + $0x8] sm:$0xff]
      %v2816 = vld [vmem:[#allocation3 + $0x10] sm:$0xff]
      %v2817 = vld [vmem:[#allocation3 + $0x18] sm:$0xff]
      %v2818 = vld [vmem:[#allocation3 + $0x20] sm:$0xff]
      %v2819 = vld [vmem:[#allocation3 + $0x28] sm:$0xff]
      %v2820 = vld [vmem:[#allocation3 + $0x30] sm:$0xff]
      %v2821 = vld [vmem:[#allocation3 + $0x38] sm:$0xff]
      %v2822 = vld [vmem:[#allocation3 + $0x40] sm:$0xff]
      %v2823 = vld [vmem:[#allocation3 + $0x48] sm:$0xff]
      %v2824 = vld [vmem:[#allocation3 + $0x50] sm:$0xff]
      %v2825 = vld [vmem:[#allocation3 + $0x58] sm:$0xff]
      %v2826 = vld [vmem:[#allocation3 + $0x60] sm:$0xff]
      %v2827 = vld [vmem:[#allocation3 + $0x68] sm:$0xff]
      %v2828 = vld [vmem:[#allocation3 + $0x70] sm:$0xff]
      %v2829 = vld [vmem:[#allocation3 + $0x78] sm:$0xff]
      %v2830 = vld [vmem:[#allocation3 + $0x80] sm:$0xff]
      %v2831 = vld [vmem:[#allocation3 + $0x88] sm:$0xff]
      %v2832 = vld [vmem:[#allocation3 + $0x90] sm:$0xff]
      %v2833 = vld [vmem:[#allocation3 + $0x98] sm:$0xff]
      %v2834 = vld [vmem:[#allocation3 + $0xa0] sm:$0xff]
      %v2835 = vld [vmem:[#allocation3 + $0xa8] sm:$0xff]
      %v2836 = vld [vmem:[#allocation3 + $0xb0] sm:$0xff]
      %v2837 = vld [vmem:[#allocation3 + $0xb8] sm:$0xff]
      %v2838 = vld [vmem:[#allocation3 + $0xc0] sm:$0xff]
      %v2839 = vld [vmem:[#allocation3 + $0xc8] sm:$0xff]
      %v2840 = vld [vmem:[#allocation3 + $0xd0] sm:$0xff]
      %v2841 = vld [vmem:[#allocation3 + $0xd8] sm:$0xff]
      %v2842 = vld [vmem:[#allocation3 + $0xe0] sm:$0xff]
      %v2843 = vld [vmem:[#allocation3 + $0xe8] sm:$0xff]
      %v2844 = vld [vmem:[#allocation3 + $0xf0] sm:$0xff]
      %v2845 = vld [vmem:[#allocation3 + $0xf8] sm:$0xff]
      %v2846 = vld [vmem:[#allocation3 + $0x100] sm:$0xff]
      %v2847 = vld [vmem:[#allocation3 + $0x108] sm:$0xff]
      %v2848 = vld [vmem:[#allocation3 + $0x110] sm:$0xff]
      %v2849 = vld [vmem:[#allocation3 + $0x118] sm:$0xff]
      %v2850 = vld [vmem:[#allocation3 + $0x120] sm:$0xff]
      %v2851 = vld [vmem:[#allocation3 + $0x128] sm:$0xff]
      %v2852 = vld [vmem:[#allocation3 + $0x130] sm:$0xff]
      %v2853 = vld [vmem:[#allocation3 + $0x138] sm:$0xff]
      %v2854 = vld [vmem:[#allocation3 + $0x140] sm:$0xff]
      %v2855 = vld [vmem:[#allocation3 + $0x148] sm:$0xff]
      %v2856 = vld [vmem:[#allocation3 + $0x150] sm:$0xff]
      %v2857 = vld [vmem:[#allocation3 + $0x158] sm:$0xff]
      %v2858 = vld [vmem:[#allocation3 + $0x160] sm:$0xff]
      %v2859 = vld [vmem:[#allocation3 + $0x168] sm:$0xff]
      %v2860 = vld [vmem:[#allocation3 + $0x170] sm:$0xff]
      %v2861 = vld [vmem:[#allocation3 + $0x178] sm:$0xff]
      %v2862 = vld [vmem:[#allocation3 + $0x180] sm:$0xff]
      %v2863 = vld [vmem:[#allocation3 + $0x188] sm:$0xff]
      %s2864 = scalar_lea.vmem %s3, 16
      %v2865 = vld [vmem:[%s2864] sm:$0xff]
      %2867 = vset.pattern.permute.xlu0 0
      %2868 = vperm.xlu0 %2867, %v2865
      %v2869 = vpop.permute.xlu0 %2868
      %v2872 = vunpack.c.l.b16 %v2813
      %v2873 = vunpack.c.h.b16 %v2813
      %v2874 = vpack.c.b16 %v2872, %v2872
      %v2875 = vpack.c.b16 %v2873, %v2873
      %v2927 = vunpack.c.l.b16 %v2814
      %v2928 = vunpack.c.h.b16 %v2814
      %v2929 = vunpack.c.l.b16 %v2815
      %v2930 = vunpack.c.h.b16 %v2815
      %v2931 = vunpack.c.l.b16 %v2816
      %v2932 = vunpack.c.h.b16 %v2816
      %v2933 = vunpack.c.l.b16 %v2817
      %v2934 = vunpack.c.h.b16 %v2817
      %v2935 = vunpack.c.l.b16 %v2818
      %v2936 = vunpack.c.h.b16 %v2818
      %v2937 = vunpack.c.l.b16 %v2819
      %v2938 = vunpack.c.h.b16 %v2819
      %v2939 = vunpack.c.l.b16 %v2820
      %v2940 = vunpack.c.h.b16 %v2820
      %v2941 = vunpack.c.l.b16 %v2821
      %v2942 = vunpack.c.h.b16 %v2821
      %v2943 = vunpack.c.l.b16 %v2822
      %v2944 = vunpack.c.h.b16 %v2822
      %v2945 = vunpack.c.l.b16 %v2823
      %v2946 = vunpack.c.h.b16 %v2823
      %v2947 = vunpack.c.l.b16 %v2824
      %v2948 = vunpack.c.h.b16 %v2824
      %v2949 = vunpack.c.l.b16 %v2825
      %v2950 = vunpack.c.h.b16 %v2825
      %v2951 = vunpack.c.l.b16 %v2826
      %v2952 = vunpack.c.h.b16 %v2826
      %v2953 = vunpack.c.l.b16 %v2827
      %v2954 = vunpack.c.h.b16 %v2827
      %v2955 = vunpack.c.l.b16 %v2828
      %v2956 = vunpack.c.h.b16 %v2828
      %v2957 = vunpack.c.l.b16 %v2829
      %v2958 = vunpack.c.h.b16 %v2829
      %v2959 = vunpack.c.l.b16 %v2830
      %v2960 = vunpack.c.h.b16 %v2830
      %v2961 = vunpack.c.l.b16 %v2831
      %v2962 = vunpack.c.h.b16 %v2831
      %v2963 = vunpack.c.l.b16 %v2832
      %v2964 = vunpack.c.h.b16 %v2832
      %v2965 = vunpack.c.l.b16 %v2833
      %v2966 = vunpack.c.h.b16 %v2833
      %v2967 = vunpack.c.l.b16 %v2834
      %v2968 = vunpack.c.h.b16 %v2834
      %v2969 = vunpack.c.l.b16 %v2835
      %v2970 = vunpack.c.h.b16 %v2835
      %v2971 = vunpack.c.l.b16 %v2836
      %v2972 = vunpack.c.h.b16 %v2836
      %v2973 = vunpack.c.l.b16 %v2837
      %v2974 = vunpack.c.h.b16 %v2837
      %v2975 = vunpack.c.l.b16 %v2838
      %v2976 = vunpack.c.h.b16 %v2838
      %v2977 = vunpack.c.l.b16 %v2839
      %v2978 = vunpack.c.h.b16 %v2839
      %v2979 = vunpack.c.l.b16 %v2840
      %v2980 = vunpack.c.h.b16 %v2840
      %v2981 = vunpack.c.l.b16 %v2841
      %v2982 = vunpack.c.h.b16 %v2841
      %v2983 = vunpack.c.l.b16 %v2842
      %v2984 = vunpack.c.h.b16 %v2842
      %v2985 = vunpack.c.l.b16 %v2843
      %v2986 = vunpack.c.h.b16 %v2843
      %v2987 = vunpack.c.l.b16 %v2844
      %v2988 = vunpack.c.h.b16 %v2844
      %v2989 = vunpack.c.l.b16 %v2845
      %v2990 = vunpack.c.h.b16 %v2845
      %v2991 = vunpack.c.l.b16 %v2846
      %v2992 = vunpack.c.h.b16 %v2846
      %v2993 = vunpack.c.l.b16 %v2847
      %v2994 = vunpack.c.h.b16 %v2847
      %v2995 = vunpack.c.l.b16 %v2848
      %v2996 = vunpack.c.h.b16 %v2848
      %v2997 = vunpack.c.l.b16 %v2849
      %v2998 = vunpack.c.h.b16 %v2849
      %v2999 = vunpack.c.l.b16 %v2850
      %v3000 = vunpack.c.h.b16 %v2850
      %v3001 = vunpack.c.l.b16 %v2851
      %v3002 = vunpack.c.h.b16 %v2851
      %v3003 = vunpack.c.l.b16 %v2852
      %v3004 = vunpack.c.h.b16 %v2852
      %v3005 = vunpack.c.l.b16 %v2853
      %v3006 = vunpack.c.h.b16 %v2853
      %v3007 = vunpack.c.l.b16 %v2854
      %v3008 = vunpack.c.h.b16 %v2854
      %v3009 = vunpack.c.l.b16 %v2855
      %v3010 = vunpack.c.h.b16 %v2855
      %v3011 = vunpack.c.l.b16 %v2856
      %v3012 = vunpack.c.h.b16 %v2856
      %v3013 = vunpack.c.l.b16 %v2857
      %v3014 = vunpack.c.h.b16 %v2857
      %v3015 = vunpack.c.l.b16 %v2858
      %v3016 = vunpack.c.h.b16 %v2858
      %v3017 = vunpack.c.l.b16 %v2859
      %v3018 = vunpack.c.h.b16 %v2859
      %v3019 = vunpack.c.l.b16 %v2860
      %v3020 = vunpack.c.h.b16 %v2860
      %v3021 = vunpack.c.l.b16 %v2861
      %v3022 = vunpack.c.h.b16 %v2861
      %v3023 = vunpack.c.l.b16 %v2862
      %v3024 = vunpack.c.h.b16 %v2862
      %v3025 = vunpack.c.l.b16 %v2863
      %v3026 = vunpack.c.h.b16 %v2863
      %v3027 = vpack.c.b16 %v2931, %v2927
      %v3028 = vpack.c.b16 %v2932, %v2928
      %v3029 = vpack.c.b16 %v2933, %v2929
      %v3030 = vpack.c.b16 %v2934, %v2930
      %v3031 = vpack.c.b16 %v2939, %v2935
      %v3032 = vpack.c.b16 %v2940, %v2936
      %v3033 = vpack.c.b16 %v2941, %v2937
      %v3034 = vpack.c.b16 %v2942, %v2938
      %v3035 = vpack.c.b16 %v2947, %v2943
      %v3036 = vpack.c.b16 %v2948, %v2944
      %v3037 = vpack.c.b16 %v2949, %v2945
      %v3038 = vpack.c.b16 %v2950, %v2946
      %v3039 = vpack.c.b16 %v2955, %v2951
      %v3040 = vpack.c.b16 %v2956, %v2952
      %v3041 = vpack.c.b16 %v2957, %v2953
      %v3042 = vpack.c.b16 %v2958, %v2954
      %v3043 = vpack.c.b16 %v2963, %v2959
      %v3044 = vpack.c.b16 %v2964, %v2960
      %v3045 = vpack.c.b16 %v2965, %v2961
      %v3046 = vpack.c.b16 %v2966, %v2962
      %v3047 = vpack.c.b16 %v2971, %v2967
      %v3048 = vpack.c.b16 %v2972, %v2968
      %v3049 = vpack.c.b16 %v2973, %v2969
      %v3050 = vpack.c.b16 %v2974, %v2970
      %v3051 = vpack.c.b16 %v2979, %v2975
      %v3052 = vpack.c.b16 %v2980, %v2976
      %v3053 = vpack.c.b16 %v2981, %v2977
      %v3054 = vpack.c.b16 %v2982, %v2978
      %v3055 = vpack.c.b16 %v2987, %v2983
      %v3056 = vpack.c.b16 %v2988, %v2984
      %v3057 = vpack.c.b16 %v2989, %v2985
      %v3058 = vpack.c.b16 %v2990, %v2986
      %v3059 = vpack.c.b16 %v2995, %v2991
      %v3060 = vpack.c.b16 %v2996, %v2992
      %v3061 = vpack.c.b16 %v2997, %v2993
      %v3062 = vpack.c.b16 %v2998, %v2994
      %v3063 = vpack.c.b16 %v3003, %v2999
      %v3064 = vpack.c.b16 %v3004, %v3000
      %v3065 = vpack.c.b16 %v3005, %v3001
      %v3066 = vpack.c.b16 %v3006, %v3002
      %v3067 = vpack.c.b16 %v3011, %v3007
      %v3068 = vpack.c.b16 %v3012, %v3008
      %v3069 = vpack.c.b16 %v3013, %v3009
      %v3070 = vpack.c.b16 %v3014, %v3010
      %v3071 = vpack.c.b16 %v3019, %v3015
      %v3072 = vpack.c.b16 %v3020, %v3016
      %v3073 = vpack.c.b16 %v3021, %v3017
      %v3074 = vpack.c.b16 %v3022, %v3018
      %v3075 = vpack.c.b16 %v3023, %v3023
      %v3076 = vpack.c.b16 %v3024, %v3024
      %v3077 = vpack.c.b16 %v3025, %v3025
      %v3078 = vpack.c.b16 %v3026, %v3026
      %v3128 = vsel %vm1137, %v2875, 0
      %v3131 = vsel %vm1141, %v3075, 0
      %v3134 = vsel %vm1141, %v3076, 0
      %v3137 = vsel %vm1141, %v3077, 0
      %v3140 = vsel %vm1141, %v3078, 0
      %3142 = vmatprep.subr.bf16.mxu0 %v3056
      %3143 = vmatpush1.bf16.msra.mxu0 %v3055
      %3144 = vmatprep.subr.bf16.mxu0 %v3052
      %3145 = vmatpush1.bf16.msra.mxu0 %v3051
      %3146 = vmatprep.subr.bf16.mxu0 %v3048
      %3147 = vmatpush1.bf16.msra.mxu0 %v3047
      %3148 = vmatprep.subr.bf16.mxu0 %v3044
      %3149 = vmatpush1.bf16.msra.mxu0 %v3043
      %3150 = vmatprep.subr.bf16.mxu0 %v3040
      %3151 = vmatpush1.bf16.msra.mxu0 %v3039
      %3152 = vmatprep.subr.bf16.mxu0 %v3036
      %3153 = vmatpush1.bf16.msra.mxu0 %v3035
      %3154 = vmatprep.subr.bf16.mxu0 %v3032
      %3155 = vmatpush1.bf16.msra.mxu0 %v3031
      %3156 = vmatprep.subr.bf16.mxu0 %v3028
      %3157 = vmatpush1.bf16.msra.mxu0 %v3027
      %3158 = vmatprep.subr.bf16.mxu0 0
      %3159 = vmatpush2.bf16.msra.mxu0 0
      %3160 = vmatprep.subr.bf16.mxu0 0
      %3161 = vmatpush2.bf16.msra.mxu0 0
      %3162 = vmatprep.subr.bf16.mxu0 0
      %3163 = vmatpush2.bf16.msra.mxu0 0
      %3164 = vmatprep.subr.bf16.mxu0 %v3134
      %3165 = vmatpush2.bf16.msra.mxu0 %v3131
      %3166 = vmatprep.subr.bf16.mxu0 %v3072
      %3167 = vmatpush2.bf16.msra.mxu0 %v3071
      %3168 = vmatprep.subr.bf16.mxu0 %v3068
      %3169 = vmatpush2.bf16.msra.mxu0 %v3067
      %3170 = vmatprep.subr.bf16.mxu0 %v3064
      %3171 = vmatpush2.bf16.msra.mxu0 %v3063
      %3172 = vmatprep.subr.bf16.mxu0 %v3060
      %3173 = vmatpush2.bf16.msra.mxu0 %v3059
      %3174 = vmatprep.mubr.bf16.mxu0 %v3128
      %3175 = vmatmul.mubr.bf16.gmra.mxu0 %v2874
      %v3176 = vpop.f32.mrf.mxu0
      %v3177 = vadd.f32 %v2869, %v3176
      %v3178 = vpop.f32.mrf.mxu0
      %v3179 = vadd.f32 %v2869, %v3178
      %v3180 = vpop.f32.mrf.mxu0
      %v3181 = vpop.f32.mrf.mxu0
      %3182 = vdwg.mxu0
      %3183 = vmatprep.subr.bf16.mxu0 %v3058
      %3184 = vmatpush1.bf16.msra.mxu0 %v3057
      %3185 = vmatprep.subr.bf16.mxu0 %v3054
      %3186 = vmatpush1.bf16.msra.mxu0 %v3053
      %3187 = vmatprep.subr.bf16.mxu0 %v3050
      %3188 = vmatpush1.bf16.msra.mxu0 %v3049
      %3189 = vmatprep.subr.bf16.mxu0 %v3046
      %3190 = vmatpush1.bf16.msra.mxu0 %v3045
      %3191 = vmatprep.subr.bf16.mxu0 %v3042
      %3192 = vmatpush1.bf16.msra.mxu0 %v3041
      %3193 = vmatprep.subr.bf16.mxu0 %v3038
      %3194 = vmatpush1.bf16.msra.mxu0 %v3037
      %3195 = vmatprep.subr.bf16.mxu0 %v3034
      %3196 = vmatpush1.bf16.msra.mxu0 %v3033
      %3197 = vmatprep.subr.bf16.mxu0 %v3030
      %3198 = vmatpush1.bf16.msra.mxu0 %v3029
      %3199 = vmatprep.subr.bf16.mxu0 0
      %3200 = vmatpush2.bf16.msra.mxu0 0
      %3201 = vmatprep.subr.bf16.mxu0 0
      %3202 = vmatpush2.bf16.msra.mxu0 0
      %3203 = vmatprep.subr.bf16.mxu0 0
      %3204 = vmatpush2.bf16.msra.mxu0 0
      %3205 = vmatprep.subr.bf16.mxu0 %v3140
      %3206 = vmatpush2.bf16.msra.mxu0 %v3137
      %3207 = vmatprep.subr.bf16.mxu0 %v3074
      %3208 = vmatpush2.bf16.msra.mxu0 %v3073
      %3209 = vmatprep.subr.bf16.mxu0 %v3070
      %3210 = vmatpush2.bf16.msra.mxu0 %v3069
      %3211 = vmatprep.subr.bf16.mxu0 %v3066
      %3212 = vmatpush2.bf16.msra.mxu0 %v3065
      %3213 = vmatprep.subr.bf16.mxu0 %v3062
      %3214 = vmatpush2.bf16.msra.mxu0 %v3061
      %3215 = vmatprep.mubr.bf16.mxu0 %v3128
      %3216 = vmatmul.mubr.bf16.gmra.mxu0 %v2874
      %v3217 = vpop.f32.mrf.mxu0
      %v3218 = vadd.f32 %v2869, %v3217
      %v3219 = vpop.f32.mrf.mxu0
      %v3220 = vadd.f32 %v2869, %v3219
      %v3221 = vpop.f32.mrf.mxu0
      %v3222 = vpop.f32.mrf.mxu0
      %3223 = vdwg.mxu0
      %v3224 = vmul.f32 %v3177, %v204
      %v3225 = vmul.f32 %v3179, %v208
      %v3226 = vmul.f32 %v3218, %v212
      %v3227 = vmul.f32 %v3220, %v216
      %v3228 = vmax.f32 %v3224, 0.0
      %v3229 = vmax.f32 %v3225, 0.0
      %v3230 = vmax.f32 %v3226, 0.0
      %v3231 = vmax.f32 %v3227, 0.0
      %v3232 = vpack.c.bf16 %v3228, %v3228
      %v3233 = vpack.c.bf16 %v3229, %v3229
      %v3234 = vpack.c.bf16 %v3230, %v3230
      %v3235 = vpack.c.bf16 %v3231, %v3231
      %v3240 = vunpack.c.l.b16 %v3232
      %v3241 = vunpack.c.l.b16 %v3233
      %v3242 = vunpack.c.l.b16 %v3234
      %v3243 = vunpack.c.l.b16 %v3235
      %v3244 = vpack.c.b16 %v3241, %v3240
      %v3245 = vpack.c.b16 %v3243, %v3242
      %3248 = vst [vmem:[#allocation2 + $0x4] sm:$0xff] %v3244
      %3249 = vst [vmem:[#allocation2 + $0xc] sm:$0xff] %v3245
      %v3250 = vld [vmem:[#allocation2] sm:$0xff]
      %v3251 = vld [vmem:[#allocation2 + $0x8] sm:$0xff]
      %v3252 = vld [vmem:[#allocation2 + $0x10] sm:$0xf]
      %3256 = vrot.lane.b32.xlu0 %v3250, 42
      %v3257 = vpop.permute.xlu0 %3256
      %3258 = vrot.lane.b32.xlu0 %v3251, 42
      %v3259 = vpop.permute.xlu0 %3258
      %3260 = vrot.lane.b32.xlu0 %v3252, 42
      %v3261 = vpop.permute.xlu0 %3260
      %v3262 = vrot.slane %v3257, 4
      %v3263 = vrot.slane %v3259, 4
      %v3264 = vrot.slane %v3261, 4
      %v3265 = vsel %vm258, %v3262, %v3263
      %v3266 = vsel %vm260, %v3257, %v3265
      %v3267 = vsel %vm258, %v3263, %v3264
      %v3268 = vsel %vm260, %v3259, %v3267
      %3271 = vst [vmem:[#allocation3] sm:$0xff] %v3266
      %3272 = vst [vmem:[#allocation3 + $0x8] sm:$0xff] %v3268
      %v3273 = vld [vmem:[#allocation2] sm:$0xff]
      %v3274 = vld [vmem:[#allocation2 + $0x8] sm:$0xff]
      %v3275 = vld [vmem:[#allocation2 + $0x10] sm:$0xf]
      %3279 = vrot.lane.b32.xlu0 %v3273, 41
      %v3280 = vpop.permute.xlu0 %3279
      %3281 = vrot.lane.b32.xlu0 %v3274, 41
      %v3282 = vpop.permute.xlu0 %3281
      %3283 = vrot.lane.b32.xlu0 %v3275, 41
      %v3284 = vpop.permute.xlu0 %3283
      %v3285 = vrot.slane %v3280, 4
      %v3286 = vrot.slane %v3282, 4
      %v3287 = vrot.slane %v3284, 4
      %v3288 = vsel %vm258, %v3285, %v3286
      %v3289 = vsel %vm284, %v3280, %v3288
      %v3290 = vsel %vm258, %v3286, %v3287
      %v3291 = vsel %vm284, %v3282, %v3290
      %3294 = vst [vmem:[#allocation3 + $0x10] sm:$0xff] %v3289
      %3295 = vst [vmem:[#allocation3 + $0x18] sm:$0xff] %v3291
      %v3296 = vld [vmem:[#allocation2] sm:$0xff]
      %v3297 = vld [vmem:[#allocation2 + $0x8] sm:$0xff]
      %v3298 = vld [vmem:[#allocation2 + $0x10] sm:$0xf]
      %3302 = vrot.lane.b32.xlu0 %v3296, 40
      %v3303 = vpop.permute.xlu0 %3302
      %3304 = vrot.lane.b32.xlu0 %v3297, 40
      %v3305 = vpop.permute.xlu0 %3304
      %3306 = vrot.lane.b32.xlu0 %v3298, 40
      %v3307 = vpop.permute.xlu0 %3306
      %v3308 = vrot.slane %v3303, 4
      %v3309 = vrot.slane %v3305, 4
      %v3310 = vrot.slane %v3307, 4
      %v3311 = vsel %vm258, %v3308, %v3309
      %v3312 = vsel %vm308, %v3303, %v3311
      %v3313 = vsel %vm258, %v3309, %v3310
      %v3314 = vsel %vm308, %v3305, %v3313
      %3317 = vst [vmem:[#allocation3 + $0x20] sm:$0xff] %v3312
      %3318 = vst [vmem:[#allocation3 + $0x28] sm:$0xff] %v3314
      %v3319 = vld [vmem:[#allocation2] sm:$0xff]
      %v3320 = vld [vmem:[#allocation2 + $0x8] sm:$0xff]
      %v3321 = vld [vmem:[#allocation2 + $0x10] sm:$0xf]
      %3325 = vrot.lane.b32.xlu0 %v3319, 39
      %v3326 = vpop.permute.xlu0 %3325
      %3327 = vrot.lane.b32.xlu0 %v3320, 39
      %v3328 = vpop.permute.xlu0 %3327
      %3329 = vrot.lane.b32.xlu0 %v3321, 39
      %v3330 = vpop.permute.xlu0 %3329
      %v3331 = vrot.slane %v3326, 4
      %v3332 = vrot.slane %v3328, 4
      %v3333 = vrot.slane %v3330, 4
      %v3334 = vsel %vm258, %v3331, %v3332
      %v3335 = vsel %vm332, %v3326, %v3334
      %v3336 = vsel %vm258, %v3332, %v3333
      %v3337 = vsel %vm332, %v3328, %v3336
      %3340 = vst [vmem:[#allocation3 + $0x30] sm:$0xff] %v3335
      %3341 = vst [vmem:[#allocation3 + $0x38] sm:$0xff] %v3337
      %v3342 = vld [vmem:[#allocation2] sm:$0xff]
      %v3343 = vld [vmem:[#allocation2 + $0x8] sm:$0xff]
      %v3344 = vld [vmem:[#allocation2 + $0x10] sm:$0xf]
      %3348 = vrot.lane.b32.xlu0 %v3342, 38
      %v3349 = vpop.permute.xlu0 %3348
      %3350 = vrot.lane.b32.xlu0 %v3343, 38
      %v3351 = vpop.permute.xlu0 %3350
      %3352 = vrot.lane.b32.xlu0 %v3344, 38
      %v3353 = vpop.permute.xlu0 %3352
      %v3354 = vrot.slane %v3349, 4
      %v3355 = vrot.slane %v3351, 4
      %v3356 = vrot.slane %v3353, 4
      %v3357 = vsel %vm258, %v3354, %v3355
      %v3358 = vsel %vm356, %v3349, %v3357
      %v3359 = vsel %vm258, %v3355, %v3356
      %v3360 = vsel %vm356, %v3351, %v3359
      %3363 = vst [vmem:[#allocation3 + $0x40] sm:$0xff] %v3358
      %3364 = vst [vmem:[#allocation3 + $0x48] sm:$0xff] %v3360
      %v3365 = vld [vmem:[#allocation2] sm:$0xff]
      %v3366 = vld [vmem:[#allocation2 + $0x8] sm:$0xff]
      %v3367 = vld [vmem:[#allocation2 + $0x10] sm:$0xf]
      %3371 = vrot.lane.b32.xlu0 %v3365, 22
      %v3372 = vpop.permute.xlu0 %3371
      %3373 = vrot.lane.b32.xlu0 %v3366, 22
      %v3374 = vpop.permute.xlu0 %3373
      %3375 = vrot.lane.b32.xlu0 %v3367, 22
      %v3376 = vpop.permute.xlu0 %3375
      %v3377 = vrot.slane %v3372, 4
      %v3378 = vrot.slane %v3374, 4
      %v3379 = vrot.slane %v3376, 4
      %v3380 = vsel %vm258, %v3377, %v3378
      %v3381 = vsel %vm380, %v3372, %v3380
      %v3382 = vsel %vm258, %v3378, %v3379
      %v3383 = vsel %vm380, %v3374, %v3382
      %3386 = vst [vmem:[#allocation3 + $0x50] sm:$0xff] %v3381
      %3387 = vst [vmem:[#allocation3 + $0x58] sm:$0xff] %v3383
      %v3388 = vld [vmem:[#allocation2] sm:$0xff]
      %v3389 = vld [vmem:[#allocation2 + $0x8] sm:$0xff]
      %v3390 = vld [vmem:[#allocation2 + $0x10] sm:$0xf]
      %3394 = vrot.lane.b32.xlu0 %v3388, 21
      %v3395 = vpop.permute.xlu0 %3394
      %3396 = vrot.lane.b32.xlu0 %v3389, 21
      %v3397 = vpop.permute.xlu0 %3396
      %3398 = vrot.lane.b32.xlu0 %v3390, 21
      %v3399 = vpop.permute.xlu0 %3398
      %v3400 = vrot.slane %v3395, 4
      %v3401 = vrot.slane %v3397, 4
      %v3402 = vrot.slane %v3399, 4
      %v3403 = vsel %vm258, %v3400, %v3401
      %v3404 = vsel %vm404, %v3395, %v3403
      %v3405 = vsel %vm258, %v3401, %v3402
      %v3406 = vsel %vm404, %v3397, %v3405
      %3409 = vst [vmem:[#allocation3 + $0x60] sm:$0xff] %v3404
      %3410 = vst [vmem:[#allocation3 + $0x68] sm:$0xff] %v3406
      %v3411 = vld [vmem:[#allocation2] sm:$0xff]
      %v3412 = vld [vmem:[#allocation2 + $0x8] sm:$0xff]
      %v3413 = vld [vmem:[#allocation2 + $0x10] sm:$0xf]
      %3417 = vrot.lane.b32.xlu0 %v3411, 20
      %v3418 = vpop.permute.xlu0 %3417
      %3419 = vrot.lane.b32.xlu0 %v3412, 20
      %v3420 = vpop.permute.xlu0 %3419
      %3421 = vrot.lane.b32.xlu0 %v3413, 20
      %v3422 = vpop.permute.xlu0 %3421
      %v3423 = vrot.slane %v3418, 4
      %v3424 = vrot.slane %v3420, 4
      %v3425 = vrot.slane %v3422, 4
      %v3426 = vsel %vm258, %v3423, %v3424
      %v3427 = vsel %vm428, %v3418, %v3426
      %v3428 = vsel %vm258, %v3424, %v3425
      %v3429 = vsel %vm428, %v3420, %v3428
      %3432 = vst [vmem:[#allocation3 + $0x70] sm:$0xff] %v3427
      %3433 = vst [vmem:[#allocation3 + $0x78] sm:$0xff] %v3429
      %v3434 = vld [vmem:[#allocation2] sm:$0xff]
      %v3435 = vld [vmem:[#allocation2 + $0x8] sm:$0xff]
      %v3436 = vld [vmem:[#allocation2 + $0x10] sm:$0xf]
      %3440 = vrot.lane.b32.xlu0 %v3434, 19
      %v3441 = vpop.permute.xlu0 %3440
      %3442 = vrot.lane.b32.xlu0 %v3435, 19
      %v3443 = vpop.permute.xlu0 %3442
      %3444 = vrot.lane.b32.xlu0 %v3436, 19
      %v3445 = vpop.permute.xlu0 %3444
      %v3446 = vrot.slane %v3441, 4
      %v3447 = vrot.slane %v3443, 4
      %v3448 = vrot.slane %v3445, 4
      %v3449 = vsel %vm258, %v3446, %v3447
      %v3450 = vsel %vm452, %v3441, %v3449
      %v3451 = vsel %vm258, %v3447, %v3448
      %v3452 = vsel %vm452, %v3443, %v3451
      %3455 = vst [vmem:[#allocation3 + $0x80] sm:$0xff] %v3450
      %3456 = vst [vmem:[#allocation3 + $0x88] sm:$0xff] %v3452
      %v3457 = vld [vmem:[#allocation2] sm:$0xff]
      %v3458 = vld [vmem:[#allocation2 + $0x8] sm:$0xff]
      %v3459 = vld [vmem:[#allocation2 + $0x10] sm:$0xf]
      %3463 = vrot.lane.b32.xlu0 %v3457, 18
      %v3464 = vpop.permute.xlu0 %3463
      %3465 = vrot.lane.b32.xlu0 %v3458, 18
      %v3466 = vpop.permute.xlu0 %3465
      %3467 = vrot.lane.b32.xlu0 %v3459, 18
      %v3468 = vpop.permute.xlu0 %3467
      %v3469 = vrot.slane %v3464, 4
      %v3470 = vrot.slane %v3466, 4
      %v3471 = vrot.slane %v3468, 4
      %v3472 = vsel %vm258, %v3469, %v3470
      %v3473 = vsel %vm476, %v3464, %v3472
      %v3474 = vsel %vm258, %v3470, %v3471
      %v3475 = vsel %vm476, %v3466, %v3474
      %3478 = vst [vmem:[#allocation3 + $0x90] sm:$0xff] %v3473
      %3479 = vst [vmem:[#allocation3 + $0x98] sm:$0xff] %v3475
      %v3480 = vld [vmem:[#allocation2] sm:$0xff]
      %v3481 = vld [vmem:[#allocation2 + $0x8] sm:$0xff]
      %v3482 = vld [vmem:[#allocation2 + $0x10] sm:$0xf]
      %3486 = vrot.lane.b32.xlu0 %v3480, 2
      %v3487 = vpop.permute.xlu0 %3486
      %3488 = vrot.lane.b32.xlu0 %v3481, 2
      %v3489 = vpop.permute.xlu0 %3488
      %3490 = vrot.lane.b32.xlu0 %v3482, 2
      %v3491 = vpop.permute.xlu0 %3490
      %v3492 = vrot.slane %v3487, 4
      %v3493 = vrot.slane %v3489, 4
      %v3494 = vrot.slane %v3491, 4
      %v3495 = vsel %vm258, %v3492, %v3493
      %v3496 = vsel %vm500, %v3487, %v3495
      %v3497 = vsel %vm258, %v3493, %v3494
      %v3498 = vsel %vm500, %v3489, %v3497
      %3501 = vst [vmem:[#allocation3 + $0xa0] sm:$0xff] %v3496
      %3502 = vst [vmem:[#allocation3 + $0xa8] sm:$0xff] %v3498
      %v3503 = vld [vmem:[#allocation2] sm:$0xff]
      %v3504 = vld [vmem:[#allocation2 + $0x8] sm:$0xff]
      %v3505 = vld [vmem:[#allocation2 + $0x10] sm:$0xf]
      %3509 = vrot.lane.b32.xlu0 %v3503, 1
      %v3510 = vpop.permute.xlu0 %3509
      %3511 = vrot.lane.b32.xlu0 %v3504, 1
      %v3512 = vpop.permute.xlu0 %3511
      %3513 = vrot.lane.b32.xlu0 %v3505, 1
      %v3514 = vpop.permute.xlu0 %3513
      %v3515 = vrot.slane %v3510, 4
      %v3516 = vrot.slane %v3512, 4
      %v3517 = vrot.slane %v3514, 4
      %v3518 = vsel %vm258, %v3515, %v3516
      %v3519 = vsel %vm524, %v3510, %v3518
      %v3520 = vsel %vm258, %v3516, %v3517
      %v3521 = vsel %vm524, %v3512, %v3520
      %3524 = vst [vmem:[#allocation3 + $0xb0] sm:$0xff] %v3519
      %3525 = vst [vmem:[#allocation3 + $0xb8] sm:$0xff] %v3521
      %v3526 = vld [vmem:[#allocation2 + $0x4] sm:$0xff]
      %v3527 = vld [vmem:[#allocation2 + $0xc] sm:$0xff]
      %3528 = vst [vmem:[#allocation3 + $0xc0] sm:$0xff] %v3526
      %3529 = vst [vmem:[#allocation3 + $0xc8] sm:$0xff] %v3527
      %v3530 = vld [vmem:[#allocation2 + $0x4] sm:$0xff]
      %v3531 = vld [vmem:[#allocation2 + $0xc] sm:$0xff]
      %v3532 = vld [vmem:[#allocation2 + $0x14] sm:$0xf]
      %3536 = vrot.lane.b32.xlu0 %v3530, 127
      %v3537 = vpop.permute.xlu0 %3536
      %3538 = vrot.lane.b32.xlu0 %v3531, 127
      %v3539 = vpop.permute.xlu0 %3538
      %3540 = vrot.lane.b32.xlu0 %v3532, 127
      %v3541 = vpop.permute.xlu0 %3540
      %v3542 = vrot.slane %v3537, 4
      %v3543 = vrot.slane %v3539, 4
      %v3544 = vrot.slane %v3541, 4
      %v3545 = vsel %vm258, %v3542, %v3543
      %v3546 = vsel %vm552, %v3537, %v3545
      %v3547 = vsel %vm258, %v3543, %v3544
      %v3548 = vsel %vm552, %v3539, %v3547
      %3551 = vst [vmem:[#allocation3 + $0xd0] sm:$0xff] %v3546
      %3552 = vst [vmem:[#allocation3 + $0xd8] sm:$0xff] %v3548
      %v3553 = vld [vmem:[#allocation2 + $0x4] sm:$0xff]
      %v3554 = vld [vmem:[#allocation2 + $0xc] sm:$0xff]
      %v3555 = vld [vmem:[#allocation2 + $0x14] sm:$0xf]
      %3559 = vrot.lane.b32.xlu0 %v3553, 126
      %v3560 = vpop.permute.xlu0 %3559
      %3561 = vrot.lane.b32.xlu0 %v3554, 126
      %v3562 = vpop.permute.xlu0 %3561
      %3563 = vrot.lane.b32.xlu0 %v3555, 126
      %v3564 = vpop.permute.xlu0 %3563
      %v3565 = vrot.slane %v3560, 4
      %v3566 = vrot.slane %v3562, 4
      %v3567 = vrot.slane %v3564, 4
      %v3568 = vsel %vm258, %v3565, %v3566
      %v3569 = vsel %vm576, %v3560, %v3568
      %v3570 = vsel %vm258, %v3566, %v3567
      %v3571 = vsel %vm576, %v3562, %v3570
      %3574 = vst [vmem:[#allocation3 + $0xe0] sm:$0xff] %v3569
      %3575 = vst [vmem:[#allocation3 + $0xe8] sm:$0xff] %v3571
      %v3576 = vld [vmem:[#allocation2 + $0x4] sm:$0xff]
      %v3577 = vld [vmem:[#allocation2 + $0xc] sm:$0xff]
      %v3578 = vld [vmem:[#allocation2 + $0x14] sm:$0xf]
      %3582 = vrot.lane.b32.xlu0 %v3576, 110
      %v3583 = vpop.permute.xlu0 %3582
      %3584 = vrot.lane.b32.xlu0 %v3577, 110
      %v3585 = vpop.permute.xlu0 %3584
      %3586 = vrot.lane.b32.xlu0 %v3578, 110
      %v3587 = vpop.permute.xlu0 %3586
      %v3588 = vrot.slane %v3583, 4
      %v3589 = vrot.slane %v3585, 4
      %v3590 = vrot.slane %v3587, 4
      %v3591 = vsel %vm258, %v3588, %v3589
      %v3592 = vsel %vm600, %v3583, %v3591
      %v3593 = vsel %vm258, %v3589, %v3590
      %v3594 = vsel %vm600, %v3585, %v3593
      %3597 = vst [vmem:[#allocation3 + $0xf0] sm:$0xff] %v3592
      %3598 = vst [vmem:[#allocation3 + $0xf8] sm:$0xff] %v3594
      %v3599 = vld [vmem:[#allocation2 + $0x4] sm:$0xff]
      %v3600 = vld [vmem:[#allocation2 + $0xc] sm:$0xff]
      %v3601 = vld [vmem:[#allocation2 + $0x14] sm:$0xf]
      %3605 = vrot.lane.b32.xlu0 %v3599, 109
      %v3606 = vpop.permute.xlu0 %3605
      %3607 = vrot.lane.b32.xlu0 %v3600, 109
      %v3608 = vpop.permute.xlu0 %3607
      %3609 = vrot.lane.b32.xlu0 %v3601, 109
      %v3610 = vpop.permute.xlu0 %3609
      %v3611 = vrot.slane %v3606, 4
      %v3612 = vrot.slane %v3608, 4
      %v3613 = vrot.slane %v3610, 4
      %v3614 = vsel %vm258, %v3611, %v3612
      %v3615 = vsel %vm624, %v3606, %v3614
      %v3616 = vsel %vm258, %v3612, %v3613
      %v3617 = vsel %vm624, %v3608, %v3616
      %3620 = vst [vmem:[#allocation3 + $0x100] sm:$0xff] %v3615
      %3621 = vst [vmem:[#allocation3 + $0x108] sm:$0xff] %v3617
      %v3622 = vld [vmem:[#allocation2 + $0x4] sm:$0xff]
      %v3623 = vld [vmem:[#allocation2 + $0xc] sm:$0xff]
      %v3624 = vld [vmem:[#allocation2 + $0x14] sm:$0xf]
      %3628 = vrot.lane.b32.xlu0 %v3622, 108
      %v3629 = vpop.permute.xlu0 %3628
      %3630 = vrot.lane.b32.xlu0 %v3623, 108
      %v3631 = vpop.permute.xlu0 %3630
      %3632 = vrot.lane.b32.xlu0 %v3624, 108
      %v3633 = vpop.permute.xlu0 %3632
      %v3634 = vrot.slane %v3629, 4
      %v3635 = vrot.slane %v3631, 4
      %v3636 = vrot.slane %v3633, 4
      %v3637 = vsel %vm258, %v3634, %v3635
      %v3638 = vsel %vm648, %v3629, %v3637
      %v3639 = vsel %vm258, %v3635, %v3636
      %v3640 = vsel %vm648, %v3631, %v3639
      %3643 = vst [vmem:[#allocation3 + $0x110] sm:$0xff] %v3638
      %3644 = vst [vmem:[#allocation3 + $0x118] sm:$0xff] %v3640
      %v3645 = vld [vmem:[#allocation2 + $0x4] sm:$0xff]
      %v3646 = vld [vmem:[#allocation2 + $0xc] sm:$0xff]
      %v3647 = vld [vmem:[#allocation2 + $0x14] sm:$0xf]
      %3651 = vrot.lane.b32.xlu0 %v3645, 107
      %v3652 = vpop.permute.xlu0 %3651
      %3653 = vrot.lane.b32.xlu0 %v3646, 107
      %v3654 = vpop.permute.xlu0 %3653
      %3655 = vrot.lane.b32.xlu0 %v3647, 107
      %v3656 = vpop.permute.xlu0 %3655
      %v3657 = vrot.slane %v3652, 4
      %v3658 = vrot.slane %v3654, 4
      %v3659 = vrot.slane %v3656, 4
      %v3660 = vsel %vm258, %v3657, %v3658
      %v3661 = vsel %vm672, %v3652, %v3660
      %v3662 = vsel %vm258, %v3658, %v3659
      %v3663 = vsel %vm672, %v3654, %v3662
      %3666 = vst [vmem:[#allocation3 + $0x120] sm:$0xff] %v3661
      %3667 = vst [vmem:[#allocation3 + $0x128] sm:$0xff] %v3663
      %v3668 = vld [vmem:[#allocation2 + $0x4] sm:$0xff]
      %v3669 = vld [vmem:[#allocation2 + $0xc] sm:$0xff]
      %v3670 = vld [vmem:[#allocation2 + $0x14] sm:$0xf]
      %3674 = vrot.lane.b32.xlu0 %v3668, 106
      %v3675 = vpop.permute.xlu0 %3674
      %3676 = vrot.lane.b32.xlu0 %v3669, 106
      %v3677 = vpop.permute.xlu0 %3676
      %3678 = vrot.lane.b32.xlu0 %v3670, 106
      %v3679 = vpop.permute.xlu0 %3678
      %v3680 = vrot.slane %v3675, 4
      %v3681 = vrot.slane %v3677, 4
      %v3682 = vrot.slane %v3679, 4
      %v3683 = vsel %vm258, %v3680, %v3681
      %v3684 = vsel %vm696, %v3675, %v3683
      %v3685 = vsel %vm258, %v3681, %v3682
      %v3686 = vsel %vm696, %v3677, %v3685
      %3689 = vst [vmem:[#allocation3 + $0x130] sm:$0xff] %v3684
      %3690 = vst [vmem:[#allocation3 + $0x138] sm:$0xff] %v3686
      %v3691 = vld [vmem:[#allocation2 + $0x4] sm:$0xff]
      %v3692 = vld [vmem:[#allocation2 + $0xc] sm:$0xff]
      %v3693 = vld [vmem:[#allocation2 + $0x14] sm:$0xf]
      %3697 = vrot.lane.b32.xlu0 %v3691, 90
      %v3698 = vpop.permute.xlu0 %3697
      %3699 = vrot.lane.b32.xlu0 %v3692, 90
      %v3700 = vpop.permute.xlu0 %3699
      %3701 = vrot.lane.b32.xlu0 %v3693, 90
      %v3702 = vpop.permute.xlu0 %3701
      %v3703 = vrot.slane %v3698, 4
      %v3704 = vrot.slane %v3700, 4
      %v3705 = vrot.slane %v3702, 4
      %v3706 = vsel %vm258, %v3703, %v3704
      %v3707 = vsel %vm720, %v3698, %v3706
      %v3708 = vsel %vm258, %v3704, %v3705
      %v3709 = vsel %vm720, %v3700, %v3708
      %3712 = vst [vmem:[#allocation3 + $0x140] sm:$0xff] %v3707
      %3713 = vst [vmem:[#allocation3 + $0x148] sm:$0xff] %v3709
      %v3714 = vld [vmem:[#allocation2 + $0x4] sm:$0xff]
      %v3715 = vld [vmem:[#allocation2 + $0xc] sm:$0xff]
      %v3716 = vld [vmem:[#allocation2 + $0x14] sm:$0xf]
      %3720 = vrot.lane.b32.xlu0 %v3714, 89
      %v3721 = vpop.permute.xlu0 %3720
      %3722 = vrot.lane.b32.xlu0 %v3715, 89
      %v3723 = vpop.permute.xlu0 %3722
      %3724 = vrot.lane.b32.xlu0 %v3716, 89
      %v3725 = vpop.permute.xlu0 %3724
      %v3726 = vrot.slane %v3721, 4
      %v3727 = vrot.slane %v3723, 4
      %v3728 = vrot.slane %v3725, 4
      %v3729 = vsel %vm258, %v3726, %v3727
      %v3730 = vsel %vm744, %v3721, %v3729
      %v3731 = vsel %vm258, %v3727, %v3728
      %v3732 = vsel %vm744, %v3723, %v3731
      %3735 = vst [vmem:[#allocation3 + $0x150] sm:$0xff] %v3730
      %3736 = vst [vmem:[#allocation3 + $0x158] sm:$0xff] %v3732
      %v3737 = vld [vmem:[#allocation2 + $0x4] sm:$0xff]
      %v3738 = vld [vmem:[#allocation2 + $0xc] sm:$0xff]
      %v3739 = vld [vmem:[#allocation2 + $0x14] sm:$0xf]
      %3743 = vrot.lane.b32.xlu0 %v3737, 88
      %v3744 = vpop.permute.xlu0 %3743
      %3745 = vrot.lane.b32.xlu0 %v3738, 88
      %v3746 = vpop.permute.xlu0 %3745
      %3747 = vrot.lane.b32.xlu0 %v3739, 88
      %v3748 = vpop.permute.xlu0 %3747
      %v3749 = vrot.slane %v3744, 4
      %v3750 = vrot.slane %v3746, 4
      %v3751 = vrot.slane %v3748, 4
      %v3752 = vsel %vm258, %v3749, %v3750
      %v3753 = vsel %vm768, %v3744, %v3752
      %v3754 = vsel %vm258, %v3750, %v3751
      %v3755 = vsel %vm768, %v3746, %v3754
      %3758 = vst [vmem:[#allocation3 + $0x160] sm:$0xff] %v3753
      %3759 = vst [vmem:[#allocation3 + $0x168] sm:$0xff] %v3755
      %v3760 = vld [vmem:[#allocation2 + $0x4] sm:$0xff]
      %v3761 = vld [vmem:[#allocation2 + $0xc] sm:$0xff]
      %v3762 = vld [vmem:[#allocation2 + $0x14] sm:$0xf]
      %3766 = vrot.lane.b32.xlu0 %v3760, 87
      %v3767 = vpop.permute.xlu0 %3766
      %3768 = vrot.lane.b32.xlu0 %v3761, 87
      %v3769 = vpop.permute.xlu0 %3768
      %3770 = vrot.lane.b32.xlu0 %v3762, 87
      %v3771 = vpop.permute.xlu0 %3770
      %v3772 = vrot.slane %v3767, 4
      %v3773 = vrot.slane %v3769, 4
      %v3774 = vrot.slane %v3771, 4
      %v3775 = vsel %vm258, %v3772, %v3773
      %v3776 = vsel %vm792, %v3767, %v3775
      %v3777 = vsel %vm258, %v3773, %v3774
      %v3778 = vsel %vm792, %v3769, %v3777
      %3781 = vst [vmem:[#allocation3 + $0x170] sm:$0xff] %v3776
      %3782 = vst [vmem:[#allocation3 + $0x178] sm:$0xff] %v3778
      %v3783 = vld [vmem:[#allocation2 + $0x4] sm:$0xff]
      %v3784 = vld [vmem:[#allocation2 + $0xc] sm:$0xff]
      %v3785 = vld [vmem:[#allocation2 + $0x14] sm:$0xf]
      %3789 = vrot.lane.b32.xlu0 %v3783, 86
      %v3790 = vpop.permute.xlu0 %3789
      %3791 = vrot.lane.b32.xlu0 %v3784, 86
      %v3792 = vpop.permute.xlu0 %3791
      %3793 = vrot.lane.b32.xlu0 %v3785, 86
      %v3794 = vpop.permute.xlu0 %3793
      %v3795 = vrot.slane %v3790, 4
      %v3796 = vrot.slane %v3792, 4
      %v3797 = vrot.slane %v3794, 4
      %v3798 = vsel %vm258, %v3795, %v3796
      %v3799 = vsel %vm816, %v3790, %v3798
      %v3800 = vsel %vm258, %v3796, %v3797
      %v3801 = vsel %vm816, %v3792, %v3800
      %3804 = vst [vmem:[#allocation3 + $0x180] sm:$0xff] %v3799
      %3805 = vst [vmem:[#allocation3 + $0x188] sm:$0xff] %v3801
      %s3806 = scalar_lea.vmem %s2, 24
      %v3807 = vld [vmem:[%s3806] sm:$0xff]
      %v3808 = vld [vmem:[#allocation3] sm:$0xff]
      %v3809 = vld [vmem:[#allocation3 + $0x8] sm:$0xff]
      %v3810 = vld [vmem:[#allocation3 + $0x10] sm:$0xff]
      %v3811 = vld [vmem:[#allocation3 + $0x18] sm:$0xff]
      %v3812 = vld [vmem:[#allocation3 + $0x20] sm:$0xff]
      %v3813 = vld [vmem:[#allocation3 + $0x28] sm:$0xff]
      %v3814 = vld [vmem:[#allocation3 + $0x30] sm:$0xff]
      %v3815 = vld [vmem:[#allocation3 + $0x38] sm:$0xff]
      %v3816 = vld [vmem:[#allocation3 + $0x40] sm:$0xff]
      %v3817 = vld [vmem:[#allocation3 + $0x48] sm:$0xff]
      %v3818 = vld [vmem:[#allocation3 + $0x50] sm:$0xff]
      %v3819 = vld [vmem:[#allocation3 + $0x58] sm:$0xff]
      %v3820 = vld [vmem:[#allocation3 + $0x60] sm:$0xff]
      %v3821 = vld [vmem:[#allocation3 + $0x68] sm:$0xff]
      %v3822 = vld [vmem:[#allocation3 + $0x70] sm:$0xff]
      %v3823 = vld [vmem:[#allocation3 + $0x78] sm:$0xff]
      %v3824 = vld [vmem:[#allocation3 + $0x80] sm:$0xff]
      %v3825 = vld [vmem:[#allocation3 + $0x88] sm:$0xff]
      %v3826 = vld [vmem:[#allocation3 + $0x90] sm:$0xff]
      %v3827 = vld [vmem:[#allocation3 + $0x98] sm:$0xff]
      %v3828 = vld [vmem:[#allocation3 + $0xa0] sm:$0xff]
      %v3829 = vld [vmem:[#allocation3 + $0xa8] sm:$0xff]
      %v3830 = vld [vmem:[#allocation3 + $0xb0] sm:$0xff]
      %v3831 = vld [vmem:[#allocation3 + $0xb8] sm:$0xff]
      %v3832 = vld [vmem:[#allocation3 + $0xc0] sm:$0xff]
      %v3833 = vld [vmem:[#allocation3 + $0xc8] sm:$0xff]
      %v3834 = vld [vmem:[#allocation3 + $0xd0] sm:$0xff]
      %v3835 = vld [vmem:[#allocation3 + $0xd8] sm:$0xff]
      %v3836 = vld [vmem:[#allocation3 + $0xe0] sm:$0xff]
      %v3837 = vld [vmem:[#allocation3 + $0xe8] sm:$0xff]
      %v3838 = vld [vmem:[#allocation3 + $0xf0] sm:$0xff]
      %v3839 = vld [vmem:[#allocation3 + $0xf8] sm:$0xff]
      %v3840 = vld [vmem:[#allocation3 + $0x100] sm:$0xff]
      %v3841 = vld [vmem:[#allocation3 + $0x108] sm:$0xff]
      %v3842 = vld [vmem:[#allocation3 + $0x110] sm:$0xff]
      %v3843 = vld [vmem:[#allocation3 + $0x118] sm:$0xff]
      %v3844 = vld [vmem:[#allocation3 + $0x120] sm:$0xff]
      %v3845 = vld [vmem:[#allocation3 + $0x128] sm:$0xff]
      %v3846 = vld [vmem:[#allocation3 + $0x130] sm:$0xff]
      %v3847 = vld [vmem:[#allocation3 + $0x138] sm:$0xff]
      %v3848 = vld [vmem:[#allocation3 + $0x140] sm:$0xff]
      %v3849 = vld [vmem:[#allocation3 + $0x148] sm:$0xff]
      %v3850 = vld [vmem:[#allocation3 + $0x150] sm:$0xff]
      %v3851 = vld [vmem:[#allocation3 + $0x158] sm:$0xff]
      %v3852 = vld [vmem:[#allocation3 + $0x160] sm:$0xff]
      %v3853 = vld [vmem:[#allocation3 + $0x168] sm:$0xff]
      %v3854 = vld [vmem:[#allocation3 + $0x170] sm:$0xff]
      %v3855 = vld [vmem:[#allocation3 + $0x178] sm:$0xff]
      %v3856 = vld [vmem:[#allocation3 + $0x180] sm:$0xff]
      %v3857 = vld [vmem:[#allocation3 + $0x188] sm:$0xff]
      %s3858 = scalar_lea.vmem %s3, 24
      %v3859 = vld [vmem:[%s3858] sm:$0xff]
      %3861 = vset.pattern.permute.xlu0 0
      %3862 = vperm.xlu0 %3861, %v3859
      %v3863 = vpop.permute.xlu0 %3862
      %v3866 = vunpack.c.l.b16 %v3807
      %v3867 = vunpack.c.h.b16 %v3807
      %v3868 = vpack.c.b16 %v3866, %v3866
      %v3869 = vpack.c.b16 %v3867, %v3867
      %v3921 = vunpack.c.l.b16 %v3808
      %v3922 = vunpack.c.h.b16 %v3808
      %v3923 = vunpack.c.l.b16 %v3809
      %v3924 = vunpack.c.h.b16 %v3809
      %v3925 = vunpack.c.l.b16 %v3810
      %v3926 = vunpack.c.h.b16 %v3810
      %v3927 = vunpack.c.l.b16 %v3811
      %v3928 = vunpack.c.h.b16 %v3811
      %v3929 = vunpack.c.l.b16 %v3812
      %v3930 = vunpack.c.h.b16 %v3812
      %v3931 = vunpack.c.l.b16 %v3813
      %v3932 = vunpack.c.h.b16 %v3813
      %v3933 = vunpack.c.l.b16 %v3814
      %v3934 = vunpack.c.h.b16 %v3814
      %v3935 = vunpack.c.l.b16 %v3815
      %v3936 = vunpack.c.h.b16 %v3815
      %v3937 = vunpack.c.l.b16 %v3816
      %v3938 = vunpack.c.h.b16 %v3816
      %v3939 = vunpack.c.l.b16 %v3817
      %v3940 = vunpack.c.h.b16 %v3817
      %v3941 = vunpack.c.l.b16 %v3818
      %v3942 = vunpack.c.h.b16 %v3818
      %v3943 = vunpack.c.l.b16 %v3819
      %v3944 = vunpack.c.h.b16 %v3819
      %v3945 = vunpack.c.l.b16 %v3820
      %v3946 = vunpack.c.h.b16 %v3820
      %v3947 = vunpack.c.l.b16 %v3821
      %v3948 = vunpack.c.h.b16 %v3821
      %v3949 = vunpack.c.l.b16 %v3822
      %v3950 = vunpack.c.h.b16 %v3822
      %v3951 = vunpack.c.l.b16 %v3823
      %v3952 = vunpack.c.h.b16 %v3823
      %v3953 = vunpack.c.l.b16 %v3824
      %v3954 = vunpack.c.h.b16 %v3824
      %v3955 = vunpack.c.l.b16 %v3825
      %v3956 = vunpack.c.h.b16 %v3825
      %v3957 = vunpack.c.l.b16 %v3826
      %v3958 = vunpack.c.h.b16 %v3826
      %v3959 = vunpack.c.l.b16 %v3827
      %v3960 = vunpack.c.h.b16 %v3827
      %v3961 = vunpack.c.l.b16 %v3828
      %v3962 = vunpack.c.h.b16 %v3828
      %v3963 = vunpack.c.l.b16 %v3829
      %v3964 = vunpack.c.h.b16 %v3829
      %v3965 = vunpack.c.l.b16 %v3830
      %v3966 = vunpack.c.h.b16 %v3830
      %v3967 = vunpack.c.l.b16 %v3831
      %v3968 = vunpack.c.h.b16 %v3831
      %v3969 = vunpack.c.l.b16 %v3832
      %v3970 = vunpack.c.h.b16 %v3832
      %v3971 = vunpack.c.l.b16 %v3833
      %v3972 = vunpack.c.h.b16 %v3833
      %v3973 = vunpack.c.l.b16 %v3834
      %v3974 = vunpack.c.h.b16 %v3834
      %v3975 = vunpack.c.l.b16 %v3835
      %v3976 = vunpack.c.h.b16 %v3835
      %v3977 = vunpack.c.l.b16 %v3836
      %v3978 = vunpack.c.h.b16 %v3836
      %v3979 = vunpack.c.l.b16 %v3837
      %v3980 = vunpack.c.h.b16 %v3837
      %v3981 = vunpack.c.l.b16 %v3838
      %v3982 = vunpack.c.h.b16 %v3838
      %v3983 = vunpack.c.l.b16 %v3839
      %v3984 = vunpack.c.h.b16 %v3839
      %v3985 = vunpack.c.l.b16 %v3840
      %v3986 = vunpack.c.h.b16 %v3840
      %v3987 = vunpack.c.l.b16 %v3841
      %v3988 = vunpack.c.h.b16 %v3841
      %v3989 = vunpack.c.l.b16 %v3842
      %v3990 = vunpack.c.h.b16 %v3842
      %v3991 = vunpack.c.l.b16 %v3843
      %v3992 = vunpack.c.h.b16 %v3843
      %v3993 = vunpack.c.l.b16 %v3844
      %v3994 = vunpack.c.h.b16 %v3844
      %v3995 = vunpack.c.l.b16 %v3845
      %v3996 = vunpack.c.h.b16 %v3845
      %v3997 = vunpack.c.l.b16 %v3846
      %v3998 = vunpack.c.h.b16 %v3846
      %v3999 = vunpack.c.l.b16 %v3847
      %v4000 = vunpack.c.h.b16 %v3847
      %v4001 = vunpack.c.l.b16 %v3848
      %v4002 = vunpack.c.h.b16 %v3848
      %v4003 = vunpack.c.l.b16 %v3849
      %v4004 = vunpack.c.h.b16 %v3849
      %v4005 = vunpack.c.l.b16 %v3850
      %v4006 = vunpack.c.h.b16 %v3850
      %v4007 = vunpack.c.l.b16 %v3851
      %v4008 = vunpack.c.h.b16 %v3851
      %v4009 = vunpack.c.l.b16 %v3852
      %v4010 = vunpack.c.h.b16 %v3852
      %v4011 = vunpack.c.l.b16 %v3853
      %v4012 = vunpack.c.h.b16 %v3853
      %v4013 = vunpack.c.l.b16 %v3854
      %v4014 = vunpack.c.h.b16 %v3854
      %v4015 = vunpack.c.l.b16 %v3855
      %v4016 = vunpack.c.h.b16 %v3855
      %v4017 = vunpack.c.l.b16 %v3856
      %v4018 = vunpack.c.h.b16 %v3856
      %v4019 = vunpack.c.l.b16 %v3857
      %v4020 = vunpack.c.h.b16 %v3857
      %v4021 = vpack.c.b16 %v3925, %v3921
      %v4022 = vpack.c.b16 %v3926, %v3922
      %v4023 = vpack.c.b16 %v3927, %v3923
      %v4024 = vpack.c.b16 %v3928, %v3924
      %v4025 = vpack.c.b16 %v3933, %v3929
      %v4026 = vpack.c.b16 %v3934, %v3930
      %v4027 = vpack.c.b16 %v3935, %v3931
      %v4028 = vpack.c.b16 %v3936, %v3932
      %v4029 = vpack.c.b16 %v3941, %v3937
      %v4030 = vpack.c.b16 %v3942, %v3938
      %v4031 = vpack.c.b16 %v3943, %v3939
      %v4032 = vpack.c.b16 %v3944, %v3940
      %v4033 = vpack.c.b16 %v3949, %v3945
      %v4034 = vpack.c.b16 %v3950, %v3946
      %v4035 = vpack.c.b16 %v3951, %v3947
      %v4036 = vpack.c.b16 %v3952, %v3948
      %v4037 = vpack.c.b16 %v3957, %v3953
      %v4038 = vpack.c.b16 %v3958, %v3954
      %v4039 = vpack.c.b16 %v3959, %v3955
      %v4040 = vpack.c.b16 %v3960, %v3956
      %v4041 = vpack.c.b16 %v3965, %v3961
      %v4042 = vpack.c.b16 %v3966, %v3962
      %v4043 = vpack.c.b16 %v3967, %v3963
      %v4044 = vpack.c.b16 %v3968, %v3964
      %v4045 = vpack.c.b16 %v3973, %v3969
      %v4046 = vpack.c.b16 %v3974, %v3970
      %v4047 = vpack.c.b16 %v3975, %v3971
      %v4048 = vpack.c.b16 %v3976, %v3972
      %v4049 = vpack.c.b16 %v3981, %v3977
      %v4050 = vpack.c.b16 %v3982, %v3978
      %v4051 = vpack.c.b16 %v3983, %v3979
      %v4052 = vpack.c.b16 %v3984, %v3980
      %v4053 = vpack.c.b16 %v3989, %v3985
      %v4054 = vpack.c.b16 %v3990, %v3986
      %v4055 = vpack.c.b16 %v3991, %v3987
      %v4056 = vpack.c.b16 %v3992, %v3988
      %v4057 = vpack.c.b16 %v3997, %v3993
      %v4058 = vpack.c.b16 %v3998, %v3994
      %v4059 = vpack.c.b16 %v3999, %v3995
      %v4060 = vpack.c.b16 %v4000, %v3996
      %v4061 = vpack.c.b16 %v4005, %v4001
      %v4062 = vpack.c.b16 %v4006, %v4002
      %v4063 = vpack.c.b16 %v4007, %v4003
      %v4064 = vpack.c.b16 %v4008, %v4004
      %v4065 = vpack.c.b16 %v4013, %v4009
      %v4066 = vpack.c.b16 %v4014, %v4010
      %v4067 = vpack.c.b16 %v4015, %v4011
      %v4068 = vpack.c.b16 %v4016, %v4012
      %v4069 = vpack.c.b16 %v4017, %v4017
      %v4070 = vpack.c.b16 %v4018, %v4018
      %v4071 = vpack.c.b16 %v4019, %v4019
      %v4072 = vpack.c.b16 %v4020, %v4020
      %v4122 = vsel %vm1137, %v3869, 0
      %v4125 = vsel %vm1141, %v4069, 0
      %v4128 = vsel %vm1141, %v4070, 0
      %v4131 = vsel %vm1141, %v4071, 0
      %v4134 = vsel %vm1141, %v4072, 0
      %4136 = vmatprep.subr.bf16.mxu0 %v4050
      %4137 = vmatpush1.bf16.msra.mxu0 %v4049
      %4138 = vmatprep.subr.bf16.mxu0 %v4046
      %4139 = vmatpush1.bf16.msra.mxu0 %v4045
      %4140 = vmatprep.subr.bf16.mxu0 %v4042
      %4141 = vmatpush1.bf16.msra.mxu0 %v4041
      %4142 = vmatprep.subr.bf16.mxu0 %v4038
      %4143 = vmatpush1.bf16.msra.mxu0 %v4037
      %4144 = vmatprep.subr.bf16.mxu0 %v4034
      %4145 = vmatpush1.bf16.msra.mxu0 %v4033
      %4146 = vmatprep.subr.bf16.mxu0 %v4030
      %4147 = vmatpush1.bf16.msra.mxu0 %v4029
      %4148 = vmatprep.subr.bf16.mxu0 %v4026
      %4149 = vmatpush1.bf16.msra.mxu0 %v4025
      %4150 = vmatprep.subr.bf16.mxu0 %v4022
      %4151 = vmatpush1.bf16.msra.mxu0 %v4021
      %4152 = vmatprep.subr.bf16.mxu0 0
      %4153 = vmatpush2.bf16.msra.mxu0 0
      %4154 = vmatprep.subr.bf16.mxu0 0
      %4155 = vmatpush2.bf16.msra.mxu0 0
      %4156 = vmatprep.subr.bf16.mxu0 0
      %4157 = vmatpush2.bf16.msra.mxu0 0
      %4158 = vmatprep.subr.bf16.mxu0 %v4128
      %4159 = vmatpush2.bf16.msra.mxu0 %v4125
      %4160 = vmatprep.subr.bf16.mxu0 %v4066
      %4161 = vmatpush2.bf16.msra.mxu0 %v4065
      %4162 = vmatprep.subr.bf16.mxu0 %v4062
      %4163 = vmatpush2.bf16.msra.mxu0 %v4061
      %4164 = vmatprep.subr.bf16.mxu0 %v4058
      %4165 = vmatpush2.bf16.msra.mxu0 %v4057
      %4166 = vmatprep.subr.bf16.mxu0 %v4054
      %4167 = vmatpush2.bf16.msra.mxu0 %v4053
      %4168 = vmatprep.mubr.bf16.mxu0 %v4122
      %4169 = vmatmul.mubr.bf16.gmra.mxu0 %v3868
      %v4170 = vpop.f32.mrf.mxu0
      %v4171 = vadd.f32 %v3863, %v4170
      %v4172 = vpop.f32.mrf.mxu0
      %v4173 = vadd.f32 %v3863, %v4172
      %v4174 = vpop.f32.mrf.mxu0
      %v4175 = vpop.f32.mrf.mxu0
      %4176 = vdwg.mxu0
      %4177 = vmatprep.subr.bf16.mxu0 %v4052
      %4178 = vmatpush1.bf16.msra.mxu0 %v4051
      %4179 = vmatprep.subr.bf16.mxu0 %v4048
      %4180 = vmatpush1.bf16.msra.mxu0 %v4047
      %4181 = vmatprep.subr.bf16.mxu0 %v4044
      %4182 = vmatpush1.bf16.msra.mxu0 %v4043
      %4183 = vmatprep.subr.bf16.mxu0 %v4040
      %4184 = vmatpush1.bf16.msra.mxu0 %v4039
      %4185 = vmatprep.subr.bf16.mxu0 %v4036
      %4186 = vmatpush1.bf16.msra.mxu0 %v4035
      %4187 = vmatprep.subr.bf16.mxu0 %v4032
      %4188 = vmatpush1.bf16.msra.mxu0 %v4031
      %4189 = vmatprep.subr.bf16.mxu0 %v4028
      %4190 = vmatpush1.bf16.msra.mxu0 %v4027
      %4191 = vmatprep.subr.bf16.mxu0 %v4024
      %4192 = vmatpush1.bf16.msra.mxu0 %v4023
      %4193 = vmatprep.subr.bf16.mxu0 0
      %4194 = vmatpush2.bf16.msra.mxu0 0
      %4195 = vmatprep.subr.bf16.mxu0 0
      %4196 = vmatpush2.bf16.msra.mxu0 0
      %4197 = vmatprep.subr.bf16.mxu0 0
      %4198 = vmatpush2.bf16.msra.mxu0 0
      %4199 = vmatprep.subr.bf16.mxu0 %v4134
      %4200 = vmatpush2.bf16.msra.mxu0 %v4131
      %4201 = vmatprep.subr.bf16.mxu0 %v4068
      %4202 = vmatpush2.bf16.msra.mxu0 %v4067
      %4203 = vmatprep.subr.bf16.mxu0 %v4064
      %4204 = vmatpush2.bf16.msra.mxu0 %v4063
      %4205 = vmatprep.subr.bf16.mxu0 %v4060
      %4206 = vmatpush2.bf16.msra.mxu0 %v4059
      %4207 = vmatprep.subr.bf16.mxu0 %v4056
      %4208 = vmatpush2.bf16.msra.mxu0 %v4055
      %4209 = vmatprep.mubr.bf16.mxu0 %v4122
      %4210 = vmatmul.mubr.bf16.gmra.mxu0 %v3868
      %v4211 = vpop.f32.mrf.mxu0
      %v4212 = vadd.f32 %v3863, %v4211
      %v4213 = vpop.f32.mrf.mxu0
      %v4214 = vadd.f32 %v3863, %v4213
      %v4215 = vpop.f32.mrf.mxu0
      %v4216 = vpop.f32.mrf.mxu0
      %4217 = vdwg.mxu0
      %v4218 = vmul.f32 %v4171, %v204
      %v4219 = vmul.f32 %v4173, %v208
      %v4220 = vmul.f32 %v4212, %v212
      %v4221 = vmul.f32 %v4214, %v216
      %v4222 = vadd.f32 %v2234, %v4218
      %v4223 = vadd.f32 %v2235, %v4219
      %v4224 = vadd.f32 %v2236, %v4220
      %v4225 = vadd.f32 %v2237, %v4221
      %v4226 = vpack.c.bf16 %v4222, %v4222
      %v4227 = vpack.c.bf16 %v4223, %v4223
      %v4228 = vpack.c.bf16 %v4224, %v4224
      %v4229 = vpack.c.bf16 %v4225, %v4225
      %v4234 = vunpack.c.l.b16 %v4226
      %v4235 = vunpack.c.l.b16 %v4227
      %v4236 = vunpack.c.l.b16 %v4228
      %v4237 = vunpack.c.l.b16 %v4229
      %v4238 = vpack.c.b16 %v4235, %v4234
      %v4239 = vpack.c.b16 %v4237, %v4236
      %4242 = vst [vmem:[#allocation2 + $0x4] sm:$0xff] %v4238
      %4243 = vst [vmem:[#allocation2 + $0xc] sm:$0xff] %v4239
      %v4244 = vld [vmem:[#allocation2] sm:$0xff]
      %v4245 = vld [vmem:[#allocation2 + $0x8] sm:$0xff]
      %v4246 = vld [vmem:[#allocation2 + $0x10] sm:$0xf]
      %4250 = vrot.lane.b32.xlu0 %v4244, 42
      %v4251 = vpop.permute.xlu0 %4250
      %4252 = vrot.lane.b32.xlu0 %v4245, 42
      %v4253 = vpop.permute.xlu0 %4252
      %4254 = vrot.lane.b32.xlu0 %v4246, 42
      %v4255 = vpop.permute.xlu0 %4254
      %v4256 = vrot.slane %v4251, 4
      %v4257 = vrot.slane %v4253, 4
      %v4258 = vrot.slane %v4255, 4
      %v4259 = vsel %vm258, %v4256, %v4257
      %v4260 = vsel %vm260, %v4251, %v4259
      %v4261 = vsel %vm258, %v4257, %v4258
      %v4262 = vsel %vm260, %v4253, %v4261
      %4265 = vst [vmem:[#allocation3] sm:$0xff] %v4260
      %4266 = vst [vmem:[#allocation3 + $0x8] sm:$0xff] %v4262
      %v4267 = vld [vmem:[#allocation2] sm:$0xff]
      %v4268 = vld [vmem:[#allocation2 + $0x8] sm:$0xff]
      %v4269 = vld [vmem:[#allocation2 + $0x10] sm:$0xf]
      %4273 = vrot.lane.b32.xlu0 %v4267, 41
      %v4274 = vpop.permute.xlu0 %4273
      %4275 = vrot.lane.b32.xlu0 %v4268, 41
      %v4276 = vpop.permute.xlu0 %4275
      %4277 = vrot.lane.b32.xlu0 %v4269, 41
      %v4278 = vpop.permute.xlu0 %4277
      %v4279 = vrot.slane %v4274, 4
      %v4280 = vrot.slane %v4276, 4
      %v4281 = vrot.slane %v4278, 4
      %v4282 = vsel %vm258, %v4279, %v4280
      %v4283 = vsel %vm284, %v4274, %v4282
      %v4284 = vsel %vm258, %v4280, %v4281
      %v4285 = vsel %vm284, %v4276, %v4284
      %4288 = vst [vmem:[#allocation3 + $0x10] sm:$0xff] %v4283
      %4289 = vst [vmem:[#allocation3 + $0x18] sm:$0xff] %v4285
      %v4290 = vld [vmem:[#allocation2] sm:$0xff]
      %v4291 = vld [vmem:[#allocation2 + $0x8] sm:$0xff]
      %v4292 = vld [vmem:[#allocation2 + $0x10] sm:$0xf]
      %4296 = vrot.lane.b32.xlu0 %v4290, 40
      %v4297 = vpop.permute.xlu0 %4296
      %4298 = vrot.lane.b32.xlu0 %v4291, 40
      %v4299 = vpop.permute.xlu0 %4298
      %4300 = vrot.lane.b32.xlu0 %v4292, 40
      %v4301 = vpop.permute.xlu0 %4300
      %v4302 = vrot.slane %v4297, 4
      %v4303 = vrot.slane %v4299, 4
      %v4304 = vrot.slane %v4301, 4
      %v4305 = vsel %vm258, %v4302, %v4303
      %v4306 = vsel %vm308, %v4297, %v4305
      %v4307 = vsel %vm258, %v4303, %v4304
      %v4308 = vsel %vm308, %v4299, %v4307
      %4311 = vst [vmem:[#allocation3 + $0x20] sm:$0xff] %v4306
      %4312 = vst [vmem:[#allocation3 + $0x28] sm:$0xff] %v4308
      %v4313 = vld [vmem:[#allocation2] sm:$0xff]
      %v4314 = vld [vmem:[#allocation2 + $0x8] sm:$0xff]
      %v4315 = vld [vmem:[#allocation2 + $0x10] sm:$0xf]
      %4319 = vrot.lane.b32.xlu0 %v4313, 39
      %v4320 = vpop.permute.xlu0 %4319
      %4321 = vrot.lane.b32.xlu0 %v4314, 39
      %v4322 = vpop.permute.xlu0 %4321
      %4323 = vrot.lane.b32.xlu0 %v4315, 39
      %v4324 = vpop.permute.xlu0 %4323
      %v4325 = vrot.slane %v4320, 4
      %v4326 = vrot.slane %v4322, 4
      %v4327 = vrot.slane %v4324, 4
      %v4328 = vsel %vm258, %v4325, %v4326
      %v4329 = vsel %vm332, %v4320, %v4328
      %v4330 = vsel %vm258, %v4326, %v4327
      %v4331 = vsel %vm332, %v4322, %v4330
      %4334 = vst [vmem:[#allocation3 + $0x30] sm:$0xff] %v4329
      %4335 = vst [vmem:[#allocation3 + $0x38] sm:$0xff] %v4331
      %v4336 = vld [vmem:[#allocation2] sm:$0xff]
      %v4337 = vld [vmem:[#allocation2 + $0x8] sm:$0xff]
      %v4338 = vld [vmem:[#allocation2 + $0x10] sm:$0xf]
      %4342 = vrot.lane.b32.xlu0 %v4336, 38
      %v4343 = vpop.permute.xlu0 %4342
      %4344 = vrot.lane.b32.xlu0 %v4337, 38
      %v4345 = vpop.permute.xlu0 %4344
      %4346 = vrot.lane.b32.xlu0 %v4338, 38
      %v4347 = vpop.permute.xlu0 %4346
      %v4348 = vrot.slane %v4343, 4
      %v4349 = vrot.slane %v4345, 4
      %v4350 = vrot.slane %v4347, 4
      %v4351 = vsel %vm258, %v4348, %v4349
      %v4352 = vsel %vm356, %v4343, %v4351
      %v4353 = vsel %vm258, %v4349, %v4350
      %v4354 = vsel %vm356, %v4345, %v4353
      %4357 = vst [vmem:[#allocation3 + $0x40] sm:$0xff] %v4352
      %4358 = vst [vmem:[#allocation3 + $0x48] sm:$0xff] %v4354
      %v4359 = vld [vmem:[#allocation2] sm:$0xff]
      %v4360 = vld [vmem:[#allocation2 + $0x8] sm:$0xff]
      %v4361 = vld [vmem:[#allocation2 + $0x10] sm:$0xf]
      %4365 = vrot.lane.b32.xlu0 %v4359, 22
      %v4366 = vpop.permute.xlu0 %4365
      %4367 = vrot.lane.b32.xlu0 %v4360, 22
      %v4368 = vpop.permute.xlu0 %4367
      %4369 = vrot.lane.b32.xlu0 %v4361, 22
      %v4370 = vpop.permute.xlu0 %4369
      %v4371 = vrot.slane %v4366, 4
      %v4372 = vrot.slane %v4368, 4
      %v4373 = vrot.slane %v4370, 4
      %v4374 = vsel %vm258, %v4371, %v4372
      %v4375 = vsel %vm380, %v4366, %v4374
      %v4376 = vsel %vm258, %v4372, %v4373
      %v4377 = vsel %vm380, %v4368, %v4376
      %4380 = vst [vmem:[#allocation3 + $0x50] sm:$0xff] %v4375
      %4381 = vst [vmem:[#allocation3 + $0x58] sm:$0xff] %v4377
      %v4382 = vld [vmem:[#allocation2] sm:$0xff]
      %v4383 = vld [vmem:[#allocation2 + $0x8] sm:$0xff]
      %v4384 = vld [vmem:[#allocation2 + $0x10] sm:$0xf]
      %4388 = vrot.lane.b32.xlu0 %v4382, 21
      %v4389 = vpop.permute.xlu0 %4388
      %4390 = vrot.lane.b32.xlu0 %v4383, 21
      %v4391 = vpop.permute.xlu0 %4390
      %4392 = vrot.lane.b32.xlu0 %v4384, 21
      %v4393 = vpop.permute.xlu0 %4392
      %v4394 = vrot.slane %v4389, 4
      %v4395 = vrot.slane %v4391, 4
      %v4396 = vrot.slane %v4393, 4
      %v4397 = vsel %vm258, %v4394, %v4395
      %v4398 = vsel %vm404, %v4389, %v4397
      %v4399 = vsel %vm258, %v4395, %v4396
      %v4400 = vsel %vm404, %v4391, %v4399
      %4403 = vst [vmem:[#allocation3 + $0x60] sm:$0xff] %v4398
      %4404 = vst [vmem:[#allocation3 + $0x68] sm:$0xff] %v4400
      %v4405 = vld [vmem:[#allocation2] sm:$0xff]
      %v4406 = vld [vmem:[#allocation2 + $0x8] sm:$0xff]
      %v4407 = vld [vmem:[#allocation2 + $0x10] sm:$0xf]
      %4411 = vrot.lane.b32.xlu0 %v4405, 20
      %v4412 = vpop.permute.xlu0 %4411
      %4413 = vrot.lane.b32.xlu0 %v4406, 20
      %v4414 = vpop.permute.xlu0 %4413
      %4415 = vrot.lane.b32.xlu0 %v4407, 20
      %v4416 = vpop.permute.xlu0 %4415
      %v4417 = vrot.slane %v4412, 4
      %v4418 = vrot.slane %v4414, 4
      %v4419 = vrot.slane %v4416, 4
      %v4420 = vsel %vm258, %v4417, %v4418
      %v4421 = vsel %vm428, %v4412, %v4420
      %v4422 = vsel %vm258, %v4418, %v4419
      %v4423 = vsel %vm428, %v4414, %v4422
      %4426 = vst [vmem:[#allocation3 + $0x70] sm:$0xff] %v4421
      %4427 = vst [vmem:[#allocation3 + $0x78] sm:$0xff] %v4423
      %v4428 = vld [vmem:[#allocation2] sm:$0xff]
      %v4429 = vld [vmem:[#allocation2 + $0x8] sm:$0xff]
      %v4430 = vld [vmem:[#allocation2 + $0x10] sm:$0xf]
      %4434 = vrot.lane.b32.xlu0 %v4428, 19
      %v4435 = vpop.permute.xlu0 %4434
      %4436 = vrot.lane.b32.xlu0 %v4429, 19
      %v4437 = vpop.permute.xlu0 %4436
      %4438 = vrot.lane.b32.xlu0 %v4430, 19
      %v4439 = vpop.permute.xlu0 %4438
      %v4440 = vrot.slane %v4435, 4
      %v4441 = vrot.slane %v4437, 4
      %v4442 = vrot.slane %v4439, 4
      %v4443 = vsel %vm258, %v4440, %v4441
      %v4444 = vsel %vm452, %v4435, %v4443
      %v4445 = vsel %vm258, %v4441, %v4442
      %v4446 = vsel %vm452, %v4437, %v4445
      %4449 = vst [vmem:[#allocation3 + $0x80] sm:$0xff] %v4444
      %4450 = vst [vmem:[#allocation3 + $0x88] sm:$0xff] %v4446
      %v4451 = vld [vmem:[#allocation2] sm:$0xff]
      %v4452 = vld [vmem:[#allocation2 + $0x8] sm:$0xff]
      %v4453 = vld [vmem:[#allocation2 + $0x10] sm:$0xf]
      %4457 = vrot.lane.b32.xlu0 %v4451, 18
      %v4458 = vpop.permute.xlu0 %4457
      %4459 = vrot.lane.b32.xlu0 %v4452, 18
      %v4460 = vpop.permute.xlu0 %4459
      %4461 = vrot.lane.b32.xlu0 %v4453, 18
      %v4462 = vpop.permute.xlu0 %4461
      %v4463 = vrot.slane %v4458, 4
      %v4464 = vrot.slane %v4460, 4
      %v4465 = vrot.slane %v4462, 4
      %v4466 = vsel %vm258, %v4463, %v4464
      %v4467 = vsel %vm476, %v4458, %v4466
      %v4468 = vsel %vm258, %v4464, %v4465
      %v4469 = vsel %vm476, %v4460, %v4468
      %4472 = vst [vmem:[#allocation3 + $0x90] sm:$0xff] %v4467
      %4473 = vst [vmem:[#allocation3 + $0x98] sm:$0xff] %v4469
      %v4474 = vld [vmem:[#allocation2] sm:$0xff]
      %v4475 = vld [vmem:[#allocation2 + $0x8] sm:$0xff]
      %v4476 = vld [vmem:[#allocation2 + $0x10] sm:$0xf]
      %4480 = vrot.lane.b32.xlu0 %v4474, 2
      %v4481 = vpop.permute.xlu0 %4480
      %4482 = vrot.lane.b32.xlu0 %v4475, 2
      %v4483 = vpop.permute.xlu0 %4482
      %4484 = vrot.lane.b32.xlu0 %v4476, 2
      %v4485 = vpop.permute.xlu0 %4484
      %v4486 = vrot.slane %v4481, 4
      %v4487 = vrot.slane %v4483, 4
      %v4488 = vrot.slane %v4485, 4
      %v4489 = vsel %vm258, %v4486, %v4487
      %v4490 = vsel %vm500, %v4481, %v4489
      %v4491 = vsel %vm258, %v4487, %v4488
      %v4492 = vsel %vm500, %v4483, %v4491
      %4495 = vst [vmem:[#allocation3 + $0xa0] sm:$0xff] %v4490
      %4496 = vst [vmem:[#allocation3 + $0xa8] sm:$0xff] %v4492
      %v4497 = vld [vmem:[#allocation2] sm:$0xff]
      %v4498 = vld [vmem:[#allocation2 + $0x8] sm:$0xff]
      %v4499 = vld [vmem:[#allocation2 + $0x10] sm:$0xf]
      %4503 = vrot.lane.b32.xlu0 %v4497, 1
      %v4504 = vpop.permute.xlu0 %4503
      %4505 = vrot.lane.b32.xlu0 %v4498, 1
      %v4506 = vpop.permute.xlu0 %4505
      %4507 = vrot.lane.b32.xlu0 %v4499, 1
      %v4508 = vpop.permute.xlu0 %4507
      %v4509 = vrot.slane %v4504, 4
      %v4510 = vrot.slane %v4506, 4
      %v4511 = vrot.slane %v4508, 4
      %v4512 = vsel %vm258, %v4509, %v4510
      %v4513 = vsel %vm524, %v4504, %v4512
      %v4514 = vsel %vm258, %v4510, %v4511
      %v4515 = vsel %vm524, %v4506, %v4514
      %4518 = vst [vmem:[#allocation3 + $0xb0] sm:$0xff] %v4513
      %4519 = vst [vmem:[#allocation3 + $0xb8] sm:$0xff] %v4515
      %v4520 = vld [vmem:[#allocation2 + $0x4] sm:$0xff]
      %v4521 = vld [vmem:[#allocation2 + $0xc] sm:$0xff]
      %4522 = vst [vmem:[#allocation3 + $0xc0] sm:$0xff] %v4520
      %4523 = vst [vmem:[#allocation3 + $0xc8] sm:$0xff] %v4521
      %v4524 = vld [vmem:[#allocation2 + $0x4] sm:$0xff]
      %v4525 = vld [vmem:[#allocation2 + $0xc] sm:$0xff]
      %v4526 = vld [vmem:[#allocation2 + $0x14] sm:$0xf]
      %4530 = vrot.lane.b32.xlu0 %v4524, 127
      %v4531 = vpop.permute.xlu0 %4530
      %4532 = vrot.lane.b32.xlu0 %v4525, 127
      %v4533 = vpop.permute.xlu0 %4532
      %4534 = vrot.lane.b32.xlu0 %v4526, 127
      %v4535 = vpop.permute.xlu0 %4534
      %v4536 = vrot.slane %v4531, 4
      %v4537 = vrot.slane %v4533, 4
      %v4538 = vrot.slane %v4535, 4
      %v4539 = vsel %vm258, %v4536, %v4537
      %v4540 = vsel %vm552, %v4531, %v4539
      %v4541 = vsel %vm258, %v4537, %v4538
      %v4542 = vsel %vm552, %v4533, %v4541
      %4545 = vst [vmem:[#allocation3 + $0xd0] sm:$0xff] %v4540
      %4546 = vst [vmem:[#allocation3 + $0xd8] sm:$0xff] %v4542
      %v4547 = vld [vmem:[#allocation2 + $0x4] sm:$0xff]
      %v4548 = vld [vmem:[#allocation2 + $0xc] sm:$0xff]
      %v4549 = vld [vmem:[#allocation2 + $0x14] sm:$0xf]
      %4553 = vrot.lane.b32.xlu0 %v4547, 126
      %v4554 = vpop.permute.xlu0 %4553
      %4555 = vrot.lane.b32.xlu0 %v4548, 126
      %v4556 = vpop.permute.xlu0 %4555
      %4557 = vrot.lane.b32.xlu0 %v4549, 126
      %v4558 = vpop.permute.xlu0 %4557
      %v4559 = vrot.slane %v4554, 4
      %v4560 = vrot.slane %v4556, 4
      %v4561 = vrot.slane %v4558, 4
      %v4562 = vsel %vm258, %v4559, %v4560
      %v4563 = vsel %vm576, %v4554, %v4562
      %v4564 = vsel %vm258, %v4560, %v4561
      %v4565 = vsel %vm576, %v4556, %v4564
      %4568 = vst [vmem:[#allocation3 + $0xe0] sm:$0xff] %v4563
      %4569 = vst [vmem:[#allocation3 + $0xe8] sm:$0xff] %v4565
      %v4570 = vld [vmem:[#allocation2 + $0x4] sm:$0xff]
      %v4571 = vld [vmem:[#allocation2 + $0xc] sm:$0xff]
      %v4572 = vld [vmem:[#allocation2 + $0x14] sm:$0xf]
      %4576 = vrot.lane.b32.xlu0 %v4570, 110
      %v4577 = vpop.permute.xlu0 %4576
      %4578 = vrot.lane.b32.xlu0 %v4571, 110
      %v4579 = vpop.permute.xlu0 %4578
      %4580 = vrot.lane.b32.xlu0 %v4572, 110
      %v4581 = vpop.permute.xlu0 %4580
      %v4582 = vrot.slane %v4577, 4
      %v4583 = vrot.slane %v4579, 4
      %v4584 = vrot.slane %v4581, 4
      %v4585 = vsel %vm258, %v4582, %v4583
      %v4586 = vsel %vm600, %v4577, %v4585
      %v4587 = vsel %vm258, %v4583, %v4584
      %v4588 = vsel %vm600, %v4579, %v4587
      %4591 = vst [vmem:[#allocation3 + $0xf0] sm:$0xff] %v4586
      %4592 = vst [vmem:[#allocation3 + $0xf8] sm:$0xff] %v4588
      %v4593 = vld [vmem:[#allocation2 + $0x4] sm:$0xff]
      %v4594 = vld [vmem:[#allocation2 + $0xc] sm:$0xff]
      %v4595 = vld [vmem:[#allocation2 + $0x14] sm:$0xf]
      %4599 = vrot.lane.b32.xlu0 %v4593, 109
      %v4600 = vpop.permute.xlu0 %4599
      %4601 = vrot.lane.b32.xlu0 %v4594, 109
      %v4602 = vpop.permute.xlu0 %4601
      %4603 = vrot.lane.b32.xlu0 %v4595, 109
      %v4604 = vpop.permute.xlu0 %4603
      %v4605 = vrot.slane %v4600, 4
      %v4606 = vrot.slane %v4602, 4
      %v4607 = vrot.slane %v4604, 4
      %v4608 = vsel %vm258, %v4605, %v4606
      %v4609 = vsel %vm624, %v4600, %v4608
      %v4610 = vsel %vm258, %v4606, %v4607
      %v4611 = vsel %vm624, %v4602, %v4610
      %4614 = vst [vmem:[#allocation3 + $0x100] sm:$0xff] %v4609
      %4615 = vst [vmem:[#allocation3 + $0x108] sm:$0xff] %v4611
      %v4616 = vld [vmem:[#allocation2 + $0x4] sm:$0xff]
      %v4617 = vld [vmem:[#allocation2 + $0xc] sm:$0xff]
      %v4618 = vld [vmem:[#allocation2 + $0x14] sm:$0xf]
      %4622 = vrot.lane.b32.xlu0 %v4616, 108
      %v4623 = vpop.permute.xlu0 %4622
      %4624 = vrot.lane.b32.xlu0 %v4617, 108
      %v4625 = vpop.permute.xlu0 %4624
      %4626 = vrot.lane.b32.xlu0 %v4618, 108
      %v4627 = vpop.permute.xlu0 %4626
      %v4628 = vrot.slane %v4623, 4
      %v4629 = vrot.slane %v4625, 4
      %v4630 = vrot.slane %v4627, 4
      %v4631 = vsel %vm258, %v4628, %v4629
      %v4632 = vsel %vm648, %v4623, %v4631
      %v4633 = vsel %vm258, %v4629, %v4630
      %v4634 = vsel %vm648, %v4625, %v4633
      %4637 = vst [vmem:[#allocation3 + $0x110] sm:$0xff] %v4632
      %4638 = vst [vmem:[#allocation3 + $0x118] sm:$0xff] %v4634
      %v4639 = vld [vmem:[#allocation2 + $0x4] sm:$0xff]
      %v4640 = vld [vmem:[#allocation2 + $0xc] sm:$0xff]
      %v4641 = vld [vmem:[#allocation2 + $0x14] sm:$0xf]
      %4645 = vrot.lane.b32.xlu0 %v4639, 107
      %v4646 = vpop.permute.xlu0 %4645
      %4647 = vrot.lane.b32.xlu0 %v4640, 107
      %v4648 = vpop.permute.xlu0 %4647
      %4649 = vrot.lane.b32.xlu0 %v4641, 107
      %v4650 = vpop.permute.xlu0 %4649
      %v4651 = vrot.slane %v4646, 4
      %v4652 = vrot.slane %v4648, 4
      %v4653 = vrot.slane %v4650, 4
      %v4654 = vsel %vm258, %v4651, %v4652
      %v4655 = vsel %vm672, %v4646, %v4654
      %v4656 = vsel %vm258, %v4652, %v4653
      %v4657 = vsel %vm672, %v4648, %v4656
      %4660 = vst [vmem:[#allocation3 + $0x120] sm:$0xff] %v4655
      %4661 = vst [vmem:[#allocation3 + $0x128] sm:$0xff] %v4657
      %v4662 = vld [vmem:[#allocation2 + $0x4] sm:$0xff]
      %v4663 = vld [vmem:[#allocation2 + $0xc] sm:$0xff]
      %v4664 = vld [vmem:[#allocation2 + $0x14] sm:$0xf]
      %4668 = vrot.lane.b32.xlu0 %v4662, 106
      %v4669 = vpop.permute.xlu0 %4668
      %4670 = vrot.lane.b32.xlu0 %v4663, 106
      %v4671 = vpop.permute.xlu0 %4670
      %4672 = vrot.lane.b32.xlu0 %v4664, 106
      %v4673 = vpop.permute.xlu0 %4672
      %v4674 = vrot.slane %v4669, 4
      %v4675 = vrot.slane %v4671, 4
      %v4676 = vrot.slane %v4673, 4
      %v4677 = vsel %vm258, %v4674, %v4675
      %v4678 = vsel %vm696, %v4669, %v4677
      %v4679 = vsel %vm258, %v4675, %v4676
      %v4680 = vsel %vm696, %v4671, %v4679
      %4683 = vst [vmem:[#allocation3 + $0x130] sm:$0xff] %v4678
      %4684 = vst [vmem:[#allocation3 + $0x138] sm:$0xff] %v4680
      %v4685 = vld [vmem:[#allocation2 + $0x4] sm:$0xff]
      %v4686 = vld [vmem:[#allocation2 + $0xc] sm:$0xff]
      %v4687 = vld [vmem:[#allocation2 + $0x14] sm:$0xf]
      %4691 = vrot.lane.b32.xlu0 %v4685, 90
      %v4692 = vpop.permute.xlu0 %4691
      %4693 = vrot.lane.b32.xlu0 %v4686, 90
      %v4694 = vpop.permute.xlu0 %4693
      %4695 = vrot.lane.b32.xlu0 %v4687, 90
      %v4696 = vpop.permute.xlu0 %4695
      %v4697 = vrot.slane %v4692, 4
      %v4698 = vrot.slane %v4694, 4
      %v4699 = vrot.slane %v4696, 4
      %v4700 = vsel %vm258, %v4697, %v4698
      %v4701 = vsel %vm720, %v4692, %v4700
      %v4702 = vsel %vm258, %v4698, %v4699
      %v4703 = vsel %vm720, %v4694, %v4702
      %4706 = vst [vmem:[#allocation3 + $0x140] sm:$0xff] %v4701
      %4707 = vst [vmem:[#allocation3 + $0x148] sm:$0xff] %v4703
      %v4708 = vld [vmem:[#allocation2 + $0x4] sm:$0xff]
      %v4709 = vld [vmem:[#allocation2 + $0xc] sm:$0xff]
      %v4710 = vld [vmem:[#allocation2 + $0x14] sm:$0xf]
      %4714 = vrot.lane.b32.xlu0 %v4708, 89
      %v4715 = vpop.permute.xlu0 %4714
      %4716 = vrot.lane.b32.xlu0 %v4709, 89
      %v4717 = vpop.permute.xlu0 %4716
      %4718 = vrot.lane.b32.xlu0 %v4710, 89
      %v4719 = vpop.permute.xlu0 %4718
      %v4720 = vrot.slane %v4715, 4
      %v4721 = vrot.slane %v4717, 4
      %v4722 = vrot.slane %v4719, 4
      %v4723 = vsel %vm258, %v4720, %v4721
      %v4724 = vsel %vm744, %v4715, %v4723
      %v4725 = vsel %vm258, %v4721, %v4722
      %v4726 = vsel %vm744, %v4717, %v4725
      %4729 = vst [vmem:[#allocation3 + $0x150] sm:$0xff] %v4724
      %4730 = vst [vmem:[#allocation3 + $0x158] sm:$0xff] %v4726
      %v4731 = vld [vmem:[#allocation2 + $0x4] sm:$0xff]
      %v4732 = vld [vmem:[#allocation2 + $0xc] sm:$0xff]
      %v4733 = vld [vmem:[#allocation2 + $0x14] sm:$0xf]
      %4737 = vrot.lane.b32.xlu0 %v4731, 88
      %v4738 = vpop.permute.xlu0 %4737
      %4739 = vrot.lane.b32.xlu0 %v4732, 88
      %v4740 = vpop.permute.xlu0 %4739
      %4741 = vrot.lane.b32.xlu0 %v4733, 88
      %v4742 = vpop.permute.xlu0 %4741
      %v4743 = vrot.slane %v4738, 4
      %v4744 = vrot.slane %v4740, 4
      %v4745 = vrot.slane %v4742, 4
      %v4746 = vsel %vm258, %v4743, %v4744
      %v4747 = vsel %vm768, %v4738, %v4746
      %v4748 = vsel %vm258, %v4744, %v4745
      %v4749 = vsel %vm768, %v4740, %v4748
      %4752 = vst [vmem:[#allocation3 + $0x160] sm:$0xff] %v4747
      %4753 = vst [vmem:[#allocation3 + $0x168] sm:$0xff] %v4749
      %v4754 = vld [vmem:[#allocation2 + $0x4] sm:$0xff]
      %v4755 = vld [vmem:[#allocation2 + $0xc] sm:$0xff]
      %v4756 = vld [vmem:[#allocation2 + $0x14] sm:$0xf]
      %4760 = vrot.lane.b32.xlu0 %v4754, 87
      %v4761 = vpop.permute.xlu0 %4760
      %4762 = vrot.lane.b32.xlu0 %v4755, 87
      %v4763 = vpop.permute.xlu0 %4762
      %4764 = vrot.lane.b32.xlu0 %v4756, 87
      %v4765 = vpop.permute.xlu0 %4764
      %v4766 = vrot.slane %v4761, 4
      %v4767 = vrot.slane %v4763, 4
      %v4768 = vrot.slane %v4765, 4
      %v4769 = vsel %vm258, %v4766, %v4767
      %v4770 = vsel %vm792, %v4761, %v4769
      %v4771 = vsel %vm258, %v4767, %v4768
      %v4772 = vsel %vm792, %v4763, %v4771
      %4775 = vst [vmem:[#allocation3 + $0x170] sm:$0xff] %v4770
      %4776 = vst [vmem:[#allocation3 + $0x178] sm:$0xff] %v4772
      %v4777 = vld [vmem:[#allocation2 + $0x4] sm:$0xff]
      %v4778 = vld [vmem:[#allocation2 + $0xc] sm:$0xff]
      %v4779 = vld [vmem:[#allocation2 + $0x14] sm:$0xf]
      %4783 = vrot.lane.b32.xlu0 %v4777, 86
      %v4784 = vpop.permute.xlu0 %4783
      %4785 = vrot.lane.b32.xlu0 %v4778, 86
      %v4786 = vpop.permute.xlu0 %4785
      %4787 = vrot.lane.b32.xlu0 %v4779, 86
      %v4788 = vpop.permute.xlu0 %4787
      %v4789 = vrot.slane %v4784, 4
      %v4790 = vrot.slane %v4786, 4
      %v4791 = vrot.slane %v4788, 4
      %v4792 = vsel %vm258, %v4789, %v4790
      %v4793 = vsel %vm816, %v4784, %v4792
      %v4794 = vsel %vm258, %v4790, %v4791
      %v4795 = vsel %vm816, %v4786, %v4794
      %4798 = vst [vmem:[#allocation3 + $0x180] sm:$0xff] %v4793
      %4799 = vst [vmem:[#allocation3 + $0x188] sm:$0xff] %v4795
      %s4800 = scalar_lea.vmem %s2, 32
      %v4801 = vld [vmem:[%s4800] sm:$0xff]
      %v4802 = vld [vmem:[#allocation3] sm:$0xff]
      %v4803 = vld [vmem:[#allocation3 + $0x8] sm:$0xff]
      %v4804 = vld [vmem:[#allocation3 + $0x10] sm:$0xff]
      %v4805 = vld [vmem:[#allocation3 + $0x18] sm:$0xff]
      %v4806 = vld [vmem:[#allocation3 + $0x20] sm:$0xff]
      %v4807 = vld [vmem:[#allocation3 + $0x28] sm:$0xff]
      %v4808 = vld [vmem:[#allocation3 + $0x30] sm:$0xff]
      %v4809 = vld [vmem:[#allocation3 + $0x38] sm:$0xff]
      %v4810 = vld [vmem:[#allocation3 + $0x40] sm:$0xff]
      %v4811 = vld [vmem:[#allocation3 + $0x48] sm:$0xff]
      %v4812 = vld [vmem:[#allocation3 + $0x50] sm:$0xff]
      %v4813 = vld [vmem:[#allocation3 + $0x58] sm:$0xff]
      %v4814 = vld [vmem:[#allocation3 + $0x60] sm:$0xff]
      %v4815 = vld [vmem:[#allocation3 + $0x68] sm:$0xff]
      %v4816 = vld [vmem:[#allocation3 + $0x70] sm:$0xff]
      %v4817 = vld [vmem:[#allocation3 + $0x78] sm:$0xff]
      %v4818 = vld [vmem:[#allocation3 + $0x80] sm:$0xff]
      %v4819 = vld [vmem:[#allocation3 + $0x88] sm:$0xff]
      %v4820 = vld [vmem:[#allocation3 + $0x90] sm:$0xff]
      %v4821 = vld [vmem:[#allocation3 + $0x98] sm:$0xff]
      %v4822 = vld [vmem:[#allocation3 + $0xa0] sm:$0xff]
      %v4823 = vld [vmem:[#allocation3 + $0xa8] sm:$0xff]
      %v4824 = vld [vmem:[#allocation3 + $0xb0] sm:$0xff]
      %v4825 = vld [vmem:[#allocation3 + $0xb8] sm:$0xff]
      %v4826 = vld [vmem:[#allocation3 + $0xc0] sm:$0xff]
      %v4827 = vld [vmem:[#allocation3 + $0xc8] sm:$0xff]
      %v4828 = vld [vmem:[#allocation3 + $0xd0] sm:$0xff]
      %v4829 = vld [vmem:[#allocation3 + $0xd8] sm:$0xff]
      %v4830 = vld [vmem:[#allocation3 + $0xe0] sm:$0xff]
      %v4831 = vld [vmem:[#allocation3 + $0xe8] sm:$0xff]
      %v4832 = vld [vmem:[#allocation3 + $0xf0] sm:$0xff]
      %v4833 = vld [vmem:[#allocation3 + $0xf8] sm:$0xff]
      %v4834 = vld [vmem:[#allocation3 + $0x100] sm:$0xff]
      %v4835 = vld [vmem:[#allocation3 + $0x108] sm:$0xff]
      %v4836 = vld [vmem:[#allocation3 + $0x110] sm:$0xff]
      %v4837 = vld [vmem:[#allocation3 + $0x118] sm:$0xff]
      %v4838 = vld [vmem:[#allocation3 + $0x120] sm:$0xff]
      %v4839 = vld [vmem:[#allocation3 + $0x128] sm:$0xff]
      %v4840 = vld [vmem:[#allocation3 + $0x130] sm:$0xff]
      %v4841 = vld [vmem:[#allocation3 + $0x138] sm:$0xff]
      %v4842 = vld [vmem:[#allocation3 + $0x140] sm:$0xff]
      %v4843 = vld [vmem:[#allocation3 + $0x148] sm:$0xff]
      %v4844 = vld [vmem:[#allocation3 + $0x150] sm:$0xff]
      %v4845 = vld [vmem:[#allocation3 + $0x158] sm:$0xff]
      %v4846 = vld [vmem:[#allocation3 + $0x160] sm:$0xff]
      %v4847 = vld [vmem:[#allocation3 + $0x168] sm:$0xff]
      %v4848 = vld [vmem:[#allocation3 + $0x170] sm:$0xff]
      %v4849 = vld [vmem:[#allocation3 + $0x178] sm:$0xff]
      %v4850 = vld [vmem:[#allocation3 + $0x180] sm:$0xff]
      %v4851 = vld [vmem:[#allocation3 + $0x188] sm:$0xff]
      %s4852 = scalar_lea.vmem %s3, 32
      %v4853 = vld [vmem:[%s4852] sm:$0xff]
      %4855 = vset.pattern.permute.xlu0 0
      %4856 = vperm.xlu0 %4855, %v4853
      %v4857 = vpop.permute.xlu0 %4856
      %v4860 = vunpack.c.l.b16 %v4801
      %v4861 = vunpack.c.h.b16 %v4801
      %v4862 = vpack.c.b16 %v4860, %v4860
      %v4863 = vpack.c.b16 %v4861, %v4861
      %v4915 = vunpack.c.l.b16 %v4802
      %v4916 = vunpack.c.h.b16 %v4802
      %v4917 = vunpack.c.l.b16 %v4803
      %v4918 = vunpack.c.h.b16 %v4803
      %v4919 = vunpack.c.l.b16 %v4804
      %v4920 = vunpack.c.h.b16 %v4804
      %v4921 = vunpack.c.l.b16 %v4805
      %v4922 = vunpack.c.h.b16 %v4805
      %v4923 = vunpack.c.l.b16 %v4806
      %v4924 = vunpack.c.h.b16 %v4806
      %v4925 = vunpack.c.l.b16 %v4807
      %v4926 = vunpack.c.h.b16 %v4807
      %v4927 = vunpack.c.l.b16 %v4808
      %v4928 = vunpack.c.h.b16 %v4808
      %v4929 = vunpack.c.l.b16 %v4809
      %v4930 = vunpack.c.h.b16 %v4809
      %v4931 = vunpack.c.l.b16 %v4810
      %v4932 = vunpack.c.h.b16 %v4810
      %v4933 = vunpack.c.l.b16 %v4811
      %v4934 = vunpack.c.h.b16 %v4811
      %v4935 = vunpack.c.l.b16 %v4812
      %v4936 = vunpack.c.h.b16 %v4812
      %v4937 = vunpack.c.l.b16 %v4813
      %v4938 = vunpack.c.h.b16 %v4813
      %v4939 = vunpack.c.l.b16 %v4814
      %v4940 = vunpack.c.h.b16 %v4814
      %v4941 = vunpack.c.l.b16 %v4815
      %v4942 = vunpack.c.h.b16 %v4815
      %v4943 = vunpack.c.l.b16 %v4816
      %v4944 = vunpack.c.h.b16 %v4816
      %v4945 = vunpack.c.l.b16 %v4817
      %v4946 = vunpack.c.h.b16 %v4817
      %v4947 = vunpack.c.l.b16 %v4818
      %v4948 = vunpack.c.h.b16 %v4818
      %v4949 = vunpack.c.l.b16 %v4819
      %v4950 = vunpack.c.h.b16 %v4819
      %v4951 = vunpack.c.l.b16 %v4820
      %v4952 = vunpack.c.h.b16 %v4820
      %v4953 = vunpack.c.l.b16 %v4821
      %v4954 = vunpack.c.h.b16 %v4821
      %v4955 = vunpack.c.l.b16 %v4822
      %v4956 = vunpack.c.h.b16 %v4822
      %v4957 = vunpack.c.l.b16 %v4823
      %v4958 = vunpack.c.h.b16 %v4823
      %v4959 = vunpack.c.l.b16 %v4824
      %v4960 = vunpack.c.h.b16 %v4824
      %v4961 = vunpack.c.l.b16 %v4825
      %v4962 = vunpack.c.h.b16 %v4825
      %v4963 = vunpack.c.l.b16 %v4826
      %v4964 = vunpack.c.h.b16 %v4826
      %v4965 = vunpack.c.l.b16 %v4827
      %v4966 = vunpack.c.h.b16 %v4827
      %v4967 = vunpack.c.l.b16 %v4828
      %v4968 = vunpack.c.h.b16 %v4828
      %v4969 = vunpack.c.l.b16 %v4829
      %v4970 = vunpack.c.h.b16 %v4829
      %v4971 = vunpack.c.l.b16 %v4830
      %v4972 = vunpack.c.h.b16 %v4830
      %v4973 = vunpack.c.l.b16 %v4831
      %v4974 = vunpack.c.h.b16 %v4831
      %v4975 = vunpack.c.l.b16 %v4832
      %v4976 = vunpack.c.h.b16 %v4832
      %v4977 = vunpack.c.l.b16 %v4833
      %v4978 = vunpack.c.h.b16 %v4833
      %v4979 = vunpack.c.l.b16 %v4834
      %v4980 = vunpack.c.h.b16 %v4834
      %v4981 = vunpack.c.l.b16 %v4835
      %v4982 = vunpack.c.h.b16 %v4835
      %v4983 = vunpack.c.l.b16 %v4836
      %v4984 = vunpack.c.h.b16 %v4836
      %v4985 = vunpack.c.l.b16 %v4837
      %v4986 = vunpack.c.h.b16 %v4837
      %v4987 = vunpack.c.l.b16 %v4838
      %v4988 = vunpack.c.h.b16 %v4838
      %v4989 = vunpack.c.l.b16 %v4839
      %v4990 = vunpack.c.h.b16 %v4839
      %v4991 = vunpack.c.l.b16 %v4840
      %v4992 = vunpack.c.h.b16 %v4840
      %v4993 = vunpack.c.l.b16 %v4841
      %v4994 = vunpack.c.h.b16 %v4841
      %v4995 = vunpack.c.l.b16 %v4842
      %v4996 = vunpack.c.h.b16 %v4842
      %v4997 = vunpack.c.l.b16 %v4843
      %v4998 = vunpack.c.h.b16 %v4843
      %v4999 = vunpack.c.l.b16 %v4844
      %v5000 = vunpack.c.h.b16 %v4844
      %v5001 = vunpack.c.l.b16 %v4845
      %v5002 = vunpack.c.h.b16 %v4845
      %v5003 = vunpack.c.l.b16 %v4846
      %v5004 = vunpack.c.h.b16 %v4846
      %v5005 = vunpack.c.l.b16 %v4847
      %v5006 = vunpack.c.h.b16 %v4847
      %v5007 = vunpack.c.l.b16 %v4848
      %v5008 = vunpack.c.h.b16 %v4848
      %v5009 = vunpack.c.l.b16 %v4849
      %v5010 = vunpack.c.h.b16 %v4849
      %v5011 = vunpack.c.l.b16 %v4850
      %v5012 = vunpack.c.h.b16 %v4850
      %v5013 = vunpack.c.l.b16 %v4851
      %v5014 = vunpack.c.h.b16 %v4851
      %v5015 = vpack.c.b16 %v4919, %v4915
      %v5016 = vpack.c.b16 %v4920, %v4916
      %v5017 = vpack.c.b16 %v4921, %v4917
      %v5018 = vpack.c.b16 %v4922, %v4918
      %v5019 = vpack.c.b16 %v4927, %v4923
      %v5020 = vpack.c.b16 %v4928, %v4924
      %v5021 = vpack.c.b16 %v4929, %v4925
      %v5022 = vpack.c.b16 %v4930, %v4926
      %v5023 = vpack.c.b16 %v4935, %v4931
      %v5024 = vpack.c.b16 %v4936, %v4932
      %v5025 = vpack.c.b16 %v4937, %v4933
      %v5026 = vpack.c.b16 %v4938, %v4934
      %v5027 = vpack.c.b16 %v4943, %v4939
      %v5028 = vpack.c.b16 %v4944, %v4940
      %v5029 = vpack.c.b16 %v4945, %v4941
      %v5030 = vpack.c.b16 %v4946, %v4942
      %v5031 = vpack.c.b16 %v4951, %v4947
      %v5032 = vpack.c.b16 %v4952, %v4948
      %v5033 = vpack.c.b16 %v4953, %v4949
      %v5034 = vpack.c.b16 %v4954, %v4950
      %v5035 = vpack.c.b16 %v4959, %v4955
      %v5036 = vpack.c.b16 %v4960, %v4956
      %v5037 = vpack.c.b16 %v4961, %v4957
      %v5038 = vpack.c.b16 %v4962, %v4958
      %v5039 = vpack.c.b16 %v4967, %v4963
      %v5040 = vpack.c.b16 %v4968, %v4964
      %v5041 = vpack.c.b16 %v4969, %v4965
      %v5042 = vpack.c.b16 %v4970, %v4966
      %v5043 = vpack.c.b16 %v4975, %v4971
      %v5044 = vpack.c.b16 %v4976, %v4972
      %v5045 = vpack.c.b16 %v4977, %v4973
      %v5046 = vpack.c.b16 %v4978, %v4974
      %v5047 = vpack.c.b16 %v4983, %v4979
      %v5048 = vpack.c.b16 %v4984, %v4980
      %v5049 = vpack.c.b16 %v4985, %v4981
      %v5050 = vpack.c.b16 %v4986, %v4982
      %v5051 = vpack.c.b16 %v4991, %v4987
      %v5052 = vpack.c.b16 %v4992, %v4988
      %v5053 = vpack.c.b16 %v4993, %v4989
      %v5054 = vpack.c.b16 %v4994, %v4990
      %v5055 = vpack.c.b16 %v4999, %v4995
      %v5056 = vpack.c.b16 %v5000, %v4996
      %v5057 = vpack.c.b16 %v5001, %v4997
      %v5058 = vpack.c.b16 %v5002, %v4998
      %v5059 = vpack.c.b16 %v5007, %v5003
      %v5060 = vpack.c.b16 %v5008, %v5004
      %v5061 = vpack.c.b16 %v5009, %v5005
      %v5062 = vpack.c.b16 %v5010, %v5006
      %v5063 = vpack.c.b16 %v5011, %v5011
      %v5064 = vpack.c.b16 %v5012, %v5012
      %v5065 = vpack.c.b16 %v5013, %v5013
      %v5066 = vpack.c.b16 %v5014, %v5014
      %v5116 = vsel %vm1137, %v4863, 0
      %v5119 = vsel %vm1141, %v5063, 0
      %v5122 = vsel %vm1141, %v5064, 0
      %v5125 = vsel %vm1141, %v5065, 0
      %v5128 = vsel %vm1141, %v5066, 0
      %5130 = vmatprep.subr.bf16.mxu0 %v5044
      %5131 = vmatpush1.bf16.msra.mxu0 %v5043
      %5132 = vmatprep.subr.bf16.mxu0 %v5040
      %5133 = vmatpush1.bf16.msra.mxu0 %v5039
      %5134 = vmatprep.subr.bf16.mxu0 %v5036
      %5135 = vmatpush1.bf16.msra.mxu0 %v5035
      %5136 = vmatprep.subr.bf16.mxu0 %v5032
      %5137 = vmatpush1.bf16.msra.mxu0 %v5031
      %5138 = vmatprep.subr.bf16.mxu0 %v5028
      %5139 = vmatpush1.bf16.msra.mxu0 %v5027
      %5140 = vmatprep.subr.bf16.mxu0 %v5024
      %5141 = vmatpush1.bf16.msra.mxu0 %v5023
      %5142 = vmatprep.subr.bf16.mxu0 %v5020
      %5143 = vmatpush1.bf16.msra.mxu0 %v5019
      %5144 = vmatprep.subr.bf16.mxu0 %v5016
      %5145 = vmatpush1.bf16.msra.mxu0 %v5015
      %5146 = vmatprep.subr.bf16.mxu0 0
      %5147 = vmatpush2.bf16.msra.mxu0 0
      %5148 = vmatprep.subr.bf16.mxu0 0
      %5149 = vmatpush2.bf16.msra.mxu0 0
      %5150 = vmatprep.subr.bf16.mxu0 0
      %5151 = vmatpush2.bf16.msra.mxu0 0
      %5152 = vmatprep.subr.bf16.mxu0 %v5122
      %5153 = vmatpush2.bf16.msra.mxu0 %v5119
      %5154 = vmatprep.subr.bf16.mxu0 %v5060
      %5155 = vmatpush2.bf16.msra.mxu0 %v5059
      %5156 = vmatprep.subr.bf16.mxu0 %v5056
      %5157 = vmatpush2.bf16.msra.mxu0 %v5055
      %5158 = vmatprep.subr.bf16.mxu0 %v5052
      %5159 = vmatpush2.bf16.msra.mxu0 %v5051
      %5160 = vmatprep.subr.bf16.mxu0 %v5048
      %5161 = vmatpush2.bf16.msra.mxu0 %v5047
      %5162 = vmatprep.mubr.bf16.mxu0 %v5116
      %5163 = vmatmul.mubr.bf16.gmra.mxu0 %v4862
      %v5164 = vpop.f32.mrf.mxu0
      %v5165 = vadd.f32 %v4857, %v5164
      %v5166 = vpop.f32.mrf.mxu0
      %v5167 = vadd.f32 %v4857, %v5166
      %v5168 = vpop.f32.mrf.mxu0
      %v5169 = vpop.f32.mrf.mxu0
      %5170 = vdwg.mxu0
      %5171 = vmatprep.subr.bf16.mxu0 %v5046
      %5172 = vmatpush1.bf16.msra.mxu0 %v5045
      %5173 = vmatprep.subr.bf16.mxu0 %v5042
      %5174 = vmatpush1.bf16.msra.mxu0 %v5041
      %5175 = vmatprep.subr.bf16.mxu0 %v5038
      %5176 = vmatpush1.bf16.msra.mxu0 %v5037
      %5177 = vmatprep.subr.bf16.mxu0 %v5034
      %5178 = vmatpush1.bf16.msra.mxu0 %v5033
      %5179 = vmatprep.subr.bf16.mxu0 %v5030
      %5180 = vmatpush1.bf16.msra.mxu0 %v5029
      %5181 = vmatprep.subr.bf16.mxu0 %v5026
      %5182 = vmatpush1.bf16.msra.mxu0 %v5025
      %5183 = vmatprep.subr.bf16.mxu0 %v5022
      %5184 = vmatpush1.bf16.msra.mxu0 %v5021
      %5185 = vmatprep.subr.bf16.mxu0 %v5018
      %5186 = vmatpush1.bf16.msra.mxu0 %v5017
      %5187 = vmatprep.subr.bf16.mxu0 0
      %5188 = vmatpush2.bf16.msra.mxu0 0
      %5189 = vmatprep.subr.bf16.mxu0 0
      %5190 = vmatpush2.bf16.msra.mxu0 0
      %5191 = vmatprep.subr.bf16.mxu0 0
      %5192 = vmatpush2.bf16.msra.mxu0 0
      %5193 = vmatprep.subr.bf16.mxu0 %v5128
      %5194 = vmatpush2.bf16.msra.mxu0 %v5125
      %5195 = vmatprep.subr.bf16.mxu0 %v5062
      %5196 = vmatpush2.bf16.msra.mxu0 %v5061
      %5197 = vmatprep.subr.bf16.mxu0 %v5058
      %5198 = vmatpush2.bf16.msra.mxu0 %v5057
      %5199 = vmatprep.subr.bf16.mxu0 %v5054
      %5200 = vmatpush2.bf16.msra.mxu0 %v5053
      %5201 = vmatprep.subr.bf16.mxu0 %v5050
      %5202 = vmatpush2.bf16.msra.mxu0 %v5049
      %5203 = vmatprep.mubr.bf16.mxu0 %v5116
      %5204 = vmatmul.mubr.bf16.gmra.mxu0 %v4862
      %v5205 = vpop.f32.mrf.mxu0
      %v5206 = vadd.f32 %v4857, %v5205
      %v5207 = vpop.f32.mrf.mxu0
      %v5208 = vadd.f32 %v4857, %v5207
      %v5209 = vpop.f32.mrf.mxu0
      %v5210 = vpop.f32.mrf.mxu0
      %5211 = vdwg.mxu0
      %v5212 = vmul.f32 %v5165, %v204
      %v5213 = vmul.f32 %v5167, %v208
      %v5214 = vmul.f32 %v5206, %v212
      %v5215 = vmul.f32 %v5208, %v216
      %v5216 = vmax.f32 %v5212, 0.0
      %v5217 = vmax.f32 %v5213, 0.0
      %v5218 = vmax.f32 %v5214, 0.0
      %v5219 = vmax.f32 %v5215, 0.0
      %v5220 = vpack.c.bf16 %v5216, %v5216
      %v5221 = vpack.c.bf16 %v5217, %v5217
      %v5222 = vpack.c.bf16 %v5218, %v5218
      %v5223 = vpack.c.bf16 %v5219, %v5219
      %v5228 = vunpack.c.l.b16 %v5220
      %v5229 = vunpack.c.l.b16 %v5221
      %v5230 = vunpack.c.l.b16 %v5222
      %v5231 = vunpack.c.l.b16 %v5223
      %v5232 = vpack.c.b16 %v5229, %v5228
      %v5233 = vpack.c.b16 %v5231, %v5230
      %5236 = vst [vmem:[#allocation2 + $0x4] sm:$0xff] %v5232
      %5237 = vst [vmem:[#allocation2 + $0xc] sm:$0xff] %v5233
      %v5238 = vld [vmem:[#allocation2] sm:$0xff]
      %v5239 = vld [vmem:[#allocation2 + $0x8] sm:$0xff]
      %v5240 = vld [vmem:[#allocation2 + $0x10] sm:$0xf]
      %5244 = vrot.lane.b32.xlu0 %v5238, 42
      %v5245 = vpop.permute.xlu0 %5244
      %5246 = vrot.lane.b32.xlu0 %v5239, 42
      %v5247 = vpop.permute.xlu0 %5246
      %5248 = vrot.lane.b32.xlu0 %v5240, 42
      %v5249 = vpop.permute.xlu0 %5248
      %v5250 = vrot.slane %v5245, 4
      %v5251 = vrot.slane %v5247, 4
      %v5252 = vrot.slane %v5249, 4
      %v5253 = vsel %vm258, %v5250, %v5251
      %v5254 = vsel %vm260, %v5245, %v5253
      %v5255 = vsel %vm258, %v5251, %v5252
      %v5256 = vsel %vm260, %v5247, %v5255
      %5259 = vst [vmem:[#allocation3] sm:$0xff] %v5254
      %5260 = vst [vmem:[#allocation3 + $0x8] sm:$0xff] %v5256
      %v5261 = vld [vmem:[#allocation2] sm:$0xff]
      %v5262 = vld [vmem:[#allocation2 + $0x8] sm:$0xff]
      %v5263 = vld [vmem:[#allocation2 + $0x10] sm:$0xf]
      %5267 = vrot.lane.b32.xlu0 %v5261, 41
      %v5268 = vpop.permute.xlu0 %5267
      %5269 = vrot.lane.b32.xlu0 %v5262, 41
      %v5270 = vpop.permute.xlu0 %5269
      %5271 = vrot.lane.b32.xlu0 %v5263, 41
      %v5272 = vpop.permute.xlu0 %5271
      %v5273 = vrot.slane %v5268, 4
      %v5274 = vrot.slane %v5270, 4
      %v5275 = vrot.slane %v5272, 4
      %v5276 = vsel %vm258, %v5273, %v5274
      %v5277 = vsel %vm284, %v5268, %v5276
      %v5278 = vsel %vm258, %v5274, %v5275
      %v5279 = vsel %vm284, %v5270, %v5278
      %5282 = vst [vmem:[#allocation3 + $0x10] sm:$0xff] %v5277
      %5283 = vst [vmem:[#allocation3 + $0x18] sm:$0xff] %v5279
      %v5284 = vld [vmem:[#allocation2] sm:$0xff]
      %v5285 = vld [vmem:[#allocation2 + $0x8] sm:$0xff]
      %v5286 = vld [vmem:[#allocation2 + $0x10] sm:$0xf]
      %5290 = vrot.lane.b32.xlu0 %v5284, 40
      %v5291 = vpop.permute.xlu0 %5290
      %5292 = vrot.lane.b32.xlu0 %v5285, 40
      %v5293 = vpop.permute.xlu0 %5292
      %5294 = vrot.lane.b32.xlu0 %v5286, 40
      %v5295 = vpop.permute.xlu0 %5294
      %v5296 = vrot.slane %v5291, 4
      %v5297 = vrot.slane %v5293, 4
      %v5298 = vrot.slane %v5295, 4
      %v5299 = vsel %vm258, %v5296, %v5297
      %v5300 = vsel %vm308, %v5291, %v5299
      %v5301 = vsel %vm258, %v5297, %v5298
      %v5302 = vsel %vm308, %v5293, %v5301
      %5305 = vst [vmem:[#allocation3 + $0x20] sm:$0xff] %v5300
      %5306 = vst [vmem:[#allocation3 + $0x28] sm:$0xff] %v5302
      %v5307 = vld [vmem:[#allocation2] sm:$0xff]
      %v5308 = vld [vmem:[#allocation2 + $0x8] sm:$0xff]
      %v5309 = vld [vmem:[#allocation2 + $0x10] sm:$0xf]
      %5313 = vrot.lane.b32.xlu0 %v5307, 39
      %v5314 = vpop.permute.xlu0 %5313
      %5315 = vrot.lane.b32.xlu0 %v5308, 39
      %v5316 = vpop.permute.xlu0 %5315
      %5317 = vrot.lane.b32.xlu0 %v5309, 39
      %v5318 = vpop.permute.xlu0 %5317
      %v5319 = vrot.slane %v5314, 4
      %v5320 = vrot.slane %v5316, 4
      %v5321 = vrot.slane %v5318, 4
      %v5322 = vsel %vm258, %v5319, %v5320
      %v5323 = vsel %vm332, %v5314, %v5322
      %v5324 = vsel %vm258, %v5320, %v5321
      %v5325 = vsel %vm332, %v5316, %v5324
      %5328 = vst [vmem:[#allocation3 + $0x30] sm:$0xff] %v5323
      %5329 = vst [vmem:[#allocation3 + $0x38] sm:$0xff] %v5325
      %v5330 = vld [vmem:[#allocation2] sm:$0xff]
      %v5331 = vld [vmem:[#allocation2 + $0x8] sm:$0xff]
      %v5332 = vld [vmem:[#allocation2 + $0x10] sm:$0xf]
      %5336 = vrot.lane.b32.xlu0 %v5330, 38
      %v5337 = vpop.permute.xlu0 %5336
      %5338 = vrot.lane.b32.xlu0 %v5331, 38
      %v5339 = vpop.permute.xlu0 %5338
      %5340 = vrot.lane.b32.xlu0 %v5332, 38
      %v5341 = vpop.permute.xlu0 %5340
      %v5342 = vrot.slane %v5337, 4
      %v5343 = vrot.slane %v5339, 4
      %v5344 = vrot.slane %v5341, 4
      %v5345 = vsel %vm258, %v5342, %v5343
      %v5346 = vsel %vm356, %v5337, %v5345
      %v5347 = vsel %vm258, %v5343, %v5344
      %v5348 = vsel %vm356, %v5339, %v5347
      %5351 = vst [vmem:[#allocation3 + $0x40] sm:$0xff] %v5346
      %5352 = vst [vmem:[#allocation3 + $0x48] sm:$0xff] %v5348
      %v5353 = vld [vmem:[#allocation2] sm:$0xff]
      %v5354 = vld [vmem:[#allocation2 + $0x8] sm:$0xff]
      %v5355 = vld [vmem:[#allocation2 + $0x10] sm:$0xf]
      %5359 = vrot.lane.b32.xlu0 %v5353, 22
      %v5360 = vpop.permute.xlu0 %5359
      %5361 = vrot.lane.b32.xlu0 %v5354, 22
      %v5362 = vpop.permute.xlu0 %5361
      %5363 = vrot.lane.b32.xlu0 %v5355, 22
      %v5364 = vpop.permute.xlu0 %5363
      %v5365 = vrot.slane %v5360, 4
      %v5366 = vrot.slane %v5362, 4
      %v5367 = vrot.slane %v5364, 4
      %v5368 = vsel %vm258, %v5365, %v5366
      %v5369 = vsel %vm380, %v5360, %v5368
      %v5370 = vsel %vm258, %v5366, %v5367
      %v5371 = vsel %vm380, %v5362, %v5370
      %5374 = vst [vmem:[#allocation3 + $0x50] sm:$0xff] %v5369
      %5375 = vst [vmem:[#allocation3 + $0x58] sm:$0xff] %v5371
      %v5376 = vld [vmem:[#allocation2] sm:$0xff]
      %v5377 = vld [vmem:[#allocation2 + $0x8] sm:$0xff]
      %v5378 = vld [vmem:[#allocation2 + $0x10] sm:$0xf]
      %5382 = vrot.lane.b32.xlu0 %v5376, 21
      %v5383 = vpop.permute.xlu0 %5382
      %5384 = vrot.lane.b32.xlu0 %v5377, 21
      %v5385 = vpop.permute.xlu0 %5384
      %5386 = vrot.lane.b32.xlu0 %v5378, 21
      %v5387 = vpop.permute.xlu0 %5386
      %v5388 = vrot.slane %v5383, 4
      %v5389 = vrot.slane %v5385, 4
      %v5390 = vrot.slane %v5387, 4
      %v5391 = vsel %vm258, %v5388, %v5389
      %v5392 = vsel %vm404, %v5383, %v5391
      %v5393 = vsel %vm258, %v5389, %v5390
      %v5394 = vsel %vm404, %v5385, %v5393
      %5397 = vst [vmem:[#allocation3 + $0x60] sm:$0xff] %v5392
      %5398 = vst [vmem:[#allocation3 + $0x68] sm:$0xff] %v5394
      %v5399 = vld [vmem:[#allocation2] sm:$0xff]
      %v5400 = vld [vmem:[#allocation2 + $0x8] sm:$0xff]
      %v5401 = vld [vmem:[#allocation2 + $0x10] sm:$0xf]
      %5405 = vrot.lane.b32.xlu0 %v5399, 20
      %v5406 = vpop.permute.xlu0 %5405
      %5407 = vrot.lane.b32.xlu0 %v5400, 20
      %v5408 = vpop.permute.xlu0 %5407
      %5409 = vrot.lane.b32.xlu0 %v5401, 20
      %v5410 = vpop.permute.xlu0 %5409
      %v5411 = vrot.slane %v5406, 4
      %v5412 = vrot.slane %v5408, 4
      %v5413 = vrot.slane %v5410, 4
      %v5414 = vsel %vm258, %v5411, %v5412
      %v5415 = vsel %vm428, %v5406, %v5414
      %v5416 = vsel %vm258, %v5412, %v5413
      %v5417 = vsel %vm428, %v5408, %v5416
      %5420 = vst [vmem:[#allocation3 + $0x70] sm:$0xff] %v5415
      %5421 = vst [vmem:[#allocation3 + $0x78] sm:$0xff] %v5417
      %v5422 = vld [vmem:[#allocation2] sm:$0xff]
      %v5423 = vld [vmem:[#allocation2 + $0x8] sm:$0xff]
      %v5424 = vld [vmem:[#allocation2 + $0x10] sm:$0xf]
      %5428 = vrot.lane.b32.xlu0 %v5422, 19
      %v5429 = vpop.permute.xlu0 %5428
      %5430 = vrot.lane.b32.xlu0 %v5423, 19
      %v5431 = vpop.permute.xlu0 %5430
      %5432 = vrot.lane.b32.xlu0 %v5424, 19
      %v5433 = vpop.permute.xlu0 %5432
      %v5434 = vrot.slane %v5429, 4
      %v5435 = vrot.slane %v5431, 4
      %v5436 = vrot.slane %v5433, 4
      %v5437 = vsel %vm258, %v5434, %v5435
      %v5438 = vsel %vm452, %v5429, %v5437
      %v5439 = vsel %vm258, %v5435, %v5436
      %v5440 = vsel %vm452, %v5431, %v5439
      %5443 = vst [vmem:[#allocation3 + $0x80] sm:$0xff] %v5438
      %5444 = vst [vmem:[#allocation3 + $0x88] sm:$0xff] %v5440
      %v5445 = vld [vmem:[#allocation2] sm:$0xff]
      %v5446 = vld [vmem:[#allocation2 + $0x8] sm:$0xff]
      %v5447 = vld [vmem:[#allocation2 + $0x10] sm:$0xf]
      %5451 = vrot.lane.b32.xlu0 %v5445, 18
      %v5452 = vpop.permute.xlu0 %5451
      %5453 = vrot.lane.b32.xlu0 %v5446, 18
      %v5454 = vpop.permute.xlu0 %5453
      %5455 = vrot.lane.b32.xlu0 %v5447, 18
      %v5456 = vpop.permute.xlu0 %5455
      %v5457 = vrot.slane %v5452, 4
      %v5458 = vrot.slane %v5454, 4
      %v5459 = vrot.slane %v5456, 4
      %v5460 = vsel %vm258, %v5457, %v5458
      %v5461 = vsel %vm476, %v5452, %v5460
      %v5462 = vsel %vm258, %v5458, %v5459
      %v5463 = vsel %vm476, %v5454, %v5462
      %5466 = vst [vmem:[#allocation3 + $0x90] sm:$0xff] %v5461
      %5467 = vst [vmem:[#allocation3 + $0x98] sm:$0xff] %v5463
      %v5468 = vld [vmem:[#allocation2] sm:$0xff]
      %v5469 = vld [vmem:[#allocation2 + $0x8] sm:$0xff]
      %v5470 = vld [vmem:[#allocation2 + $0x10] sm:$0xf]
      %5474 = vrot.lane.b32.xlu0 %v5468, 2
      %v5475 = vpop.permute.xlu0 %5474
      %5476 = vrot.lane.b32.xlu0 %v5469, 2
      %v5477 = vpop.permute.xlu0 %5476
      %5478 = vrot.lane.b32.xlu0 %v5470, 2
      %v5479 = vpop.permute.xlu0 %5478
      %v5480 = vrot.slane %v5475, 4
      %v5481 = vrot.slane %v5477, 4
      %v5482 = vrot.slane %v5479, 4
      %v5483 = vsel %vm258, %v5480, %v5481
      %v5484 = vsel %vm500, %v5475, %v5483
      %v5485 = vsel %vm258, %v5481, %v5482
      %v5486 = vsel %vm500, %v5477, %v5485
      %5489 = vst [vmem:[#allocation3 + $0xa0] sm:$0xff] %v5484
      %5490 = vst [vmem:[#allocation3 + $0xa8] sm:$0xff] %v5486
      %v5491 = vld [vmem:[#allocation2] sm:$0xff]
      %v5492 = vld [vmem:[#allocation2 + $0x8] sm:$0xff]
      %v5493 = vld [vmem:[#allocation2 + $0x10] sm:$0xf]
      %5497 = vrot.lane.b32.xlu0 %v5491, 1
      %v5498 = vpop.permute.xlu0 %5497
      %5499 = vrot.lane.b32.xlu0 %v5492, 1
      %v5500 = vpop.permute.xlu0 %5499
      %5501 = vrot.lane.b32.xlu0 %v5493, 1
      %v5502 = vpop.permute.xlu0 %5501
      %v5503 = vrot.slane %v5498, 4
      %v5504 = vrot.slane %v5500, 4
      %v5505 = vrot.slane %v5502, 4
      %v5506 = vsel %vm258, %v5503, %v5504
      %v5507 = vsel %vm524, %v5498, %v5506
      %v5508 = vsel %vm258, %v5504, %v5505
      %v5509 = vsel %vm524, %v5500, %v5508
      %5512 = vst [vmem:[#allocation3 + $0xb0] sm:$0xff] %v5507
      %5513 = vst [vmem:[#allocation3 + $0xb8] sm:$0xff] %v5509
      %v5514 = vld [vmem:[#allocation2 + $0x4] sm:$0xff]
      %v5515 = vld [vmem:[#allocation2 + $0xc] sm:$0xff]
      %5516 = vst [vmem:[#allocation3 + $0xc0] sm:$0xff] %v5514
      %5517 = vst [vmem:[#allocation3 + $0xc8] sm:$0xff] %v5515
      %v5518 = vld [vmem:[#allocation2 + $0x4] sm:$0xff]
      %v5519 = vld [vmem:[#allocation2 + $0xc] sm:$0xff]
      %v5520 = vld [vmem:[#allocation2 + $0x14] sm:$0xf]
      %5524 = vrot.lane.b32.xlu0 %v5518, 127
      %v5525 = vpop.permute.xlu0 %5524
      %5526 = vrot.lane.b32.xlu0 %v5519, 127
      %v5527 = vpop.permute.xlu0 %5526
      %5528 = vrot.lane.b32.xlu0 %v5520, 127
      %v5529 = vpop.permute.xlu0 %5528
      %v5530 = vrot.slane %v5525, 4
      %v5531 = vrot.slane %v5527, 4
      %v5532 = vrot.slane %v5529, 4
      %v5533 = vsel %vm258, %v5530, %v5531
      %v5534 = vsel %vm552, %v5525, %v5533
      %v5535 = vsel %vm258, %v5531, %v5532
      %v5536 = vsel %vm552, %v5527, %v5535
      %5539 = vst [vmem:[#allocation3 + $0xd0] sm:$0xff] %v5534
      %5540 = vst [vmem:[#allocation3 + $0xd8] sm:$0xff] %v5536
      %v5541 = vld [vmem:[#allocation2 + $0x4] sm:$0xff]
      %v5542 = vld [vmem:[#allocation2 + $0xc] sm:$0xff]
      %v5543 = vld [vmem:[#allocation2 + $0x14] sm:$0xf]
      %5547 = vrot.lane.b32.xlu0 %v5541, 126
      %v5548 = vpop.permute.xlu0 %5547
      %5549 = vrot.lane.b32.xlu0 %v5542, 126
      %v5550 = vpop.permute.xlu0 %5549
      %5551 = vrot.lane.b32.xlu0 %v5543, 126
      %v5552 = vpop.permute.xlu0 %5551
      %v5553 = vrot.slane %v5548, 4
      %v5554 = vrot.slane %v5550, 4
      %v5555 = vrot.slane %v5552, 4
      %v5556 = vsel %vm258, %v5553, %v5554
      %v5557 = vsel %vm576, %v5548, %v5556
      %v5558 = vsel %vm258, %v5554, %v5555
      %v5559 = vsel %vm576, %v5550, %v5558
      %5562 = vst [vmem:[#allocation3 + $0xe0] sm:$0xff] %v5557
      %5563 = vst [vmem:[#allocation3 + $0xe8] sm:$0xff] %v5559
      %v5564 = vld [vmem:[#allocation2 + $0x4] sm:$0xff]
      %v5565 = vld [vmem:[#allocation2 + $0xc] sm:$0xff]
      %v5566 = vld [vmem:[#allocation2 + $0x14] sm:$0xf]
      %5570 = vrot.lane.b32.xlu0 %v5564, 110
      %v5571 = vpop.permute.xlu0 %5570
      %5572 = vrot.lane.b32.xlu0 %v5565, 110
      %v5573 = vpop.permute.xlu0 %5572
      %5574 = vrot.lane.b32.xlu0 %v5566, 110
      %v5575 = vpop.permute.xlu0 %5574
      %v5576 = vrot.slane %v5571, 4
      %v5577 = vrot.slane %v5573, 4
      %v5578 = vrot.slane %v5575, 4
      %v5579 = vsel %vm258, %v5576, %v5577
      %v5580 = vsel %vm600, %v5571, %v5579
      %v5581 = vsel %vm258, %v5577, %v5578
      %v5582 = vsel %vm600, %v5573, %v5581
      %5585 = vst [vmem:[#allocation3 + $0xf0] sm:$0xff] %v5580
      %5586 = vst [vmem:[#allocation3 + $0xf8] sm:$0xff] %v5582
      %v5587 = vld [vmem:[#allocation2 + $0x4] sm:$0xff]
      %v5588 = vld [vmem:[#allocation2 + $0xc] sm:$0xff]
      %v5589 = vld [vmem:[#allocation2 + $0x14] sm:$0xf]
      %5593 = vrot.lane.b32.xlu0 %v5587, 109
      %v5594 = vpop.permute.xlu0 %5593
      %5595 = vrot.lane.b32.xlu0 %v5588, 109
      %v5596 = vpop.permute.xlu0 %5595
      %5597 = vrot.lane.b32.xlu0 %v5589, 109
      %v5598 = vpop.permute.xlu0 %5597
      %v5599 = vrot.slane %v5594, 4
      %v5600 = vrot.slane %v5596, 4
      %v5601 = vrot.slane %v5598, 4
      %v5602 = vsel %vm258, %v5599, %v5600
      %v5603 = vsel %vm624, %v5594, %v5602
      %v5604 = vsel %vm258, %v5600, %v5601
      %v5605 = vsel %vm624, %v5596, %v5604
      %5608 = vst [vmem:[#allocation3 + $0x100] sm:$0xff] %v5603
      %5609 = vst [vmem:[#allocation3 + $0x108] sm:$0xff] %v5605
      %v5610 = vld [vmem:[#allocation2 + $0x4] sm:$0xff]
      %v5611 = vld [vmem:[#allocation2 + $0xc] sm:$0xff]
      %v5612 = vld [vmem:[#allocation2 + $0x14] sm:$0xf]
      %5616 = vrot.lane.b32.xlu0 %v5610, 108
      %v5617 = vpop.permute.xlu0 %5616
      %5618 = vrot.lane.b32.xlu0 %v5611, 108
      %v5619 = vpop.permute.xlu0 %5618
      %5620 = vrot.lane.b32.xlu0 %v5612, 108
      %v5621 = vpop.permute.xlu0 %5620
      %v5622 = vrot.slane %v5617, 4
      %v5623 = vrot.slane %v5619, 4
      %v5624 = vrot.slane %v5621, 4
      %v5625 = vsel %vm258, %v5622, %v5623
      %v5626 = vsel %vm648, %v5617, %v5625
      %v5627 = vsel %vm258, %v5623, %v5624
      %v5628 = vsel %vm648, %v5619, %v5627
      %5631 = vst [vmem:[#allocation3 + $0x110] sm:$0xff] %v5626
      %5632 = vst [vmem:[#allocation3 + $0x118] sm:$0xff] %v5628
      %v5633 = vld [vmem:[#allocation2 + $0x4] sm:$0xff]
      %v5634 = vld [vmem:[#allocation2 + $0xc] sm:$0xff]
      %v5635 = vld [vmem:[#allocation2 + $0x14] sm:$0xf]
      %5639 = vrot.lane.b32.xlu0 %v5633, 107
      %v5640 = vpop.permute.xlu0 %5639
      %5641 = vrot.lane.b32.xlu0 %v5634, 107
      %v5642 = vpop.permute.xlu0 %5641
      %5643 = vrot.lane.b32.xlu0 %v5635, 107
      %v5644 = vpop.permute.xlu0 %5643
      %v5645 = vrot.slane %v5640, 4
      %v5646 = vrot.slane %v5642, 4
      %v5647 = vrot.slane %v5644, 4
      %v5648 = vsel %vm258, %v5645, %v5646
      %v5649 = vsel %vm672, %v5640, %v5648
      %v5650 = vsel %vm258, %v5646, %v5647
      %v5651 = vsel %vm672, %v5642, %v5650
      %5654 = vst [vmem:[#allocation3 + $0x120] sm:$0xff] %v5649
      %5655 = vst [vmem:[#allocation3 + $0x128] sm:$0xff] %v5651
      %v5656 = vld [vmem:[#allocation2 + $0x4] sm:$0xff]
      %v5657 = vld [vmem:[#allocation2 + $0xc] sm:$0xff]
      %v5658 = vld [vmem:[#allocation2 + $0x14] sm:$0xf]
      %5662 = vrot.lane.b32.xlu0 %v5656, 106
      %v5663 = vpop.permute.xlu0 %5662
      %5664 = vrot.lane.b32.xlu0 %v5657, 106
      %v5665 = vpop.permute.xlu0 %5664
      %5666 = vrot.lane.b32.xlu0 %v5658, 106
      %v5667 = vpop.permute.xlu0 %5666
      %v5668 = vrot.slane %v5663, 4
      %v5669 = vrot.slane %v5665, 4
      %v5670 = vrot.slane %v5667, 4
      %v5671 = vsel %vm258, %v5668, %v5669
      %v5672 = vsel %vm696, %v5663, %v5671
      %v5673 = vsel %vm258, %v5669, %v5670
      %v5674 = vsel %vm696, %v5665, %v5673
      %5677 = vst [vmem:[#allocation3 + $0x130] sm:$0xff] %v5672
      %5678 = vst [vmem:[#allocation3 + $0x138] sm:$0xff] %v5674
      %v5679 = vld [vmem:[#allocation2 + $0x4] sm:$0xff]
      %v5680 = vld [vmem:[#allocation2 + $0xc] sm:$0xff]
      %v5681 = vld [vmem:[#allocation2 + $0x14] sm:$0xf]
      %5685 = vrot.lane.b32.xlu0 %v5679, 90
      %v5686 = vpop.permute.xlu0 %5685
      %5687 = vrot.lane.b32.xlu0 %v5680, 90
      %v5688 = vpop.permute.xlu0 %5687
      %5689 = vrot.lane.b32.xlu0 %v5681, 90
      %v5690 = vpop.permute.xlu0 %5689
      %v5691 = vrot.slane %v5686, 4
      %v5692 = vrot.slane %v5688, 4
      %v5693 = vrot.slane %v5690, 4
      %v5694 = vsel %vm258, %v5691, %v5692
      %v5695 = vsel %vm720, %v5686, %v5694
      %v5696 = vsel %vm258, %v5692, %v5693
      %v5697 = vsel %vm720, %v5688, %v5696
      %5700 = vst [vmem:[#allocation3 + $0x140] sm:$0xff] %v5695
      %5701 = vst [vmem:[#allocation3 + $0x148] sm:$0xff] %v5697
      %v5702 = vld [vmem:[#allocation2 + $0x4] sm:$0xff]
      %v5703 = vld [vmem:[#allocation2 + $0xc] sm:$0xff]
      %v5704 = vld [vmem:[#allocation2 + $0x14] sm:$0xf]
      %5708 = vrot.lane.b32.xlu0 %v5702, 89
      %v5709 = vpop.permute.xlu0 %5708
      %5710 = vrot.lane.b32.xlu0 %v5703, 89
      %v5711 = vpop.permute.xlu0 %5710
      %5712 = vrot.lane.b32.xlu0 %v5704, 89
      %v5713 = vpop.permute.xlu0 %5712
      %v5714 = vrot.slane %v5709, 4
      %v5715 = vrot.slane %v5711, 4
      %v5716 = vrot.slane %v5713, 4
      %v5717 = vsel %vm258, %v5714, %v5715
      %v5718 = vsel %vm744, %v5709, %v5717
      %v5719 = vsel %vm258, %v5715, %v5716
      %v5720 = vsel %vm744, %v5711, %v5719
      %5723 = vst [vmem:[#allocation3 + $0x150] sm:$0xff] %v5718
      %5724 = vst [vmem:[#allocation3 + $0x158] sm:$0xff] %v5720
      %v5725 = vld [vmem:[#allocation2 + $0x4] sm:$0xff]
      %v5726 = vld [vmem:[#allocation2 + $0xc] sm:$0xff]
      %v5727 = vld [vmem:[#allocation2 + $0x14] sm:$0xf]
      %5731 = vrot.lane.b32.xlu0 %v5725, 88
      %v5732 = vpop.permute.xlu0 %5731
      %5733 = vrot.lane.b32.xlu0 %v5726, 88
      %v5734 = vpop.permute.xlu0 %5733
      %5735 = vrot.lane.b32.xlu0 %v5727, 88
      %v5736 = vpop.permute.xlu0 %5735
      %v5737 = vrot.slane %v5732, 4
      %v5738 = vrot.slane %v5734, 4
      %v5739 = vrot.slane %v5736, 4
      %v5740 = vsel %vm258, %v5737, %v5738
      %v5741 = vsel %vm768, %v5732, %v5740
      %v5742 = vsel %vm258, %v5738, %v5739
      %v5743 = vsel %vm768, %v5734, %v5742
      %5746 = vst [vmem:[#allocation3 + $0x160] sm:$0xff] %v5741
      %5747 = vst [vmem:[#allocation3 + $0x168] sm:$0xff] %v5743
      %v5748 = vld [vmem:[#allocation2 + $0x4] sm:$0xff]
      %v5749 = vld [vmem:[#allocation2 + $0xc] sm:$0xff]
      %v5750 = vld [vmem:[#allocation2 + $0x14] sm:$0xf]
      %5754 = vrot.lane.b32.xlu0 %v5748, 87
      %v5755 = vpop.permute.xlu0 %5754
      %5756 = vrot.lane.b32.xlu0 %v5749, 87
      %v5757 = vpop.permute.xlu0 %5756
      %5758 = vrot.lane.b32.xlu0 %v5750, 87
      %v5759 = vpop.permute.xlu0 %5758
      %v5760 = vrot.slane %v5755, 4
      %v5761 = vrot.slane %v5757, 4
      %v5762 = vrot.slane %v5759, 4
      %v5763 = vsel %vm258, %v5760, %v5761
      %v5764 = vsel %vm792, %v5755, %v5763
      %v5765 = vsel %vm258, %v5761, %v5762
      %v5766 = vsel %vm792, %v5757, %v5765
      %5769 = vst [vmem:[#allocation3 + $0x170] sm:$0xff] %v5764
      %5770 = vst [vmem:[#allocation3 + $0x178] sm:$0xff] %v5766
      %v5771 = vld [vmem:[#allocation2 + $0x4] sm:$0xff]
      %v5772 = vld [vmem:[#allocation2 + $0xc] sm:$0xff]
      %v5773 = vld [vmem:[#allocation2 + $0x14] sm:$0xf]
      %5777 = vrot.lane.b32.xlu0 %v5771, 86
      %v5778 = vpop.permute.xlu0 %5777
      %5779 = vrot.lane.b32.xlu0 %v5772, 86
      %v5780 = vpop.permute.xlu0 %5779
      %5781 = vrot.lane.b32.xlu0 %v5773, 86
      %v5782 = vpop.permute.xlu0 %5781
      %v5783 = vrot.slane %v5778, 4
      %v5784 = vrot.slane %v5780, 4
      %v5785 = vrot.slane %v5782, 4
      %v5786 = vsel %vm258, %v5783, %v5784
      %v5787 = vsel %vm816, %v5778, %v5786
      %v5788 = vsel %vm258, %v5784, %v5785
      %v5789 = vsel %vm816, %v5780, %v5788
      %5792 = vst [vmem:[#allocation3 + $0x180] sm:$0xff] %v5787
      %5793 = vst [vmem:[#allocation3 + $0x188] sm:$0xff] %v5789
      %s5794 = scalar_lea.vmem %s2, 40
      %v5795 = vld [vmem:[%s5794] sm:$0xff]
      %v5796 = vld [vmem:[#allocation3] sm:$0xff]
      %v5797 = vld [vmem:[#allocation3 + $0x8] sm:$0xff]
      %v5798 = vld [vmem:[#allocation3 + $0x10] sm:$0xff]
      %v5799 = vld [vmem:[#allocation3 + $0x18] sm:$0xff]
      %v5800 = vld [vmem:[#allocation3 + $0x20] sm:$0xff]
      %v5801 = vld [vmem:[#allocation3 + $0x28] sm:$0xff]
      %v5802 = vld [vmem:[#allocation3 + $0x30] sm:$0xff]
      %v5803 = vld [vmem:[#allocation3 + $0x38] sm:$0xff]
      %v5804 = vld [vmem:[#allocation3 + $0x40] sm:$0xff]
      %v5805 = vld [vmem:[#allocation3 + $0x48] sm:$0xff]
      %v5806 = vld [vmem:[#allocation3 + $0x50] sm:$0xff]
      %v5807 = vld [vmem:[#allocation3 + $0x58] sm:$0xff]
      %v5808 = vld [vmem:[#allocation3 + $0x60] sm:$0xff]
      %v5809 = vld [vmem:[#allocation3 + $0x68] sm:$0xff]
      %v5810 = vld [vmem:[#allocation3 + $0x70] sm:$0xff]
      %v5811 = vld [vmem:[#allocation3 + $0x78] sm:$0xff]
      %v5812 = vld [vmem:[#allocation3 + $0x80] sm:$0xff]
      %v5813 = vld [vmem:[#allocation3 + $0x88] sm:$0xff]
      %v5814 = vld [vmem:[#allocation3 + $0x90] sm:$0xff]
      %v5815 = vld [vmem:[#allocation3 + $0x98] sm:$0xff]
      %v5816 = vld [vmem:[#allocation3 + $0xa0] sm:$0xff]
      %v5817 = vld [vmem:[#allocation3 + $0xa8] sm:$0xff]
      %v5818 = vld [vmem:[#allocation3 + $0xb0] sm:$0xff]
      %v5819 = vld [vmem:[#allocation3 + $0xb8] sm:$0xff]
      %v5820 = vld [vmem:[#allocation3 + $0xc0] sm:$0xff]
      %v5821 = vld [vmem:[#allocation3 + $0xc8] sm:$0xff]
      %v5822 = vld [vmem:[#allocation3 + $0xd0] sm:$0xff]
      %v5823 = vld [vmem:[#allocation3 + $0xd8] sm:$0xff]
      %v5824 = vld [vmem:[#allocation3 + $0xe0] sm:$0xff]
      %v5825 = vld [vmem:[#allocation3 + $0xe8] sm:$0xff]
      %v5826 = vld [vmem:[#allocation3 + $0xf0] sm:$0xff]
      %v5827 = vld [vmem:[#allocation3 + $0xf8] sm:$0xff]
      %v5828 = vld [vmem:[#allocation3 + $0x100] sm:$0xff]
      %v5829 = vld [vmem:[#allocation3 + $0x108] sm:$0xff]
      %v5830 = vld [vmem:[#allocation3 + $0x110] sm:$0xff]
      %v5831 = vld [vmem:[#allocation3 + $0x118] sm:$0xff]
      %v5832 = vld [vmem:[#allocation3 + $0x120] sm:$0xff]
      %v5833 = vld [vmem:[#allocation3 + $0x128] sm:$0xff]
      %v5834 = vld [vmem:[#allocation3 + $0x130] sm:$0xff]
      %v5835 = vld [vmem:[#allocation3 + $0x138] sm:$0xff]
      %v5836 = vld [vmem:[#allocation3 + $0x140] sm:$0xff]
      %v5837 = vld [vmem:[#allocation3 + $0x148] sm:$0xff]
      %v5838 = vld [vmem:[#allocation3 + $0x150] sm:$0xff]
      %v5839 = vld [vmem:[#allocation3 + $0x158] sm:$0xff]
      %v5840 = vld [vmem:[#allocation3 + $0x160] sm:$0xff]
      %v5841 = vld [vmem:[#allocation3 + $0x168] sm:$0xff]
      %v5842 = vld [vmem:[#allocation3 + $0x170] sm:$0xff]
      %v5843 = vld [vmem:[#allocation3 + $0x178] sm:$0xff]
      %v5844 = vld [vmem:[#allocation3 + $0x180] sm:$0xff]
      %v5845 = vld [vmem:[#allocation3 + $0x188] sm:$0xff]
      %s5846 = scalar_lea.vmem %s3, 40
      %v5847 = vld [vmem:[%s5846] sm:$0xff]
      %5849 = vset.pattern.permute.xlu0 0
      %5850 = vperm.xlu0 %5849, %v5847
      %v5851 = vpop.permute.xlu0 %5850
      %v5854 = vunpack.c.l.b16 %v5795
      %v5855 = vunpack.c.h.b16 %v5795
      %v5856 = vpack.c.b16 %v5854, %v5854
      %v5857 = vpack.c.b16 %v5855, %v5855
      %v5909 = vunpack.c.l.b16 %v5796
      %v5910 = vunpack.c.h.b16 %v5796
      %v5911 = vunpack.c.l.b16 %v5797
      %v5912 = vunpack.c.h.b16 %v5797
      %v5913 = vunpack.c.l.b16 %v5798
      %v5914 = vunpack.c.h.b16 %v5798
      %v5915 = vunpack.c.l.b16 %v5799
      %v5916 = vunpack.c.h.b16 %v5799
      %v5917 = vunpack.c.l.b16 %v5800
      %v5918 = vunpack.c.h.b16 %v5800
      %v5919 = vunpack.c.l.b16 %v5801
      %v5920 = vunpack.c.h.b16 %v5801
      %v5921 = vunpack.c.l.b16 %v5802
      %v5922 = vunpack.c.h.b16 %v5802
      %v5923 = vunpack.c.l.b16 %v5803
      %v5924 = vunpack.c.h.b16 %v5803
      %v5925 = vunpack.c.l.b16 %v5804
      %v5926 = vunpack.c.h.b16 %v5804
      %v5927 = vunpack.c.l.b16 %v5805
      %v5928 = vunpack.c.h.b16 %v5805
      %v5929 = vunpack.c.l.b16 %v5806
      %v5930 = vunpack.c.h.b16 %v5806
      %v5931 = vunpack.c.l.b16 %v5807
      %v5932 = vunpack.c.h.b16 %v5807
      %v5933 = vunpack.c.l.b16 %v5808
      %v5934 = vunpack.c.h.b16 %v5808
      %v5935 = vunpack.c.l.b16 %v5809
      %v5936 = vunpack.c.h.b16 %v5809
      %v5937 = vunpack.c.l.b16 %v5810
      %v5938 = vunpack.c.h.b16 %v5810
      %v5939 = vunpack.c.l.b16 %v5811
      %v5940 = vunpack.c.h.b16 %v5811
      %v5941 = vunpack.c.l.b16 %v5812
      %v5942 = vunpack.c.h.b16 %v5812
      %v5943 = vunpack.c.l.b16 %v5813
      %v5944 = vunpack.c.h.b16 %v5813
      %v5945 = vunpack.c.l.b16 %v5814
      %v5946 = vunpack.c.h.b16 %v5814
      %v5947 = vunpack.c.l.b16 %v5815
      %v5948 = vunpack.c.h.b16 %v5815
      %v5949 = vunpack.c.l.b16 %v5816
      %v5950 = vunpack.c.h.b16 %v5816
      %v5951 = vunpack.c.l.b16 %v5817
      %v5952 = vunpack.c.h.b16 %v5817
      %v5953 = vunpack.c.l.b16 %v5818
      %v5954 = vunpack.c.h.b16 %v5818
      %v5955 = vunpack.c.l.b16 %v5819
      %v5956 = vunpack.c.h.b16 %v5819
      %v5957 = vunpack.c.l.b16 %v5820
      %v5958 = vunpack.c.h.b16 %v5820
      %v5959 = vunpack.c.l.b16 %v5821
      %v5960 = vunpack.c.h.b16 %v5821
      %v5961 = vunpack.c.l.b16 %v5822
      %v5962 = vunpack.c.h.b16 %v5822
      %v5963 = vunpack.c.l.b16 %v5823
      %v5964 = vunpack.c.h.b16 %v5823
      %v5965 = vunpack.c.l.b16 %v5824
      %v5966 = vunpack.c.h.b16 %v5824
      %v5967 = vunpack.c.l.b16 %v5825
      %v5968 = vunpack.c.h.b16 %v5825
      %v5969 = vunpack.c.l.b16 %v5826
      %v5970 = vunpack.c.h.b16 %v5826
      %v5971 = vunpack.c.l.b16 %v5827
      %v5972 = vunpack.c.h.b16 %v5827
      %v5973 = vunpack.c.l.b16 %v5828
      %v5974 = vunpack.c.h.b16 %v5828
      %v5975 = vunpack.c.l.b16 %v5829
      %v5976 = vunpack.c.h.b16 %v5829
      %v5977 = vunpack.c.l.b16 %v5830
      %v5978 = vunpack.c.h.b16 %v5830
      %v5979 = vunpack.c.l.b16 %v5831
      %v5980 = vunpack.c.h.b16 %v5831
      %v5981 = vunpack.c.l.b16 %v5832
      %v5982 = vunpack.c.h.b16 %v5832
      %v5983 = vunpack.c.l.b16 %v5833
      %v5984 = vunpack.c.h.b16 %v5833
      %v5985 = vunpack.c.l.b16 %v5834
      %v5986 = vunpack.c.h.b16 %v5834
      %v5987 = vunpack.c.l.b16 %v5835
      %v5988 = vunpack.c.h.b16 %v5835
      %v5989 = vunpack.c.l.b16 %v5836
      %v5990 = vunpack.c.h.b16 %v5836
      %v5991 = vunpack.c.l.b16 %v5837
      %v5992 = vunpack.c.h.b16 %v5837
      %v5993 = vunpack.c.l.b16 %v5838
      %v5994 = vunpack.c.h.b16 %v5838
      %v5995 = vunpack.c.l.b16 %v5839
      %v5996 = vunpack.c.h.b16 %v5839
      %v5997 = vunpack.c.l.b16 %v5840
      %v5998 = vunpack.c.h.b16 %v5840
      %v5999 = vunpack.c.l.b16 %v5841
      %v6000 = vunpack.c.h.b16 %v5841
      %v6001 = vunpack.c.l.b16 %v5842
      %v6002 = vunpack.c.h.b16 %v5842
      %v6003 = vunpack.c.l.b16 %v5843
      %v6004 = vunpack.c.h.b16 %v5843
      %v6005 = vunpack.c.l.b16 %v5844
      %v6006 = vunpack.c.h.b16 %v5844
      %v6007 = vunpack.c.l.b16 %v5845
      %v6008 = vunpack.c.h.b16 %v5845
      %v6009 = vpack.c.b16 %v5913, %v5909
      %v6010 = vpack.c.b16 %v5914, %v5910
      %v6011 = vpack.c.b16 %v5915, %v5911
      %v6012 = vpack.c.b16 %v5916, %v5912
      %v6013 = vpack.c.b16 %v5921, %v5917
      %v6014 = vpack.c.b16 %v5922, %v5918
      %v6015 = vpack.c.b16 %v5923, %v5919
      %v6016 = vpack.c.b16 %v5924, %v5920
      %v6017 = vpack.c.b16 %v5929, %v5925
      %v6018 = vpack.c.b16 %v5930, %v5926
      %v6019 = vpack.c.b16 %v5931, %v5927
      %v6020 = vpack.c.b16 %v5932, %v5928
      %v6021 = vpack.c.b16 %v5937, %v5933
      %v6022 = vpack.c.b16 %v5938, %v5934
      %v6023 = vpack.c.b16 %v5939, %v5935
      %v6024 = vpack.c.b16 %v5940, %v5936
      %v6025 = vpack.c.b16 %v5945, %v5941
      %v6026 = vpack.c.b16 %v5946, %v5942
      %v6027 = vpack.c.b16 %v5947, %v5943
      %v6028 = vpack.c.b16 %v5948, %v5944
      %v6029 = vpack.c.b16 %v5953, %v5949
      %v6030 = vpack.c.b16 %v5954, %v5950
      %v6031 = vpack.c.b16 %v5955, %v5951
      %v6032 = vpack.c.b16 %v5956, %v5952
      %v6033 = vpack.c.b16 %v5961, %v5957
      %v6034 = vpack.c.b16 %v5962, %v5958
      %v6035 = vpack.c.b16 %v5963, %v5959
      %v6036 = vpack.c.b16 %v5964, %v5960
      %v6037 = vpack.c.b16 %v5969, %v5965
      %v6038 = vpack.c.b16 %v5970, %v5966
      %v6039 = vpack.c.b16 %v5971, %v5967
      %v6040 = vpack.c.b16 %v5972, %v5968
      %v6041 = vpack.c.b16 %v5977, %v5973
      %v6042 = vpack.c.b16 %v5978, %v5974
      %v6043 = vpack.c.b16 %v5979, %v5975
      %v6044 = vpack.c.b16 %v5980, %v5976
      %v6045 = vpack.c.b16 %v5985, %v5981
      %v6046 = vpack.c.b16 %v5986, %v5982
      %v6047 = vpack.c.b16 %v5987, %v5983
      %v6048 = vpack.c.b16 %v5988, %v5984
      %v6049 = vpack.c.b16 %v5993, %v5989
      %v6050 = vpack.c.b16 %v5994, %v5990
      %v6051 = vpack.c.b16 %v5995, %v5991
      %v6052 = vpack.c.b16 %v5996, %v5992
      %v6053 = vpack.c.b16 %v6001, %v5997
      %v6054 = vpack.c.b16 %v6002, %v5998
      %v6055 = vpack.c.b16 %v6003, %v5999
      %v6056 = vpack.c.b16 %v6004, %v6000
      %v6057 = vpack.c.b16 %v6005, %v6005
      %v6058 = vpack.c.b16 %v6006, %v6006
      %v6059 = vpack.c.b16 %v6007, %v6007
      %v6060 = vpack.c.b16 %v6008, %v6008
      %v6110 = vsel %vm1137, %v5857, 0
      %v6113 = vsel %vm1141, %v6057, 0
      %v6116 = vsel %vm1141, %v6058, 0
      %v6119 = vsel %vm1141, %v6059, 0
      %v6122 = vsel %vm1141, %v6060, 0
      %6124 = vmatprep.subr.bf16.mxu0 %v6038
      %6125 = vmatpush1.bf16.msra.mxu0 %v6037
      %6126 = vmatprep.subr.bf16.mxu0 %v6034
      %6127 = vmatpush1.bf16.msra.mxu0 %v6033
      %6128 = vmatprep.subr.bf16.mxu0 %v6030
      %6129 = vmatpush1.bf16.msra.mxu0 %v6029
      %6130 = vmatprep.subr.bf16.mxu0 %v6026
      %6131 = vmatpush1.bf16.msra.mxu0 %v6025
      %6132 = vmatprep.subr.bf16.mxu0 %v6022
      %6133 = vmatpush1.bf16.msra.mxu0 %v6021
      %6134 = vmatprep.subr.bf16.mxu0 %v6018
      %6135 = vmatpush1.bf16.msra.mxu0 %v6017
      %6136 = vmatprep.subr.bf16.mxu0 %v6014
      %6137 = vmatpush1.bf16.msra.mxu0 %v6013
      %6138 = vmatprep.subr.bf16.mxu0 %v6010
      %6139 = vmatpush1.bf16.msra.mxu0 %v6009
      %6140 = vmatprep.subr.bf16.mxu0 0
      %6141 = vmatpush2.bf16.msra.mxu0 0
      %6142 = vmatprep.subr.bf16.mxu0 0
      %6143 = vmatpush2.bf16.msra.mxu0 0
      %6144 = vmatprep.subr.bf16.mxu0 0
      %6145 = vmatpush2.bf16.msra.mxu0 0
      %6146 = vmatprep.subr.bf16.mxu0 %v6116
      %6147 = vmatpush2.bf16.msra.mxu0 %v6113
      %6148 = vmatprep.subr.bf16.mxu0 %v6054
      %6149 = vmatpush2.bf16.msra.mxu0 %v6053
      %6150 = vmatprep.subr.bf16.mxu0 %v6050
      %6151 = vmatpush2.bf16.msra.mxu0 %v6049
      %6152 = vmatprep.subr.bf16.mxu0 %v6046
      %6153 = vmatpush2.bf16.msra.mxu0 %v6045
      %6154 = vmatprep.subr.bf16.mxu0 %v6042
      %6155 = vmatpush2.bf16.msra.mxu0 %v6041
      %6156 = vmatprep.mubr.bf16.mxu0 %v6110
      %6157 = vmatmul.mubr.bf16.gmra.mxu0 %v5856
      %v6158 = vpop.f32.mrf.mxu0
      %v6159 = vadd.f32 %v5851, %v6158
      %v6160 = vpop.f32.mrf.mxu0
      %v6161 = vadd.f32 %v5851, %v6160
      %v6162 = vpop.f32.mrf.mxu0
      %v6163 = vpop.f32.mrf.mxu0
      %6164 = vdwg.mxu0
      %6165 = vmatprep.subr.bf16.mxu0 %v6040
      %6166 = vmatpush1.bf16.msra.mxu0 %v6039
      %6167 = vmatprep.subr.bf16.mxu0 %v6036
      %6168 = vmatpush1.bf16.msra.mxu0 %v6035
      %6169 = vmatprep.subr.bf16.mxu0 %v6032
      %6170 = vmatpush1.bf16.msra.mxu0 %v6031
      %6171 = vmatprep.subr.bf16.mxu0 %v6028
      %6172 = vmatpush1.bf16.msra.mxu0 %v6027
      %6173 = vmatprep.subr.bf16.mxu0 %v6024
      %6174 = vmatpush1.bf16.msra.mxu0 %v6023
      %6175 = vmatprep.subr.bf16.mxu0 %v6020
      %6176 = vmatpush1.bf16.msra.mxu0 %v6019
      %6177 = vmatprep.subr.bf16.mxu0 %v6016
      %6178 = vmatpush1.bf16.msra.mxu0 %v6015
      %6179 = vmatprep.subr.bf16.mxu0 %v6012
      %6180 = vmatpush1.bf16.msra.mxu0 %v6011
      %6181 = vmatprep.subr.bf16.mxu0 0
      %6182 = vmatpush2.bf16.msra.mxu0 0
      %6183 = vmatprep.subr.bf16.mxu0 0
      %6184 = vmatpush2.bf16.msra.mxu0 0
      %6185 = vmatprep.subr.bf16.mxu0 0
      %6186 = vmatpush2.bf16.msra.mxu0 0
      %6187 = vmatprep.subr.bf16.mxu0 %v6122
      %6188 = vmatpush2.bf16.msra.mxu0 %v6119
      %6189 = vmatprep.subr.bf16.mxu0 %v6056
      %6190 = vmatpush2.bf16.msra.mxu0 %v6055
      %6191 = vmatprep.subr.bf16.mxu0 %v6052
      %6192 = vmatpush2.bf16.msra.mxu0 %v6051
      %6193 = vmatprep.subr.bf16.mxu0 %v6048
      %6194 = vmatpush2.bf16.msra.mxu0 %v6047
      %6195 = vmatprep.subr.bf16.mxu0 %v6044
      %6196 = vmatpush2.bf16.msra.mxu0 %v6043
      %6197 = vmatprep.mubr.bf16.mxu0 %v6110
      %6198 = vmatmul.mubr.bf16.gmra.mxu0 %v5856
      %v6199 = vpop.f32.mrf.mxu0
      %v6200 = vadd.f32 %v5851, %v6199
      %v6201 = vpop.f32.mrf.mxu0
      %v6202 = vadd.f32 %v5851, %v6201
      %v6203 = vpop.f32.mrf.mxu0
      %v6204 = vpop.f32.mrf.mxu0
      %6205 = vdwg.mxu0
      %v6206 = vmul.f32 %v6159, %v204
      %v6207 = vmul.f32 %v6161, %v208
      %v6208 = vmul.f32 %v6200, %v212
      %v6209 = vmul.f32 %v6202, %v216
      %v6210 = vadd.f32 %v4222, %v6206
      %v6211 = vadd.f32 %v4223, %v6207
      %v6212 = vadd.f32 %v4224, %v6208
      %v6213 = vadd.f32 %v4225, %v6209
      %v6214 = vpack.c.bf16 %v6210, %v6210
      %v6215 = vpack.c.bf16 %v6211, %v6211
      %v6216 = vpack.c.bf16 %v6212, %v6212
      %v6217 = vpack.c.bf16 %v6213, %v6213
      %v6222 = vunpack.c.l.b16 %v6214
      %v6223 = vunpack.c.l.b16 %v6215
      %v6224 = vunpack.c.l.b16 %v6216
      %v6225 = vunpack.c.l.b16 %v6217
      %v6226 = vpack.c.b16 %v6223, %v6222
      %v6227 = vpack.c.b16 %v6225, %v6224
      %6230 = vst [vmem:[#allocation2 + $0x4] sm:$0xff] %v6226
      %6231 = vst [vmem:[#allocation2 + $0xc] sm:$0xff] %v6227
      %v6232 = vld [vmem:[#allocation2] sm:$0xff]
      %v6233 = vld [vmem:[#allocation2 + $0x8] sm:$0xff]
      %v6234 = vld [vmem:[#allocation2 + $0x10] sm:$0xf]
      %6238 = vrot.lane.b32.xlu0 %v6232, 42
      %v6239 = vpop.permute.xlu0 %6238
      %6240 = vrot.lane.b32.xlu0 %v6233, 42
      %v6241 = vpop.permute.xlu0 %6240
      %6242 = vrot.lane.b32.xlu0 %v6234, 42
      %v6243 = vpop.permute.xlu0 %6242
      %v6244 = vrot.slane %v6239, 4
      %v6245 = vrot.slane %v6241, 4
      %v6246 = vrot.slane %v6243, 4
      %v6247 = vsel %vm258, %v6244, %v6245
      %v6248 = vsel %vm260, %v6239, %v6247
      %v6249 = vsel %vm258, %v6245, %v6246
      %v6250 = vsel %vm260, %v6241, %v6249
      %6253 = vst [vmem:[#allocation3] sm:$0xff] %v6248
      %6254 = vst [vmem:[#allocation3 + $0x8] sm:$0xff] %v6250
      %v6255 = vld [vmem:[#allocation2] sm:$0xff]
      %v6256 = vld [vmem:[#allocation2 + $0x8] sm:$0xff]
      %v6257 = vld [vmem:[#allocation2 + $0x10] sm:$0xf]
      %6261 = vrot.lane.b32.xlu0 %v6255, 41
      %v6262 = vpop.permute.xlu0 %6261
      %6263 = vrot.lane.b32.xlu0 %v6256, 41
      %v6264 = vpop.permute.xlu0 %6263
      %6265 = vrot.lane.b32.xlu0 %v6257, 41
      %v6266 = vpop.permute.xlu0 %6265
      %v6267 = vrot.slane %v6262, 4
      %v6268 = vrot.slane %v6264, 4
      %v6269 = vrot.slane %v6266, 4
      %v6270 = vsel %vm258, %v6267, %v6268
      %v6271 = vsel %vm284, %v6262, %v6270
      %v6272 = vsel %vm258, %v6268, %v6269
      %v6273 = vsel %vm284, %v6264, %v6272
      %6276 = vst [vmem:[#allocation3 + $0x10] sm:$0xff] %v6271
      %6277 = vst [vmem:[#allocation3 + $0x18] sm:$0xff] %v6273
      %v6278 = vld [vmem:[#allocation2] sm:$0xff]
      %v6279 = vld [vmem:[#allocation2 + $0x8] sm:$0xff]
      %v6280 = vld [vmem:[#allocation2 + $0x10] sm:$0xf]
      %6284 = vrot.lane.b32.xlu0 %v6278, 40
      %v6285 = vpop.permute.xlu0 %6284
      %6286 = vrot.lane.b32.xlu0 %v6279, 40
      %v6287 = vpop.permute.xlu0 %6286
      %6288 = vrot.lane.b32.xlu0 %v6280, 40
      %v6289 = vpop.permute.xlu0 %6288
      %v6290 = vrot.slane %v6285, 4
      %v6291 = vrot.slane %v6287, 4
      %v6292 = vrot.slane %v6289, 4
      %v6293 = vsel %vm258, %v6290, %v6291
      %v6294 = vsel %vm308, %v6285, %v6293
      %v6295 = vsel %vm258, %v6291, %v6292
      %v6296 = vsel %vm308, %v6287, %v6295
      %6299 = vst [vmem:[#allocation3 + $0x20] sm:$0xff] %v6294
      %6300 = vst [vmem:[#allocation3 + $0x28] sm:$0xff] %v6296
      %v6301 = vld [vmem:[#allocation2] sm:$0xff]
      %v6302 = vld [vmem:[#allocation2 + $0x8] sm:$0xff]
      %v6303 = vld [vmem:[#allocation2 + $0x10] sm:$0xf]
      %6307 = vrot.lane.b32.xlu0 %v6301, 39
      %v6308 = vpop.permute.xlu0 %6307
      %6309 = vrot.lane.b32.xlu0 %v6302, 39
      %v6310 = vpop.permute.xlu0 %6309
      %6311 = vrot.lane.b32.xlu0 %v6303, 39
      %v6312 = vpop.permute.xlu0 %6311
      %v6313 = vrot.slane %v6308, 4
      %v6314 = vrot.slane %v6310, 4
      %v6315 = vrot.slane %v6312, 4
      %v6316 = vsel %vm258, %v6313, %v6314
      %v6317 = vsel %vm332, %v6308, %v6316
      %v6318 = vsel %vm258, %v6314, %v6315
      %v6319 = vsel %vm332, %v6310, %v6318
      %6322 = vst [vmem:[#allocation3 + $0x30] sm:$0xff] %v6317
      %6323 = vst [vmem:[#allocation3 + $0x38] sm:$0xff] %v6319
      %v6324 = vld [vmem:[#allocation2] sm:$0xff]
      %v6325 = vld [vmem:[#allocation2 + $0x8] sm:$0xff]
      %v6326 = vld [vmem:[#allocation2 + $0x10] sm:$0xf]
      %6330 = vrot.lane.b32.xlu0 %v6324, 38
      %v6331 = vpop.permute.xlu0 %6330
      %6332 = vrot.lane.b32.xlu0 %v6325, 38
      %v6333 = vpop.permute.xlu0 %6332
      %6334 = vrot.lane.b32.xlu0 %v6326, 38
      %v6335 = vpop.permute.xlu0 %6334
      %v6336 = vrot.slane %v6331, 4
      %v6337 = vrot.slane %v6333, 4
      %v6338 = vrot.slane %v6335, 4
      %v6339 = vsel %vm258, %v6336, %v6337
      %v6340 = vsel %vm356, %v6331, %v6339
      %v6341 = vsel %vm258, %v6337, %v6338
      %v6342 = vsel %vm356, %v6333, %v6341
      %6345 = vst [vmem:[#allocation3 + $0x40] sm:$0xff] %v6340
      %6346 = vst [vmem:[#allocation3 + $0x48] sm:$0xff] %v6342
      %v6347 = vld [vmem:[#allocation2] sm:$0xff]
      %v6348 = vld [vmem:[#allocation2 + $0x8] sm:$0xff]
      %v6349 = vld [vmem:[#allocation2 + $0x10] sm:$0xf]
      %6353 = vrot.lane.b32.xlu0 %v6347, 22
      %v6354 = vpop.permute.xlu0 %6353
      %6355 = vrot.lane.b32.xlu0 %v6348, 22
      %v6356 = vpop.permute.xlu0 %6355
      %6357 = vrot.lane.b32.xlu0 %v6349, 22
      %v6358 = vpop.permute.xlu0 %6357
      %v6359 = vrot.slane %v6354, 4
      %v6360 = vrot.slane %v6356, 4
      %v6361 = vrot.slane %v6358, 4
      %v6362 = vsel %vm258, %v6359, %v6360
      %v6363 = vsel %vm380, %v6354, %v6362
      %v6364 = vsel %vm258, %v6360, %v6361
      %v6365 = vsel %vm380, %v6356, %v6364
      %6368 = vst [vmem:[#allocation3 + $0x50] sm:$0xff] %v6363
      %6369 = vst [vmem:[#allocation3 + $0x58] sm:$0xff] %v6365
      %v6370 = vld [vmem:[#allocation2] sm:$0xff]
      %v6371 = vld [vmem:[#allocation2 + $0x8] sm:$0xff]
      %v6372 = vld [vmem:[#allocation2 + $0x10] sm:$0xf]
      %6376 = vrot.lane.b32.xlu0 %v6370, 21
      %v6377 = vpop.permute.xlu0 %6376
      %6378 = vrot.lane.b32.xlu0 %v6371, 21
      %v6379 = vpop.permute.xlu0 %6378
      %6380 = vrot.lane.b32.xlu0 %v6372, 21
      %v6381 = vpop.permute.xlu0 %6380
      %v6382 = vrot.slane %v6377, 4
      %v6383 = vrot.slane %v6379, 4
      %v6384 = vrot.slane %v6381, 4
      %v6385 = vsel %vm258, %v6382, %v6383
      %v6386 = vsel %vm404, %v6377, %v6385
      %v6387 = vsel %vm258, %v6383, %v6384
      %v6388 = vsel %vm404, %v6379, %v6387
      %6391 = vst [vmem:[#allocation3 + $0x60] sm:$0xff] %v6386
      %6392 = vst [vmem:[#allocation3 + $0x68] sm:$0xff] %v6388
      %v6393 = vld [vmem:[#allocation2] sm:$0xff]
      %v6394 = vld [vmem:[#allocation2 + $0x8] sm:$0xff]
      %v6395 = vld [vmem:[#allocation2 + $0x10] sm:$0xf]
      %6399 = vrot.lane.b32.xlu0 %v6393, 20
      %v6400 = vpop.permute.xlu0 %6399
      %6401 = vrot.lane.b32.xlu0 %v6394, 20
      %v6402 = vpop.permute.xlu0 %6401
      %6403 = vrot.lane.b32.xlu0 %v6395, 20
      %v6404 = vpop.permute.xlu0 %6403
      %v6405 = vrot.slane %v6400, 4
      %v6406 = vrot.slane %v6402, 4
      %v6407 = vrot.slane %v6404, 4
      %v6408 = vsel %vm258, %v6405, %v6406
      %v6409 = vsel %vm428, %v6400, %v6408
      %v6410 = vsel %vm258, %v6406, %v6407
      %v6411 = vsel %vm428, %v6402, %v6410
      %6414 = vst [vmem:[#allocation3 + $0x70] sm:$0xff] %v6409
      %6415 = vst [vmem:[#allocation3 + $0x78] sm:$0xff] %v6411
      %v6416 = vld [vmem:[#allocation2] sm:$0xff]
      %v6417 = vld [vmem:[#allocation2 + $0x8] sm:$0xff]
      %v6418 = vld [vmem:[#allocation2 + $0x10] sm:$0xf]
      %6422 = vrot.lane.b32.xlu0 %v6416, 19
      %v6423 = vpop.permute.xlu0 %6422
      %6424 = vrot.lane.b32.xlu0 %v6417, 19
      %v6425 = vpop.permute.xlu0 %6424
      %6426 = vrot.lane.b32.xlu0 %v6418, 19
      %v6427 = vpop.permute.xlu0 %6426
      %v6428 = vrot.slane %v6423, 4
      %v6429 = vrot.slane %v6425, 4
      %v6430 = vrot.slane %v6427, 4
      %v6431 = vsel %vm258, %v6428, %v6429
      %v6432 = vsel %vm452, %v6423, %v6431
      %v6433 = vsel %vm258, %v6429, %v6430
      %v6434 = vsel %vm452, %v6425, %v6433
      %6437 = vst [vmem:[#allocation3 + $0x80] sm:$0xff] %v6432
      %6438 = vst [vmem:[#allocation3 + $0x88] sm:$0xff] %v6434
      %v6439 = vld [vmem:[#allocation2] sm:$0xff]
      %v6440 = vld [vmem:[#allocation2 + $0x8] sm:$0xff]
      %v6441 = vld [vmem:[#allocation2 + $0x10] sm:$0xf]
      %6445 = vrot.lane.b32.xlu0 %v6439, 18
      %v6446 = vpop.permute.xlu0 %6445
      %6447 = vrot.lane.b32.xlu0 %v6440, 18
      %v6448 = vpop.permute.xlu0 %6447
      %6449 = vrot.lane.b32.xlu0 %v6441, 18
      %v6450 = vpop.permute.xlu0 %6449
      %v6451 = vrot.slane %v6446, 4
      %v6452 = vrot.slane %v6448, 4
      %v6453 = vrot.slane %v6450, 4
      %v6454 = vsel %vm258, %v6451, %v6452
      %v6455 = vsel %vm476, %v6446, %v6454
      %v6456 = vsel %vm258, %v6452, %v6453
      %v6457 = vsel %vm476, %v6448, %v6456
      %6460 = vst [vmem:[#allocation3 + $0x90] sm:$0xff] %v6455
      %6461 = vst [vmem:[#allocation3 + $0x98] sm:$0xff] %v6457
      %v6462 = vld [vmem:[#allocation2] sm:$0xff]
      %v6463 = vld [vmem:[#allocation2 + $0x8] sm:$0xff]
      %v6464 = vld [vmem:[#allocation2 + $0x10] sm:$0xf]
      %6468 = vrot.lane.b32.xlu0 %v6462, 2
      %v6469 = vpop.permute.xlu0 %6468
      %6470 = vrot.lane.b32.xlu0 %v6463, 2
      %v6471 = vpop.permute.xlu0 %6470
      %6472 = vrot.lane.b32.xlu0 %v6464, 2
      %v6473 = vpop.permute.xlu0 %6472
      %v6474 = vrot.slane %v6469, 4
      %v6475 = vrot.slane %v6471, 4
      %v6476 = vrot.slane %v6473, 4
      %v6477 = vsel %vm258, %v6474, %v6475
      %v6478 = vsel %vm500, %v6469, %v6477
      %v6479 = vsel %vm258, %v6475, %v6476
      %v6480 = vsel %vm500, %v6471, %v6479
      %6483 = vst [vmem:[#allocation3 + $0xa0] sm:$0xff] %v6478
      %6484 = vst [vmem:[#allocation3 + $0xa8] sm:$0xff] %v6480
      %v6485 = vld [vmem:[#allocation2] sm:$0xff]
      %v6486 = vld [vmem:[#allocation2 + $0x8] sm:$0xff]
      %v6487 = vld [vmem:[#allocation2 + $0x10] sm:$0xf]
      %6491 = vrot.lane.b32.xlu0 %v6485, 1
      %v6492 = vpop.permute.xlu0 %6491
      %6493 = vrot.lane.b32.xlu0 %v6486, 1
      %v6494 = vpop.permute.xlu0 %6493
      %6495 = vrot.lane.b32.xlu0 %v6487, 1
      %v6496 = vpop.permute.xlu0 %6495
      %v6497 = vrot.slane %v6492, 4
      %v6498 = vrot.slane %v6494, 4
      %v6499 = vrot.slane %v6496, 4
      %v6500 = vsel %vm258, %v6497, %v6498
      %v6501 = vsel %vm524, %v6492, %v6500
      %v6502 = vsel %vm258, %v6498, %v6499
      %v6503 = vsel %vm524, %v6494, %v6502
      %6506 = vst [vmem:[#allocation3 + $0xb0] sm:$0xff] %v6501
      %6507 = vst [vmem:[#allocation3 + $0xb8] sm:$0xff] %v6503
      %v6508 = vld [vmem:[#allocation2 + $0x4] sm:$0xff]
      %v6509 = vld [vmem:[#allocation2 + $0xc] sm:$0xff]
      %6510 = vst [vmem:[#allocation3 + $0xc0] sm:$0xff] %v6508
      %6511 = vst [vmem:[#allocation3 + $0xc8] sm:$0xff] %v6509
      %v6512 = vld [vmem:[#allocation2 + $0x4] sm:$0xff]
      %v6513 = vld [vmem:[#allocation2 + $0xc] sm:$0xff]
      %v6514 = vld [vmem:[#allocation2 + $0x14] sm:$0xf]
      %6518 = vrot.lane.b32.xlu0 %v6512, 127
      %v6519 = vpop.permute.xlu0 %6518
      %6520 = vrot.lane.b32.xlu0 %v6513, 127
      %v6521 = vpop.permute.xlu0 %6520
      %6522 = vrot.lane.b32.xlu0 %v6514, 127
      %v6523 = vpop.permute.xlu0 %6522
      %v6524 = vrot.slane %v6519, 4
      %v6525 = vrot.slane %v6521, 4
      %v6526 = vrot.slane %v6523, 4
      %v6527 = vsel %vm258, %v6524, %v6525
      %v6528 = vsel %vm552, %v6519, %v6527
      %v6529 = vsel %vm258, %v6525, %v6526
      %v6530 = vsel %vm552, %v6521, %v6529
      %6533 = vst [vmem:[#allocation3 + $0xd0] sm:$0xff] %v6528
      %6534 = vst [vmem:[#allocation3 + $0xd8] sm:$0xff] %v6530
      %v6535 = vld [vmem:[#allocation2 + $0x4] sm:$0xff]
      %v6536 = vld [vmem:[#allocation2 + $0xc] sm:$0xff]
      %v6537 = vld [vmem:[#allocation2 + $0x14] sm:$0xf]
      %6541 = vrot.lane.b32.xlu0 %v6535, 126
      %v6542 = vpop.permute.xlu0 %6541
      %6543 = vrot.lane.b32.xlu0 %v6536, 126
      %v6544 = vpop.permute.xlu0 %6543
      %6545 = vrot.lane.b32.xlu0 %v6537, 126
      %v6546 = vpop.permute.xlu0 %6545
      %v6547 = vrot.slane %v6542, 4
      %v6548 = vrot.slane %v6544, 4
      %v6549 = vrot.slane %v6546, 4
      %v6550 = vsel %vm258, %v6547, %v6548
      %v6551 = vsel %vm576, %v6542, %v6550
      %v6552 = vsel %vm258, %v6548, %v6549
      %v6553 = vsel %vm576, %v6544, %v6552
      %6556 = vst [vmem:[#allocation3 + $0xe0] sm:$0xff] %v6551
      %6557 = vst [vmem:[#allocation3 + $0xe8] sm:$0xff] %v6553
      %v6558 = vld [vmem:[#allocation2 + $0x4] sm:$0xff]
      %v6559 = vld [vmem:[#allocation2 + $0xc] sm:$0xff]
      %v6560 = vld [vmem:[#allocation2 + $0x14] sm:$0xf]
      %6564 = vrot.lane.b32.xlu0 %v6558, 110
      %v6565 = vpop.permute.xlu0 %6564
      %6566 = vrot.lane.b32.xlu0 %v6559, 110
      %v6567 = vpop.permute.xlu0 %6566
      %6568 = vrot.lane.b32.xlu0 %v6560, 110
      %v6569 = vpop.permute.xlu0 %6568
      %v6570 = vrot.slane %v6565, 4
      %v6571 = vrot.slane %v6567, 4
      %v6572 = vrot.slane %v6569, 4
      %v6573 = vsel %vm258, %v6570, %v6571
      %v6574 = vsel %vm600, %v6565, %v6573
      %v6575 = vsel %vm258, %v6571, %v6572
      %v6576 = vsel %vm600, %v6567, %v6575
      %6579 = vst [vmem:[#allocation3 + $0xf0] sm:$0xff] %v6574
      %6580 = vst [vmem:[#allocation3 + $0xf8] sm:$0xff] %v6576
      %v6581 = vld [vmem:[#allocation2 + $0x4] sm:$0xff]
      %v6582 = vld [vmem:[#allocation2 + $0xc] sm:$0xff]
      %v6583 = vld [vmem:[#allocation2 + $0x14] sm:$0xf]
      %6587 = vrot.lane.b32.xlu0 %v6581, 109
      %v6588 = vpop.permute.xlu0 %6587
      %6589 = vrot.lane.b32.xlu0 %v6582, 109
      %v6590 = vpop.permute.xlu0 %6589
      %6591 = vrot.lane.b32.xlu0 %v6583, 109
      %v6592 = vpop.permute.xlu0 %6591
      %v6593 = vrot.slane %v6588, 4
      %v6594 = vrot.slane %v6590, 4
      %v6595 = vrot.slane %v6592, 4
      %v6596 = vsel %vm258, %v6593, %v6594
      %v6597 = vsel %vm624, %v6588, %v6596
      %v6598 = vsel %vm258, %v6594, %v6595
      %v6599 = vsel %vm624, %v6590, %v6598
      %6602 = vst [vmem:[#allocation3 + $0x100] sm:$0xff] %v6597
      %6603 = vst [vmem:[#allocation3 + $0x108] sm:$0xff] %v6599
      %v6604 = vld [vmem:[#allocation2 + $0x4] sm:$0xff]
      %v6605 = vld [vmem:[#allocation2 + $0xc] sm:$0xff]
      %v6606 = vld [vmem:[#allocation2 + $0x14] sm:$0xf]
      %6610 = vrot.lane.b32.xlu0 %v6604, 108
      %v6611 = vpop.permute.xlu0 %6610
      %6612 = vrot.lane.b32.xlu0 %v6605, 108
      %v6613 = vpop.permute.xlu0 %6612
      %6614 = vrot.lane.b32.xlu0 %v6606, 108
      %v6615 = vpop.permute.xlu0 %6614
      %v6616 = vrot.slane %v6611, 4
      %v6617 = vrot.slane %v6613, 4
      %v6618 = vrot.slane %v6615, 4
      %v6619 = vsel %vm258, %v6616, %v6617
      %v6620 = vsel %vm648, %v6611, %v6619
      %v6621 = vsel %vm258, %v6617, %v6618
      %v6622 = vsel %vm648, %v6613, %v6621
      %6625 = vst [vmem:[#allocation3 + $0x110] sm:$0xff] %v6620
      %6626 = vst [vmem:[#allocation3 + $0x118] sm:$0xff] %v6622
      %v6627 = vld [vmem:[#allocation2 + $0x4] sm:$0xff]
      %v6628 = vld [vmem:[#allocation2 + $0xc] sm:$0xff]
      %v6629 = vld [vmem:[#allocation2 + $0x14] sm:$0xf]
      %6633 = vrot.lane.b32.xlu0 %v6627, 107
      %v6634 = vpop.permute.xlu0 %6633
      %6635 = vrot.lane.b32.xlu0 %v6628, 107
      %v6636 = vpop.permute.xlu0 %6635
      %6637 = vrot.lane.b32.xlu0 %v6629, 107
      %v6638 = vpop.permute.xlu0 %6637
      %v6639 = vrot.slane %v6634, 4
      %v6640 = vrot.slane %v6636, 4
      %v6641 = vrot.slane %v6638, 4
      %v6642 = vsel %vm258, %v6639, %v6640
      %v6643 = vsel %vm672, %v6634, %v6642
      %v6644 = vsel %vm258, %v6640, %v6641
      %v6645 = vsel %vm672, %v6636, %v6644
      %6648 = vst [vmem:[#allocation3 + $0x120] sm:$0xff] %v6643
      %6649 = vst [vmem:[#allocation3 + $0x128] sm:$0xff] %v6645
      %v6650 = vld [vmem:[#allocation2 + $0x4] sm:$0xff]
      %v6651 = vld [vmem:[#allocation2 + $0xc] sm:$0xff]
      %v6652 = vld [vmem:[#allocation2 + $0x14] sm:$0xf]
      %6656 = vrot.lane.b32.xlu0 %v6650, 106
      %v6657 = vpop.permute.xlu0 %6656
      %6658 = vrot.lane.b32.xlu0 %v6651, 106
      %v6659 = vpop.permute.xlu0 %6658
      %6660 = vrot.lane.b32.xlu0 %v6652, 106
      %v6661 = vpop.permute.xlu0 %6660
      %v6662 = vrot.slane %v6657, 4
      %v6663 = vrot.slane %v6659, 4
      %v6664 = vrot.slane %v6661, 4
      %v6665 = vsel %vm258, %v6662, %v6663
      %v6666 = vsel %vm696, %v6657, %v6665
      %v6667 = vsel %vm258, %v6663, %v6664
      %v6668 = vsel %vm696, %v6659, %v6667
      %6671 = vst [vmem:[#allocation3 + $0x130] sm:$0xff] %v6666
      %6672 = vst [vmem:[#allocation3 + $0x138] sm:$0xff] %v6668
      %v6673 = vld [vmem:[#allocation2 + $0x4] sm:$0xff]
      %v6674 = vld [vmem:[#allocation2 + $0xc] sm:$0xff]
      %v6675 = vld [vmem:[#allocation2 + $0x14] sm:$0xf]
      %6679 = vrot.lane.b32.xlu0 %v6673, 90
      %v6680 = vpop.permute.xlu0 %6679
      %6681 = vrot.lane.b32.xlu0 %v6674, 90
      %v6682 = vpop.permute.xlu0 %6681
      %6683 = vrot.lane.b32.xlu0 %v6675, 90
      %v6684 = vpop.permute.xlu0 %6683
      %v6685 = vrot.slane %v6680, 4
      %v6686 = vrot.slane %v6682, 4
      %v6687 = vrot.slane %v6684, 4
      %v6688 = vsel %vm258, %v6685, %v6686
      %v6689 = vsel %vm720, %v6680, %v6688
      %v6690 = vsel %vm258, %v6686, %v6687
      %v6691 = vsel %vm720, %v6682, %v6690
      %6694 = vst [vmem:[#allocation3 + $0x140] sm:$0xff] %v6689
      %6695 = vst [vmem:[#allocation3 + $0x148] sm:$0xff] %v6691
      %v6696 = vld [vmem:[#allocation2 + $0x4] sm:$0xff]
      %v6697 = vld [vmem:[#allocation2 + $0xc] sm:$0xff]
      %v6698 = vld [vmem:[#allocation2 + $0x14] sm:$0xf]
      %6702 = vrot.lane.b32.xlu0 %v6696, 89
      %v6703 = vpop.permute.xlu0 %6702
      %6704 = vrot.lane.b32.xlu0 %v6697, 89
      %v6705 = vpop.permute.xlu0 %6704
      %6706 = vrot.lane.b32.xlu0 %v6698, 89
      %v6707 = vpop.permute.xlu0 %6706
      %v6708 = vrot.slane %v6703, 4
      %v6709 = vrot.slane %v6705, 4
      %v6710 = vrot.slane %v6707, 4
      %v6711 = vsel %vm258, %v6708, %v6709
      %v6712 = vsel %vm744, %v6703, %v6711
      %v6713 = vsel %vm258, %v6709, %v6710
      %v6714 = vsel %vm744, %v6705, %v6713
      %6717 = vst [vmem:[#allocation3 + $0x150] sm:$0xff] %v6712
      %6718 = vst [vmem:[#allocation3 + $0x158] sm:$0xff] %v6714
      %v6719 = vld [vmem:[#allocation2 + $0x4] sm:$0xff]
      %v6720 = vld [vmem:[#allocation2 + $0xc] sm:$0xff]
      %v6721 = vld [vmem:[#allocation2 + $0x14] sm:$0xf]
      %6725 = vrot.lane.b32.xlu0 %v6719, 88
      %v6726 = vpop.permute.xlu0 %6725
      %6727 = vrot.lane.b32.xlu0 %v6720, 88
      %v6728 = vpop.permute.xlu0 %6727
      %6729 = vrot.lane.b32.xlu0 %v6721, 88
      %v6730 = vpop.permute.xlu0 %6729
      %v6731 = vrot.slane %v6726, 4
      %v6732 = vrot.slane %v6728, 4
      %v6733 = vrot.slane %v6730, 4
      %v6734 = vsel %vm258, %v6731, %v6732
      %v6735 = vsel %vm768, %v6726, %v6734
      %v6736 = vsel %vm258, %v6732, %v6733
      %v6737 = vsel %vm768, %v6728, %v6736
      %6740 = vst [vmem:[#allocation3 + $0x160] sm:$0xff] %v6735
      %6741 = vst [vmem:[#allocation3 + $0x168] sm:$0xff] %v6737
      %v6742 = vld [vmem:[#allocation2 + $0x4] sm:$0xff]
      %v6743 = vld [vmem:[#allocation2 + $0xc] sm:$0xff]
      %v6744 = vld [vmem:[#allocation2 + $0x14] sm:$0xf]
      %6748 = vrot.lane.b32.xlu0 %v6742, 87
      %v6749 = vpop.permute.xlu0 %6748
      %6750 = vrot.lane.b32.xlu0 %v6743, 87
      %v6751 = vpop.permute.xlu0 %6750
      %6752 = vrot.lane.b32.xlu0 %v6744, 87
      %v6753 = vpop.permute.xlu0 %6752
      %v6754 = vrot.slane %v6749, 4
      %v6755 = vrot.slane %v6751, 4
      %v6756 = vrot.slane %v6753, 4
      %v6757 = vsel %vm258, %v6754, %v6755
      %v6758 = vsel %vm792, %v6749, %v6757
      %v6759 = vsel %vm258, %v6755, %v6756
      %v6760 = vsel %vm792, %v6751, %v6759
      %6763 = vst [vmem:[#allocation3 + $0x170] sm:$0xff] %v6758
      %6764 = vst [vmem:[#allocation3 + $0x178] sm:$0xff] %v6760
      %v6765 = vld [vmem:[#allocation2 + $0x4] sm:$0xff]
      %v6766 = vld [vmem:[#allocation2 + $0xc] sm:$0xff]
      %v6767 = vld [vmem:[#allocation2 + $0x14] sm:$0xf]
      %6771 = vrot.lane.b32.xlu0 %v6765, 86
      %v6772 = vpop.permute.xlu0 %6771
      %6773 = vrot.lane.b32.xlu0 %v6766, 86
      %v6774 = vpop.permute.xlu0 %6773
      %6775 = vrot.lane.b32.xlu0 %v6767, 86
      %v6776 = vpop.permute.xlu0 %6775
      %v6777 = vrot.slane %v6772, 4
      %v6778 = vrot.slane %v6774, 4
      %v6779 = vrot.slane %v6776, 4
      %v6780 = vsel %vm258, %v6777, %v6778
      %v6781 = vsel %vm816, %v6772, %v6780
      %v6782 = vsel %vm258, %v6778, %v6779
      %v6783 = vsel %vm816, %v6774, %v6782
      %6786 = vst [vmem:[#allocation3 + $0x180] sm:$0xff] %v6781
      %6787 = vst [vmem:[#allocation3 + $0x188] sm:$0xff] %v6783
      %s6788 = scalar_lea.vmem %s2, 48
      %v6789 = vld [vmem:[%s6788] sm:$0xff]
      %v6790 = vld [vmem:[#allocation3] sm:$0xff]
      %v6791 = vld [vmem:[#allocation3 + $0x8] sm:$0xff]
      %v6792 = vld [vmem:[#allocation3 + $0x10] sm:$0xff]
      %v6793 = vld [vmem:[#allocation3 + $0x18] sm:$0xff]
      %v6794 = vld [vmem:[#allocation3 + $0x20] sm:$0xff]
      %v6795 = vld [vmem:[#allocation3 + $0x28] sm:$0xff]
      %v6796 = vld [vmem:[#allocation3 + $0x30] sm:$0xff]
      %v6797 = vld [vmem:[#allocation3 + $0x38] sm:$0xff]
      %v6798 = vld [vmem:[#allocation3 + $0x40] sm:$0xff]
      %v6799 = vld [vmem:[#allocation3 + $0x48] sm:$0xff]
      %v6800 = vld [vmem:[#allocation3 + $0x50] sm:$0xff]
      %v6801 = vld [vmem:[#allocation3 + $0x58] sm:$0xff]
      %v6802 = vld [vmem:[#allocation3 + $0x60] sm:$0xff]
      %v6803 = vld [vmem:[#allocation3 + $0x68] sm:$0xff]
      %v6804 = vld [vmem:[#allocation3 + $0x70] sm:$0xff]
      %v6805 = vld [vmem:[#allocation3 + $0x78] sm:$0xff]
      %v6806 = vld [vmem:[#allocation3 + $0x80] sm:$0xff]
      %v6807 = vld [vmem:[#allocation3 + $0x88] sm:$0xff]
      %v6808 = vld [vmem:[#allocation3 + $0x90] sm:$0xff]
      %v6809 = vld [vmem:[#allocation3 + $0x98] sm:$0xff]
      %v6810 = vld [vmem:[#allocation3 + $0xa0] sm:$0xff]
      %v6811 = vld [vmem:[#allocation3 + $0xa8] sm:$0xff]
      %v6812 = vld [vmem:[#allocation3 + $0xb0] sm:$0xff]
      %v6813 = vld [vmem:[#allocation3 + $0xb8] sm:$0xff]
      %v6814 = vld [vmem:[#allocation3 + $0xc0] sm:$0xff]
      %v6815 = vld [vmem:[#allocation3 + $0xc8] sm:$0xff]
      %v6816 = vld [vmem:[#allocation3 + $0xd0] sm:$0xff]
      %v6817 = vld [vmem:[#allocation3 + $0xd8] sm:$0xff]
      %v6818 = vld [vmem:[#allocation3 + $0xe0] sm:$0xff]
      %v6819 = vld [vmem:[#allocation3 + $0xe8] sm:$0xff]
      %v6820 = vld [vmem:[#allocation3 + $0xf0] sm:$0xff]
      %v6821 = vld [vmem:[#allocation3 + $0xf8] sm:$0xff]
      %v6822 = vld [vmem:[#allocation3 + $0x100] sm:$0xff]
      %v6823 = vld [vmem:[#allocation3 + $0x108] sm:$0xff]
      %v6824 = vld [vmem:[#allocation3 + $0x110] sm:$0xff]
      %v6825 = vld [vmem:[#allocation3 + $0x118] sm:$0xff]
      %v6826 = vld [vmem:[#allocation3 + $0x120] sm:$0xff]
      %v6827 = vld [vmem:[#allocation3 + $0x128] sm:$0xff]
      %v6828 = vld [vmem:[#allocation3 + $0x130] sm:$0xff]
      %v6829 = vld [vmem:[#allocation3 + $0x138] sm:$0xff]
      %v6830 = vld [vmem:[#allocation3 + $0x140] sm:$0xff]
      %v6831 = vld [vmem:[#allocation3 + $0x148] sm:$0xff]
      %v6832 = vld [vmem:[#allocation3 + $0x150] sm:$0xff]
      %v6833 = vld [vmem:[#allocation3 + $0x158] sm:$0xff]
      %v6834 = vld [vmem:[#allocation3 + $0x160] sm:$0xff]
      %v6835 = vld [vmem:[#allocation3 + $0x168] sm:$0xff]
      %v6836 = vld [vmem:[#allocation3 + $0x170] sm:$0xff]
      %v6837 = vld [vmem:[#allocation3 + $0x178] sm:$0xff]
      %v6838 = vld [vmem:[#allocation3 + $0x180] sm:$0xff]
      %v6839 = vld [vmem:[#allocation3 + $0x188] sm:$0xff]
      %s6840 = scalar_lea.vmem %s3, 48
      %v6841 = vld [vmem:[%s6840] sm:$0xff]
      %6843 = vset.pattern.permute.xlu0 0
      %6844 = vperm.xlu0 %6843, %v6841
      %v6845 = vpop.permute.xlu0 %6844
      %v6848 = vunpack.c.l.b16 %v6789
      %v6849 = vunpack.c.h.b16 %v6789
      %v6850 = vpack.c.b16 %v6848, %v6848
      %v6851 = vpack.c.b16 %v6849, %v6849
      %v6903 = vunpack.c.l.b16 %v6790
      %v6904 = vunpack.c.h.b16 %v6790
      %v6905 = vunpack.c.l.b16 %v6791
      %v6906 = vunpack.c.h.b16 %v6791
      %v6907 = vunpack.c.l.b16 %v6792
      %v6908 = vunpack.c.h.b16 %v6792
      %v6909 = vunpack.c.l.b16 %v6793
      %v6910 = vunpack.c.h.b16 %v6793
      %v6911 = vunpack.c.l.b16 %v6794
      %v6912 = vunpack.c.h.b16 %v6794
      %v6913 = vunpack.c.l.b16 %v6795
      %v6914 = vunpack.c.h.b16 %v6795
      %v6915 = vunpack.c.l.b16 %v6796
      %v6916 = vunpack.c.h.b16 %v6796
      %v6917 = vunpack.c.l.b16 %v6797
      %v6918 = vunpack.c.h.b16 %v6797
      %v6919 = vunpack.c.l.b16 %v6798
      %v6920 = vunpack.c.h.b16 %v6798
      %v6921 = vunpack.c.l.b16 %v6799
      %v6922 = vunpack.c.h.b16 %v6799
      %v6923 = vunpack.c.l.b16 %v6800
      %v6924 = vunpack.c.h.b16 %v6800
      %v6925 = vunpack.c.l.b16 %v6801
      %v6926 = vunpack.c.h.b16 %v6801
      %v6927 = vunpack.c.l.b16 %v6802
      %v6928 = vunpack.c.h.b16 %v6802
      %v6929 = vunpack.c.l.b16 %v6803
      %v6930 = vunpack.c.h.b16 %v6803
      %v6931 = vunpack.c.l.b16 %v6804
      %v6932 = vunpack.c.h.b16 %v6804
      %v6933 = vunpack.c.l.b16 %v6805
      %v6934 = vunpack.c.h.b16 %v6805
      %v6935 = vunpack.c.l.b16 %v6806
      %v6936 = vunpack.c.h.b16 %v6806
      %v6937 = vunpack.c.l.b16 %v6807
      %v6938 = vunpack.c.h.b16 %v6807
      %v6939 = vunpack.c.l.b16 %v6808
      %v6940 = vunpack.c.h.b16 %v6808
      %v6941 = vunpack.c.l.b16 %v6809
      %v6942 = vunpack.c.h.b16 %v6809
      %v6943 = vunpack.c.l.b16 %v6810
      %v6944 = vunpack.c.h.b16 %v6810
      %v6945 = vunpack.c.l.b16 %v6811
      %v6946 = vunpack.c.h.b16 %v6811
      %v6947 = vunpack.c.l.b16 %v6812
      %v6948 = vunpack.c.h.b16 %v6812
      %v6949 = vunpack.c.l.b16 %v6813
      %v6950 = vunpack.c.h.b16 %v6813
      %v6951 = vunpack.c.l.b16 %v6814
      %v6952 = vunpack.c.h.b16 %v6814
      %v6953 = vunpack.c.l.b16 %v6815
      %v6954 = vunpack.c.h.b16 %v6815
      %v6955 = vunpack.c.l.b16 %v6816
      %v6956 = vunpack.c.h.b16 %v6816
      %v6957 = vunpack.c.l.b16 %v6817
      %v6958 = vunpack.c.h.b16 %v6817
      %v6959 = vunpack.c.l.b16 %v6818
      %v6960 = vunpack.c.h.b16 %v6818
      %v6961 = vunpack.c.l.b16 %v6819
      %v6962 = vunpack.c.h.b16 %v6819
      %v6963 = vunpack.c.l.b16 %v6820
      %v6964 = vunpack.c.h.b16 %v6820
      %v6965 = vunpack.c.l.b16 %v6821
      %v6966 = vunpack.c.h.b16 %v6821
      %v6967 = vunpack.c.l.b16 %v6822
      %v6968 = vunpack.c.h.b16 %v6822
      %v6969 = vunpack.c.l.b16 %v6823
      %v6970 = vunpack.c.h.b16 %v6823
      %v6971 = vunpack.c.l.b16 %v6824
      %v6972 = vunpack.c.h.b16 %v6824
      %v6973 = vunpack.c.l.b16 %v6825
      %v6974 = vunpack.c.h.b16 %v6825
      %v6975 = vunpack.c.l.b16 %v6826
      %v6976 = vunpack.c.h.b16 %v6826
      %v6977 = vunpack.c.l.b16 %v6827
      %v6978 = vunpack.c.h.b16 %v6827
      %v6979 = vunpack.c.l.b16 %v6828
      %v6980 = vunpack.c.h.b16 %v6828
      %v6981 = vunpack.c.l.b16 %v6829
      %v6982 = vunpack.c.h.b16 %v6829
      %v6983 = vunpack.c.l.b16 %v6830
      %v6984 = vunpack.c.h.b16 %v6830
      %v6985 = vunpack.c.l.b16 %v6831
      %v6986 = vunpack.c.h.b16 %v6831
      %v6987 = vunpack.c.l.b16 %v6832
      %v6988 = vunpack.c.h.b16 %v6832
      %v6989 = vunpack.c.l.b16 %v6833
      %v6990 = vunpack.c.h.b16 %v6833
      %v6991 = vunpack.c.l.b16 %v6834
      %v6992 = vunpack.c.h.b16 %v6834
      %v6993 = vunpack.c.l.b16 %v6835
      %v6994 = vunpack.c.h.b16 %v6835
      %v6995 = vunpack.c.l.b16 %v6836
      %v6996 = vunpack.c.h.b16 %v6836
      %v6997 = vunpack.c.l.b16 %v6837
      %v6998 = vunpack.c.h.b16 %v6837
      %v6999 = vunpack.c.l.b16 %v6838
      %v7000 = vunpack.c.h.b16 %v6838
      %v7001 = vunpack.c.l.b16 %v6839
      %v7002 = vunpack.c.h.b16 %v6839
      %v7003 = vpack.c.b16 %v6907, %v6903
      %v7004 = vpack.c.b16 %v6908, %v6904
      %v7005 = vpack.c.b16 %v6909, %v6905
      %v7006 = vpack.c.b16 %v6910, %v6906
      %v7007 = vpack.c.b16 %v6915, %v6911
      %v7008 = vpack.c.b16 %v6916, %v6912
      %v7009 = vpack.c.b16 %v6917, %v6913
      %v7010 = vpack.c.b16 %v6918, %v6914
      %v7011 = vpack.c.b16 %v6923, %v6919
      %v7012 = vpack.c.b16 %v6924, %v6920
      %v7013 = vpack.c.b16 %v6925, %v6921
      %v7014 = vpack.c.b16 %v6926, %v6922
      %v7015 = vpack.c.b16 %v6931, %v6927
      %v7016 = vpack.c.b16 %v6932, %v6928
      %v7017 = vpack.c.b16 %v6933, %v6929
      %v7018 = vpack.c.b16 %v6934, %v6930
      %v7019 = vpack.c.b16 %v6939, %v6935
      %v7020 = vpack.c.b16 %v6940, %v6936
      %v7021 = vpack.c.b16 %v6941, %v6937
      %v7022 = vpack.c.b16 %v6942, %v6938
      %v7023 = vpack.c.b16 %v6947, %v6943
      %v7024 = vpack.c.b16 %v6948, %v6944
      %v7025 = vpack.c.b16 %v6949, %v6945
      %v7026 = vpack.c.b16 %v6950, %v6946
      %v7027 = vpack.c.b16 %v6955, %v6951
      %v7028 = vpack.c.b16 %v6956, %v6952
      %v7029 = vpack.c.b16 %v6957, %v6953
      %v7030 = vpack.c.b16 %v6958, %v6954
      %v7031 = vpack.c.b16 %v6963, %v6959
      %v7032 = vpack.c.b16 %v6964, %v6960
      %v7033 = vpack.c.b16 %v6965, %v6961
      %v7034 = vpack.c.b16 %v6966, %v6962
      %v7035 = vpack.c.b16 %v6971, %v6967
      %v7036 = vpack.c.b16 %v6972, %v6968
      %v7037 = vpack.c.b16 %v6973, %v6969
      %v7038 = vpack.c.b16 %v6974, %v6970
      %v7039 = vpack.c.b16 %v6979, %v6975
      %v7040 = vpack.c.b16 %v6980, %v6976
      %v7041 = vpack.c.b16 %v6981, %v6977
      %v7042 = vpack.c.b16 %v6982, %v6978
      %v7043 = vpack.c.b16 %v6987, %v6983
      %v7044 = vpack.c.b16 %v6988, %v6984
      %v7045 = vpack.c.b16 %v6989, %v6985
      %v7046 = vpack.c.b16 %v6990, %v6986
      %v7047 = vpack.c.b16 %v6995, %v6991
      %v7048 = vpack.c.b16 %v6996, %v6992
      %v7049 = vpack.c.b16 %v6997, %v6993
      %v7050 = vpack.c.b16 %v6998, %v6994
      %v7051 = vpack.c.b16 %v6999, %v6999
      %v7052 = vpack.c.b16 %v7000, %v7000
      %v7053 = vpack.c.b16 %v7001, %v7001
      %v7054 = vpack.c.b16 %v7002, %v7002
      %v7104 = vsel %vm1137, %v6851, 0
      %v7107 = vsel %vm1141, %v7051, 0
      %v7110 = vsel %vm1141, %v7052, 0
      %v7113 = vsel %vm1141, %v7053, 0
      %v7116 = vsel %vm1141, %v7054, 0
      %7118 = vmatprep.subr.bf16.mxu0 %v7032
      %7119 = vmatpush1.bf16.msra.mxu0 %v7031
      %7120 = vmatprep.subr.bf16.mxu0 %v7028
      %7121 = vmatpush1.bf16.msra.mxu0 %v7027
      %7122 = vmatprep.subr.bf16.mxu0 %v7024
      %7123 = vmatpush1.bf16.msra.mxu0 %v7023
      %7124 = vmatprep.subr.bf16.mxu0 %v7020
      %7125 = vmatpush1.bf16.msra.mxu0 %v7019
      %7126 = vmatprep.subr.bf16.mxu0 %v7016
      %7127 = vmatpush1.bf16.msra.mxu0 %v7015
      %7128 = vmatprep.subr.bf16.mxu0 %v7012
      %7129 = vmatpush1.bf16.msra.mxu0 %v7011
      %7130 = vmatprep.subr.bf16.mxu0 %v7008
      %7131 = vmatpush1.bf16.msra.mxu0 %v7007
      %7132 = vmatprep.subr.bf16.mxu0 %v7004
      %7133 = vmatpush1.bf16.msra.mxu0 %v7003
      %7134 = vmatprep.subr.bf16.mxu0 0
      %7135 = vmatpush2.bf16.msra.mxu0 0
      %7136 = vmatprep.subr.bf16.mxu0 0
      %7137 = vmatpush2.bf16.msra.mxu0 0
      %7138 = vmatprep.subr.bf16.mxu0 0
      %7139 = vmatpush2.bf16.msra.mxu0 0
      %7140 = vmatprep.subr.bf16.mxu0 %v7110
      %7141 = vmatpush2.bf16.msra.mxu0 %v7107
      %7142 = vmatprep.subr.bf16.mxu0 %v7048
      %7143 = vmatpush2.bf16.msra.mxu0 %v7047
      %7144 = vmatprep.subr.bf16.mxu0 %v7044
      %7145 = vmatpush2.bf16.msra.mxu0 %v7043
      %7146 = vmatprep.subr.bf16.mxu0 %v7040
      %7147 = vmatpush2.bf16.msra.mxu0 %v7039
      %7148 = vmatprep.subr.bf16.mxu0 %v7036
      %7149 = vmatpush2.bf16.msra.mxu0 %v7035
      %7150 = vmatprep.mubr.bf16.mxu0 %v7104
      %7151 = vmatmul.mubr.bf16.gmra.mxu0 %v6850
      %v7152 = vpop.f32.mrf.mxu0
      %v7153 = vadd.f32 %v6845, %v7152
      %v7154 = vpop.f32.mrf.mxu0
      %v7155 = vadd.f32 %v6845, %v7154
      %v7156 = vpop.f32.mrf.mxu0
      %v7157 = vpop.f32.mrf.mxu0
      %7158 = vdwg.mxu0
      %7159 = vmatprep.subr.bf16.mxu0 %v7034
      %7160 = vmatpush1.bf16.msra.mxu0 %v7033
      %7161 = vmatprep.subr.bf16.mxu0 %v7030
      %7162 = vmatpush1.bf16.msra.mxu0 %v7029
      %7163 = vmatprep.subr.bf16.mxu0 %v7026
      %7164 = vmatpush1.bf16.msra.mxu0 %v7025
      %7165 = vmatprep.subr.bf16.mxu0 %v7022
      %7166 = vmatpush1.bf16.msra.mxu0 %v7021
      %7167 = vmatprep.subr.bf16.mxu0 %v7018
      %7168 = vmatpush1.bf16.msra.mxu0 %v7017
      %7169 = vmatprep.subr.bf16.mxu0 %v7014
      %7170 = vmatpush1.bf16.msra.mxu0 %v7013
      %7171 = vmatprep.subr.bf16.mxu0 %v7010
      %7172 = vmatpush1.bf16.msra.mxu0 %v7009
      %7173 = vmatprep.subr.bf16.mxu0 %v7006
      %7174 = vmatpush1.bf16.msra.mxu0 %v7005
      %7175 = vmatprep.subr.bf16.mxu0 0
      %7176 = vmatpush2.bf16.msra.mxu0 0
      %7177 = vmatprep.subr.bf16.mxu0 0
      %7178 = vmatpush2.bf16.msra.mxu0 0
      %7179 = vmatprep.subr.bf16.mxu0 0
      %7180 = vmatpush2.bf16.msra.mxu0 0
      %7181 = vmatprep.subr.bf16.mxu0 %v7116
      %7182 = vmatpush2.bf16.msra.mxu0 %v7113
      %7183 = vmatprep.subr.bf16.mxu0 %v7050
      %7184 = vmatpush2.bf16.msra.mxu0 %v7049
      %7185 = vmatprep.subr.bf16.mxu0 %v7046
      %7186 = vmatpush2.bf16.msra.mxu0 %v7045
      %7187 = vmatprep.subr.bf16.mxu0 %v7042
      %7188 = vmatpush2.bf16.msra.mxu0 %v7041
      %7189 = vmatprep.subr.bf16.mxu0 %v7038
      %7190 = vmatpush2.bf16.msra.mxu0 %v7037
      %7191 = vmatprep.mubr.bf16.mxu0 %v7104
      %7192 = vmatmul.mubr.bf16.gmra.mxu0 %v6850
      %v7193 = vpop.f32.mrf.mxu0
      %v7194 = vadd.f32 %v6845, %v7193
      %v7195 = vpop.f32.mrf.mxu0
      %v7196 = vadd.f32 %v6845, %v7195
      %v7197 = vpop.f32.mrf.mxu0
      %v7198 = vpop.f32.mrf.mxu0
      %7199 = vdwg.mxu0
      %v7204 = vcombine.low %v7153, %v7155
      %v7205 = vcombine.low %v7194, %v7196
      %v7207 = vunpack.c.l.s4 1966171168
      %v7208 = vunpack.c.0.s8 %v7207
      %v7209 = vlaneseq
      %v7210 = vshrl.u32 %v7209, 7
      %v7211 = vsub.s32 %v7208, %v7210
      %v7212 = vrot.slane %v7204, %v7211
      %v7214 = vunpack.c.l.s4 1966171168
      %v7215 = vunpack.c.0.s8 %v7214
      %v7216 = vlaneseq
      %v7217 = vshrl.u32 %v7216, 7
      %v7218 = vsub.s32 %v7215, %v7217
      %v7219 = vrot.slane %v7205, %v7218
      %v7220 = vcombine.low %v7212, %v7219
      %v7222 = vunpack.c.l.s4 1966171168
      %v7223 = vunpack.c.0.s8 %v7222
      %v7224 = vlaneseq
      %v7225 = vshrl.u32 %v7224, 7
      %v7226 = vsub.s32 %v7223, %v7225
      %v7227 = vrot.slane %v7220, %v7226
      %v7229 = vlaneseq
      %vm7230 = vcmp.ge.s32.totalorder %v7229, 0
      %vm7231 = vcmp.lt.s32.totalorder %v7229, 512
      %vm7232 = vmand %vm7230, %vm7231
      %7233 = vst.msk [vmem:[%s195] sm:$0xf] %vm7232, %v7227
      %p7234 = scmp.lt.s32.totalorder %s15, 1
      %s7235 = scalar_select %p7234, %s15, 1
      %s7236 = smul.addr %s7235, 4
      %s7237 = scalar_lea.vmem %s4, %s7236
      // Predicated region
      $region37: #{outblock_pallas.1} parent=35 // pred_check
        %p7238 = pneg %p122
      $region38: #{outblock_pallas.1} parent=35 // pred_check_branch
        %7240 = sbr.rel (%p7238) target = $region40
      $region39: #{outblock_pallas.1} parent=35 // pred_region
        _
      $region40: #{outblock_pallas.1} parent=35 // pred_fallthru
        _
    $region36: #{outblock_pallas.1} parent=5 // pred_fallthru
      _
    %p7241 = scmp.le.s32.totalorder 2, %s10
    // Predicated region
    $region41: #{outblock_pallas.1} parent=5 // pred_check
      %p7242 = pneg %p7241
    $region42: #{outblock_pallas.1} parent=5 // pred_check_branch
      %7244 = sbr.rel (%p7242) target = $region44
    $region43: #{outblock_pallas.1} parent=5 // pred_region
      %s7245 = ssub.s32 %s10, 2
      // Predicated region
      $region45: #{outblock_pallas.1} parent=43 // pred_check
        %p7246 = pneg %p128
      $region46: #{outblock_pallas.1} parent=43 // pred_check_branch
        %7248 = sbr.rel (%p7246) target = $region48
      $region47: #{outblock_pallas.1} parent=43 // pred_region
        %p7249 = scmp.lt.s32.totalorder %s16, 1
        %s7250 = scalar_select %p7249, %s16, 1
        %s7251 = smul.addr %s7250, 4
        %s7252 = scalar_lea.vmem %s4, %s7251
      $region48: #{outblock_pallas.1} parent=43 // pred_fallthru
        _
    $region44: #{outblock_pallas.1} parent=5 // pred_fallthru
      _
  $region6: #{outblock_pallas.1} parent=0 // loop_footer
    %s14 = sadd.s32 1, %s10
  $region7: #{outblock_pallas.1} parent=0 // loop_footer_branch
    %9 = sbr.rel target = $region3
  $region8: #{outblock_pallas.1} parent=0 // loop_exit
    _

</llo_original>
